<compile_context>
chip_gen: v7x
topology: tpu7x:2x2x1
jax: 0.10.0
libtpu: 0.0.40
codegen_flags: <defaults>
</compile_context>

<pallas_src>
import numpy as np
import jax
import jax.numpy as jnp
from jax.experimental import pallas as pl
from jax.experimental.pallas import tpu as pltpu


def _rope_kernel(ids_ref, hi_ref, lo_ref, cos_ref, sin_ref):
    n_axes = ids_ref.shape[-1]
    pos = ids_ref[...].astype(jnp.float32)           # [T, n_axes], in-kernel cast (VPU)

    def axis_term(i):
        p = pos[:, i:i + 1]                          # [T, 1] lane-broadcast against [1, D]
        return p * hi_ref[i:i + 1, :] + p * lo_ref[i:i + 1, :]

    ang = axis_term(0)
    for i in range(1, n_axes):                       # n_axes is tiny & static (unrolled)
        ang = ang + axis_term(i)                     # other axes' columns are exact zeros

    cos_ref[...] = jnp.cos(ang)                      # EUP pass
    sin_ref[...] = jnp.sin(ang)                      # EUP pass


def _is_two_core_chip():
    """v7x has 2 TensorCores per chip; v5e/v6e have 1 (defensive: default False)."""
    try:
        kind = jax.devices()[0].device_kind.lower()
    except Exception:
        return False
    return "v7" in kind


def _pick_tile_s(S, requested, two_cores):
    s_pad = pl.cdiv(S, 8) * 8                        # rows padded to f32 sublane granularity
    t = min(max(int(requested), 8), 2304, s_pad)     # big tiles: this kernel is step-overhead bound
    t = max(8, (t // 8) * 8)
    if two_cores and s_pad > 8:
        # Force an even step count (>= 2) so the parallel grid axis splits evenly over 2 TCs.
        steps = pl.cdiv(S, t)
        if steps < 2 or steps % 2 == 1:
            steps = max(2, steps + (steps % 2))
            t = max(8, pl.cdiv(pl.cdiv(S, steps), 8) * 8)
    return t


def flux_pos_embed(ids, theta, axes_dim, *, tile_s=2048):
    """JAX/Pallas equivalent of FluxPosEmbed(theta, axes_dim).forward(ids)."""
    S, n_axes = ids.shape
    assert len(axes_dim) == n_axes
    assert all(d % 2 == 0 for d in axes_dim)
    D = int(sum(axes_dim))
    Dp = max(128, pl.cdiv(D, 128) * 128)             # lane-dense output stores; slice back below

    # ---- host-side constants (float64, mirroring torch's freqs_dtype), interleaved layout ----
    coef64 = np.zeros((n_axes, Dp), dtype=np.float64)
    off = 0
    for i, d in enumerate(axes_dim):
        f = 1.0 / (float(theta) ** (np.arange(0, d, 2, dtype=np.float64)[: d // 2] / d))
        coef64[i, off:off + d] = np.repeat(f, 2)      # repeat_interleave(2) baked in
        off += d

    # hi/lo split: hi keeps <= 9 significand bits (low 15 mantissa bits zeroed) so pos*hi is
    # exact in f32 for integer |pos| < 2^15; lo carries the remaining f64 mass.
    c32 = coef64.astype(np.float32)
    hi_np = (c32.view(np.uint32) & np.uint32(0xFFFF8000)).view(np.float32)
    lo_np = (coef64 - hi_np.astype(np.float64)).astype(np.float32)
    hi = jnp.asarray(hi_np)
    lo = jnp.asarray(lo_np)

    # TODO(synk): torch forms the outer product in float64 and takes cos/sin of the f32-cast
    # angle; TPU has no f64 vector path, so the hi/lo-compensated f32 angle (and EUP cos/sin)
    # can still differ by ~1 ulp of the angle for very large position ids.
    if jnp.issubdtype(ids.dtype, jnp.floating):
        ids_in = ids.astype(jnp.float32)
    else:
        ids_in = ids.astype(jnp.int32)               # cast to f32 happens inside the kernel

    t = _pick_tile_s(S, tile_s, _is_two_core_chip())
    grid = (pl.cdiv(S, t),)

    cost = pl.CostEstimate(
        flops=int(S) * Dp * 4 * n_axes,
        transcendentals=2 * int(S) * Dp,
        bytes_accessed=int(S) * n_axes * 4 + 2 * int(S) * Dp * 4 + 2 * n_axes * Dp * 4,
    )

    cos_out, sin_out = pl.pallas_call(
        _rope_kernel,
        out_shape=(jax.ShapeDtypeStruct((S, Dp), jnp.float32),
                   jax.ShapeDtypeStruct((S, Dp), jnp.float32)),
        grid_spec=pltpu.PrefetchScalarGridSpec(
            num_scalar_prefetch=0,
            grid=grid,
            in_specs=[
                pl.BlockSpec((t, n_axes), lambda i: (i, 0)),    # ids tile
                pl.BlockSpec((n_axes, Dp), lambda i: (0, 0)),   # interleaved inv-freqs (hi)
                pl.BlockSpec((n_axes, Dp), lambda i: (0, 0)),   # interleaved inv-freqs (lo)
            ],
            out_specs=[
                pl.BlockSpec((t, Dp), lambda i: (i, 0)),
                pl.BlockSpec((t, Dp), lambda i: (i, 0)),
            ],
        ),
        compiler_params=pltpu.CompilerParams(dimension_semantics=("parallel",)),
        cost_estimate=cost,
    )(ids_in, hi, lo)

    if Dp != D:
        cos_out = cos_out[:, :D]
        sin_out = sin_out[:, :D]
    return cos_out, sin_out


if __name__ == "__main__":
    key = jax.random.PRNGKey(0)
    theta = 10000
    axes_dim = [16, 56, 56]          # production FLUX dims -> D = 128 (lane-dense outputs)
    S = 256
    n_axes = len(axes_dim)

    ids = jax.random.randint(key, (S, n_axes), 0, 64, dtype=jnp.int32)

    cos_j, sin_j = flux_pos_embed(ids, theta, axes_dim)
    jax.block_until_ready((cos_j, sin_j))

    # --- pure numpy reference mirroring the PyTorch module (f64 outer, f32 cos/sin) ---
    ids_np = np.asarray(ids)
    cos_ref_l, sin_ref_l = [], []
    for i, d in enumerate(axes_dim):
        f = 1.0 / (float(theta) ** (np.arange(0, d, 2, dtype=np.float64)[: d // 2] / d))
        fr = np.outer(ids_np[:, i].astype(np.float64), f).astype(np.float32)
        cos_ref_l.append(np.repeat(np.cos(fr), 2, axis=1))
        sin_ref_l.append(np.repeat(np.sin(fr), 2, axis=1))
    cos_ref = np.concatenate(cos_ref_l, axis=-1).astype(np.float32)
    sin_ref = np.concatenate(sin_ref_l, axis=-1).astype(np.float32)

    np.testing.assert_allclose(np.asarray(cos_j), cos_ref, atol=5e-5, rtol=5e-5)
    np.testing.assert_allclose(np.asarray(sin_j), sin_ref, atol=5e-5, rtol=5e-5)
    print("KERNEL_OK")
</pallas_src>

<mosaic_0001>
module attributes {stable_mosaic.version = 11 : i64} {
  func.func @_rope_kernel(%arg0: i32, %arg1: memref<256x3xi32, #tpu.memory_space<vmem>>, %arg2: memref<3x128xf32, #tpu.memory_space<vmem>>, %arg3: memref<3x128xf32, #tpu.memory_space<vmem>>, %arg4: memref<256x128xf32, #tpu.memory_space<vmem>>, %arg5: memref<256x128xf32, #tpu.memory_space<vmem>>) attributes {dimension_semantics = [#tpu.dimension_semantics<parallel>], iteration_bounds = array<i64: 1>, scalar_prefetch = 0 : i64, scratch_operands = 0 : i64, tpu.core_type = #tpu.core_type<tc>, window_params = [{transform_indices = @transform_0, window_bounds = array<i64: 256, 3>}, {pipeline_mode = #tpu.pipeline_mode<synchronous>, transform_indices = @transform_1, window_bounds = array<i64: 3, 128>}, {pipeline_mode = #tpu.pipeline_mode<synchronous>, transform_indices = @transform_2, window_bounds = array<i64: 3, 128>}, {transform_indices = @transform_3, window_bounds = array<i64: 256, 128>}, {transform_indices = @transform_4, window_bounds = array<i64: 256, 128>}]} {
    %c0 = arith.constant 0 : index
    %c0_0 = arith.constant 0 : index
    %0 = vector.load %arg1[%c0, %c0_0] : memref<256x3xi32, #tpu.memory_space<vmem>>, vector<256x3xi32>
    %1 = arith.sitofp %0 : vector<256x3xi32> to vector<256x3xf32>
    %2 = vector.extract_strided_slice %1 {offsets = [0, 0], sizes = [256, 1], strides = [1, 1]} : vector<256x3xf32> to vector<256x1xf32>
    %c0_1 = arith.constant 0 : index
    %c0_2 = arith.constant 0 : index
    %3 = vector.load %arg2[%c0_1, %c0_2] : memref<3x128xf32, #tpu.memory_space<vmem>>, vector<1x128xf32>
    %4 = vector.broadcast %2 : vector<256x1xf32> to vector<256x128xf32>
    %5 = vector.broadcast %3 : vector<1x128xf32> to vector<256x128xf32>
    %6 = arith.mulf %4, %5 : vector<256x128xf32>
    %c0_3 = arith.constant 0 : index
    %c0_4 = arith.constant 0 : index
    %7 = vector.load %arg3[%c0_3, %c0_4] : memref<3x128xf32, #tpu.memory_space<vmem>>, vector<1x128xf32>
    %8 = vector.broadcast %2 : vector<256x1xf32> to vector<256x128xf32>
    %9 = vector.broadcast %7 : vector<1x128xf32> to vector<256x128xf32>
    %10 = arith.mulf %8, %9 : vector<256x128xf32>
    %11 = arith.addf %6, %10 : vector<256x128xf32>
    %12 = vector.extract_strided_slice %1 {offsets = [0, 1], sizes = [256, 1], strides = [1, 1]} : vector<256x3xf32> to vector<256x1xf32>
    %c1 = arith.constant 1 : index
    %c0_5 = arith.constant 0 : index
    %13 = vector.load %arg2[%c1, %c0_5] : memref<3x128xf32, #tpu.memory_space<vmem>>, vector<1x128xf32>
    %14 = vector.broadcast %12 : vector<256x1xf32> to vector<256x128xf32>
    %15 = vector.broadcast %13 : vector<1x128xf32> to vector<256x128xf32>
    %16 = arith.mulf %14, %15 : vector<256x128xf32>
    %c1_6 = arith.constant 1 : index
    %c0_7 = arith.constant 0 : index
    %17 = vector.load %arg3[%c1_6, %c0_7] : memref<3x128xf32, #tpu.memory_space<vmem>>, vector<1x128xf32>
    %18 = vector.broadcast %12 : vector<256x1xf32> to vector<256x128xf32>
    %19 = vector.broadcast %17 : vector<1x128xf32> to vector<256x128xf32>
    %20 = arith.mulf %18, %19 : vector<256x128xf32>
    %21 = arith.addf %16, %20 : vector<256x128xf32>
    %22 = arith.addf %11, %21 : vector<256x128xf32>
    %23 = vector.extract_strided_slice %1 {offsets = [0, 2], sizes = [256, 1], strides = [1, 1]} : vector<256x3xf32> to vector<256x1xf32>
    %c2 = arith.constant 2 : index
    %c0_8 = arith.constant 0 : index
    %24 = vector.load %arg2[%c2, %c0_8] : memref<3x128xf32, #tpu.memory_space<vmem>>, vector<1x128xf32>
    %25 = vector.broadcast %23 : vector<256x1xf32> to vector<256x128xf32>
    %26 = vector.broadcast %24 : vector<1x128xf32> to vector<256x128xf32>
    %27 = arith.mulf %25, %26 : vector<256x128xf32>
    %c2_9 = arith.constant 2 : index
    %c0_10 = arith.constant 0 : index
    %28 = vector.load %arg3[%c2_9, %c0_10] : memref<3x128xf32, #tpu.memory_space<vmem>>, vector<1x128xf32>
    %29 = vector.broadcast %23 : vector<256x1xf32> to vector<256x128xf32>
    %30 = vector.broadcast %28 : vector<1x128xf32> to vector<256x128xf32>
    %31 = arith.mulf %29, %30 : vector<256x128xf32>
    %32 = arith.addf %27, %31 : vector<256x128xf32>
    %33 = arith.addf %22, %32 : vector<256x128xf32>
    %34 = math.cos %33 : vector<256x128xf32>
    %c0_11 = arith.constant 0 : index
    %c0_12 = arith.constant 0 : index
    %35 = vector.load %arg4[%c0_11, %c0_12] : memref<256x128xf32, #tpu.memory_space<vmem>>, vector<256x128xf32>
    tpu.vector_store %arg4[%c0_11, %c0_12], %34 {strides = array<i32>} : memref<256x128xf32, #tpu.memory_space<vmem>>, vector<256x128xf32>,
    %36 = math.sin %33 : vector<256x128xf32>
    %c0_13 = arith.constant 0 : index
    %c0_14 = arith.constant 0 : index
    %37 = vector.load %arg5[%c0_13, %c0_14] : memref<256x128xf32, #tpu.memory_space<vmem>>, vector<256x128xf32>
    tpu.vector_store %arg5[%c0_13, %c0_14], %36 {strides = array<i32>} : memref<256x128xf32, #tpu.memory_space<vmem>>, vector<256x128xf32>,
    return
  }
  func.func @transform_0(%arg0: i32) -> (i32, i32) {
    %c0_i32 = arith.constant 0 : i32
    %c0_i32_0 = arith.constant 0 : i32
    return %arg0, %c0_i32 : i32, i32
  }
  func.func @transform_1(%arg0: i32) -> (i32, i32) {
    %c0_i32 = arith.constant 0 : i32
    %c0_i32_0 = arith.constant 0 : i32
    %c0_i32_1 = arith.constant 0 : i32
    return %c0_i32, %c0_i32_0 : i32, i32
  }
  func.func @transform_2(%arg0: i32) -> (i32, i32) {
    %c0_i32 = arith.constant 0 : i32
    %c0_i32_0 = arith.constant 0 : i32
    %c0_i32_1 = arith.constant 0 : i32
    return %c0_i32, %c0_i32_0 : i32, i32
  }
  func.func @transform_3(%arg0: i32) -> (i32, i32) {
    %c0_i32 = arith.constant 0 : i32
    %c0_i32_0 = arith.constant 0 : i32
    return %arg0, %c0_i32 : i32, i32
  }
  func.func @transform_4(%arg0: i32) -> (i32, i32) {
    %c0_i32 = arith.constant 0 : i32
    %c0_i32_0 = arith.constant 0 : i32
    return %arg0, %c0_i32 : i32, i32
  }
}

</mosaic_0001>

<llo_original>
// kernel: tpu_custom_call.1
$region0: #{tpu_custom_call.1}
  #allocation0 [shape = 'u32[]', space=smem, size = 0x4, offset = 0x4, fixed_abs, tag = 'smem constant byte address 0x4 - core index']
  #allocation1 [shape = 'u32[144,128]{1,0:T(1,128)}', space=vmem, size = 0x12000, scoped, tag = 'internal scratch']
  %s0 = inlined_call_operand.vmem [shape: s32[256,3], index: 0, kind: input, shape index: {}]
  %s1 = inlined_call_operand.vmem [shape: f32[3,128], index: 1, kind: input, shape index: {}]
  %s2 = inlined_call_operand.vmem [shape: f32[3,128], index: 2, kind: input, shape index: {}]
  %s3 = inlined_call_operand.hbm [shape: f32[256,128], index: 3, kind: output, shape index: {0}]
  %s4 = inlined_call_operand.hbm [shape: f32[256,128], index: 4, kind: output, shape index: {1}]
  %5 = xla_tuple %s3, %s4
  %s6 = sld [smem:[#allocation0]]
  $region30: #{tpu_custom_call.1} parent=0
    _
  %s8 = ssub.s32 1, %s6
  %s9 = scalar_select 0, %s8, %s6
  $region1: #{tpu_custom_call.1} parent=0
    #allocation2 [shape = 'u8[131072]{0}', space=vmem, size = 0x20000, scoped, tag = 'output window, operand 0, single buffered']
    #allocation3 [shape = 's32[1]{0}', space=sflag, size = 0x4, scoped, tag = 'scoped memory for tpu_custom_call.1']
    #allocation4 [shape = 'u8[131072]{0}', space=vmem, size = 0x20000, scoped, tag = 'output window, operand 1, single buffered']
    #allocation5 [shape = 's32[1]{0}', space=sflag, size = 0x4, scoped, tag = 'scoped memory for tpu_custom_call.1']
    %10 = vsyncpa [#allocation3], 0
    %11 = vsyncpa [#allocation5], 0
    // Predicated region
    $region2: #{tpu_custom_call.1} parent=1 // pred_check
      _
    $region3: #{tpu_custom_call.1} parent=1 // pred_check_branch
      %13 = sbr.rel (0) target = $region5
    $region4: #{tpu_custom_call.1} parent=1 // pred_region
      _
    $region5: #{tpu_custom_call.1} parent=1 // pred_fallthru
      _
    // Predicated region
    $region6: #{tpu_custom_call.1} parent=1 // pred_check
      _
    $region7: #{tpu_custom_call.1} parent=1 // pred_check_branch
      %15 = sbr.rel (0) target = $region9
    $region8: #{tpu_custom_call.1} parent=1 // pred_region
      _
    $region9: #{tpu_custom_call.1} parent=1 // pred_fallthru
      _
    // Predicated region
    $region10: #{tpu_custom_call.1} parent=1 // pred_check
      _
    $region11: #{tpu_custom_call.1} parent=1 // pred_check_branch
      %17 = sbr.rel (0) target = $region13
    $region12: #{tpu_custom_call.1} parent=1 // pred_region
      _
    $region13: #{tpu_custom_call.1} parent=1 // pred_fallthru
      _
    %v18 = vld [vmem:[%s0] sm:$0xff]
    %v19 = vld [vmem:[%s0 + $0x8] sm:$0xff]
    %v20 = vld [vmem:[%s0 + $0x10] sm:$0xff]
    %v21 = vld [vmem:[%s0 + $0x18] sm:$0xff]
    %v22 = vld [vmem:[%s0 + $0x20] sm:$0xff]
    %v23 = vld [vmem:[%s0 + $0x28] sm:$0xff]
    %v24 = vld [vmem:[%s0 + $0x30] sm:$0xff]
    %v25 = vld [vmem:[%s0 + $0x38] sm:$0xff]
    %v26 = vld [vmem:[%s0 + $0x40] sm:$0xff]
    %v27 = vld [vmem:[%s0 + $0x48] sm:$0xff]
    %v28 = vld [vmem:[%s0 + $0x50] sm:$0xff]
    %v29 = vld [vmem:[%s0 + $0x58] sm:$0xff]
    %v30 = vld [vmem:[%s0 + $0x60] sm:$0xff]
    %v31 = vld [vmem:[%s0 + $0x68] sm:$0xff]
    %v32 = vld [vmem:[%s0 + $0x70] sm:$0xff]
    %v33 = vld [vmem:[%s0 + $0x78] sm:$0xff]
    %v34 = vld [vmem:[%s0 + $0x80] sm:$0xff]
    %v35 = vld [vmem:[%s0 + $0x88] sm:$0xff]
    %v36 = vld [vmem:[%s0 + $0x90] sm:$0xff]
    %v37 = vld [vmem:[%s0 + $0x98] sm:$0xff]
    %v38 = vld [vmem:[%s0 + $0xa0] sm:$0xff]
    %v39 = vld [vmem:[%s0 + $0xa8] sm:$0xff]
    %v40 = vld [vmem:[%s0 + $0xb0] sm:$0xff]
    %v41 = vld [vmem:[%s0 + $0xb8] sm:$0xff]
    %v42 = vld [vmem:[%s0 + $0xc0] sm:$0xff]
    %v43 = vld [vmem:[%s0 + $0xc8] sm:$0xff]
    %v44 = vld [vmem:[%s0 + $0xd0] sm:$0xff]
    %v45 = vld [vmem:[%s0 + $0xd8] sm:$0xff]
    %v46 = vld [vmem:[%s0 + $0xe0] sm:$0xff]
    %v47 = vld [vmem:[%s0 + $0xe8] sm:$0xff]
    %v48 = vld [vmem:[%s0 + $0xf0] sm:$0xff]
    %v49 = vld [vmem:[%s0 + $0xf8] sm:$0xff]
    %v50 = vcvt.s32.f32 %v18
    %v51 = vcvt.s32.f32 %v19
    %v52 = vcvt.s32.f32 %v20
    %v53 = vcvt.s32.f32 %v21
    %v54 = vcvt.s32.f32 %v22
    %v55 = vcvt.s32.f32 %v23
    %v56 = vcvt.s32.f32 %v24
    %v57 = vcvt.s32.f32 %v25
    %v58 = vcvt.s32.f32 %v26
    %v59 = vcvt.s32.f32 %v27
    %v60 = vcvt.s32.f32 %v28
    %v61 = vcvt.s32.f32 %v29
    %v62 = vcvt.s32.f32 %v30
    %v63 = vcvt.s32.f32 %v31
    %v64 = vcvt.s32.f32 %v32
    %v65 = vcvt.s32.f32 %v33
    %v66 = vcvt.s32.f32 %v34
    %v67 = vcvt.s32.f32 %v35
    %v68 = vcvt.s32.f32 %v36
    %v69 = vcvt.s32.f32 %v37
    %v70 = vcvt.s32.f32 %v38
    %v71 = vcvt.s32.f32 %v39
    %v72 = vcvt.s32.f32 %v40
    %v73 = vcvt.s32.f32 %v41
    %v74 = vcvt.s32.f32 %v42
    %v75 = vcvt.s32.f32 %v43
    %v76 = vcvt.s32.f32 %v44
    %v77 = vcvt.s32.f32 %v45
    %v78 = vcvt.s32.f32 %v46
    %v79 = vcvt.s32.f32 %v47
    %v80 = vcvt.s32.f32 %v48
    %v81 = vcvt.s32.f32 %v49
    %v82 = vld [vmem:[%s1] sm:$0x1]
    %84 = vset.pattern.permute.xlu0 0
    %85 = vperm.xlu0 %84, %v50
    %v86 = vpop.permute.xlu0 %85
    %89 = vset.pattern.permute.xlu0 0
    %90 = vperm.xlu0 %89, %v51
    %v91 = vpop.permute.xlu0 %90
    %94 = vset.pattern.permute.xlu0 0
    %95 = vperm.xlu0 %94, %v52
    %v96 = vpop.permute.xlu0 %95
    %99 = vset.pattern.permute.xlu0 0
    %100 = vperm.xlu0 %99, %v53
    %v101 = vpop.permute.xlu0 %100
    %104 = vset.pattern.permute.xlu0 0
    %105 = vperm.xlu0 %104, %v54
    %v106 = vpop.permute.xlu0 %105
    %109 = vset.pattern.permute.xlu0 0
    %110 = vperm.xlu0 %109, %v55
    %v111 = vpop.permute.xlu0 %110
    %114 = vset.pattern.permute.xlu0 0
    %115 = vperm.xlu0 %114, %v56
    %v116 = vpop.permute.xlu0 %115
    %119 = vset.pattern.permute.xlu0 0
    %120 = vperm.xlu0 %119, %v57
    %v121 = vpop.permute.xlu0 %120
    %124 = vset.pattern.permute.xlu0 0
    %125 = vperm.xlu0 %124, %v58
    %v126 = vpop.permute.xlu0 %125
    %129 = vset.pattern.permute.xlu0 0
    %130 = vperm.xlu0 %129, %v59
    %v131 = vpop.permute.xlu0 %130
    %134 = vset.pattern.permute.xlu0 0
    %135 = vperm.xlu0 %134, %v60
    %v136 = vpop.permute.xlu0 %135
    %139 = vset.pattern.permute.xlu0 0
    %140 = vperm.xlu0 %139, %v61
    %v141 = vpop.permute.xlu0 %140
    %144 = vset.pattern.permute.xlu0 0
    %145 = vperm.xlu0 %144, %v62
    %v146 = vpop.permute.xlu0 %145
    %149 = vset.pattern.permute.xlu0 0
    %150 = vperm.xlu0 %149, %v63
    %v151 = vpop.permute.xlu0 %150
    %154 = vset.pattern.permute.xlu0 0
    %155 = vperm.xlu0 %154, %v64
    %v156 = vpop.permute.xlu0 %155
    %159 = vset.pattern.permute.xlu0 0
    %160 = vperm.xlu0 %159, %v65
    %v161 = vpop.permute.xlu0 %160
    %164 = vset.pattern.permute.xlu0 0
    %165 = vperm.xlu0 %164, %v66
    %v166 = vpop.permute.xlu0 %165
    %169 = vset.pattern.permute.xlu0 0
    %170 = vperm.xlu0 %169, %v67
    %v171 = vpop.permute.xlu0 %170
    %174 = vset.pattern.permute.xlu0 0
    %175 = vperm.xlu0 %174, %v68
    %v176 = vpop.permute.xlu0 %175
    %179 = vset.pattern.permute.xlu0 0
    %180 = vperm.xlu0 %179, %v69
    %v181 = vpop.permute.xlu0 %180
    %184 = vset.pattern.permute.xlu0 0
    %185 = vperm.xlu0 %184, %v70
    %v186 = vpop.permute.xlu0 %185
    %189 = vset.pattern.permute.xlu0 0
    %190 = vperm.xlu0 %189, %v71
    %v191 = vpop.permute.xlu0 %190
    %194 = vset.pattern.permute.xlu0 0
    %195 = vperm.xlu0 %194, %v72
    %v196 = vpop.permute.xlu0 %195
    %199 = vset.pattern.permute.xlu0 0
    %200 = vperm.xlu0 %199, %v73
    %v201 = vpop.permute.xlu0 %200
    %204 = vset.pattern.permute.xlu0 0
    %205 = vperm.xlu0 %204, %v74
    %v206 = vpop.permute.xlu0 %205
    %209 = vset.pattern.permute.xlu0 0
    %210 = vperm.xlu0 %209, %v75
    %v211 = vpop.permute.xlu0 %210
    %214 = vset.pattern.permute.xlu0 0
    %215 = vperm.xlu0 %214, %v76
    %v216 = vpop.permute.xlu0 %215
    %219 = vset.pattern.permute.xlu0 0
    %220 = vperm.xlu0 %219, %v77
    %v221 = vpop.permute.xlu0 %220
    %224 = vset.pattern.permute.xlu0 0
    %225 = vperm.xlu0 %224, %v78
    %v226 = vpop.permute.xlu0 %225
    %229 = vset.pattern.permute.xlu0 0
    %230 = vperm.xlu0 %229, %v79
    %v231 = vpop.permute.xlu0 %230
    %234 = vset.pattern.permute.xlu0 0
    %235 = vperm.xlu0 %234, %v80
    %v236 = vpop.permute.xlu0 %235
    %239 = vset.pattern.permute.xlu0 0
    %240 = vperm.xlu0 %239, %v81
    %v241 = vpop.permute.xlu0 %240
    %v243 = vlaneseq
    %v244 = vshrl.u32 %v243, 7
    %v245 = vsub.s32 0, %v244
    %v246 = vrot.slane %v82, %v245
    %v247 = vmul.f32 %v86, %v246
    %v248 = vmul.f32 %v91, %v246
    %v249 = vmul.f32 %v96, %v246
    %v250 = vmul.f32 %v101, %v246
    %v251 = vmul.f32 %v106, %v246
    %v252 = vmul.f32 %v111, %v246
    %v253 = vmul.f32 %v116, %v246
    %v254 = vmul.f32 %v121, %v246
    %v255 = vmul.f32 %v126, %v246
    %v256 = vmul.f32 %v131, %v246
    %v257 = vmul.f32 %v136, %v246
    %v258 = vmul.f32 %v141, %v246
    %v259 = vmul.f32 %v146, %v246
    %v260 = vmul.f32 %v151, %v246
    %v261 = vmul.f32 %v156, %v246
    %v262 = vmul.f32 %v161, %v246
    %v263 = vmul.f32 %v166, %v246
    %v264 = vmul.f32 %v171, %v246
    %v265 = vmul.f32 %v176, %v246
    %v266 = vmul.f32 %v181, %v246
    %v267 = vmul.f32 %v186, %v246
    %v268 = vmul.f32 %v191, %v246
    %v269 = vmul.f32 %v196, %v246
    %v270 = vmul.f32 %v201, %v246
    %v271 = vmul.f32 %v206, %v246
    %v272 = vmul.f32 %v211, %v246
    %v273 = vmul.f32 %v216, %v246
    %v274 = vmul.f32 %v221, %v246
    %v275 = vmul.f32 %v226, %v246
    %v276 = vmul.f32 %v231, %v246
    %v277 = vmul.f32 %v236, %v246
    %v278 = vmul.f32 %v241, %v246
    %v279 = vld [vmem:[%s2] sm:$0x1]
    %v280 = vlaneseq
    %v281 = vshrl.u32 %v280, 7
    %v282 = vsub.s32 0, %v281
    %v283 = vrot.slane %v279, %v282
    %v284 = vmul.f32 %v86, %v283
    %v285 = vmul.f32 %v91, %v283
    %v286 = vmul.f32 %v96, %v283
    %v287 = vmul.f32 %v101, %v283
    %v288 = vmul.f32 %v106, %v283
    %v289 = vmul.f32 %v111, %v283
    %v290 = vmul.f32 %v116, %v283
    %v291 = vmul.f32 %v121, %v283
    %v292 = vmul.f32 %v126, %v283
    %v293 = vmul.f32 %v131, %v283
    %v294 = vmul.f32 %v136, %v283
    %v295 = vmul.f32 %v141, %v283
    %v296 = vmul.f32 %v146, %v283
    %v297 = vmul.f32 %v151, %v283
    %v298 = vmul.f32 %v156, %v283
    %v299 = vmul.f32 %v161, %v283
    %v300 = vmul.f32 %v166, %v283
    %v301 = vmul.f32 %v171, %v283
    %v302 = vmul.f32 %v176, %v283
    %v303 = vmul.f32 %v181, %v283
    %v304 = vmul.f32 %v186, %v283
    %v305 = vmul.f32 %v191, %v283
    %v306 = vmul.f32 %v196, %v283
    %v307 = vmul.f32 %v201, %v283
    %v308 = vmul.f32 %v206, %v283
    %v309 = vmul.f32 %v211, %v283
    %v310 = vmul.f32 %v216, %v283
    %v311 = vmul.f32 %v221, %v283
    %v312 = vmul.f32 %v226, %v283
    %v313 = vmul.f32 %v231, %v283
    %v314 = vmul.f32 %v236, %v283
    %v315 = vmul.f32 %v241, %v283
    %v316 = vadd.f32 %v247, %v284
    %v317 = vadd.f32 %v248, %v285
    %v318 = vadd.f32 %v249, %v286
    %v319 = vadd.f32 %v250, %v287
    %v320 = vadd.f32 %v251, %v288
    %v321 = vadd.f32 %v252, %v289
    %v322 = vadd.f32 %v253, %v290
    %v323 = vadd.f32 %v254, %v291
    %v324 = vadd.f32 %v255, %v292
    %v325 = vadd.f32 %v256, %v293
    %v326 = vadd.f32 %v257, %v294
    %v327 = vadd.f32 %v258, %v295
    %v328 = vadd.f32 %v259, %v296
    %v329 = vadd.f32 %v260, %v297
    %v330 = vadd.f32 %v261, %v298
    %v331 = vadd.f32 %v262, %v299
    %v332 = vadd.f32 %v263, %v300
    %v333 = vadd.f32 %v264, %v301
    %v334 = vadd.f32 %v265, %v302
    %v335 = vadd.f32 %v266, %v303
    %v336 = vadd.f32 %v267, %v304
    %v337 = vadd.f32 %v268, %v305
    %v338 = vadd.f32 %v269, %v306
    %v339 = vadd.f32 %v270, %v307
    %v340 = vadd.f32 %v271, %v308
    %v341 = vadd.f32 %v272, %v309
    %v342 = vadd.f32 %v273, %v310
    %v343 = vadd.f32 %v274, %v311
    %v344 = vadd.f32 %v275, %v312
    %v345 = vadd.f32 %v276, %v313
    %v346 = vadd.f32 %v277, %v314
    %v347 = vadd.f32 %v278, %v315
    %v348 = vld [vmem:[%s1 + $0x1] sm:$0x1]
    %349 = vset.pattern.permute.xlu0 1
    %350 = vperm.xlu0 %349, %v50
    %v351 = vpop.permute.xlu0 %350
    %353 = vset.pattern.permute.xlu0 1
    %354 = vperm.xlu0 %353, %v51
    %v355 = vpop.permute.xlu0 %354
    %357 = vset.pattern.permute.xlu0 1
    %358 = vperm.xlu0 %357, %v52
    %v359 = vpop.permute.xlu0 %358
    %361 = vset.pattern.permute.xlu0 1
    %362 = vperm.xlu0 %361, %v53
    %v363 = vpop.permute.xlu0 %362
    %365 = vset.pattern.permute.xlu0 1
    %366 = vperm.xlu0 %365, %v54
    %v367 = vpop.permute.xlu0 %366
    %369 = vset.pattern.permute.xlu0 1
    %370 = vperm.xlu0 %369, %v55
    %v371 = vpop.permute.xlu0 %370
    %373 = vset.pattern.permute.xlu0 1
    %374 = vperm.xlu0 %373, %v56
    %v375 = vpop.permute.xlu0 %374
    %377 = vset.pattern.permute.xlu0 1
    %378 = vperm.xlu0 %377, %v57
    %v379 = vpop.permute.xlu0 %378
    %381 = vset.pattern.permute.xlu0 1
    %382 = vperm.xlu0 %381, %v58
    %v383 = vpop.permute.xlu0 %382
    %385 = vset.pattern.permute.xlu0 1
    %386 = vperm.xlu0 %385, %v59
    %v387 = vpop.permute.xlu0 %386
    %389 = vset.pattern.permute.xlu0 1
    %390 = vperm.xlu0 %389, %v60
    %v391 = vpop.permute.xlu0 %390
    %393 = vset.pattern.permute.xlu0 1
    %394 = vperm.xlu0 %393, %v61
    %v395 = vpop.permute.xlu0 %394
    %397 = vset.pattern.permute.xlu0 1
    %398 = vperm.xlu0 %397, %v62
    %v399 = vpop.permute.xlu0 %398
    %401 = vset.pattern.permute.xlu0 1
    %402 = vperm.xlu0 %401, %v63
    %v403 = vpop.permute.xlu0 %402
    %405 = vset.pattern.permute.xlu0 1
    %406 = vperm.xlu0 %405, %v64
    %v407 = vpop.permute.xlu0 %406
    %409 = vset.pattern.permute.xlu0 1
    %410 = vperm.xlu0 %409, %v65
    %v411 = vpop.permute.xlu0 %410
    %413 = vset.pattern.permute.xlu0 1
    %414 = vperm.xlu0 %413, %v66
    %v415 = vpop.permute.xlu0 %414
    %417 = vset.pattern.permute.xlu0 1
    %418 = vperm.xlu0 %417, %v67
    %v419 = vpop.permute.xlu0 %418
    %421 = vset.pattern.permute.xlu0 1
    %422 = vperm.xlu0 %421, %v68
    %v423 = vpop.permute.xlu0 %422
    %425 = vset.pattern.permute.xlu0 1
    %426 = vperm.xlu0 %425, %v69
    %v427 = vpop.permute.xlu0 %426
    %429 = vset.pattern.permute.xlu0 1
    %430 = vperm.xlu0 %429, %v70
    %v431 = vpop.permute.xlu0 %430
    %433 = vset.pattern.permute.xlu0 1
    %434 = vperm.xlu0 %433, %v71
    %v435 = vpop.permute.xlu0 %434
    %437 = vset.pattern.permute.xlu0 1
    %438 = vperm.xlu0 %437, %v72
    %v439 = vpop.permute.xlu0 %438
    %441 = vset.pattern.permute.xlu0 1
    %442 = vperm.xlu0 %441, %v73
    %v443 = vpop.permute.xlu0 %442
    %445 = vset.pattern.permute.xlu0 1
    %446 = vperm.xlu0 %445, %v74
    %v447 = vpop.permute.xlu0 %446
    %449 = vset.pattern.permute.xlu0 1
    %450 = vperm.xlu0 %449, %v75
    %v451 = vpop.permute.xlu0 %450
    %453 = vset.pattern.permute.xlu0 1
    %454 = vperm.xlu0 %453, %v76
    %v455 = vpop.permute.xlu0 %454
    %457 = vset.pattern.permute.xlu0 1
    %458 = vperm.xlu0 %457, %v77
    %v459 = vpop.permute.xlu0 %458
    %461 = vset.pattern.permute.xlu0 1
    %462 = vperm.xlu0 %461, %v78
    %v463 = vpop.permute.xlu0 %462
    %465 = vset.pattern.permute.xlu0 1
    %466 = vperm.xlu0 %465, %v79
    %v467 = vpop.permute.xlu0 %466
    %469 = vset.pattern.permute.xlu0 1
    %470 = vperm.xlu0 %469, %v80
    %v471 = vpop.permute.xlu0 %470
    %473 = vset.pattern.permute.xlu0 1
    %474 = vperm.xlu0 %473, %v81
    %v475 = vpop.permute.xlu0 %474
    %v477 = vlaneseq
    %v478 = vshrl.u32 %v477, 7
    %v479 = vsub.s32 0, %v478
    %v480 = vrot.slane %v348, %v479
    %v481 = vmul.f32 %v351, %v480
    %v482 = vmul.f32 %v355, %v480
    %v483 = vmul.f32 %v359, %v480
    %v484 = vmul.f32 %v363, %v480
    %v485 = vmul.f32 %v367, %v480
    %v486 = vmul.f32 %v371, %v480
    %v487 = vmul.f32 %v375, %v480
    %v488 = vmul.f32 %v379, %v480
    %v489 = vmul.f32 %v383, %v480
    %v490 = vmul.f32 %v387, %v480
    %v491 = vmul.f32 %v391, %v480
    %v492 = vmul.f32 %v395, %v480
    %v493 = vmul.f32 %v399, %v480
    %v494 = vmul.f32 %v403, %v480
    %v495 = vmul.f32 %v407, %v480
    %v496 = vmul.f32 %v411, %v480
    %v497 = vmul.f32 %v415, %v480
    %v498 = vmul.f32 %v419, %v480
    %v499 = vmul.f32 %v423, %v480
    %v500 = vmul.f32 %v427, %v480
    %v501 = vmul.f32 %v431, %v480
    %v502 = vmul.f32 %v435, %v480
    %v503 = vmul.f32 %v439, %v480
    %v504 = vmul.f32 %v443, %v480
    %v505 = vmul.f32 %v447, %v480
    %v506 = vmul.f32 %v451, %v480
    %v507 = vmul.f32 %v455, %v480
    %v508 = vmul.f32 %v459, %v480
    %v509 = vmul.f32 %v463, %v480
    %v510 = vmul.f32 %v467, %v480
    %v511 = vmul.f32 %v471, %v480
    %v512 = vmul.f32 %v475, %v480
    %v513 = vld [vmem:[%s2 + $0x1] sm:$0x1]
    %v514 = vlaneseq
    %v515 = vshrl.u32 %v514, 7
    %v516 = vsub.s32 0, %v515
    %v517 = vrot.slane %v513, %v516
    %v518 = vmul.f32 %v351, %v517
    %v519 = vmul.f32 %v355, %v517
    %v520 = vmul.f32 %v359, %v517
    %v521 = vmul.f32 %v363, %v517
    %v522 = vmul.f32 %v367, %v517
    %v523 = vmul.f32 %v371, %v517
    %v524 = vmul.f32 %v375, %v517
    %v525 = vmul.f32 %v379, %v517
    %v526 = vmul.f32 %v383, %v517
    %v527 = vmul.f32 %v387, %v517
    %v528 = vmul.f32 %v391, %v517
    %v529 = vmul.f32 %v395, %v517
    %v530 = vmul.f32 %v399, %v517
    %v531 = vmul.f32 %v403, %v517
    %v532 = vmul.f32 %v407, %v517
    %v533 = vmul.f32 %v411, %v517
    %v534 = vmul.f32 %v415, %v517
    %v535 = vmul.f32 %v419, %v517
    %v536 = vmul.f32 %v423, %v517
    %v537 = vmul.f32 %v427, %v517
    %v538 = vmul.f32 %v431, %v517
    %v539 = vmul.f32 %v435, %v517
    %v540 = vmul.f32 %v439, %v517
    %v541 = vmul.f32 %v443, %v517
    %v542 = vmul.f32 %v447, %v517
    %v543 = vmul.f32 %v451, %v517
    %v544 = vmul.f32 %v455, %v517
    %v545 = vmul.f32 %v459, %v517
    %v546 = vmul.f32 %v463, %v517
    %v547 = vmul.f32 %v467, %v517
    %v548 = vmul.f32 %v471, %v517
    %v549 = vmul.f32 %v475, %v517
    %v550 = vadd.f32 %v481, %v518
    %v551 = vadd.f32 %v482, %v519
    %v552 = vadd.f32 %v483, %v520
    %v553 = vadd.f32 %v484, %v521
    %v554 = vadd.f32 %v485, %v522
    %v555 = vadd.f32 %v486, %v523
    %v556 = vadd.f32 %v487, %v524
    %v557 = vadd.f32 %v488, %v525
    %v558 = vadd.f32 %v489, %v526
    %v559 = vadd.f32 %v490, %v527
    %v560 = vadd.f32 %v491, %v528
    %v561 = vadd.f32 %v492, %v529
    %v562 = vadd.f32 %v493, %v530
    %v563 = vadd.f32 %v494, %v531
    %v564 = vadd.f32 %v495, %v532
    %v565 = vadd.f32 %v496, %v533
    %v566 = vadd.f32 %v497, %v534
    %v567 = vadd.f32 %v498, %v535
    %v568 = vadd.f32 %v499, %v536
    %v569 = vadd.f32 %v500, %v537
    %v570 = vadd.f32 %v501, %v538
    %v571 = vadd.f32 %v502, %v539
    %v572 = vadd.f32 %v503, %v540
    %v573 = vadd.f32 %v504, %v541
    %v574 = vadd.f32 %v505, %v542
    %v575 = vadd.f32 %v506, %v543
    %v576 = vadd.f32 %v507, %v544
    %v577 = vadd.f32 %v508, %v545
    %v578 = vadd.f32 %v509, %v546
    %v579 = vadd.f32 %v510, %v547
    %v580 = vadd.f32 %v511, %v548
    %v581 = vadd.f32 %v512, %v549
    %v582 = vadd.f32 %v316, %v550
    %v583 = vadd.f32 %v317, %v551
    %v584 = vadd.f32 %v318, %v552
    %v585 = vadd.f32 %v319, %v553
    %v586 = vadd.f32 %v320, %v554
    %v587 = vadd.f32 %v321, %v555
    %v588 = vadd.f32 %v322, %v556
    %v589 = vadd.f32 %v323, %v557
    %v590 = vadd.f32 %v324, %v558
    %v591 = vadd.f32 %v325, %v559
    %v592 = vadd.f32 %v326, %v560
    %v593 = vadd.f32 %v327, %v561
    %v594 = vadd.f32 %v328, %v562
    %v595 = vadd.f32 %v329, %v563
    %v596 = vadd.f32 %v330, %v564
    %v597 = vadd.f32 %v331, %v565
    %v598 = vadd.f32 %v332, %v566
    %v599 = vadd.f32 %v333, %v567
    %v600 = vadd.f32 %v334, %v568
    %v601 = vadd.f32 %v335, %v569
    %v602 = vadd.f32 %v336, %v570
    %v603 = vadd.f32 %v337, %v571
    %v604 = vadd.f32 %v338, %v572
    %v605 = vadd.f32 %v339, %v573
    %v606 = vadd.f32 %v340, %v574
    %v607 = vadd.f32 %v341, %v575
    %v608 = vadd.f32 %v342, %v576
    %v609 = vadd.f32 %v343, %v577
    %v610 = vadd.f32 %v344, %v578
    %v611 = vadd.f32 %v345, %v579
    %v612 = vadd.f32 %v346, %v580
    %v613 = vadd.f32 %v347, %v581
    %v614 = vld [vmem:[%s1 + $0x2] sm:$0x1]
    %615 = vset.pattern.permute.xlu0 2
    %616 = vperm.xlu0 %615, %v50
    %v617 = vpop.permute.xlu0 %616
    %619 = vset.pattern.permute.xlu0 2
    %620 = vperm.xlu0 %619, %v51
    %v621 = vpop.permute.xlu0 %620
    %623 = vset.pattern.permute.xlu0 2
    %624 = vperm.xlu0 %623, %v52
    %v625 = vpop.permute.xlu0 %624
    %627 = vset.pattern.permute.xlu0 2
    %628 = vperm.xlu0 %627, %v53
    %v629 = vpop.permute.xlu0 %628
    %631 = vset.pattern.permute.xlu0 2
    %632 = vperm.xlu0 %631, %v54
    %v633 = vpop.permute.xlu0 %632
    %635 = vset.pattern.permute.xlu0 2
    %636 = vperm.xlu0 %635, %v55
    %v637 = vpop.permute.xlu0 %636
    %639 = vset.pattern.permute.xlu0 2
    %640 = vperm.xlu0 %639, %v56
    %v641 = vpop.permute.xlu0 %640
    %643 = vset.pattern.permute.xlu0 2
    %644 = vperm.xlu0 %643, %v57
    %v645 = vpop.permute.xlu0 %644
    %647 = vset.pattern.permute.xlu0 2
    %648 = vperm.xlu0 %647, %v58
    %v649 = vpop.permute.xlu0 %648
    %651 = vset.pattern.permute.xlu0 2
    %652 = vperm.xlu0 %651, %v59
    %v653 = vpop.permute.xlu0 %652
    %655 = vset.pattern.permute.xlu0 2
    %656 = vperm.xlu0 %655, %v60
    %v657 = vpop.permute.xlu0 %656
    %659 = vset.pattern.permute.xlu0 2
    %660 = vperm.xlu0 %659, %v61
    %v661 = vpop.permute.xlu0 %660
    %663 = vset.pattern.permute.xlu0 2
    %664 = vperm.xlu0 %663, %v62
    %v665 = vpop.permute.xlu0 %664
    %667 = vset.pattern.permute.xlu0 2
    %668 = vperm.xlu0 %667, %v63
    %v669 = vpop.permute.xlu0 %668
    %671 = vset.pattern.permute.xlu0 2
    %672 = vperm.xlu0 %671, %v64
    %v673 = vpop.permute.xlu0 %672
    %675 = vset.pattern.permute.xlu0 2
    %676 = vperm.xlu0 %675, %v65
    %v677 = vpop.permute.xlu0 %676
    %679 = vset.pattern.permute.xlu0 2
    %680 = vperm.xlu0 %679, %v66
    %v681 = vpop.permute.xlu0 %680
    %683 = vset.pattern.permute.xlu0 2
    %684 = vperm.xlu0 %683, %v67
    %v685 = vpop.permute.xlu0 %684
    %687 = vset.pattern.permute.xlu0 2
    %688 = vperm.xlu0 %687, %v68
    %v689 = vpop.permute.xlu0 %688
    %691 = vset.pattern.permute.xlu0 2
    %692 = vperm.xlu0 %691, %v69
    %v693 = vpop.permute.xlu0 %692
    %695 = vset.pattern.permute.xlu0 2
    %696 = vperm.xlu0 %695, %v70
    %v697 = vpop.permute.xlu0 %696
    %699 = vset.pattern.permute.xlu0 2
    %700 = vperm.xlu0 %699, %v71
    %v701 = vpop.permute.xlu0 %700
    %703 = vset.pattern.permute.xlu0 2
    %704 = vperm.xlu0 %703, %v72
    %v705 = vpop.permute.xlu0 %704
    %707 = vset.pattern.permute.xlu0 2
    %708 = vperm.xlu0 %707, %v73
    %v709 = vpop.permute.xlu0 %708
    %711 = vset.pattern.permute.xlu0 2
    %712 = vperm.xlu0 %711, %v74
    %v713 = vpop.permute.xlu0 %712
    %715 = vset.pattern.permute.xlu0 2
    %716 = vperm.xlu0 %715, %v75
    %v717 = vpop.permute.xlu0 %716
    %719 = vset.pattern.permute.xlu0 2
    %720 = vperm.xlu0 %719, %v76
    %v721 = vpop.permute.xlu0 %720
    %723 = vset.pattern.permute.xlu0 2
    %724 = vperm.xlu0 %723, %v77
    %v725 = vpop.permute.xlu0 %724
    %727 = vset.pattern.permute.xlu0 2
    %728 = vperm.xlu0 %727, %v78
    %v729 = vpop.permute.xlu0 %728
    %731 = vset.pattern.permute.xlu0 2
    %732 = vperm.xlu0 %731, %v79
    %v733 = vpop.permute.xlu0 %732
    %735 = vset.pattern.permute.xlu0 2
    %736 = vperm.xlu0 %735, %v80
    %v737 = vpop.permute.xlu0 %736
    %739 = vset.pattern.permute.xlu0 2
    %740 = vperm.xlu0 %739, %v81
    %v741 = vpop.permute.xlu0 %740
    %v743 = vlaneseq
    %v744 = vshrl.u32 %v743, 7
    %v745 = vsub.s32 0, %v744
    %v746 = vrot.slane %v614, %v745
    %v747 = vmul.f32 %v617, %v746
    %v748 = vmul.f32 %v621, %v746
    %v749 = vmul.f32 %v625, %v746
    %v750 = vmul.f32 %v629, %v746
    %v751 = vmul.f32 %v633, %v746
    %v752 = vmul.f32 %v637, %v746
    %v753 = vmul.f32 %v641, %v746
    %v754 = vmul.f32 %v645, %v746
    %v755 = vmul.f32 %v649, %v746
    %v756 = vmul.f32 %v653, %v746
    %v757 = vmul.f32 %v657, %v746
    %v758 = vmul.f32 %v661, %v746
    %v759 = vmul.f32 %v665, %v746
    %v760 = vmul.f32 %v669, %v746
    %v761 = vmul.f32 %v673, %v746
    %v762 = vmul.f32 %v677, %v746
    %v763 = vmul.f32 %v681, %v746
    %v764 = vmul.f32 %v685, %v746
    %v765 = vmul.f32 %v689, %v746
    %v766 = vmul.f32 %v693, %v746
    %v767 = vmul.f32 %v697, %v746
    %v768 = vmul.f32 %v701, %v746
    %v769 = vmul.f32 %v705, %v746
    %v770 = vmul.f32 %v709, %v746
    %v771 = vmul.f32 %v713, %v746
    %v772 = vmul.f32 %v717, %v746
    %v773 = vmul.f32 %v721, %v746
    %v774 = vmul.f32 %v725, %v746
    %v775 = vmul.f32 %v729, %v746
    %v776 = vmul.f32 %v733, %v746
    %v777 = vmul.f32 %v737, %v746
    %v778 = vmul.f32 %v741, %v746
    %v779 = vld [vmem:[%s2 + $0x2] sm:$0x1]
    %v780 = vlaneseq
    %v781 = vshrl.u32 %v780, 7
    %v782 = vsub.s32 0, %v781
    %v783 = vrot.slane %v779, %v782
    %v784 = vmul.f32 %v617, %v783
    %v785 = vmul.f32 %v621, %v783
    %v786 = vmul.f32 %v625, %v783
    %v787 = vmul.f32 %v629, %v783
    %v788 = vmul.f32 %v633, %v783
    %v789 = vmul.f32 %v637, %v783
    %v790 = vmul.f32 %v641, %v783
    %v791 = vmul.f32 %v645, %v783
    %v792 = vmul.f32 %v649, %v783
    %v793 = vmul.f32 %v653, %v783
    %v794 = vmul.f32 %v657, %v783
    %v795 = vmul.f32 %v661, %v783
    %v796 = vmul.f32 %v665, %v783
    %v797 = vmul.f32 %v669, %v783
    %v798 = vmul.f32 %v673, %v783
    %v799 = vmul.f32 %v677, %v783
    %v800 = vmul.f32 %v681, %v783
    %v801 = vmul.f32 %v685, %v783
    %v802 = vmul.f32 %v689, %v783
    %v803 = vmul.f32 %v693, %v783
    %v804 = vmul.f32 %v697, %v783
    %v805 = vmul.f32 %v701, %v783
    %v806 = vmul.f32 %v705, %v783
    %v807 = vmul.f32 %v709, %v783
    %v808 = vmul.f32 %v713, %v783
    %v809 = vmul.f32 %v717, %v783
    %v810 = vmul.f32 %v721, %v783
    %v811 = vmul.f32 %v725, %v783
    %v812 = vmul.f32 %v729, %v783
    %v813 = vmul.f32 %v733, %v783
    %v814 = vmul.f32 %v737, %v783
    %v815 = vmul.f32 %v741, %v783
    %v816 = vadd.f32 %v747, %v784
    %v817 = vadd.f32 %v748, %v785
    %v818 = vadd.f32 %v749, %v786
    %v819 = vadd.f32 %v750, %v787
    %v820 = vadd.f32 %v751, %v788
    %v821 = vadd.f32 %v752, %v789
    %v822 = vadd.f32 %v753, %v790
    %v823 = vadd.f32 %v754, %v791
    %v824 = vadd.f32 %v755, %v792
    %v825 = vadd.f32 %v756, %v793
    %v826 = vadd.f32 %v757, %v794
    %v827 = vadd.f32 %v758, %v795
    %v828 = vadd.f32 %v759, %v796
    %v829 = vadd.f32 %v760, %v797
    %v830 = vadd.f32 %v761, %v798
    %v831 = vadd.f32 %v762, %v799
    %v832 = vadd.f32 %v763, %v800
    %v833 = vadd.f32 %v764, %v801
    %v834 = vadd.f32 %v765, %v802
    %v835 = vadd.f32 %v766, %v803
    %v836 = vadd.f32 %v767, %v804
    %v837 = vadd.f32 %v768, %v805
    %v838 = vadd.f32 %v769, %v806
    %v839 = vadd.f32 %v770, %v807
    %v840 = vadd.f32 %v771, %v808
    %v841 = vadd.f32 %v772, %v809
    %v842 = vadd.f32 %v773, %v810
    %v843 = vadd.f32 %v774, %v811
    %v844 = vadd.f32 %v775, %v812
    %v845 = vadd.f32 %v776, %v813
    %v846 = vadd.f32 %v777, %v814
    %v847 = vadd.f32 %v778, %v815
    %v848 = vadd.f32 %v582, %v816
    %v849 = vadd.f32 %v583, %v817
    %v850 = vadd.f32 %v584, %v818
    %v851 = vadd.f32 %v585, %v819
    %v852 = vadd.f32 %v586, %v820
    %v853 = vadd.f32 %v587, %v821
    %v854 = vadd.f32 %v588, %v822
    %v855 = vadd.f32 %v589, %v823
    %v856 = vadd.f32 %v590, %v824
    %v857 = vadd.f32 %v591, %v825
    %v858 = vadd.f32 %v592, %v826
    %v859 = vadd.f32 %v593, %v827
    %v860 = vadd.f32 %v594, %v828
    %v861 = vadd.f32 %v595, %v829
    %v862 = vadd.f32 %v596, %v830
    %v863 = vadd.f32 %v597, %v831
    %v864 = vadd.f32 %v598, %v832
    %v865 = vadd.f32 %v599, %v833
    %v866 = vadd.f32 %v600, %v834
    %v867 = vadd.f32 %v601, %v835
    %v868 = vadd.f32 %v602, %v836
    %v869 = vadd.f32 %v603, %v837
    %v870 = vadd.f32 %v604, %v838
    %v871 = vadd.f32 %v605, %v839
    %v872 = vadd.f32 %v606, %v840
    %v873 = vadd.f32 %v607, %v841
    %v874 = vadd.f32 %v608, %v842
    %v875 = vadd.f32 %v609, %v843
    %v876 = vadd.f32 %v610, %v844
    %v877 = vadd.f32 %v611, %v845
    %v878 = vadd.f32 %v612, %v846
    %v879 = vadd.f32 %v613, %v847
    %v880 = vand.u32 2147483647, %v848
    %vm881 = vcmp.le.f32.partialorder %v880, 0.7853982
    %vm882 = vcmp.lt.s32.totalorder %v848, 0
    %v883 = vand.u32 %v848, 2139095040
    %v884 = vshrl.u32 %v883, 23
    %v885 = vsub.s32 %v884, 127
    %v886 = vand.u32 2147483647, %v848
    %v887 = vand.u32 %v886, 8388607
    %v888 = vor.u32 %v887, 8388608
    %v889 = vsub.s32 0, %v888
    %v890 = vadd.s32 %v885, 1
    %vm891 = vcmp.gt.s32.totalorder %v890, 0
    %v892 = vsel %vm891, %v890, 0
    %v893 = vshrl.u32 %v892, 5
    %v894 = vand.u32 %v892, 31
    %v895 = vsub.s32 32, %v894
    %v896 = vshrl.u32 683565275, %v895
    %v897 = vshll.u32 683565275, %v894
    %v898 = vshrl.u32 2475754826, %v895
    %v899 = vor.u32 %v897, %v898
    %v900 = vshll.u32 2475754826, %v894
    %v901 = vshrl.u32 2131351028, %v895
    %v902 = vor.u32 %v900, %v901
    %v903 = vshll.u32 2131351028, %v894
    %v904 = vshrl.u32 2102212464, %v895
    %v905 = vor.u32 %v903, %v904
    %v906 = vshll.u32 2102212464, %v894
    %v907 = vshrl.u32 920167782, %v895
    %v908 = vor.u32 %v906, %v907
    %v909 = vshll.u32 920167782, %v894
    %v910 = vshrl.u32 1326507024, %v895
    %v911 = vor.u32 %v909, %v910
    %vm912 = vcmp.lt.s32.totalorder %v893, 1
    %vm913 = vcmp.lt.s32.totalorder %v893, 2
    %vm914 = vcmp.lt.s32.totalorder %v893, 3
    %vm915 = vcmp.lt.s32.totalorder %v893, 4
    %v916 = vsel %vm912, %v896, %v899
    %v917 = vsel %vm915, %v905, 2102212464
    %v918 = vsel %vm914, %v902, %v917
    %v919 = vsel %vm913, %v916, %v918
    %v920 = vsel %vm912, %v899, %v902
    %v921 = vsel %vm915, %v908, 920167782
    %v922 = vsel %vm914, %v905, %v921
    %v923 = vsel %vm913, %v920, %v922
    %v924 = vsel %vm912, %v902, %v905
    %v925 = vsel %vm915, %v911, 1326507024
    %v926 = vsel %vm914, %v908, %v925
    %v927 = vsel %vm913, %v924, %v926
    %v928 = vshll.u32 %v888, 8
    %v929 = vmul.u32.u64.compose %v928, %v927
    %v930 = vextract.low.u32 %v929
    %v931 = vextract.high.u32 %v929
    %v932 = vmul.u32.u64.compose %v928, %v923
    %v933 = vextract.low.u32 %v932
    %v934 = vextract.high.u32 %v932
    %v935 = vmul.u32 %v928, %v919
    %v936 = vadd.s32 %v931, %v933
    %vm937 = vc.u32 %v931, %v933
    %v938 = vadd.s32 %v934, 1
    %v939 = vsel %vm937, %v938, %v934
    %v940 = vadd.s32 %v935, %v939
    %v941 = vadd.s32 %v940, 536870912
    %v942 = vshrl.u32 %v941, 30
    %v943 = vshll.u32 %v942, 30
    %v944 = vsub.s32 %v940, %v943
    %vm945 = vcmp.lt.s32.totalorder %v944, 0
    %v946 = vsub.s32 0, %v944
    %v947 = vsel %vm945, %v946, %v944
    %v948 = vclz %v947
    %v949 = vsub.s32 %v948, 2
    %vm950 = vcmp.gt.s32.totalorder 0, %v949
    %v951 = vsel %vm950, 0, %v949
    %v952 = vsub.s32 32, %v951
    %v953 = vshll.u32 %v944, %v951
    %v954 = vshrl.u32 %v936, %v952
    %v955 = vor.u32 %v953, %v954
    %v956 = vsub.s32 4294967266, %v951
    %v957 = vadd.s32 %v956, 127
    %v958 = vshll.u32 %v957, 23
    %v959 = vor.u32 4788187, %v958
    %v960 = vand.u32 2147483647, %v959
    %v962 = vcvt.s32.f32 %v955
    %v963 = vmul.f32 %v962, %v960
    %v964 = vxor.u32 %v963, 2147483648
    %v965 = vsel %vm882, %v964, %v963
    %v966 = vsub.s32 4, %v942
    %v967 = vsel %vm882, %v966, %v942
    %v968 = vsel %vm881, %v848, %v965
    %v969 = vsel %vm881, 0, %v967
    %v970 = vcosq.f32.pop %v968
    %v971 = vsinq.f32.pop %v968
    %vm972 = vweird.f32 %v848
    %v973 = vand.u32 %v969, 3
    %vm974 = vcmp.lt.s32.totalorder %v973, 2
    %vm975 = vcmp.eq.s32.totalorder %v973, 0
    %v976 = vxor.u32 %v971, 2147483648
    %v977 = vsel %vm975, %v970, %v976
    %vm978 = vcmp.eq.s32.totalorder %v973, 2
    %v979 = vxor.u32 %v970, 2147483648
    %v980 = vsel %vm978, %v979, %v971
    %v981 = vsel %vm974, %v977, %v980
    %v982 = vsel %vm972, nan, %v981
    %v983 = vand.u32 2147483647, %v849
    %vm984 = vcmp.le.f32.partialorder %v983, 0.7853982
    %vm985 = vcmp.lt.s32.totalorder %v849, 0
    %v986 = vand.u32 %v849, 2139095040
    %v987 = vshrl.u32 %v986, 23
    %v988 = vsub.s32 %v987, 127
    %v989 = vand.u32 2147483647, %v849
    %v990 = vand.u32 %v989, 8388607
    %v991 = vor.u32 %v990, 8388608
    %v992 = vsub.s32 0, %v991
    %v993 = vadd.s32 %v988, 1
    %vm994 = vcmp.gt.s32.totalorder %v993, 0
    %v995 = vsel %vm994, %v993, 0
    %v996 = vshrl.u32 %v995, 5
    %v997 = vand.u32 %v995, 31
    %v998 = vsub.s32 32, %v997
    %v999 = vshrl.u32 683565275, %v998
    %v1000 = vshll.u32 683565275, %v997
    %v1001 = vshrl.u32 2475754826, %v998
    %v1002 = vor.u32 %v1000, %v1001
    %v1003 = vshll.u32 2475754826, %v997
    %v1004 = vshrl.u32 2131351028, %v998
    %v1005 = vor.u32 %v1003, %v1004
    %v1006 = vshll.u32 2131351028, %v997
    %v1007 = vshrl.u32 2102212464, %v998
    %v1008 = vor.u32 %v1006, %v1007
    %v1009 = vshll.u32 2102212464, %v997
    %v1010 = vshrl.u32 920167782, %v998
    %v1011 = vor.u32 %v1009, %v1010
    %v1012 = vshll.u32 920167782, %v997
    %v1013 = vshrl.u32 1326507024, %v998
    %v1014 = vor.u32 %v1012, %v1013
    %vm1015 = vcmp.lt.s32.totalorder %v996, 1
    %vm1016 = vcmp.lt.s32.totalorder %v996, 2
    %vm1017 = vcmp.lt.s32.totalorder %v996, 3
    %vm1018 = vcmp.lt.s32.totalorder %v996, 4
    %v1019 = vsel %vm1015, %v999, %v1002
    %v1020 = vsel %vm1018, %v1008, 2102212464
    %v1021 = vsel %vm1017, %v1005, %v1020
    %v1022 = vsel %vm1016, %v1019, %v1021
    %v1023 = vsel %vm1015, %v1002, %v1005
    %v1024 = vsel %vm1018, %v1011, 920167782
    %v1025 = vsel %vm1017, %v1008, %v1024
    %v1026 = vsel %vm1016, %v1023, %v1025
    %v1027 = vsel %vm1015, %v1005, %v1008
    %v1028 = vsel %vm1018, %v1014, 1326507024
    %v1029 = vsel %vm1017, %v1011, %v1028
    %v1030 = vsel %vm1016, %v1027, %v1029
    %v1031 = vshll.u32 %v991, 8
    %v1032 = vmul.u32.u64.compose %v1031, %v1030
    %v1033 = vextract.low.u32 %v1032
    %v1034 = vextract.high.u32 %v1032
    %v1035 = vmul.u32.u64.compose %v1031, %v1026
    %v1036 = vextract.low.u32 %v1035
    %v1037 = vextract.high.u32 %v1035
    %v1038 = vmul.u32 %v1031, %v1022
    %v1039 = vadd.s32 %v1034, %v1036
    %vm1040 = vc.u32 %v1034, %v1036
    %v1041 = vadd.s32 %v1037, 1
    %v1042 = vsel %vm1040, %v1041, %v1037
    %v1043 = vadd.s32 %v1038, %v1042
    %v1044 = vadd.s32 %v1043, 536870912
    %v1045 = vshrl.u32 %v1044, 30
    %v1046 = vshll.u32 %v1045, 30
    %v1047 = vsub.s32 %v1043, %v1046
    %vm1048 = vcmp.lt.s32.totalorder %v1047, 0
    %v1049 = vsub.s32 0, %v1047
    %v1050 = vsel %vm1048, %v1049, %v1047
    %v1051 = vclz %v1050
    %v1052 = vsub.s32 %v1051, 2
    %vm1053 = vcmp.gt.s32.totalorder 0, %v1052
    %v1054 = vsel %vm1053, 0, %v1052
    %v1055 = vsub.s32 32, %v1054
    %v1056 = vshll.u32 %v1047, %v1054
    %v1057 = vshrl.u32 %v1039, %v1055
    %v1058 = vor.u32 %v1056, %v1057
    %v1059 = vsub.s32 4294967266, %v1054
    %v1060 = vadd.s32 %v1059, 127
    %v1061 = vshll.u32 %v1060, 23
    %v1062 = vor.u32 4788187, %v1061
    %v1063 = vand.u32 2147483647, %v1062
    %v1065 = vcvt.s32.f32 %v1058
    %v1066 = vmul.f32 %v1065, %v1063
    %v1067 = vxor.u32 %v1066, 2147483648
    %v1068 = vsel %vm985, %v1067, %v1066
    %v1069 = vsub.s32 4, %v1045
    %v1070 = vsel %vm985, %v1069, %v1045
    %v1071 = vsel %vm984, %v849, %v1068
    %v1072 = vsel %vm984, 0, %v1070
    %v1073 = vcosq.f32.pop %v1071
    %v1074 = vsinq.f32.pop %v1071
    %vm1075 = vweird.f32 %v849
    %v1076 = vand.u32 %v1072, 3
    %vm1077 = vcmp.lt.s32.totalorder %v1076, 2
    %vm1078 = vcmp.eq.s32.totalorder %v1076, 0
    %v1079 = vxor.u32 %v1074, 2147483648
    %v1080 = vsel %vm1078, %v1073, %v1079
    %vm1081 = vcmp.eq.s32.totalorder %v1076, 2
    %v1082 = vxor.u32 %v1073, 2147483648
    %v1083 = vsel %vm1081, %v1082, %v1074
    %v1084 = vsel %vm1077, %v1080, %v1083
    %v1085 = vsel %vm1075, nan, %v1084
    %v1086 = vand.u32 2147483647, %v850
    %vm1087 = vcmp.le.f32.partialorder %v1086, 0.7853982
    %vm1088 = vcmp.lt.s32.totalorder %v850, 0
    %v1089 = vand.u32 %v850, 2139095040
    %v1090 = vshrl.u32 %v1089, 23
    %v1091 = vsub.s32 %v1090, 127
    %v1092 = vand.u32 2147483647, %v850
    %v1093 = vand.u32 %v1092, 8388607
    %v1094 = vor.u32 %v1093, 8388608
    %v1095 = vsub.s32 0, %v1094
    %v1096 = vadd.s32 %v1091, 1
    %vm1097 = vcmp.gt.s32.totalorder %v1096, 0
    %v1098 = vsel %vm1097, %v1096, 0
    %v1099 = vshrl.u32 %v1098, 5
    %v1100 = vand.u32 %v1098, 31
    %v1101 = vsub.s32 32, %v1100
    %v1102 = vshrl.u32 683565275, %v1101
    %v1103 = vshll.u32 683565275, %v1100
    %v1104 = vshrl.u32 2475754826, %v1101
    %v1105 = vor.u32 %v1103, %v1104
    %v1106 = vshll.u32 2475754826, %v1100
    %v1107 = vshrl.u32 2131351028, %v1101
    %v1108 = vor.u32 %v1106, %v1107
    %v1109 = vshll.u32 2131351028, %v1100
    %v1110 = vshrl.u32 2102212464, %v1101
    %v1111 = vor.u32 %v1109, %v1110
    %v1112 = vshll.u32 2102212464, %v1100
    %v1113 = vshrl.u32 920167782, %v1101
    %v1114 = vor.u32 %v1112, %v1113
    %v1115 = vshll.u32 920167782, %v1100
    %v1116 = vshrl.u32 1326507024, %v1101
    %v1117 = vor.u32 %v1115, %v1116
    %vm1118 = vcmp.lt.s32.totalorder %v1099, 1
    %vm1119 = vcmp.lt.s32.totalorder %v1099, 2
    %vm1120 = vcmp.lt.s32.totalorder %v1099, 3
    %vm1121 = vcmp.lt.s32.totalorder %v1099, 4
    %v1122 = vsel %vm1118, %v1102, %v1105
    %v1123 = vsel %vm1121, %v1111, 2102212464
    %v1124 = vsel %vm1120, %v1108, %v1123
    %v1125 = vsel %vm1119, %v1122, %v1124
    %v1126 = vsel %vm1118, %v1105, %v1108
    %v1127 = vsel %vm1121, %v1114, 920167782
    %v1128 = vsel %vm1120, %v1111, %v1127
    %v1129 = vsel %vm1119, %v1126, %v1128
    %v1130 = vsel %vm1118, %v1108, %v1111
    %v1131 = vsel %vm1121, %v1117, 1326507024
    %v1132 = vsel %vm1120, %v1114, %v1131
    %v1133 = vsel %vm1119, %v1130, %v1132
    %v1134 = vshll.u32 %v1094, 8
    %v1135 = vmul.u32.u64.compose %v1134, %v1133
    %v1136 = vextract.low.u32 %v1135
    %v1137 = vextract.high.u32 %v1135
    %v1138 = vmul.u32.u64.compose %v1134, %v1129
    %v1139 = vextract.low.u32 %v1138
    %v1140 = vextract.high.u32 %v1138
    %v1141 = vmul.u32 %v1134, %v1125
    %v1142 = vadd.s32 %v1137, %v1139
    %vm1143 = vc.u32 %v1137, %v1139
    %v1144 = vadd.s32 %v1140, 1
    %v1145 = vsel %vm1143, %v1144, %v1140
    %v1146 = vadd.s32 %v1141, %v1145
    %v1147 = vadd.s32 %v1146, 536870912
    %v1148 = vshrl.u32 %v1147, 30
    %v1149 = vshll.u32 %v1148, 30
    %v1150 = vsub.s32 %v1146, %v1149
    %vm1151 = vcmp.lt.s32.totalorder %v1150, 0
    %v1152 = vsub.s32 0, %v1150
    %v1153 = vsel %vm1151, %v1152, %v1150
    %v1154 = vclz %v1153
    %v1155 = vsub.s32 %v1154, 2
    %vm1156 = vcmp.gt.s32.totalorder 0, %v1155
    %v1157 = vsel %vm1156, 0, %v1155
    %v1158 = vsub.s32 32, %v1157
    %v1159 = vshll.u32 %v1150, %v1157
    %v1160 = vshrl.u32 %v1142, %v1158
    %v1161 = vor.u32 %v1159, %v1160
    %v1162 = vsub.s32 4294967266, %v1157
    %v1163 = vadd.s32 %v1162, 127
    %v1164 = vshll.u32 %v1163, 23
    %v1165 = vor.u32 4788187, %v1164
    %v1166 = vand.u32 2147483647, %v1165
    %v1168 = vcvt.s32.f32 %v1161
    %v1169 = vmul.f32 %v1168, %v1166
    %v1170 = vxor.u32 %v1169, 2147483648
    %v1171 = vsel %vm1088, %v1170, %v1169
    %v1172 = vsub.s32 4, %v1148
    %v1173 = vsel %vm1088, %v1172, %v1148
    %v1174 = vsel %vm1087, %v850, %v1171
    %v1175 = vsel %vm1087, 0, %v1173
    %v1176 = vcosq.f32.pop %v1174
    %v1177 = vsinq.f32.pop %v1174
    %vm1178 = vweird.f32 %v850
    %v1179 = vand.u32 %v1175, 3
    %vm1180 = vcmp.lt.s32.totalorder %v1179, 2
    %vm1181 = vcmp.eq.s32.totalorder %v1179, 0
    %v1182 = vxor.u32 %v1177, 2147483648
    %v1183 = vsel %vm1181, %v1176, %v1182
    %vm1184 = vcmp.eq.s32.totalorder %v1179, 2
    %v1185 = vxor.u32 %v1176, 2147483648
    %v1186 = vsel %vm1184, %v1185, %v1177
    %v1187 = vsel %vm1180, %v1183, %v1186
    %v1188 = vsel %vm1178, nan, %v1187
    %v1189 = vand.u32 2147483647, %v851
    %vm1190 = vcmp.le.f32.partialorder %v1189, 0.7853982
    %vm1191 = vcmp.lt.s32.totalorder %v851, 0
    %v1192 = vand.u32 %v851, 2139095040
    %v1193 = vshrl.u32 %v1192, 23
    %v1194 = vsub.s32 %v1193, 127
    %v1195 = vand.u32 2147483647, %v851
    %v1196 = vand.u32 %v1195, 8388607
    %v1197 = vor.u32 %v1196, 8388608
    %v1198 = vsub.s32 0, %v1197
    %v1199 = vadd.s32 %v1194, 1
    %vm1200 = vcmp.gt.s32.totalorder %v1199, 0
    %v1201 = vsel %vm1200, %v1199, 0
    %v1202 = vshrl.u32 %v1201, 5
    %v1203 = vand.u32 %v1201, 31
    %v1204 = vsub.s32 32, %v1203
    %v1205 = vshrl.u32 683565275, %v1204
    %v1206 = vshll.u32 683565275, %v1203
    %v1207 = vshrl.u32 2475754826, %v1204
    %v1208 = vor.u32 %v1206, %v1207
    %v1209 = vshll.u32 2475754826, %v1203
    %v1210 = vshrl.u32 2131351028, %v1204
    %v1211 = vor.u32 %v1209, %v1210
    %v1212 = vshll.u32 2131351028, %v1203
    %v1213 = vshrl.u32 2102212464, %v1204
    %v1214 = vor.u32 %v1212, %v1213
    %v1215 = vshll.u32 2102212464, %v1203
    %v1216 = vshrl.u32 920167782, %v1204
    %v1217 = vor.u32 %v1215, %v1216
    %v1218 = vshll.u32 920167782, %v1203
    %v1219 = vshrl.u32 1326507024, %v1204
    %v1220 = vor.u32 %v1218, %v1219
    %vm1221 = vcmp.lt.s32.totalorder %v1202, 1
    %vm1222 = vcmp.lt.s32.totalorder %v1202, 2
    %vm1223 = vcmp.lt.s32.totalorder %v1202, 3
    %vm1224 = vcmp.lt.s32.totalorder %v1202, 4
    %v1225 = vsel %vm1221, %v1205, %v1208
    %v1226 = vsel %vm1224, %v1214, 2102212464
    %v1227 = vsel %vm1223, %v1211, %v1226
    %v1228 = vsel %vm1222, %v1225, %v1227
    %v1229 = vsel %vm1221, %v1208, %v1211
    %v1230 = vsel %vm1224, %v1217, 920167782
    %v1231 = vsel %vm1223, %v1214, %v1230
    %v1232 = vsel %vm1222, %v1229, %v1231
    %v1233 = vsel %vm1221, %v1211, %v1214
    %v1234 = vsel %vm1224, %v1220, 1326507024
    %v1235 = vsel %vm1223, %v1217, %v1234
    %v1236 = vsel %vm1222, %v1233, %v1235
    %v1237 = vshll.u32 %v1197, 8
    %v1238 = vmul.u32.u64.compose %v1237, %v1236
    %v1239 = vextract.low.u32 %v1238
    %v1240 = vextract.high.u32 %v1238
    %v1241 = vmul.u32.u64.compose %v1237, %v1232
    %v1242 = vextract.low.u32 %v1241
    %v1243 = vextract.high.u32 %v1241
    %v1244 = vmul.u32 %v1237, %v1228
    %v1245 = vadd.s32 %v1240, %v1242
    %vm1246 = vc.u32 %v1240, %v1242
    %v1247 = vadd.s32 %v1243, 1
    %v1248 = vsel %vm1246, %v1247, %v1243
    %v1249 = vadd.s32 %v1244, %v1248
    %v1250 = vadd.s32 %v1249, 536870912
    %v1251 = vshrl.u32 %v1250, 30
    %v1252 = vshll.u32 %v1251, 30
    %v1253 = vsub.s32 %v1249, %v1252
    %vm1254 = vcmp.lt.s32.totalorder %v1253, 0
    %v1255 = vsub.s32 0, %v1253
    %v1256 = vsel %vm1254, %v1255, %v1253
    %v1257 = vclz %v1256
    %v1258 = vsub.s32 %v1257, 2
    %vm1259 = vcmp.gt.s32.totalorder 0, %v1258
    %v1260 = vsel %vm1259, 0, %v1258
    %v1261 = vsub.s32 32, %v1260
    %v1262 = vshll.u32 %v1253, %v1260
    %v1263 = vshrl.u32 %v1245, %v1261
    %v1264 = vor.u32 %v1262, %v1263
    %v1265 = vsub.s32 4294967266, %v1260
    %v1266 = vadd.s32 %v1265, 127
    %v1267 = vshll.u32 %v1266, 23
    %v1268 = vor.u32 4788187, %v1267
    %v1269 = vand.u32 2147483647, %v1268
    %v1271 = vcvt.s32.f32 %v1264
    %v1272 = vmul.f32 %v1271, %v1269
    %v1273 = vxor.u32 %v1272, 2147483648
    %v1274 = vsel %vm1191, %v1273, %v1272
    %v1275 = vsub.s32 4, %v1251
    %v1276 = vsel %vm1191, %v1275, %v1251
    %v1277 = vsel %vm1190, %v851, %v1274
    %v1278 = vsel %vm1190, 0, %v1276
    %v1279 = vcosq.f32.pop %v1277
    %v1280 = vsinq.f32.pop %v1277
    %vm1281 = vweird.f32 %v851
    %v1282 = vand.u32 %v1278, 3
    %vm1283 = vcmp.lt.s32.totalorder %v1282, 2
    %vm1284 = vcmp.eq.s32.totalorder %v1282, 0
    %v1285 = vxor.u32 %v1280, 2147483648
    %v1286 = vsel %vm1284, %v1279, %v1285
    %vm1287 = vcmp.eq.s32.totalorder %v1282, 2
    %v1288 = vxor.u32 %v1279, 2147483648
    %v1289 = vsel %vm1287, %v1288, %v1280
    %v1290 = vsel %vm1283, %v1286, %v1289
    %v1291 = vsel %vm1281, nan, %v1290
    %v1292 = vand.u32 2147483647, %v852
    %vm1293 = vcmp.le.f32.partialorder %v1292, 0.7853982
    %vm1294 = vcmp.lt.s32.totalorder %v852, 0
    %v1295 = vand.u32 %v852, 2139095040
    %v1296 = vshrl.u32 %v1295, 23
    %v1297 = vsub.s32 %v1296, 127
    %v1298 = vand.u32 2147483647, %v852
    %v1299 = vand.u32 %v1298, 8388607
    %v1300 = vor.u32 %v1299, 8388608
    %v1301 = vsub.s32 0, %v1300
    %v1302 = vadd.s32 %v1297, 1
    %vm1303 = vcmp.gt.s32.totalorder %v1302, 0
    %v1304 = vsel %vm1303, %v1302, 0
    %v1305 = vshrl.u32 %v1304, 5
    %v1306 = vand.u32 %v1304, 31
    %v1307 = vsub.s32 32, %v1306
    %v1308 = vshrl.u32 683565275, %v1307
    %v1309 = vshll.u32 683565275, %v1306
    %v1310 = vshrl.u32 2475754826, %v1307
    %v1311 = vor.u32 %v1309, %v1310
    %v1312 = vshll.u32 2475754826, %v1306
    %v1313 = vshrl.u32 2131351028, %v1307
    %v1314 = vor.u32 %v1312, %v1313
    %v1315 = vshll.u32 2131351028, %v1306
    %v1316 = vshrl.u32 2102212464, %v1307
    %v1317 = vor.u32 %v1315, %v1316
    %v1318 = vshll.u32 2102212464, %v1306
    %v1319 = vshrl.u32 920167782, %v1307
    %v1320 = vor.u32 %v1318, %v1319
    %v1321 = vshll.u32 920167782, %v1306
    %v1322 = vshrl.u32 1326507024, %v1307
    %v1323 = vor.u32 %v1321, %v1322
    %vm1324 = vcmp.lt.s32.totalorder %v1305, 1
    %vm1325 = vcmp.lt.s32.totalorder %v1305, 2
    %vm1326 = vcmp.lt.s32.totalorder %v1305, 3
    %vm1327 = vcmp.lt.s32.totalorder %v1305, 4
    %v1328 = vsel %vm1324, %v1308, %v1311
    %v1329 = vsel %vm1327, %v1317, 2102212464
    %v1330 = vsel %vm1326, %v1314, %v1329
    %v1331 = vsel %vm1325, %v1328, %v1330
    %v1332 = vsel %vm1324, %v1311, %v1314
    %v1333 = vsel %vm1327, %v1320, 920167782
    %v1334 = vsel %vm1326, %v1317, %v1333
    %v1335 = vsel %vm1325, %v1332, %v1334
    %v1336 = vsel %vm1324, %v1314, %v1317
    %v1337 = vsel %vm1327, %v1323, 1326507024
    %v1338 = vsel %vm1326, %v1320, %v1337
    %v1339 = vsel %vm1325, %v1336, %v1338
    %v1340 = vshll.u32 %v1300, 8
    %v1341 = vmul.u32.u64.compose %v1340, %v1339
    %v1342 = vextract.low.u32 %v1341
    %v1343 = vextract.high.u32 %v1341
    %v1344 = vmul.u32.u64.compose %v1340, %v1335
    %v1345 = vextract.low.u32 %v1344
    %v1346 = vextract.high.u32 %v1344
    %v1347 = vmul.u32 %v1340, %v1331
    %v1348 = vadd.s32 %v1343, %v1345
    %vm1349 = vc.u32 %v1343, %v1345
    %v1350 = vadd.s32 %v1346, 1
    %v1351 = vsel %vm1349, %v1350, %v1346
    %v1352 = vadd.s32 %v1347, %v1351
    %v1353 = vadd.s32 %v1352, 536870912
    %v1354 = vshrl.u32 %v1353, 30
    %v1355 = vshll.u32 %v1354, 30
    %v1356 = vsub.s32 %v1352, %v1355
    %vm1357 = vcmp.lt.s32.totalorder %v1356, 0
    %v1358 = vsub.s32 0, %v1356
    %v1359 = vsel %vm1357, %v1358, %v1356
    %v1360 = vclz %v1359
    %v1361 = vsub.s32 %v1360, 2
    %vm1362 = vcmp.gt.s32.totalorder 0, %v1361
    %v1363 = vsel %vm1362, 0, %v1361
    %v1364 = vsub.s32 32, %v1363
    %v1365 = vshll.u32 %v1356, %v1363
    %v1366 = vshrl.u32 %v1348, %v1364
    %v1367 = vor.u32 %v1365, %v1366
    %v1368 = vsub.s32 4294967266, %v1363
    %v1369 = vadd.s32 %v1368, 127
    %v1370 = vshll.u32 %v1369, 23
    %v1371 = vor.u32 4788187, %v1370
    %v1372 = vand.u32 2147483647, %v1371
    %v1374 = vcvt.s32.f32 %v1367
    %v1375 = vmul.f32 %v1374, %v1372
    %v1376 = vxor.u32 %v1375, 2147483648
    %v1377 = vsel %vm1294, %v1376, %v1375
    %v1378 = vsub.s32 4, %v1354
    %v1379 = vsel %vm1294, %v1378, %v1354
    %v1380 = vsel %vm1293, %v852, %v1377
    %v1381 = vsel %vm1293, 0, %v1379
    %v1382 = vcosq.f32.pop %v1380
    %v1383 = vsinq.f32.pop %v1380
    %vm1384 = vweird.f32 %v852
    %v1385 = vand.u32 %v1381, 3
    %vm1386 = vcmp.lt.s32.totalorder %v1385, 2
    %vm1387 = vcmp.eq.s32.totalorder %v1385, 0
    %v1388 = vxor.u32 %v1383, 2147483648
    %v1389 = vsel %vm1387, %v1382, %v1388
    %vm1390 = vcmp.eq.s32.totalorder %v1385, 2
    %v1391 = vxor.u32 %v1382, 2147483648
    %v1392 = vsel %vm1390, %v1391, %v1383
    %v1393 = vsel %vm1386, %v1389, %v1392
    %v1394 = vsel %vm1384, nan, %v1393
    %v1395 = vand.u32 2147483647, %v853
    %vm1396 = vcmp.le.f32.partialorder %v1395, 0.7853982
    %vm1397 = vcmp.lt.s32.totalorder %v853, 0
    %v1398 = vand.u32 %v853, 2139095040
    %v1399 = vshrl.u32 %v1398, 23
    %v1400 = vsub.s32 %v1399, 127
    %v1401 = vand.u32 2147483647, %v853
    %v1402 = vand.u32 %v1401, 8388607
    %v1403 = vor.u32 %v1402, 8388608
    %v1404 = vsub.s32 0, %v1403
    %v1405 = vadd.s32 %v1400, 1
    %vm1406 = vcmp.gt.s32.totalorder %v1405, 0
    %v1407 = vsel %vm1406, %v1405, 0
    %v1408 = vshrl.u32 %v1407, 5
    %v1409 = vand.u32 %v1407, 31
    %v1410 = vsub.s32 32, %v1409
    %v1411 = vshrl.u32 683565275, %v1410
    %v1412 = vshll.u32 683565275, %v1409
    %v1413 = vshrl.u32 2475754826, %v1410
    %v1414 = vor.u32 %v1412, %v1413
    %v1415 = vshll.u32 2475754826, %v1409
    %v1416 = vshrl.u32 2131351028, %v1410
    %v1417 = vor.u32 %v1415, %v1416
    %v1418 = vshll.u32 2131351028, %v1409
    %v1419 = vshrl.u32 2102212464, %v1410
    %v1420 = vor.u32 %v1418, %v1419
    %v1421 = vshll.u32 2102212464, %v1409
    %v1422 = vshrl.u32 920167782, %v1410
    %v1423 = vor.u32 %v1421, %v1422
    %v1424 = vshll.u32 920167782, %v1409
    %v1425 = vshrl.u32 1326507024, %v1410
    %v1426 = vor.u32 %v1424, %v1425
    %vm1427 = vcmp.lt.s32.totalorder %v1408, 1
    %vm1428 = vcmp.lt.s32.totalorder %v1408, 2
    %vm1429 = vcmp.lt.s32.totalorder %v1408, 3
    %vm1430 = vcmp.lt.s32.totalorder %v1408, 4
    %v1431 = vsel %vm1427, %v1411, %v1414
    %v1432 = vsel %vm1430, %v1420, 2102212464
    %v1433 = vsel %vm1429, %v1417, %v1432
    %v1434 = vsel %vm1428, %v1431, %v1433
    %v1435 = vsel %vm1427, %v1414, %v1417
    %v1436 = vsel %vm1430, %v1423, 920167782
    %v1437 = vsel %vm1429, %v1420, %v1436
    %v1438 = vsel %vm1428, %v1435, %v1437
    %v1439 = vsel %vm1427, %v1417, %v1420
    %v1440 = vsel %vm1430, %v1426, 1326507024
    %v1441 = vsel %vm1429, %v1423, %v1440
    %v1442 = vsel %vm1428, %v1439, %v1441
    %v1443 = vshll.u32 %v1403, 8
    %v1444 = vmul.u32.u64.compose %v1443, %v1442
    %v1445 = vextract.low.u32 %v1444
    %v1446 = vextract.high.u32 %v1444
    %v1447 = vmul.u32.u64.compose %v1443, %v1438
    %v1448 = vextract.low.u32 %v1447
    %v1449 = vextract.high.u32 %v1447
    %v1450 = vmul.u32 %v1443, %v1434
    %v1451 = vadd.s32 %v1446, %v1448
    %vm1452 = vc.u32 %v1446, %v1448
    %v1453 = vadd.s32 %v1449, 1
    %v1454 = vsel %vm1452, %v1453, %v1449
    %v1455 = vadd.s32 %v1450, %v1454
    %v1456 = vadd.s32 %v1455, 536870912
    %v1457 = vshrl.u32 %v1456, 30
    %v1458 = vshll.u32 %v1457, 30
    %v1459 = vsub.s32 %v1455, %v1458
    %vm1460 = vcmp.lt.s32.totalorder %v1459, 0
    %v1461 = vsub.s32 0, %v1459
    %v1462 = vsel %vm1460, %v1461, %v1459
    %v1463 = vclz %v1462
    %v1464 = vsub.s32 %v1463, 2
    %vm1465 = vcmp.gt.s32.totalorder 0, %v1464
    %v1466 = vsel %vm1465, 0, %v1464
    %v1467 = vsub.s32 32, %v1466
    %v1468 = vshll.u32 %v1459, %v1466
    %v1469 = vshrl.u32 %v1451, %v1467
    %v1470 = vor.u32 %v1468, %v1469
    %v1471 = vsub.s32 4294967266, %v1466
    %v1472 = vadd.s32 %v1471, 127
    %v1473 = vshll.u32 %v1472, 23
    %v1474 = vor.u32 4788187, %v1473
    %v1475 = vand.u32 2147483647, %v1474
    %v1477 = vcvt.s32.f32 %v1470
    %v1478 = vmul.f32 %v1477, %v1475
    %v1479 = vxor.u32 %v1478, 2147483648
    %v1480 = vsel %vm1397, %v1479, %v1478
    %v1481 = vsub.s32 4, %v1457
    %v1482 = vsel %vm1397, %v1481, %v1457
    %v1483 = vsel %vm1396, %v853, %v1480
    %v1484 = vsel %vm1396, 0, %v1482
    %v1485 = vcosq.f32.pop %v1483
    %v1486 = vsinq.f32.pop %v1483
    %vm1487 = vweird.f32 %v853
    %v1488 = vand.u32 %v1484, 3
    %vm1489 = vcmp.lt.s32.totalorder %v1488, 2
    %vm1490 = vcmp.eq.s32.totalorder %v1488, 0
    %v1491 = vxor.u32 %v1486, 2147483648
    %v1492 = vsel %vm1490, %v1485, %v1491
    %vm1493 = vcmp.eq.s32.totalorder %v1488, 2
    %v1494 = vxor.u32 %v1485, 2147483648
    %v1495 = vsel %vm1493, %v1494, %v1486
    %v1496 = vsel %vm1489, %v1492, %v1495
    %v1497 = vsel %vm1487, nan, %v1496
    %v1498 = vand.u32 2147483647, %v854
    %vm1499 = vcmp.le.f32.partialorder %v1498, 0.7853982
    %vm1500 = vcmp.lt.s32.totalorder %v854, 0
    %v1501 = vand.u32 %v854, 2139095040
    %v1502 = vshrl.u32 %v1501, 23
    %v1503 = vsub.s32 %v1502, 127
    %v1504 = vand.u32 2147483647, %v854
    %v1505 = vand.u32 %v1504, 8388607
    %v1506 = vor.u32 %v1505, 8388608
    %v1507 = vsub.s32 0, %v1506
    %v1508 = vadd.s32 %v1503, 1
    %vm1509 = vcmp.gt.s32.totalorder %v1508, 0
    %v1510 = vsel %vm1509, %v1508, 0
    %v1511 = vshrl.u32 %v1510, 5
    %v1512 = vand.u32 %v1510, 31
    %v1513 = vsub.s32 32, %v1512
    %v1514 = vshrl.u32 683565275, %v1513
    %v1515 = vshll.u32 683565275, %v1512
    %v1516 = vshrl.u32 2475754826, %v1513
    %v1517 = vor.u32 %v1515, %v1516
    %v1518 = vshll.u32 2475754826, %v1512
    %v1519 = vshrl.u32 2131351028, %v1513
    %v1520 = vor.u32 %v1518, %v1519
    %v1521 = vshll.u32 2131351028, %v1512
    %v1522 = vshrl.u32 2102212464, %v1513
    %v1523 = vor.u32 %v1521, %v1522
    %v1524 = vshll.u32 2102212464, %v1512
    %v1525 = vshrl.u32 920167782, %v1513
    %v1526 = vor.u32 %v1524, %v1525
    %v1527 = vshll.u32 920167782, %v1512
    %v1528 = vshrl.u32 1326507024, %v1513
    %v1529 = vor.u32 %v1527, %v1528
    %vm1530 = vcmp.lt.s32.totalorder %v1511, 1
    %vm1531 = vcmp.lt.s32.totalorder %v1511, 2
    %vm1532 = vcmp.lt.s32.totalorder %v1511, 3
    %vm1533 = vcmp.lt.s32.totalorder %v1511, 4
    %v1534 = vsel %vm1530, %v1514, %v1517
    %v1535 = vsel %vm1533, %v1523, 2102212464
    %v1536 = vsel %vm1532, %v1520, %v1535
    %v1537 = vsel %vm1531, %v1534, %v1536
    %v1538 = vsel %vm1530, %v1517, %v1520
    %v1539 = vsel %vm1533, %v1526, 920167782
    %v1540 = vsel %vm1532, %v1523, %v1539
    %v1541 = vsel %vm1531, %v1538, %v1540
    %v1542 = vsel %vm1530, %v1520, %v1523
    %v1543 = vsel %vm1533, %v1529, 1326507024
    %v1544 = vsel %vm1532, %v1526, %v1543
    %v1545 = vsel %vm1531, %v1542, %v1544
    %v1546 = vshll.u32 %v1506, 8
    %v1547 = vmul.u32.u64.compose %v1546, %v1545
    %v1548 = vextract.low.u32 %v1547
    %v1549 = vextract.high.u32 %v1547
    %v1550 = vmul.u32.u64.compose %v1546, %v1541
    %v1551 = vextract.low.u32 %v1550
    %v1552 = vextract.high.u32 %v1550
    %v1553 = vmul.u32 %v1546, %v1537
    %v1554 = vadd.s32 %v1549, %v1551
    %vm1555 = vc.u32 %v1549, %v1551
    %v1556 = vadd.s32 %v1552, 1
    %v1557 = vsel %vm1555, %v1556, %v1552
    %v1558 = vadd.s32 %v1553, %v1557
    %v1559 = vadd.s32 %v1558, 536870912
    %v1560 = vshrl.u32 %v1559, 30
    %v1561 = vshll.u32 %v1560, 30
    %v1562 = vsub.s32 %v1558, %v1561
    %vm1563 = vcmp.lt.s32.totalorder %v1562, 0
    %v1564 = vsub.s32 0, %v1562
    %v1565 = vsel %vm1563, %v1564, %v1562
    %v1566 = vclz %v1565
    %v1567 = vsub.s32 %v1566, 2
    %vm1568 = vcmp.gt.s32.totalorder 0, %v1567
    %v1569 = vsel %vm1568, 0, %v1567
    %v1570 = vsub.s32 32, %v1569
    %v1571 = vshll.u32 %v1562, %v1569
    %v1572 = vshrl.u32 %v1554, %v1570
    %v1573 = vor.u32 %v1571, %v1572
    %v1574 = vsub.s32 4294967266, %v1569
    %v1575 = vadd.s32 %v1574, 127
    %v1576 = vshll.u32 %v1575, 23
    %v1577 = vor.u32 4788187, %v1576
    %v1578 = vand.u32 2147483647, %v1577
    %v1580 = vcvt.s32.f32 %v1573
    %v1581 = vmul.f32 %v1580, %v1578
    %v1582 = vxor.u32 %v1581, 2147483648
    %v1583 = vsel %vm1500, %v1582, %v1581
    %v1584 = vsub.s32 4, %v1560
    %v1585 = vsel %vm1500, %v1584, %v1560
    %v1586 = vsel %vm1499, %v854, %v1583
    %v1587 = vsel %vm1499, 0, %v1585
    %v1588 = vcosq.f32.pop %v1586
    %v1589 = vsinq.f32.pop %v1586
    %vm1590 = vweird.f32 %v854
    %v1591 = vand.u32 %v1587, 3
    %vm1592 = vcmp.lt.s32.totalorder %v1591, 2
    %vm1593 = vcmp.eq.s32.totalorder %v1591, 0
    %v1594 = vxor.u32 %v1589, 2147483648
    %v1595 = vsel %vm1593, %v1588, %v1594
    %vm1596 = vcmp.eq.s32.totalorder %v1591, 2
    %v1597 = vxor.u32 %v1588, 2147483648
    %v1598 = vsel %vm1596, %v1597, %v1589
    %v1599 = vsel %vm1592, %v1595, %v1598
    %v1600 = vsel %vm1590, nan, %v1599
    %v1601 = vand.u32 2147483647, %v855
    %vm1602 = vcmp.le.f32.partialorder %v1601, 0.7853982
    %vm1603 = vcmp.lt.s32.totalorder %v855, 0
    %v1604 = vand.u32 %v855, 2139095040
    %v1605 = vshrl.u32 %v1604, 23
    %v1606 = vsub.s32 %v1605, 127
    %v1607 = vand.u32 2147483647, %v855
    %v1608 = vand.u32 %v1607, 8388607
    %v1609 = vor.u32 %v1608, 8388608
    %v1610 = vsub.s32 0, %v1609
    %v1611 = vadd.s32 %v1606, 1
    %vm1612 = vcmp.gt.s32.totalorder %v1611, 0
    %v1613 = vsel %vm1612, %v1611, 0
    %v1614 = vshrl.u32 %v1613, 5
    %v1615 = vand.u32 %v1613, 31
    %v1616 = vsub.s32 32, %v1615
    %v1617 = vshrl.u32 683565275, %v1616
    %v1618 = vshll.u32 683565275, %v1615
    %v1619 = vshrl.u32 2475754826, %v1616
    %v1620 = vor.u32 %v1618, %v1619
    %v1621 = vshll.u32 2475754826, %v1615
    %v1622 = vshrl.u32 2131351028, %v1616
    %v1623 = vor.u32 %v1621, %v1622
    %v1624 = vshll.u32 2131351028, %v1615
    %v1625 = vshrl.u32 2102212464, %v1616
    %v1626 = vor.u32 %v1624, %v1625
    %v1627 = vshll.u32 2102212464, %v1615
    %v1628 = vshrl.u32 920167782, %v1616
    %v1629 = vor.u32 %v1627, %v1628
    %v1630 = vshll.u32 920167782, %v1615
    %v1631 = vshrl.u32 1326507024, %v1616
    %v1632 = vor.u32 %v1630, %v1631
    %vm1633 = vcmp.lt.s32.totalorder %v1614, 1
    %vm1634 = vcmp.lt.s32.totalorder %v1614, 2
    %vm1635 = vcmp.lt.s32.totalorder %v1614, 3
    %vm1636 = vcmp.lt.s32.totalorder %v1614, 4
    %v1637 = vsel %vm1633, %v1617, %v1620
    %v1638 = vsel %vm1636, %v1626, 2102212464
    %v1639 = vsel %vm1635, %v1623, %v1638
    %v1640 = vsel %vm1634, %v1637, %v1639
    %v1641 = vsel %vm1633, %v1620, %v1623
    %v1642 = vsel %vm1636, %v1629, 920167782
    %v1643 = vsel %vm1635, %v1626, %v1642
    %v1644 = vsel %vm1634, %v1641, %v1643
    %v1645 = vsel %vm1633, %v1623, %v1626
    %v1646 = vsel %vm1636, %v1632, 1326507024
    %v1647 = vsel %vm1635, %v1629, %v1646
    %v1648 = vsel %vm1634, %v1645, %v1647
    %v1649 = vshll.u32 %v1609, 8
    %v1650 = vmul.u32.u64.compose %v1649, %v1648
    %v1651 = vextract.low.u32 %v1650
    %v1652 = vextract.high.u32 %v1650
    %v1653 = vmul.u32.u64.compose %v1649, %v1644
    %v1654 = vextract.low.u32 %v1653
    %v1655 = vextract.high.u32 %v1653
    %v1656 = vmul.u32 %v1649, %v1640
    %v1657 = vadd.s32 %v1652, %v1654
    %vm1658 = vc.u32 %v1652, %v1654
    %v1659 = vadd.s32 %v1655, 1
    %v1660 = vsel %vm1658, %v1659, %v1655
    %v1661 = vadd.s32 %v1656, %v1660
    %v1662 = vadd.s32 %v1661, 536870912
    %v1663 = vshrl.u32 %v1662, 30
    %v1664 = vshll.u32 %v1663, 30
    %v1665 = vsub.s32 %v1661, %v1664
    %vm1666 = vcmp.lt.s32.totalorder %v1665, 0
    %v1667 = vsub.s32 0, %v1665
    %v1668 = vsel %vm1666, %v1667, %v1665
    %v1669 = vclz %v1668
    %v1670 = vsub.s32 %v1669, 2
    %vm1671 = vcmp.gt.s32.totalorder 0, %v1670
    %v1672 = vsel %vm1671, 0, %v1670
    %v1673 = vsub.s32 32, %v1672
    %v1674 = vshll.u32 %v1665, %v1672
    %v1675 = vshrl.u32 %v1657, %v1673
    %v1676 = vor.u32 %v1674, %v1675
    %v1677 = vsub.s32 4294967266, %v1672
    %v1678 = vadd.s32 %v1677, 127
    %v1679 = vshll.u32 %v1678, 23
    %v1680 = vor.u32 4788187, %v1679
    %v1681 = vand.u32 2147483647, %v1680
    %v1683 = vcvt.s32.f32 %v1676
    %v1684 = vmul.f32 %v1683, %v1681
    %v1685 = vxor.u32 %v1684, 2147483648
    %v1686 = vsel %vm1603, %v1685, %v1684
    %v1687 = vsub.s32 4, %v1663
    %v1688 = vsel %vm1603, %v1687, %v1663
    %v1689 = vsel %vm1602, %v855, %v1686
    %v1690 = vsel %vm1602, 0, %v1688
    %v1691 = vcosq.f32.pop %v1689
    %v1692 = vsinq.f32.pop %v1689
    %vm1693 = vweird.f32 %v855
    %v1694 = vand.u32 %v1690, 3
    %vm1695 = vcmp.lt.s32.totalorder %v1694, 2
    %vm1696 = vcmp.eq.s32.totalorder %v1694, 0
    %v1697 = vxor.u32 %v1692, 2147483648
    %v1698 = vsel %vm1696, %v1691, %v1697
    %vm1699 = vcmp.eq.s32.totalorder %v1694, 2
    %v1700 = vxor.u32 %v1691, 2147483648
    %v1701 = vsel %vm1699, %v1700, %v1692
    %v1702 = vsel %vm1695, %v1698, %v1701
    %v1703 = vsel %vm1693, nan, %v1702
    %v1704 = vand.u32 2147483647, %v856
    %vm1705 = vcmp.le.f32.partialorder %v1704, 0.7853982
    %vm1706 = vcmp.lt.s32.totalorder %v856, 0
    %v1707 = vand.u32 %v856, 2139095040
    %v1708 = vshrl.u32 %v1707, 23
    %v1709 = vsub.s32 %v1708, 127
    %v1710 = vand.u32 2147483647, %v856
    %v1711 = vand.u32 %v1710, 8388607
    %v1712 = vor.u32 %v1711, 8388608
    %v1713 = vsub.s32 0, %v1712
    %v1714 = vadd.s32 %v1709, 1
    %vm1715 = vcmp.gt.s32.totalorder %v1714, 0
    %v1716 = vsel %vm1715, %v1714, 0
    %v1717 = vshrl.u32 %v1716, 5
    %v1718 = vand.u32 %v1716, 31
    %v1719 = vsub.s32 32, %v1718
    %v1720 = vshrl.u32 683565275, %v1719
    %v1721 = vshll.u32 683565275, %v1718
    %v1722 = vshrl.u32 2475754826, %v1719
    %v1723 = vor.u32 %v1721, %v1722
    %v1724 = vshll.u32 2475754826, %v1718
    %v1725 = vshrl.u32 2131351028, %v1719
    %v1726 = vor.u32 %v1724, %v1725
    %v1727 = vshll.u32 2131351028, %v1718
    %v1728 = vshrl.u32 2102212464, %v1719
    %v1729 = vor.u32 %v1727, %v1728
    %v1730 = vshll.u32 2102212464, %v1718
    %v1731 = vshrl.u32 920167782, %v1719
    %v1732 = vor.u32 %v1730, %v1731
    %v1733 = vshll.u32 920167782, %v1718
    %v1734 = vshrl.u32 1326507024, %v1719
    %v1735 = vor.u32 %v1733, %v1734
    %vm1736 = vcmp.lt.s32.totalorder %v1717, 1
    %vm1737 = vcmp.lt.s32.totalorder %v1717, 2
    %vm1738 = vcmp.lt.s32.totalorder %v1717, 3
    %vm1739 = vcmp.lt.s32.totalorder %v1717, 4
    %v1740 = vsel %vm1736, %v1720, %v1723
    %v1741 = vsel %vm1739, %v1729, 2102212464
    %v1742 = vsel %vm1738, %v1726, %v1741
    %v1743 = vsel %vm1737, %v1740, %v1742
    %v1744 = vsel %vm1736, %v1723, %v1726
    %v1745 = vsel %vm1739, %v1732, 920167782
    %v1746 = vsel %vm1738, %v1729, %v1745
    %v1747 = vsel %vm1737, %v1744, %v1746
    %v1748 = vsel %vm1736, %v1726, %v1729
    %v1749 = vsel %vm1739, %v1735, 1326507024
    %v1750 = vsel %vm1738, %v1732, %v1749
    %v1751 = vsel %vm1737, %v1748, %v1750
    %v1752 = vshll.u32 %v1712, 8
    %v1753 = vmul.u32.u64.compose %v1752, %v1751
    %v1754 = vextract.low.u32 %v1753
    %v1755 = vextract.high.u32 %v1753
    %v1756 = vmul.u32.u64.compose %v1752, %v1747
    %v1757 = vextract.low.u32 %v1756
    %v1758 = vextract.high.u32 %v1756
    %v1759 = vmul.u32 %v1752, %v1743
    %v1760 = vadd.s32 %v1755, %v1757
    %vm1761 = vc.u32 %v1755, %v1757
    %v1762 = vadd.s32 %v1758, 1
    %v1763 = vsel %vm1761, %v1762, %v1758
    %v1764 = vadd.s32 %v1759, %v1763
    %v1765 = vadd.s32 %v1764, 536870912
    %v1766 = vshrl.u32 %v1765, 30
    %v1767 = vshll.u32 %v1766, 30
    %v1768 = vsub.s32 %v1764, %v1767
    %vm1769 = vcmp.lt.s32.totalorder %v1768, 0
    %v1770 = vsub.s32 0, %v1768
    %v1771 = vsel %vm1769, %v1770, %v1768
    %v1772 = vclz %v1771
    %v1773 = vsub.s32 %v1772, 2
    %vm1774 = vcmp.gt.s32.totalorder 0, %v1773
    %v1775 = vsel %vm1774, 0, %v1773
    %v1776 = vsub.s32 32, %v1775
    %v1777 = vshll.u32 %v1768, %v1775
    %v1778 = vshrl.u32 %v1760, %v1776
    %v1779 = vor.u32 %v1777, %v1778
    %v1780 = vsub.s32 4294967266, %v1775
    %v1781 = vadd.s32 %v1780, 127
    %v1782 = vshll.u32 %v1781, 23
    %v1783 = vor.u32 4788187, %v1782
    %v1784 = vand.u32 2147483647, %v1783
    %v1786 = vcvt.s32.f32 %v1779
    %v1787 = vmul.f32 %v1786, %v1784
    %v1788 = vxor.u32 %v1787, 2147483648
    %v1789 = vsel %vm1706, %v1788, %v1787
    %v1790 = vsub.s32 4, %v1766
    %v1791 = vsel %vm1706, %v1790, %v1766
    %v1792 = vsel %vm1705, %v856, %v1789
    %v1793 = vsel %vm1705, 0, %v1791
    %v1794 = vcosq.f32.pop %v1792
    %v1795 = vsinq.f32.pop %v1792
    %vm1796 = vweird.f32 %v856
    %v1797 = vand.u32 %v1793, 3
    %vm1798 = vcmp.lt.s32.totalorder %v1797, 2
    %vm1799 = vcmp.eq.s32.totalorder %v1797, 0
    %v1800 = vxor.u32 %v1795, 2147483648
    %v1801 = vsel %vm1799, %v1794, %v1800
    %vm1802 = vcmp.eq.s32.totalorder %v1797, 2
    %v1803 = vxor.u32 %v1794, 2147483648
    %v1804 = vsel %vm1802, %v1803, %v1795
    %v1805 = vsel %vm1798, %v1801, %v1804
    %v1806 = vsel %vm1796, nan, %v1805
    %v1807 = vand.u32 2147483647, %v857
    %vm1808 = vcmp.le.f32.partialorder %v1807, 0.7853982
    %vm1809 = vcmp.lt.s32.totalorder %v857, 0
    %v1810 = vand.u32 %v857, 2139095040
    %v1811 = vshrl.u32 %v1810, 23
    %v1812 = vsub.s32 %v1811, 127
    %v1813 = vand.u32 2147483647, %v857
    %v1814 = vand.u32 %v1813, 8388607
    %v1815 = vor.u32 %v1814, 8388608
    %v1816 = vsub.s32 0, %v1815
    %v1817 = vadd.s32 %v1812, 1
    %vm1818 = vcmp.gt.s32.totalorder %v1817, 0
    %v1819 = vsel %vm1818, %v1817, 0
    %v1820 = vshrl.u32 %v1819, 5
    %v1821 = vand.u32 %v1819, 31
    %v1822 = vsub.s32 32, %v1821
    %v1823 = vshrl.u32 683565275, %v1822
    %v1824 = vshll.u32 683565275, %v1821
    %v1825 = vshrl.u32 2475754826, %v1822
    %v1826 = vor.u32 %v1824, %v1825
    %v1827 = vshll.u32 2475754826, %v1821
    %v1828 = vshrl.u32 2131351028, %v1822
    %v1829 = vor.u32 %v1827, %v1828
    %v1830 = vshll.u32 2131351028, %v1821
    %v1831 = vshrl.u32 2102212464, %v1822
    %v1832 = vor.u32 %v1830, %v1831
    %v1833 = vshll.u32 2102212464, %v1821
    %v1834 = vshrl.u32 920167782, %v1822
    %v1835 = vor.u32 %v1833, %v1834
    %v1836 = vshll.u32 920167782, %v1821
    %v1837 = vshrl.u32 1326507024, %v1822
    %v1838 = vor.u32 %v1836, %v1837
    %vm1839 = vcmp.lt.s32.totalorder %v1820, 1
    %vm1840 = vcmp.lt.s32.totalorder %v1820, 2
    %vm1841 = vcmp.lt.s32.totalorder %v1820, 3
    %vm1842 = vcmp.lt.s32.totalorder %v1820, 4
    %v1843 = vsel %vm1839, %v1823, %v1826
    %v1844 = vsel %vm1842, %v1832, 2102212464
    %v1845 = vsel %vm1841, %v1829, %v1844
    %v1846 = vsel %vm1840, %v1843, %v1845
    %v1847 = vsel %vm1839, %v1826, %v1829
    %v1848 = vsel %vm1842, %v1835, 920167782
    %v1849 = vsel %vm1841, %v1832, %v1848
    %v1850 = vsel %vm1840, %v1847, %v1849
    %v1851 = vsel %vm1839, %v1829, %v1832
    %v1852 = vsel %vm1842, %v1838, 1326507024
    %v1853 = vsel %vm1841, %v1835, %v1852
    %v1854 = vsel %vm1840, %v1851, %v1853
    %v1855 = vshll.u32 %v1815, 8
    %v1856 = vmul.u32.u64.compose %v1855, %v1854
    %v1857 = vextract.low.u32 %v1856
    %v1858 = vextract.high.u32 %v1856
    %v1859 = vmul.u32.u64.compose %v1855, %v1850
    %v1860 = vextract.low.u32 %v1859
    %v1861 = vextract.high.u32 %v1859
    %v1862 = vmul.u32 %v1855, %v1846
    %v1863 = vadd.s32 %v1858, %v1860
    %vm1864 = vc.u32 %v1858, %v1860
    %v1865 = vadd.s32 %v1861, 1
    %v1866 = vsel %vm1864, %v1865, %v1861
    %v1867 = vadd.s32 %v1862, %v1866
    %v1868 = vadd.s32 %v1867, 536870912
    %v1869 = vshrl.u32 %v1868, 30
    %v1870 = vshll.u32 %v1869, 30
    %v1871 = vsub.s32 %v1867, %v1870
    %vm1872 = vcmp.lt.s32.totalorder %v1871, 0
    %v1873 = vsub.s32 0, %v1871
    %v1874 = vsel %vm1872, %v1873, %v1871
    %v1875 = vclz %v1874
    %v1876 = vsub.s32 %v1875, 2
    %vm1877 = vcmp.gt.s32.totalorder 0, %v1876
    %v1878 = vsel %vm1877, 0, %v1876
    %v1879 = vsub.s32 32, %v1878
    %v1880 = vshll.u32 %v1871, %v1878
    %v1881 = vshrl.u32 %v1863, %v1879
    %v1882 = vor.u32 %v1880, %v1881
    %v1883 = vsub.s32 4294967266, %v1878
    %v1884 = vadd.s32 %v1883, 127
    %v1885 = vshll.u32 %v1884, 23
    %v1886 = vor.u32 4788187, %v1885
    %v1887 = vand.u32 2147483647, %v1886
    %v1889 = vcvt.s32.f32 %v1882
    %v1890 = vmul.f32 %v1889, %v1887
    %v1891 = vxor.u32 %v1890, 2147483648
    %v1892 = vsel %vm1809, %v1891, %v1890
    %v1893 = vsub.s32 4, %v1869
    %v1894 = vsel %vm1809, %v1893, %v1869
    %v1895 = vsel %vm1808, %v857, %v1892
    %v1896 = vsel %vm1808, 0, %v1894
    %v1897 = vcosq.f32.pop %v1895
    %v1898 = vsinq.f32.pop %v1895
    %vm1899 = vweird.f32 %v857
    %v1900 = vand.u32 %v1896, 3
    %vm1901 = vcmp.lt.s32.totalorder %v1900, 2
    %vm1902 = vcmp.eq.s32.totalorder %v1900, 0
    %v1903 = vxor.u32 %v1898, 2147483648
    %v1904 = vsel %vm1902, %v1897, %v1903
    %vm1905 = vcmp.eq.s32.totalorder %v1900, 2
    %v1906 = vxor.u32 %v1897, 2147483648
    %v1907 = vsel %vm1905, %v1906, %v1898
    %v1908 = vsel %vm1901, %v1904, %v1907
    %v1909 = vsel %vm1899, nan, %v1908
    %v1910 = vand.u32 2147483647, %v858
    %vm1911 = vcmp.le.f32.partialorder %v1910, 0.7853982
    %vm1912 = vcmp.lt.s32.totalorder %v858, 0
    %v1913 = vand.u32 %v858, 2139095040
    %v1914 = vshrl.u32 %v1913, 23
    %v1915 = vsub.s32 %v1914, 127
    %v1916 = vand.u32 2147483647, %v858
    %v1917 = vand.u32 %v1916, 8388607
    %v1918 = vor.u32 %v1917, 8388608
    %v1919 = vsub.s32 0, %v1918
    %v1920 = vadd.s32 %v1915, 1
    %vm1921 = vcmp.gt.s32.totalorder %v1920, 0
    %v1922 = vsel %vm1921, %v1920, 0
    %v1923 = vshrl.u32 %v1922, 5
    %v1924 = vand.u32 %v1922, 31
    %v1925 = vsub.s32 32, %v1924
    %v1926 = vshrl.u32 683565275, %v1925
    %v1927 = vshll.u32 683565275, %v1924
    %v1928 = vshrl.u32 2475754826, %v1925
    %v1929 = vor.u32 %v1927, %v1928
    %v1930 = vshll.u32 2475754826, %v1924
    %v1931 = vshrl.u32 2131351028, %v1925
    %v1932 = vor.u32 %v1930, %v1931
    %v1933 = vshll.u32 2131351028, %v1924
    %v1934 = vshrl.u32 2102212464, %v1925
    %v1935 = vor.u32 %v1933, %v1934
    %v1936 = vshll.u32 2102212464, %v1924
    %v1937 = vshrl.u32 920167782, %v1925
    %v1938 = vor.u32 %v1936, %v1937
    %v1939 = vshll.u32 920167782, %v1924
    %v1940 = vshrl.u32 1326507024, %v1925
    %v1941 = vor.u32 %v1939, %v1940
    %vm1942 = vcmp.lt.s32.totalorder %v1923, 1
    %vm1943 = vcmp.lt.s32.totalorder %v1923, 2
    %vm1944 = vcmp.lt.s32.totalorder %v1923, 3
    %vm1945 = vcmp.lt.s32.totalorder %v1923, 4
    %v1946 = vsel %vm1942, %v1926, %v1929
    %v1947 = vsel %vm1945, %v1935, 2102212464
    %v1948 = vsel %vm1944, %v1932, %v1947
    %v1949 = vsel %vm1943, %v1946, %v1948
    %v1950 = vsel %vm1942, %v1929, %v1932
    %v1951 = vsel %vm1945, %v1938, 920167782
    %v1952 = vsel %vm1944, %v1935, %v1951
    %v1953 = vsel %vm1943, %v1950, %v1952
    %v1954 = vsel %vm1942, %v1932, %v1935
    %v1955 = vsel %vm1945, %v1941, 1326507024
    %v1956 = vsel %vm1944, %v1938, %v1955
    %v1957 = vsel %vm1943, %v1954, %v1956
    %v1958 = vshll.u32 %v1918, 8
    %v1959 = vmul.u32.u64.compose %v1958, %v1957
    %v1960 = vextract.low.u32 %v1959
    %v1961 = vextract.high.u32 %v1959
    %v1962 = vmul.u32.u64.compose %v1958, %v1953
    %v1963 = vextract.low.u32 %v1962
    %v1964 = vextract.high.u32 %v1962
    %v1965 = vmul.u32 %v1958, %v1949
    %v1966 = vadd.s32 %v1961, %v1963
    %vm1967 = vc.u32 %v1961, %v1963
    %v1968 = vadd.s32 %v1964, 1
    %v1969 = vsel %vm1967, %v1968, %v1964
    %v1970 = vadd.s32 %v1965, %v1969
    %v1971 = vadd.s32 %v1970, 536870912
    %v1972 = vshrl.u32 %v1971, 30
    %v1973 = vshll.u32 %v1972, 30
    %v1974 = vsub.s32 %v1970, %v1973
    %vm1975 = vcmp.lt.s32.totalorder %v1974, 0
    %v1976 = vsub.s32 0, %v1974
    %v1977 = vsel %vm1975, %v1976, %v1974
    %v1978 = vclz %v1977
    %v1979 = vsub.s32 %v1978, 2
    %vm1980 = vcmp.gt.s32.totalorder 0, %v1979
    %v1981 = vsel %vm1980, 0, %v1979
    %v1982 = vsub.s32 32, %v1981
    %v1983 = vshll.u32 %v1974, %v1981
    %v1984 = vshrl.u32 %v1966, %v1982
    %v1985 = vor.u32 %v1983, %v1984
    %v1986 = vsub.s32 4294967266, %v1981
    %v1987 = vadd.s32 %v1986, 127
    %v1988 = vshll.u32 %v1987, 23
    %v1989 = vor.u32 4788187, %v1988
    %v1990 = vand.u32 2147483647, %v1989
    %v1992 = vcvt.s32.f32 %v1985
    %v1993 = vmul.f32 %v1992, %v1990
    %v1994 = vxor.u32 %v1993, 2147483648
    %v1995 = vsel %vm1912, %v1994, %v1993
    %v1996 = vsub.s32 4, %v1972
    %v1997 = vsel %vm1912, %v1996, %v1972
    %v1998 = vsel %vm1911, %v858, %v1995
    %v1999 = vsel %vm1911, 0, %v1997
    %v2000 = vcosq.f32.pop %v1998
    %v2001 = vsinq.f32.pop %v1998
    %vm2002 = vweird.f32 %v858
    %v2003 = vand.u32 %v1999, 3
    %vm2004 = vcmp.lt.s32.totalorder %v2003, 2
    %vm2005 = vcmp.eq.s32.totalorder %v2003, 0
    %v2006 = vxor.u32 %v2001, 2147483648
    %v2007 = vsel %vm2005, %v2000, %v2006
    %vm2008 = vcmp.eq.s32.totalorder %v2003, 2
    %v2009 = vxor.u32 %v2000, 2147483648
    %v2010 = vsel %vm2008, %v2009, %v2001
    %v2011 = vsel %vm2004, %v2007, %v2010
    %v2012 = vsel %vm2002, nan, %v2011
    %v2013 = vand.u32 2147483647, %v859
    %vm2014 = vcmp.le.f32.partialorder %v2013, 0.7853982
    %vm2015 = vcmp.lt.s32.totalorder %v859, 0
    %v2016 = vand.u32 %v859, 2139095040
    %v2017 = vshrl.u32 %v2016, 23
    %v2018 = vsub.s32 %v2017, 127
    %v2019 = vand.u32 2147483647, %v859
    %v2020 = vand.u32 %v2019, 8388607
    %v2021 = vor.u32 %v2020, 8388608
    %v2022 = vsub.s32 0, %v2021
    %v2023 = vadd.s32 %v2018, 1
    %vm2024 = vcmp.gt.s32.totalorder %v2023, 0
    %v2025 = vsel %vm2024, %v2023, 0
    %v2026 = vshrl.u32 %v2025, 5
    %v2027 = vand.u32 %v2025, 31
    %v2028 = vsub.s32 32, %v2027
    %v2029 = vshrl.u32 683565275, %v2028
    %v2030 = vshll.u32 683565275, %v2027
    %v2031 = vshrl.u32 2475754826, %v2028
    %v2032 = vor.u32 %v2030, %v2031
    %v2033 = vshll.u32 2475754826, %v2027
    %v2034 = vshrl.u32 2131351028, %v2028
    %v2035 = vor.u32 %v2033, %v2034
    %v2036 = vshll.u32 2131351028, %v2027
    %v2037 = vshrl.u32 2102212464, %v2028
    %v2038 = vor.u32 %v2036, %v2037
    %v2039 = vshll.u32 2102212464, %v2027
    %v2040 = vshrl.u32 920167782, %v2028
    %v2041 = vor.u32 %v2039, %v2040
    %v2042 = vshll.u32 920167782, %v2027
    %v2043 = vshrl.u32 1326507024, %v2028
    %v2044 = vor.u32 %v2042, %v2043
    %vm2045 = vcmp.lt.s32.totalorder %v2026, 1
    %vm2046 = vcmp.lt.s32.totalorder %v2026, 2
    %vm2047 = vcmp.lt.s32.totalorder %v2026, 3
    %vm2048 = vcmp.lt.s32.totalorder %v2026, 4
    %v2049 = vsel %vm2045, %v2029, %v2032
    %v2050 = vsel %vm2048, %v2038, 2102212464
    %v2051 = vsel %vm2047, %v2035, %v2050
    %v2052 = vsel %vm2046, %v2049, %v2051
    %v2053 = vsel %vm2045, %v2032, %v2035
    %v2054 = vsel %vm2048, %v2041, 920167782
    %v2055 = vsel %vm2047, %v2038, %v2054
    %v2056 = vsel %vm2046, %v2053, %v2055
    %v2057 = vsel %vm2045, %v2035, %v2038
    %v2058 = vsel %vm2048, %v2044, 1326507024
    %v2059 = vsel %vm2047, %v2041, %v2058
    %v2060 = vsel %vm2046, %v2057, %v2059
    %v2061 = vshll.u32 %v2021, 8
    %v2062 = vmul.u32.u64.compose %v2061, %v2060
    %v2063 = vextract.low.u32 %v2062
    %v2064 = vextract.high.u32 %v2062
    %v2065 = vmul.u32.u64.compose %v2061, %v2056
    %v2066 = vextract.low.u32 %v2065
    %v2067 = vextract.high.u32 %v2065
    %v2068 = vmul.u32 %v2061, %v2052
    %v2069 = vadd.s32 %v2064, %v2066
    %vm2070 = vc.u32 %v2064, %v2066
    %v2071 = vadd.s32 %v2067, 1
    %v2072 = vsel %vm2070, %v2071, %v2067
    %v2073 = vadd.s32 %v2068, %v2072
    %v2074 = vadd.s32 %v2073, 536870912
    %v2075 = vshrl.u32 %v2074, 30
    %v2076 = vshll.u32 %v2075, 30
    %v2077 = vsub.s32 %v2073, %v2076
    %vm2078 = vcmp.lt.s32.totalorder %v2077, 0
    %v2079 = vsub.s32 0, %v2077
    %v2080 = vsel %vm2078, %v2079, %v2077
    %v2081 = vclz %v2080
    %v2082 = vsub.s32 %v2081, 2
    %vm2083 = vcmp.gt.s32.totalorder 0, %v2082
    %v2084 = vsel %vm2083, 0, %v2082
    %v2085 = vsub.s32 32, %v2084
    %v2086 = vshll.u32 %v2077, %v2084
    %v2087 = vshrl.u32 %v2069, %v2085
    %v2088 = vor.u32 %v2086, %v2087
    %v2089 = vsub.s32 4294967266, %v2084
    %v2090 = vadd.s32 %v2089, 127
    %v2091 = vshll.u32 %v2090, 23
    %v2092 = vor.u32 4788187, %v2091
    %v2093 = vand.u32 2147483647, %v2092
    %v2095 = vcvt.s32.f32 %v2088
    %v2096 = vmul.f32 %v2095, %v2093
    %v2097 = vxor.u32 %v2096, 2147483648
    %v2098 = vsel %vm2015, %v2097, %v2096
    %v2099 = vsub.s32 4, %v2075
    %v2100 = vsel %vm2015, %v2099, %v2075
    %v2101 = vsel %vm2014, %v859, %v2098
    %v2102 = vsel %vm2014, 0, %v2100
    %v2103 = vcosq.f32.pop %v2101
    %v2104 = vsinq.f32.pop %v2101
    %vm2105 = vweird.f32 %v859
    %v2106 = vand.u32 %v2102, 3
    %vm2107 = vcmp.lt.s32.totalorder %v2106, 2
    %vm2108 = vcmp.eq.s32.totalorder %v2106, 0
    %v2109 = vxor.u32 %v2104, 2147483648
    %v2110 = vsel %vm2108, %v2103, %v2109
    %vm2111 = vcmp.eq.s32.totalorder %v2106, 2
    %v2112 = vxor.u32 %v2103, 2147483648
    %v2113 = vsel %vm2111, %v2112, %v2104
    %v2114 = vsel %vm2107, %v2110, %v2113
    %v2115 = vsel %vm2105, nan, %v2114
    %v2116 = vand.u32 2147483647, %v860
    %vm2117 = vcmp.le.f32.partialorder %v2116, 0.7853982
    %vm2118 = vcmp.lt.s32.totalorder %v860, 0
    %v2119 = vand.u32 %v860, 2139095040
    %v2120 = vshrl.u32 %v2119, 23
    %v2121 = vsub.s32 %v2120, 127
    %v2122 = vand.u32 2147483647, %v860
    %v2123 = vand.u32 %v2122, 8388607
    %v2124 = vor.u32 %v2123, 8388608
    %v2125 = vsub.s32 0, %v2124
    %v2126 = vadd.s32 %v2121, 1
    %vm2127 = vcmp.gt.s32.totalorder %v2126, 0
    %v2128 = vsel %vm2127, %v2126, 0
    %v2129 = vshrl.u32 %v2128, 5
    %v2130 = vand.u32 %v2128, 31
    %v2131 = vsub.s32 32, %v2130
    %v2132 = vshrl.u32 683565275, %v2131
    %v2133 = vshll.u32 683565275, %v2130
    %v2134 = vshrl.u32 2475754826, %v2131
    %v2135 = vor.u32 %v2133, %v2134
    %v2136 = vshll.u32 2475754826, %v2130
    %v2137 = vshrl.u32 2131351028, %v2131
    %v2138 = vor.u32 %v2136, %v2137
    %v2139 = vshll.u32 2131351028, %v2130
    %v2140 = vshrl.u32 2102212464, %v2131
    %v2141 = vor.u32 %v2139, %v2140
    %v2142 = vshll.u32 2102212464, %v2130
    %v2143 = vshrl.u32 920167782, %v2131
    %v2144 = vor.u32 %v2142, %v2143
    %v2145 = vshll.u32 920167782, %v2130
    %v2146 = vshrl.u32 1326507024, %v2131
    %v2147 = vor.u32 %v2145, %v2146
    %vm2148 = vcmp.lt.s32.totalorder %v2129, 1
    %vm2149 = vcmp.lt.s32.totalorder %v2129, 2
    %vm2150 = vcmp.lt.s32.totalorder %v2129, 3
    %vm2151 = vcmp.lt.s32.totalorder %v2129, 4
    %v2152 = vsel %vm2148, %v2132, %v2135
    %v2153 = vsel %vm2151, %v2141, 2102212464
    %v2154 = vsel %vm2150, %v2138, %v2153
    %v2155 = vsel %vm2149, %v2152, %v2154
    %v2156 = vsel %vm2148, %v2135, %v2138
    %v2157 = vsel %vm2151, %v2144, 920167782
    %v2158 = vsel %vm2150, %v2141, %v2157
    %v2159 = vsel %vm2149, %v2156, %v2158
    %v2160 = vsel %vm2148, %v2138, %v2141
    %v2161 = vsel %vm2151, %v2147, 1326507024
    %v2162 = vsel %vm2150, %v2144, %v2161
    %v2163 = vsel %vm2149, %v2160, %v2162
    %v2164 = vshll.u32 %v2124, 8
    %v2165 = vmul.u32.u64.compose %v2164, %v2163
    %v2166 = vextract.low.u32 %v2165
    %v2167 = vextract.high.u32 %v2165
    %v2168 = vmul.u32.u64.compose %v2164, %v2159
    %v2169 = vextract.low.u32 %v2168
    %v2170 = vextract.high.u32 %v2168
    %v2171 = vmul.u32 %v2164, %v2155
    %v2172 = vadd.s32 %v2167, %v2169
    %vm2173 = vc.u32 %v2167, %v2169
    %v2174 = vadd.s32 %v2170, 1
    %v2175 = vsel %vm2173, %v2174, %v2170
    %v2176 = vadd.s32 %v2171, %v2175
    %v2177 = vadd.s32 %v2176, 536870912
    %v2178 = vshrl.u32 %v2177, 30
    %v2179 = vshll.u32 %v2178, 30
    %v2180 = vsub.s32 %v2176, %v2179
    %vm2181 = vcmp.lt.s32.totalorder %v2180, 0
    %v2182 = vsub.s32 0, %v2180
    %v2183 = vsel %vm2181, %v2182, %v2180
    %v2184 = vclz %v2183
    %v2185 = vsub.s32 %v2184, 2
    %vm2186 = vcmp.gt.s32.totalorder 0, %v2185
    %v2187 = vsel %vm2186, 0, %v2185
    %v2188 = vsub.s32 32, %v2187
    %v2189 = vshll.u32 %v2180, %v2187
    %v2190 = vshrl.u32 %v2172, %v2188
    %v2191 = vor.u32 %v2189, %v2190
    %v2192 = vsub.s32 4294967266, %v2187
    %v2193 = vadd.s32 %v2192, 127
    %v2194 = vshll.u32 %v2193, 23
    %v2195 = vor.u32 4788187, %v2194
    %v2196 = vand.u32 2147483647, %v2195
    %v2198 = vcvt.s32.f32 %v2191
    %v2199 = vmul.f32 %v2198, %v2196
    %v2200 = vxor.u32 %v2199, 2147483648
    %v2201 = vsel %vm2118, %v2200, %v2199
    %v2202 = vsub.s32 4, %v2178
    %v2203 = vsel %vm2118, %v2202, %v2178
    %v2204 = vsel %vm2117, %v860, %v2201
    %v2205 = vsel %vm2117, 0, %v2203
    %v2206 = vcosq.f32.pop %v2204
    %v2207 = vsinq.f32.pop %v2204
    %vm2208 = vweird.f32 %v860
    %v2209 = vand.u32 %v2205, 3
    %vm2210 = vcmp.lt.s32.totalorder %v2209, 2
    %vm2211 = vcmp.eq.s32.totalorder %v2209, 0
    %v2212 = vxor.u32 %v2207, 2147483648
    %v2213 = vsel %vm2211, %v2206, %v2212
    %vm2214 = vcmp.eq.s32.totalorder %v2209, 2
    %v2215 = vxor.u32 %v2206, 2147483648
    %v2216 = vsel %vm2214, %v2215, %v2207
    %v2217 = vsel %vm2210, %v2213, %v2216
    %v2218 = vsel %vm2208, nan, %v2217
    %v2219 = vand.u32 2147483647, %v861
    %vm2220 = vcmp.le.f32.partialorder %v2219, 0.7853982
    %vm2221 = vcmp.lt.s32.totalorder %v861, 0
    %v2222 = vand.u32 %v861, 2139095040
    %v2223 = vshrl.u32 %v2222, 23
    %v2224 = vsub.s32 %v2223, 127
    %v2225 = vand.u32 2147483647, %v861
    %v2226 = vand.u32 %v2225, 8388607
    %v2227 = vor.u32 %v2226, 8388608
    %v2228 = vsub.s32 0, %v2227
    %v2229 = vadd.s32 %v2224, 1
    %vm2230 = vcmp.gt.s32.totalorder %v2229, 0
    %v2231 = vsel %vm2230, %v2229, 0
    %v2232 = vshrl.u32 %v2231, 5
    %v2233 = vand.u32 %v2231, 31
    %v2234 = vsub.s32 32, %v2233
    %v2235 = vshrl.u32 683565275, %v2234
    %v2236 = vshll.u32 683565275, %v2233
    %v2237 = vshrl.u32 2475754826, %v2234
    %v2238 = vor.u32 %v2236, %v2237
    %v2239 = vshll.u32 2475754826, %v2233
    %v2240 = vshrl.u32 2131351028, %v2234
    %v2241 = vor.u32 %v2239, %v2240
    %v2242 = vshll.u32 2131351028, %v2233
    %v2243 = vshrl.u32 2102212464, %v2234
    %v2244 = vor.u32 %v2242, %v2243
    %v2245 = vshll.u32 2102212464, %v2233
    %v2246 = vshrl.u32 920167782, %v2234
    %v2247 = vor.u32 %v2245, %v2246
    %v2248 = vshll.u32 920167782, %v2233
    %v2249 = vshrl.u32 1326507024, %v2234
    %v2250 = vor.u32 %v2248, %v2249
    %vm2251 = vcmp.lt.s32.totalorder %v2232, 1
    %vm2252 = vcmp.lt.s32.totalorder %v2232, 2
    %vm2253 = vcmp.lt.s32.totalorder %v2232, 3
    %vm2254 = vcmp.lt.s32.totalorder %v2232, 4
    %v2255 = vsel %vm2251, %v2235, %v2238
    %v2256 = vsel %vm2254, %v2244, 2102212464
    %v2257 = vsel %vm2253, %v2241, %v2256
    %v2258 = vsel %vm2252, %v2255, %v2257
    %v2259 = vsel %vm2251, %v2238, %v2241
    %v2260 = vsel %vm2254, %v2247, 920167782
    %v2261 = vsel %vm2253, %v2244, %v2260
    %v2262 = vsel %vm2252, %v2259, %v2261
    %v2263 = vsel %vm2251, %v2241, %v2244
    %v2264 = vsel %vm2254, %v2250, 1326507024
    %v2265 = vsel %vm2253, %v2247, %v2264
    %v2266 = vsel %vm2252, %v2263, %v2265
    %v2267 = vshll.u32 %v2227, 8
    %v2268 = vmul.u32.u64.compose %v2267, %v2266
    %v2269 = vextract.low.u32 %v2268
    %v2270 = vextract.high.u32 %v2268
    %v2271 = vmul.u32.u64.compose %v2267, %v2262
    %v2272 = vextract.low.u32 %v2271
    %v2273 = vextract.high.u32 %v2271
    %v2274 = vmul.u32 %v2267, %v2258
    %v2275 = vadd.s32 %v2270, %v2272
    %vm2276 = vc.u32 %v2270, %v2272
    %v2277 = vadd.s32 %v2273, 1
    %v2278 = vsel %vm2276, %v2277, %v2273
    %v2279 = vadd.s32 %v2274, %v2278
    %v2280 = vadd.s32 %v2279, 536870912
    %v2281 = vshrl.u32 %v2280, 30
    %v2282 = vshll.u32 %v2281, 30
    %v2283 = vsub.s32 %v2279, %v2282
    %vm2284 = vcmp.lt.s32.totalorder %v2283, 0
    %v2285 = vsub.s32 0, %v2283
    %v2286 = vsel %vm2284, %v2285, %v2283
    %v2287 = vclz %v2286
    %v2288 = vsub.s32 %v2287, 2
    %vm2289 = vcmp.gt.s32.totalorder 0, %v2288
    %v2290 = vsel %vm2289, 0, %v2288
    %v2291 = vsub.s32 32, %v2290
    %v2292 = vshll.u32 %v2283, %v2290
    %v2293 = vshrl.u32 %v2275, %v2291
    %v2294 = vor.u32 %v2292, %v2293
    %v2295 = vsub.s32 4294967266, %v2290
    %v2296 = vadd.s32 %v2295, 127
    %v2297 = vshll.u32 %v2296, 23
    %v2298 = vor.u32 4788187, %v2297
    %v2299 = vand.u32 2147483647, %v2298
    %v2301 = vcvt.s32.f32 %v2294
    %v2302 = vmul.f32 %v2301, %v2299
    %v2303 = vxor.u32 %v2302, 2147483648
    %v2304 = vsel %vm2221, %v2303, %v2302
    %v2305 = vsub.s32 4, %v2281
    %v2306 = vsel %vm2221, %v2305, %v2281
    %v2307 = vsel %vm2220, %v861, %v2304
    %v2308 = vsel %vm2220, 0, %v2306
    %v2309 = vcosq.f32.pop %v2307
    %v2310 = vsinq.f32.pop %v2307
    %vm2311 = vweird.f32 %v861
    %v2312 = vand.u32 %v2308, 3
    %vm2313 = vcmp.lt.s32.totalorder %v2312, 2
    %vm2314 = vcmp.eq.s32.totalorder %v2312, 0
    %v2315 = vxor.u32 %v2310, 2147483648
    %v2316 = vsel %vm2314, %v2309, %v2315
    %vm2317 = vcmp.eq.s32.totalorder %v2312, 2
    %v2318 = vxor.u32 %v2309, 2147483648
    %v2319 = vsel %vm2317, %v2318, %v2310
    %v2320 = vsel %vm2313, %v2316, %v2319
    %v2321 = vsel %vm2311, nan, %v2320
    %v2322 = vand.u32 2147483647, %v862
    %vm2323 = vcmp.le.f32.partialorder %v2322, 0.7853982
    %vm2324 = vcmp.lt.s32.totalorder %v862, 0
    %v2325 = vand.u32 %v862, 2139095040
    %v2326 = vshrl.u32 %v2325, 23
    %v2327 = vsub.s32 %v2326, 127
    %v2328 = vand.u32 2147483647, %v862
    %v2329 = vand.u32 %v2328, 8388607
    %v2330 = vor.u32 %v2329, 8388608
    %v2331 = vsub.s32 0, %v2330
    %v2332 = vadd.s32 %v2327, 1
    %vm2333 = vcmp.gt.s32.totalorder %v2332, 0
    %v2334 = vsel %vm2333, %v2332, 0
    %v2335 = vshrl.u32 %v2334, 5
    %v2336 = vand.u32 %v2334, 31
    %v2337 = vsub.s32 32, %v2336
    %v2338 = vshrl.u32 683565275, %v2337
    %v2339 = vshll.u32 683565275, %v2336
    %v2340 = vshrl.u32 2475754826, %v2337
    %v2341 = vor.u32 %v2339, %v2340
    %v2342 = vshll.u32 2475754826, %v2336
    %v2343 = vshrl.u32 2131351028, %v2337
    %v2344 = vor.u32 %v2342, %v2343
    %v2345 = vshll.u32 2131351028, %v2336
    %v2346 = vshrl.u32 2102212464, %v2337
    %v2347 = vor.u32 %v2345, %v2346
    %v2348 = vshll.u32 2102212464, %v2336
    %v2349 = vshrl.u32 920167782, %v2337
    %v2350 = vor.u32 %v2348, %v2349
    %v2351 = vshll.u32 920167782, %v2336
    %v2352 = vshrl.u32 1326507024, %v2337
    %v2353 = vor.u32 %v2351, %v2352
    %vm2354 = vcmp.lt.s32.totalorder %v2335, 1
    %vm2355 = vcmp.lt.s32.totalorder %v2335, 2
    %vm2356 = vcmp.lt.s32.totalorder %v2335, 3
    %vm2357 = vcmp.lt.s32.totalorder %v2335, 4
    %v2358 = vsel %vm2354, %v2338, %v2341
    %v2359 = vsel %vm2357, %v2347, 2102212464
    %v2360 = vsel %vm2356, %v2344, %v2359
    %v2361 = vsel %vm2355, %v2358, %v2360
    %v2362 = vsel %vm2354, %v2341, %v2344
    %v2363 = vsel %vm2357, %v2350, 920167782
    %v2364 = vsel %vm2356, %v2347, %v2363
    %v2365 = vsel %vm2355, %v2362, %v2364
    %v2366 = vsel %vm2354, %v2344, %v2347
    %v2367 = vsel %vm2357, %v2353, 1326507024
    %v2368 = vsel %vm2356, %v2350, %v2367
    %v2369 = vsel %vm2355, %v2366, %v2368
    %v2370 = vshll.u32 %v2330, 8
    %v2371 = vmul.u32.u64.compose %v2370, %v2369
    %v2372 = vextract.low.u32 %v2371
    %v2373 = vextract.high.u32 %v2371
    %v2374 = vmul.u32.u64.compose %v2370, %v2365
    %v2375 = vextract.low.u32 %v2374
    %v2376 = vextract.high.u32 %v2374
    %v2377 = vmul.u32 %v2370, %v2361
    %v2378 = vadd.s32 %v2373, %v2375
    %vm2379 = vc.u32 %v2373, %v2375
    %v2380 = vadd.s32 %v2376, 1
    %v2381 = vsel %vm2379, %v2380, %v2376
    %v2382 = vadd.s32 %v2377, %v2381
    %v2383 = vadd.s32 %v2382, 536870912
    %v2384 = vshrl.u32 %v2383, 30
    %v2385 = vshll.u32 %v2384, 30
    %v2386 = vsub.s32 %v2382, %v2385
    %vm2387 = vcmp.lt.s32.totalorder %v2386, 0
    %v2388 = vsub.s32 0, %v2386
    %v2389 = vsel %vm2387, %v2388, %v2386
    %v2390 = vclz %v2389
    %v2391 = vsub.s32 %v2390, 2
    %vm2392 = vcmp.gt.s32.totalorder 0, %v2391
    %v2393 = vsel %vm2392, 0, %v2391
    %v2394 = vsub.s32 32, %v2393
    %v2395 = vshll.u32 %v2386, %v2393
    %v2396 = vshrl.u32 %v2378, %v2394
    %v2397 = vor.u32 %v2395, %v2396
    %v2398 = vsub.s32 4294967266, %v2393
    %v2399 = vadd.s32 %v2398, 127
    %v2400 = vshll.u32 %v2399, 23
    %v2401 = vor.u32 4788187, %v2400
    %v2402 = vand.u32 2147483647, %v2401
    %v2404 = vcvt.s32.f32 %v2397
    %v2405 = vmul.f32 %v2404, %v2402
    %v2406 = vxor.u32 %v2405, 2147483648
    %v2407 = vsel %vm2324, %v2406, %v2405
    %v2408 = vsub.s32 4, %v2384
    %v2409 = vsel %vm2324, %v2408, %v2384
    %v2410 = vsel %vm2323, %v862, %v2407
    %v2411 = vsel %vm2323, 0, %v2409
    %v2412 = vcosq.f32.pop %v2410
    %v2413 = vsinq.f32.pop %v2410
    %vm2414 = vweird.f32 %v862
    %v2415 = vand.u32 %v2411, 3
    %vm2416 = vcmp.lt.s32.totalorder %v2415, 2
    %vm2417 = vcmp.eq.s32.totalorder %v2415, 0
    %v2418 = vxor.u32 %v2413, 2147483648
    %v2419 = vsel %vm2417, %v2412, %v2418
    %vm2420 = vcmp.eq.s32.totalorder %v2415, 2
    %v2421 = vxor.u32 %v2412, 2147483648
    %v2422 = vsel %vm2420, %v2421, %v2413
    %v2423 = vsel %vm2416, %v2419, %v2422
    %v2424 = vsel %vm2414, nan, %v2423
    %v2425 = vand.u32 2147483647, %v863
    %vm2426 = vcmp.le.f32.partialorder %v2425, 0.7853982
    %vm2427 = vcmp.lt.s32.totalorder %v863, 0
    %v2428 = vand.u32 %v863, 2139095040
    %v2429 = vshrl.u32 %v2428, 23
    %v2430 = vsub.s32 %v2429, 127
    %v2431 = vand.u32 2147483647, %v863
    %v2432 = vand.u32 %v2431, 8388607
    %v2433 = vor.u32 %v2432, 8388608
    %v2434 = vsub.s32 0, %v2433
    %v2435 = vadd.s32 %v2430, 1
    %vm2436 = vcmp.gt.s32.totalorder %v2435, 0
    %v2437 = vsel %vm2436, %v2435, 0
    %v2438 = vshrl.u32 %v2437, 5
    %v2439 = vand.u32 %v2437, 31
    %v2440 = vsub.s32 32, %v2439
    %v2441 = vshrl.u32 683565275, %v2440
    %v2442 = vshll.u32 683565275, %v2439
    %v2443 = vshrl.u32 2475754826, %v2440
    %v2444 = vor.u32 %v2442, %v2443
    %v2445 = vshll.u32 2475754826, %v2439
    %v2446 = vshrl.u32 2131351028, %v2440
    %v2447 = vor.u32 %v2445, %v2446
    %v2448 = vshll.u32 2131351028, %v2439
    %v2449 = vshrl.u32 2102212464, %v2440
    %v2450 = vor.u32 %v2448, %v2449
    %v2451 = vshll.u32 2102212464, %v2439
    %v2452 = vshrl.u32 920167782, %v2440
    %v2453 = vor.u32 %v2451, %v2452
    %v2454 = vshll.u32 920167782, %v2439
    %v2455 = vshrl.u32 1326507024, %v2440
    %v2456 = vor.u32 %v2454, %v2455
    %vm2457 = vcmp.lt.s32.totalorder %v2438, 1
    %vm2458 = vcmp.lt.s32.totalorder %v2438, 2
    %vm2459 = vcmp.lt.s32.totalorder %v2438, 3
    %vm2460 = vcmp.lt.s32.totalorder %v2438, 4
    %v2461 = vsel %vm2457, %v2441, %v2444
    %v2462 = vsel %vm2460, %v2450, 2102212464
    %v2463 = vsel %vm2459, %v2447, %v2462
    %v2464 = vsel %vm2458, %v2461, %v2463
    %v2465 = vsel %vm2457, %v2444, %v2447
    %v2466 = vsel %vm2460, %v2453, 920167782
    %v2467 = vsel %vm2459, %v2450, %v2466
    %v2468 = vsel %vm2458, %v2465, %v2467
    %v2469 = vsel %vm2457, %v2447, %v2450
    %v2470 = vsel %vm2460, %v2456, 1326507024
    %v2471 = vsel %vm2459, %v2453, %v2470
    %v2472 = vsel %vm2458, %v2469, %v2471
    %v2473 = vshll.u32 %v2433, 8
    %v2474 = vmul.u32.u64.compose %v2473, %v2472
    %v2475 = vextract.low.u32 %v2474
    %v2476 = vextract.high.u32 %v2474
    %v2477 = vmul.u32.u64.compose %v2473, %v2468
    %v2478 = vextract.low.u32 %v2477
    %v2479 = vextract.high.u32 %v2477
    %v2480 = vmul.u32 %v2473, %v2464
    %v2481 = vadd.s32 %v2476, %v2478
    %vm2482 = vc.u32 %v2476, %v2478
    %v2483 = vadd.s32 %v2479, 1
    %v2484 = vsel %vm2482, %v2483, %v2479
    %v2485 = vadd.s32 %v2480, %v2484
    %v2486 = vadd.s32 %v2485, 536870912
    %v2487 = vshrl.u32 %v2486, 30
    %v2488 = vshll.u32 %v2487, 30
    %v2489 = vsub.s32 %v2485, %v2488
    %vm2490 = vcmp.lt.s32.totalorder %v2489, 0
    %v2491 = vsub.s32 0, %v2489
    %v2492 = vsel %vm2490, %v2491, %v2489
    %v2493 = vclz %v2492
    %v2494 = vsub.s32 %v2493, 2
    %vm2495 = vcmp.gt.s32.totalorder 0, %v2494
    %v2496 = vsel %vm2495, 0, %v2494
    %v2497 = vsub.s32 32, %v2496
    %v2498 = vshll.u32 %v2489, %v2496
    %v2499 = vshrl.u32 %v2481, %v2497
    %v2500 = vor.u32 %v2498, %v2499
    %v2501 = vsub.s32 4294967266, %v2496
    %v2502 = vadd.s32 %v2501, 127
    %v2503 = vshll.u32 %v2502, 23
    %v2504 = vor.u32 4788187, %v2503
    %v2505 = vand.u32 2147483647, %v2504
    %v2507 = vcvt.s32.f32 %v2500
    %v2508 = vmul.f32 %v2507, %v2505
    %v2509 = vxor.u32 %v2508, 2147483648
    %v2510 = vsel %vm2427, %v2509, %v2508
    %v2511 = vsub.s32 4, %v2487
    %v2512 = vsel %vm2427, %v2511, %v2487
    %v2513 = vsel %vm2426, %v863, %v2510
    %v2514 = vsel %vm2426, 0, %v2512
    %v2515 = vcosq.f32.pop %v2513
    %v2516 = vsinq.f32.pop %v2513
    %vm2517 = vweird.f32 %v863
    %v2518 = vand.u32 %v2514, 3
    %vm2519 = vcmp.lt.s32.totalorder %v2518, 2
    %vm2520 = vcmp.eq.s32.totalorder %v2518, 0
    %v2521 = vxor.u32 %v2516, 2147483648
    %v2522 = vsel %vm2520, %v2515, %v2521
    %vm2523 = vcmp.eq.s32.totalorder %v2518, 2
    %v2524 = vxor.u32 %v2515, 2147483648
    %v2525 = vsel %vm2523, %v2524, %v2516
    %v2526 = vsel %vm2519, %v2522, %v2525
    %v2527 = vsel %vm2517, nan, %v2526
    %v2528 = vand.u32 2147483647, %v864
    %vm2529 = vcmp.le.f32.partialorder %v2528, 0.7853982
    %vm2530 = vcmp.lt.s32.totalorder %v864, 0
    %v2531 = vand.u32 %v864, 2139095040
    %v2532 = vshrl.u32 %v2531, 23
    %v2533 = vsub.s32 %v2532, 127
    %v2534 = vand.u32 2147483647, %v864
    %v2535 = vand.u32 %v2534, 8388607
    %v2536 = vor.u32 %v2535, 8388608
    %v2537 = vsub.s32 0, %v2536
    %v2538 = vadd.s32 %v2533, 1
    %vm2539 = vcmp.gt.s32.totalorder %v2538, 0
    %v2540 = vsel %vm2539, %v2538, 0
    %v2541 = vshrl.u32 %v2540, 5
    %v2542 = vand.u32 %v2540, 31
    %v2543 = vsub.s32 32, %v2542
    %v2544 = vshrl.u32 683565275, %v2543
    %v2545 = vshll.u32 683565275, %v2542
    %v2546 = vshrl.u32 2475754826, %v2543
    %v2547 = vor.u32 %v2545, %v2546
    %v2548 = vshll.u32 2475754826, %v2542
    %v2549 = vshrl.u32 2131351028, %v2543
    %v2550 = vor.u32 %v2548, %v2549
    %v2551 = vshll.u32 2131351028, %v2542
    %v2552 = vshrl.u32 2102212464, %v2543
    %v2553 = vor.u32 %v2551, %v2552
    %v2554 = vshll.u32 2102212464, %v2542
    %v2555 = vshrl.u32 920167782, %v2543
    %v2556 = vor.u32 %v2554, %v2555
    %v2557 = vshll.u32 920167782, %v2542
    %v2558 = vshrl.u32 1326507024, %v2543
    %v2559 = vor.u32 %v2557, %v2558
    %vm2560 = vcmp.lt.s32.totalorder %v2541, 1
    %vm2561 = vcmp.lt.s32.totalorder %v2541, 2
    %vm2562 = vcmp.lt.s32.totalorder %v2541, 3
    %vm2563 = vcmp.lt.s32.totalorder %v2541, 4
    %v2564 = vsel %vm2560, %v2544, %v2547
    %v2565 = vsel %vm2563, %v2553, 2102212464
    %v2566 = vsel %vm2562, %v2550, %v2565
    %v2567 = vsel %vm2561, %v2564, %v2566
    %v2568 = vsel %vm2560, %v2547, %v2550
    %v2569 = vsel %vm2563, %v2556, 920167782
    %v2570 = vsel %vm2562, %v2553, %v2569
    %v2571 = vsel %vm2561, %v2568, %v2570
    %v2572 = vsel %vm2560, %v2550, %v2553
    %v2573 = vsel %vm2563, %v2559, 1326507024
    %v2574 = vsel %vm2562, %v2556, %v2573
    %v2575 = vsel %vm2561, %v2572, %v2574
    %v2576 = vshll.u32 %v2536, 8
    %v2577 = vmul.u32.u64.compose %v2576, %v2575
    %v2578 = vextract.low.u32 %v2577
    %v2579 = vextract.high.u32 %v2577
    %v2580 = vmul.u32.u64.compose %v2576, %v2571
    %v2581 = vextract.low.u32 %v2580
    %v2582 = vextract.high.u32 %v2580
    %v2583 = vmul.u32 %v2576, %v2567
    %v2584 = vadd.s32 %v2579, %v2581
    %vm2585 = vc.u32 %v2579, %v2581
    %v2586 = vadd.s32 %v2582, 1
    %v2587 = vsel %vm2585, %v2586, %v2582
    %v2588 = vadd.s32 %v2583, %v2587
    %v2589 = vadd.s32 %v2588, 536870912
    %v2590 = vshrl.u32 %v2589, 30
    %v2591 = vshll.u32 %v2590, 30
    %v2592 = vsub.s32 %v2588, %v2591
    %vm2593 = vcmp.lt.s32.totalorder %v2592, 0
    %v2594 = vsub.s32 0, %v2592
    %v2595 = vsel %vm2593, %v2594, %v2592
    %v2596 = vclz %v2595
    %v2597 = vsub.s32 %v2596, 2
    %vm2598 = vcmp.gt.s32.totalorder 0, %v2597
    %v2599 = vsel %vm2598, 0, %v2597
    %v2600 = vsub.s32 32, %v2599
    %v2601 = vshll.u32 %v2592, %v2599
    %v2602 = vshrl.u32 %v2584, %v2600
    %v2603 = vor.u32 %v2601, %v2602
    %v2604 = vsub.s32 4294967266, %v2599
    %v2605 = vadd.s32 %v2604, 127
    %v2606 = vshll.u32 %v2605, 23
    %v2607 = vor.u32 4788187, %v2606
    %v2608 = vand.u32 2147483647, %v2607
    %v2610 = vcvt.s32.f32 %v2603
    %v2611 = vmul.f32 %v2610, %v2608
    %v2612 = vxor.u32 %v2611, 2147483648
    %v2613 = vsel %vm2530, %v2612, %v2611
    %v2614 = vsub.s32 4, %v2590
    %v2615 = vsel %vm2530, %v2614, %v2590
    %v2616 = vsel %vm2529, %v864, %v2613
    %v2617 = vsel %vm2529, 0, %v2615
    %v2618 = vcosq.f32.pop %v2616
    %v2619 = vsinq.f32.pop %v2616
    %vm2620 = vweird.f32 %v864
    %v2621 = vand.u32 %v2617, 3
    %vm2622 = vcmp.lt.s32.totalorder %v2621, 2
    %vm2623 = vcmp.eq.s32.totalorder %v2621, 0
    %v2624 = vxor.u32 %v2619, 2147483648
    %v2625 = vsel %vm2623, %v2618, %v2624
    %vm2626 = vcmp.eq.s32.totalorder %v2621, 2
    %v2627 = vxor.u32 %v2618, 2147483648
    %v2628 = vsel %vm2626, %v2627, %v2619
    %v2629 = vsel %vm2622, %v2625, %v2628
    %v2630 = vsel %vm2620, nan, %v2629
    %v2631 = vand.u32 2147483647, %v865
    %vm2632 = vcmp.le.f32.partialorder %v2631, 0.7853982
    %vm2633 = vcmp.lt.s32.totalorder %v865, 0
    %v2634 = vand.u32 %v865, 2139095040
    %v2635 = vshrl.u32 %v2634, 23
    %v2636 = vsub.s32 %v2635, 127
    %v2637 = vand.u32 2147483647, %v865
    %v2638 = vand.u32 %v2637, 8388607
    %v2639 = vor.u32 %v2638, 8388608
    %v2640 = vsub.s32 0, %v2639
    %v2641 = vadd.s32 %v2636, 1
    %vm2642 = vcmp.gt.s32.totalorder %v2641, 0
    %v2643 = vsel %vm2642, %v2641, 0
    %v2644 = vshrl.u32 %v2643, 5
    %v2645 = vand.u32 %v2643, 31
    %v2646 = vsub.s32 32, %v2645
    %v2647 = vshrl.u32 683565275, %v2646
    %v2648 = vshll.u32 683565275, %v2645
    %v2649 = vshrl.u32 2475754826, %v2646
    %v2650 = vor.u32 %v2648, %v2649
    %v2651 = vshll.u32 2475754826, %v2645
    %v2652 = vshrl.u32 2131351028, %v2646
    %v2653 = vor.u32 %v2651, %v2652
    %v2654 = vshll.u32 2131351028, %v2645
    %v2655 = vshrl.u32 2102212464, %v2646
    %v2656 = vor.u32 %v2654, %v2655
    %v2657 = vshll.u32 2102212464, %v2645
    %v2658 = vshrl.u32 920167782, %v2646
    %v2659 = vor.u32 %v2657, %v2658
    %v2660 = vshll.u32 920167782, %v2645
    %v2661 = vshrl.u32 1326507024, %v2646
    %v2662 = vor.u32 %v2660, %v2661
    %vm2663 = vcmp.lt.s32.totalorder %v2644, 1
    %vm2664 = vcmp.lt.s32.totalorder %v2644, 2
    %vm2665 = vcmp.lt.s32.totalorder %v2644, 3
    %vm2666 = vcmp.lt.s32.totalorder %v2644, 4
    %v2667 = vsel %vm2663, %v2647, %v2650
    %v2668 = vsel %vm2666, %v2656, 2102212464
    %v2669 = vsel %vm2665, %v2653, %v2668
    %v2670 = vsel %vm2664, %v2667, %v2669
    %v2671 = vsel %vm2663, %v2650, %v2653
    %v2672 = vsel %vm2666, %v2659, 920167782
    %v2673 = vsel %vm2665, %v2656, %v2672
    %v2674 = vsel %vm2664, %v2671, %v2673
    %v2675 = vsel %vm2663, %v2653, %v2656
    %v2676 = vsel %vm2666, %v2662, 1326507024
    %v2677 = vsel %vm2665, %v2659, %v2676
    %v2678 = vsel %vm2664, %v2675, %v2677
    %v2679 = vshll.u32 %v2639, 8
    %v2680 = vmul.u32.u64.compose %v2679, %v2678
    %v2681 = vextract.low.u32 %v2680
    %v2682 = vextract.high.u32 %v2680
    %v2683 = vmul.u32.u64.compose %v2679, %v2674
    %v2684 = vextract.low.u32 %v2683
    %v2685 = vextract.high.u32 %v2683
    %v2686 = vmul.u32 %v2679, %v2670
    %v2687 = vadd.s32 %v2682, %v2684
    %vm2688 = vc.u32 %v2682, %v2684
    %v2689 = vadd.s32 %v2685, 1
    %v2690 = vsel %vm2688, %v2689, %v2685
    %v2691 = vadd.s32 %v2686, %v2690
    %v2692 = vadd.s32 %v2691, 536870912
    %v2693 = vshrl.u32 %v2692, 30
    %v2694 = vshll.u32 %v2693, 30
    %v2695 = vsub.s32 %v2691, %v2694
    %vm2696 = vcmp.lt.s32.totalorder %v2695, 0
    %v2697 = vsub.s32 0, %v2695
    %v2698 = vsel %vm2696, %v2697, %v2695
    %v2699 = vclz %v2698
    %v2700 = vsub.s32 %v2699, 2
    %vm2701 = vcmp.gt.s32.totalorder 0, %v2700
    %v2702 = vsel %vm2701, 0, %v2700
    %v2703 = vsub.s32 32, %v2702
    %v2704 = vshll.u32 %v2695, %v2702
    %v2705 = vshrl.u32 %v2687, %v2703
    %v2706 = vor.u32 %v2704, %v2705
    %v2707 = vsub.s32 4294967266, %v2702
    %v2708 = vadd.s32 %v2707, 127
    %v2709 = vshll.u32 %v2708, 23
    %v2710 = vor.u32 4788187, %v2709
    %v2711 = vand.u32 2147483647, %v2710
    %v2713 = vcvt.s32.f32 %v2706
    %v2714 = vmul.f32 %v2713, %v2711
    %v2715 = vxor.u32 %v2714, 2147483648
    %v2716 = vsel %vm2633, %v2715, %v2714
    %v2717 = vsub.s32 4, %v2693
    %v2718 = vsel %vm2633, %v2717, %v2693
    %v2719 = vsel %vm2632, %v865, %v2716
    %v2720 = vsel %vm2632, 0, %v2718
    %v2721 = vcosq.f32.pop %v2719
    %v2722 = vsinq.f32.pop %v2719
    %vm2723 = vweird.f32 %v865
    %v2724 = vand.u32 %v2720, 3
    %vm2725 = vcmp.lt.s32.totalorder %v2724, 2
    %vm2726 = vcmp.eq.s32.totalorder %v2724, 0
    %v2727 = vxor.u32 %v2722, 2147483648
    %v2728 = vsel %vm2726, %v2721, %v2727
    %vm2729 = vcmp.eq.s32.totalorder %v2724, 2
    %v2730 = vxor.u32 %v2721, 2147483648
    %v2731 = vsel %vm2729, %v2730, %v2722
    %v2732 = vsel %vm2725, %v2728, %v2731
    %v2733 = vsel %vm2723, nan, %v2732
    %v2734 = vand.u32 2147483647, %v866
    %vm2735 = vcmp.le.f32.partialorder %v2734, 0.7853982
    %vm2736 = vcmp.lt.s32.totalorder %v866, 0
    %v2737 = vand.u32 %v866, 2139095040
    %v2738 = vshrl.u32 %v2737, 23
    %v2739 = vsub.s32 %v2738, 127
    %v2740 = vand.u32 2147483647, %v866
    %v2741 = vand.u32 %v2740, 8388607
    %v2742 = vor.u32 %v2741, 8388608
    %v2743 = vsub.s32 0, %v2742
    %v2744 = vadd.s32 %v2739, 1
    %vm2745 = vcmp.gt.s32.totalorder %v2744, 0
    %v2746 = vsel %vm2745, %v2744, 0
    %v2747 = vshrl.u32 %v2746, 5
    %v2748 = vand.u32 %v2746, 31
    %v2749 = vsub.s32 32, %v2748
    %v2750 = vshrl.u32 683565275, %v2749
    %v2751 = vshll.u32 683565275, %v2748
    %v2752 = vshrl.u32 2475754826, %v2749
    %v2753 = vor.u32 %v2751, %v2752
    %v2754 = vshll.u32 2475754826, %v2748
    %v2755 = vshrl.u32 2131351028, %v2749
    %v2756 = vor.u32 %v2754, %v2755
    %v2757 = vshll.u32 2131351028, %v2748
    %v2758 = vshrl.u32 2102212464, %v2749
    %v2759 = vor.u32 %v2757, %v2758
    %v2760 = vshll.u32 2102212464, %v2748
    %v2761 = vshrl.u32 920167782, %v2749
    %v2762 = vor.u32 %v2760, %v2761
    %v2763 = vshll.u32 920167782, %v2748
    %v2764 = vshrl.u32 1326507024, %v2749
    %v2765 = vor.u32 %v2763, %v2764
    %vm2766 = vcmp.lt.s32.totalorder %v2747, 1
    %vm2767 = vcmp.lt.s32.totalorder %v2747, 2
    %vm2768 = vcmp.lt.s32.totalorder %v2747, 3
    %vm2769 = vcmp.lt.s32.totalorder %v2747, 4
    %v2770 = vsel %vm2766, %v2750, %v2753
    %v2771 = vsel %vm2769, %v2759, 2102212464
    %v2772 = vsel %vm2768, %v2756, %v2771
    %v2773 = vsel %vm2767, %v2770, %v2772
    %v2774 = vsel %vm2766, %v2753, %v2756
    %v2775 = vsel %vm2769, %v2762, 920167782
    %v2776 = vsel %vm2768, %v2759, %v2775
    %v2777 = vsel %vm2767, %v2774, %v2776
    %v2778 = vsel %vm2766, %v2756, %v2759
    %v2779 = vsel %vm2769, %v2765, 1326507024
    %v2780 = vsel %vm2768, %v2762, %v2779
    %v2781 = vsel %vm2767, %v2778, %v2780
    %v2782 = vshll.u32 %v2742, 8
    %v2783 = vmul.u32.u64.compose %v2782, %v2781
    %v2784 = vextract.low.u32 %v2783
    %v2785 = vextract.high.u32 %v2783
    %v2786 = vmul.u32.u64.compose %v2782, %v2777
    %v2787 = vextract.low.u32 %v2786
    %v2788 = vextract.high.u32 %v2786
    %v2789 = vmul.u32 %v2782, %v2773
    %v2790 = vadd.s32 %v2785, %v2787
    %vm2791 = vc.u32 %v2785, %v2787
    %v2792 = vadd.s32 %v2788, 1
    %v2793 = vsel %vm2791, %v2792, %v2788
    %v2794 = vadd.s32 %v2789, %v2793
    %v2795 = vadd.s32 %v2794, 536870912
    %v2796 = vshrl.u32 %v2795, 30
    %v2797 = vshll.u32 %v2796, 30
    %v2798 = vsub.s32 %v2794, %v2797
    %vm2799 = vcmp.lt.s32.totalorder %v2798, 0
    %v2800 = vsub.s32 0, %v2798
    %v2801 = vsel %vm2799, %v2800, %v2798
    %v2802 = vclz %v2801
    %v2803 = vsub.s32 %v2802, 2
    %vm2804 = vcmp.gt.s32.totalorder 0, %v2803
    %v2805 = vsel %vm2804, 0, %v2803
    %v2806 = vsub.s32 32, %v2805
    %v2807 = vshll.u32 %v2798, %v2805
    %v2808 = vshrl.u32 %v2790, %v2806
    %v2809 = vor.u32 %v2807, %v2808
    %v2810 = vsub.s32 4294967266, %v2805
    %v2811 = vadd.s32 %v2810, 127
    %v2812 = vshll.u32 %v2811, 23
    %v2813 = vor.u32 4788187, %v2812
    %v2814 = vand.u32 2147483647, %v2813
    %v2816 = vcvt.s32.f32 %v2809
    %v2817 = vmul.f32 %v2816, %v2814
    %v2818 = vxor.u32 %v2817, 2147483648
    %v2819 = vsel %vm2736, %v2818, %v2817
    %v2820 = vsub.s32 4, %v2796
    %v2821 = vsel %vm2736, %v2820, %v2796
    %v2822 = vsel %vm2735, %v866, %v2819
    %v2823 = vsel %vm2735, 0, %v2821
    %v2824 = vcosq.f32.pop %v2822
    %v2825 = vsinq.f32.pop %v2822
    %vm2826 = vweird.f32 %v866
    %v2827 = vand.u32 %v2823, 3
    %vm2828 = vcmp.lt.s32.totalorder %v2827, 2
    %vm2829 = vcmp.eq.s32.totalorder %v2827, 0
    %v2830 = vxor.u32 %v2825, 2147483648
    %v2831 = vsel %vm2829, %v2824, %v2830
    %vm2832 = vcmp.eq.s32.totalorder %v2827, 2
    %v2833 = vxor.u32 %v2824, 2147483648
    %v2834 = vsel %vm2832, %v2833, %v2825
    %v2835 = vsel %vm2828, %v2831, %v2834
    %v2836 = vsel %vm2826, nan, %v2835
    %v2837 = vand.u32 2147483647, %v867
    %vm2838 = vcmp.le.f32.partialorder %v2837, 0.7853982
    %vm2839 = vcmp.lt.s32.totalorder %v867, 0
    %v2840 = vand.u32 %v867, 2139095040
    %v2841 = vshrl.u32 %v2840, 23
    %v2842 = vsub.s32 %v2841, 127
    %v2843 = vand.u32 2147483647, %v867
    %v2844 = vand.u32 %v2843, 8388607
    %v2845 = vor.u32 %v2844, 8388608
    %v2846 = vsub.s32 0, %v2845
    %v2847 = vadd.s32 %v2842, 1
    %vm2848 = vcmp.gt.s32.totalorder %v2847, 0
    %v2849 = vsel %vm2848, %v2847, 0
    %v2850 = vshrl.u32 %v2849, 5
    %v2851 = vand.u32 %v2849, 31
    %v2852 = vsub.s32 32, %v2851
    %v2853 = vshrl.u32 683565275, %v2852
    %v2854 = vshll.u32 683565275, %v2851
    %v2855 = vshrl.u32 2475754826, %v2852
    %v2856 = vor.u32 %v2854, %v2855
    %v2857 = vshll.u32 2475754826, %v2851
    %v2858 = vshrl.u32 2131351028, %v2852
    %v2859 = vor.u32 %v2857, %v2858
    %v2860 = vshll.u32 2131351028, %v2851
    %v2861 = vshrl.u32 2102212464, %v2852
    %v2862 = vor.u32 %v2860, %v2861
    %v2863 = vshll.u32 2102212464, %v2851
    %v2864 = vshrl.u32 920167782, %v2852
    %v2865 = vor.u32 %v2863, %v2864
    %v2866 = vshll.u32 920167782, %v2851
    %v2867 = vshrl.u32 1326507024, %v2852
    %v2868 = vor.u32 %v2866, %v2867
    %vm2869 = vcmp.lt.s32.totalorder %v2850, 1
    %vm2870 = vcmp.lt.s32.totalorder %v2850, 2
    %vm2871 = vcmp.lt.s32.totalorder %v2850, 3
    %vm2872 = vcmp.lt.s32.totalorder %v2850, 4
    %v2873 = vsel %vm2869, %v2853, %v2856
    %v2874 = vsel %vm2872, %v2862, 2102212464
    %v2875 = vsel %vm2871, %v2859, %v2874
    %v2876 = vsel %vm2870, %v2873, %v2875
    %v2877 = vsel %vm2869, %v2856, %v2859
    %v2878 = vsel %vm2872, %v2865, 920167782
    %v2879 = vsel %vm2871, %v2862, %v2878
    %v2880 = vsel %vm2870, %v2877, %v2879
    %v2881 = vsel %vm2869, %v2859, %v2862
    %v2882 = vsel %vm2872, %v2868, 1326507024
    %v2883 = vsel %vm2871, %v2865, %v2882
    %v2884 = vsel %vm2870, %v2881, %v2883
    %v2885 = vshll.u32 %v2845, 8
    %v2886 = vmul.u32.u64.compose %v2885, %v2884
    %v2887 = vextract.low.u32 %v2886
    %v2888 = vextract.high.u32 %v2886
    %v2889 = vmul.u32.u64.compose %v2885, %v2880
    %v2890 = vextract.low.u32 %v2889
    %v2891 = vextract.high.u32 %v2889
    %v2892 = vmul.u32 %v2885, %v2876
    %v2893 = vadd.s32 %v2888, %v2890
    %vm2894 = vc.u32 %v2888, %v2890
    %v2895 = vadd.s32 %v2891, 1
    %v2896 = vsel %vm2894, %v2895, %v2891
    %v2897 = vadd.s32 %v2892, %v2896
    %v2898 = vadd.s32 %v2897, 536870912
    %v2899 = vshrl.u32 %v2898, 30
    %v2900 = vshll.u32 %v2899, 30
    %v2901 = vsub.s32 %v2897, %v2900
    %vm2902 = vcmp.lt.s32.totalorder %v2901, 0
    %v2903 = vsub.s32 0, %v2901
    %v2904 = vsel %vm2902, %v2903, %v2901
    %v2905 = vclz %v2904
    %v2906 = vsub.s32 %v2905, 2
    %vm2907 = vcmp.gt.s32.totalorder 0, %v2906
    %v2908 = vsel %vm2907, 0, %v2906
    %v2909 = vsub.s32 32, %v2908
    %v2910 = vshll.u32 %v2901, %v2908
    %v2911 = vshrl.u32 %v2893, %v2909
    %v2912 = vor.u32 %v2910, %v2911
    %v2913 = vsub.s32 4294967266, %v2908
    %v2914 = vadd.s32 %v2913, 127
    %v2915 = vshll.u32 %v2914, 23
    %v2916 = vor.u32 4788187, %v2915
    %v2917 = vand.u32 2147483647, %v2916
    %v2919 = vcvt.s32.f32 %v2912
    %v2920 = vmul.f32 %v2919, %v2917
    %v2921 = vxor.u32 %v2920, 2147483648
    %v2922 = vsel %vm2839, %v2921, %v2920
    %v2923 = vsub.s32 4, %v2899
    %v2924 = vsel %vm2839, %v2923, %v2899
    %v2925 = vsel %vm2838, %v867, %v2922
    %v2926 = vsel %vm2838, 0, %v2924
    %v2927 = vcosq.f32.pop %v2925
    %v2928 = vsinq.f32.pop %v2925
    %vm2929 = vweird.f32 %v867
    %v2930 = vand.u32 %v2926, 3
    %vm2931 = vcmp.lt.s32.totalorder %v2930, 2
    %vm2932 = vcmp.eq.s32.totalorder %v2930, 0
    %v2933 = vxor.u32 %v2928, 2147483648
    %v2934 = vsel %vm2932, %v2927, %v2933
    %vm2935 = vcmp.eq.s32.totalorder %v2930, 2
    %v2936 = vxor.u32 %v2927, 2147483648
    %v2937 = vsel %vm2935, %v2936, %v2928
    %v2938 = vsel %vm2931, %v2934, %v2937
    %v2939 = vsel %vm2929, nan, %v2938
    %v2940 = vand.u32 2147483647, %v868
    %vm2941 = vcmp.le.f32.partialorder %v2940, 0.7853982
    %vm2942 = vcmp.lt.s32.totalorder %v868, 0
    %v2943 = vand.u32 %v868, 2139095040
    %v2944 = vshrl.u32 %v2943, 23
    %v2945 = vsub.s32 %v2944, 127
    %v2946 = vand.u32 2147483647, %v868
    %v2947 = vand.u32 %v2946, 8388607
    %v2948 = vor.u32 %v2947, 8388608
    %v2949 = vsub.s32 0, %v2948
    %v2950 = vadd.s32 %v2945, 1
    %vm2951 = vcmp.gt.s32.totalorder %v2950, 0
    %v2952 = vsel %vm2951, %v2950, 0
    %v2953 = vshrl.u32 %v2952, 5
    %v2954 = vand.u32 %v2952, 31
    %v2955 = vsub.s32 32, %v2954
    %v2956 = vshrl.u32 683565275, %v2955
    %v2957 = vshll.u32 683565275, %v2954
    %v2958 = vshrl.u32 2475754826, %v2955
    %v2959 = vor.u32 %v2957, %v2958
    %v2960 = vshll.u32 2475754826, %v2954
    %v2961 = vshrl.u32 2131351028, %v2955
    %v2962 = vor.u32 %v2960, %v2961
    %v2963 = vshll.u32 2131351028, %v2954
    %v2964 = vshrl.u32 2102212464, %v2955
    %v2965 = vor.u32 %v2963, %v2964
    %v2966 = vshll.u32 2102212464, %v2954
    %v2967 = vshrl.u32 920167782, %v2955
    %v2968 = vor.u32 %v2966, %v2967
    %v2969 = vshll.u32 920167782, %v2954
    %v2970 = vshrl.u32 1326507024, %v2955
    %v2971 = vor.u32 %v2969, %v2970
    %vm2972 = vcmp.lt.s32.totalorder %v2953, 1
    %vm2973 = vcmp.lt.s32.totalorder %v2953, 2
    %vm2974 = vcmp.lt.s32.totalorder %v2953, 3
    %vm2975 = vcmp.lt.s32.totalorder %v2953, 4
    %v2976 = vsel %vm2972, %v2956, %v2959
    %v2977 = vsel %vm2975, %v2965, 2102212464
    %v2978 = vsel %vm2974, %v2962, %v2977
    %v2979 = vsel %vm2973, %v2976, %v2978
    %v2980 = vsel %vm2972, %v2959, %v2962
    %v2981 = vsel %vm2975, %v2968, 920167782
    %v2982 = vsel %vm2974, %v2965, %v2981
    %v2983 = vsel %vm2973, %v2980, %v2982
    %v2984 = vsel %vm2972, %v2962, %v2965
    %v2985 = vsel %vm2975, %v2971, 1326507024
    %v2986 = vsel %vm2974, %v2968, %v2985
    %v2987 = vsel %vm2973, %v2984, %v2986
    %v2988 = vshll.u32 %v2948, 8
    %v2989 = vmul.u32.u64.compose %v2988, %v2987
    %v2990 = vextract.low.u32 %v2989
    %v2991 = vextract.high.u32 %v2989
    %v2992 = vmul.u32.u64.compose %v2988, %v2983
    %v2993 = vextract.low.u32 %v2992
    %v2994 = vextract.high.u32 %v2992
    %v2995 = vmul.u32 %v2988, %v2979
    %v2996 = vadd.s32 %v2991, %v2993
    %vm2997 = vc.u32 %v2991, %v2993
    %v2998 = vadd.s32 %v2994, 1
    %v2999 = vsel %vm2997, %v2998, %v2994
    %v3000 = vadd.s32 %v2995, %v2999
    %v3001 = vadd.s32 %v3000, 536870912
    %v3002 = vshrl.u32 %v3001, 30
    %v3003 = vshll.u32 %v3002, 30
    %v3004 = vsub.s32 %v3000, %v3003
    %vm3005 = vcmp.lt.s32.totalorder %v3004, 0
    %v3006 = vsub.s32 0, %v3004
    %v3007 = vsel %vm3005, %v3006, %v3004
    %v3008 = vclz %v3007
    %v3009 = vsub.s32 %v3008, 2
    %vm3010 = vcmp.gt.s32.totalorder 0, %v3009
    %v3011 = vsel %vm3010, 0, %v3009
    %v3012 = vsub.s32 32, %v3011
    %v3013 = vshll.u32 %v3004, %v3011
    %v3014 = vshrl.u32 %v2996, %v3012
    %v3015 = vor.u32 %v3013, %v3014
    %v3016 = vsub.s32 4294967266, %v3011
    %v3017 = vadd.s32 %v3016, 127
    %v3018 = vshll.u32 %v3017, 23
    %v3019 = vor.u32 4788187, %v3018
    %v3020 = vand.u32 2147483647, %v3019
    %v3022 = vcvt.s32.f32 %v3015
    %v3023 = vmul.f32 %v3022, %v3020
    %v3024 = vxor.u32 %v3023, 2147483648
    %v3025 = vsel %vm2942, %v3024, %v3023
    %v3026 = vsub.s32 4, %v3002
    %v3027 = vsel %vm2942, %v3026, %v3002
    %v3028 = vsel %vm2941, %v868, %v3025
    %v3029 = vsel %vm2941, 0, %v3027
    %v3030 = vcosq.f32.pop %v3028
    %v3031 = vsinq.f32.pop %v3028
    %vm3032 = vweird.f32 %v868
    %v3033 = vand.u32 %v3029, 3
    %vm3034 = vcmp.lt.s32.totalorder %v3033, 2
    %vm3035 = vcmp.eq.s32.totalorder %v3033, 0
    %v3036 = vxor.u32 %v3031, 2147483648
    %v3037 = vsel %vm3035, %v3030, %v3036
    %vm3038 = vcmp.eq.s32.totalorder %v3033, 2
    %v3039 = vxor.u32 %v3030, 2147483648
    %v3040 = vsel %vm3038, %v3039, %v3031
    %v3041 = vsel %vm3034, %v3037, %v3040
    %v3042 = vsel %vm3032, nan, %v3041
    %v3043 = vand.u32 2147483647, %v869
    %vm3044 = vcmp.le.f32.partialorder %v3043, 0.7853982
    %vm3045 = vcmp.lt.s32.totalorder %v869, 0
    %v3046 = vand.u32 %v869, 2139095040
    %v3047 = vshrl.u32 %v3046, 23
    %v3048 = vsub.s32 %v3047, 127
    %v3049 = vand.u32 2147483647, %v869
    %v3050 = vand.u32 %v3049, 8388607
    %v3051 = vor.u32 %v3050, 8388608
    %v3052 = vsub.s32 0, %v3051
    %v3053 = vadd.s32 %v3048, 1
    %vm3054 = vcmp.gt.s32.totalorder %v3053, 0
    %v3055 = vsel %vm3054, %v3053, 0
    %v3056 = vshrl.u32 %v3055, 5
    %v3057 = vand.u32 %v3055, 31
    %v3058 = vsub.s32 32, %v3057
    %v3059 = vshrl.u32 683565275, %v3058
    %v3060 = vshll.u32 683565275, %v3057
    %v3061 = vshrl.u32 2475754826, %v3058
    %v3062 = vor.u32 %v3060, %v3061
    %v3063 = vshll.u32 2475754826, %v3057
    %v3064 = vshrl.u32 2131351028, %v3058
    %v3065 = vor.u32 %v3063, %v3064
    %v3066 = vshll.u32 2131351028, %v3057
    %v3067 = vshrl.u32 2102212464, %v3058
    %v3068 = vor.u32 %v3066, %v3067
    %v3069 = vshll.u32 2102212464, %v3057
    %v3070 = vshrl.u32 920167782, %v3058
    %v3071 = vor.u32 %v3069, %v3070
    %v3072 = vshll.u32 920167782, %v3057
    %v3073 = vshrl.u32 1326507024, %v3058
    %v3074 = vor.u32 %v3072, %v3073
    %vm3075 = vcmp.lt.s32.totalorder %v3056, 1
    %vm3076 = vcmp.lt.s32.totalorder %v3056, 2
    %vm3077 = vcmp.lt.s32.totalorder %v3056, 3
    %vm3078 = vcmp.lt.s32.totalorder %v3056, 4
    %v3079 = vsel %vm3075, %v3059, %v3062
    %v3080 = vsel %vm3078, %v3068, 2102212464
    %v3081 = vsel %vm3077, %v3065, %v3080
    %v3082 = vsel %vm3076, %v3079, %v3081
    %v3083 = vsel %vm3075, %v3062, %v3065
    %v3084 = vsel %vm3078, %v3071, 920167782
    %v3085 = vsel %vm3077, %v3068, %v3084
    %v3086 = vsel %vm3076, %v3083, %v3085
    %v3087 = vsel %vm3075, %v3065, %v3068
    %v3088 = vsel %vm3078, %v3074, 1326507024
    %v3089 = vsel %vm3077, %v3071, %v3088
    %v3090 = vsel %vm3076, %v3087, %v3089
    %v3091 = vshll.u32 %v3051, 8
    %v3092 = vmul.u32.u64.compose %v3091, %v3090
    %v3093 = vextract.low.u32 %v3092
    %v3094 = vextract.high.u32 %v3092
    %v3095 = vmul.u32.u64.compose %v3091, %v3086
    %v3096 = vextract.low.u32 %v3095
    %v3097 = vextract.high.u32 %v3095
    %v3098 = vmul.u32 %v3091, %v3082
    %v3099 = vadd.s32 %v3094, %v3096
    %vm3100 = vc.u32 %v3094, %v3096
    %v3101 = vadd.s32 %v3097, 1
    %v3102 = vsel %vm3100, %v3101, %v3097
    %v3103 = vadd.s32 %v3098, %v3102
    %v3104 = vadd.s32 %v3103, 536870912
    %v3105 = vshrl.u32 %v3104, 30
    %v3106 = vshll.u32 %v3105, 30
    %v3107 = vsub.s32 %v3103, %v3106
    %vm3108 = vcmp.lt.s32.totalorder %v3107, 0
    %v3109 = vsub.s32 0, %v3107
    %v3110 = vsel %vm3108, %v3109, %v3107
    %v3111 = vclz %v3110
    %v3112 = vsub.s32 %v3111, 2
    %vm3113 = vcmp.gt.s32.totalorder 0, %v3112
    %v3114 = vsel %vm3113, 0, %v3112
    %v3115 = vsub.s32 32, %v3114
    %v3116 = vshll.u32 %v3107, %v3114
    %v3117 = vshrl.u32 %v3099, %v3115
    %v3118 = vor.u32 %v3116, %v3117
    %v3119 = vsub.s32 4294967266, %v3114
    %v3120 = vadd.s32 %v3119, 127
    %v3121 = vshll.u32 %v3120, 23
    %v3122 = vor.u32 4788187, %v3121
    %v3123 = vand.u32 2147483647, %v3122
    %v3125 = vcvt.s32.f32 %v3118
    %v3126 = vmul.f32 %v3125, %v3123
    %v3127 = vxor.u32 %v3126, 2147483648
    %v3128 = vsel %vm3045, %v3127, %v3126
    %v3129 = vsub.s32 4, %v3105
    %v3130 = vsel %vm3045, %v3129, %v3105
    %v3131 = vsel %vm3044, %v869, %v3128
    %v3132 = vsel %vm3044, 0, %v3130
    %v3133 = vcosq.f32.pop %v3131
    %v3134 = vsinq.f32.pop %v3131
    %vm3135 = vweird.f32 %v869
    %v3136 = vand.u32 %v3132, 3
    %vm3137 = vcmp.lt.s32.totalorder %v3136, 2
    %vm3138 = vcmp.eq.s32.totalorder %v3136, 0
    %v3139 = vxor.u32 %v3134, 2147483648
    %v3140 = vsel %vm3138, %v3133, %v3139
    %vm3141 = vcmp.eq.s32.totalorder %v3136, 2
    %v3142 = vxor.u32 %v3133, 2147483648
    %v3143 = vsel %vm3141, %v3142, %v3134
    %v3144 = vsel %vm3137, %v3140, %v3143
    %v3145 = vsel %vm3135, nan, %v3144
    %v3146 = vand.u32 2147483647, %v870
    %vm3147 = vcmp.le.f32.partialorder %v3146, 0.7853982
    %vm3148 = vcmp.lt.s32.totalorder %v870, 0
    %v3149 = vand.u32 %v870, 2139095040
    %v3150 = vshrl.u32 %v3149, 23
    %v3151 = vsub.s32 %v3150, 127
    %v3152 = vand.u32 2147483647, %v870
    %v3153 = vand.u32 %v3152, 8388607
    %v3154 = vor.u32 %v3153, 8388608
    %v3155 = vsub.s32 0, %v3154
    %v3156 = vadd.s32 %v3151, 1
    %vm3157 = vcmp.gt.s32.totalorder %v3156, 0
    %v3158 = vsel %vm3157, %v3156, 0
    %v3159 = vshrl.u32 %v3158, 5
    %v3160 = vand.u32 %v3158, 31
    %v3161 = vsub.s32 32, %v3160
    %v3162 = vshrl.u32 683565275, %v3161
    %v3163 = vshll.u32 683565275, %v3160
    %v3164 = vshrl.u32 2475754826, %v3161
    %v3165 = vor.u32 %v3163, %v3164
    %v3166 = vshll.u32 2475754826, %v3160
    %v3167 = vshrl.u32 2131351028, %v3161
    %v3168 = vor.u32 %v3166, %v3167
    %v3169 = vshll.u32 2131351028, %v3160
    %v3170 = vshrl.u32 2102212464, %v3161
    %v3171 = vor.u32 %v3169, %v3170
    %v3172 = vshll.u32 2102212464, %v3160
    %v3173 = vshrl.u32 920167782, %v3161
    %v3174 = vor.u32 %v3172, %v3173
    %v3175 = vshll.u32 920167782, %v3160
    %v3176 = vshrl.u32 1326507024, %v3161
    %v3177 = vor.u32 %v3175, %v3176
    %vm3178 = vcmp.lt.s32.totalorder %v3159, 1
    %vm3179 = vcmp.lt.s32.totalorder %v3159, 2
    %vm3180 = vcmp.lt.s32.totalorder %v3159, 3
    %vm3181 = vcmp.lt.s32.totalorder %v3159, 4
    %v3182 = vsel %vm3178, %v3162, %v3165
    %v3183 = vsel %vm3181, %v3171, 2102212464
    %v3184 = vsel %vm3180, %v3168, %v3183
    %v3185 = vsel %vm3179, %v3182, %v3184
    %v3186 = vsel %vm3178, %v3165, %v3168
    %v3187 = vsel %vm3181, %v3174, 920167782
    %v3188 = vsel %vm3180, %v3171, %v3187
    %v3189 = vsel %vm3179, %v3186, %v3188
    %v3190 = vsel %vm3178, %v3168, %v3171
    %v3191 = vsel %vm3181, %v3177, 1326507024
    %v3192 = vsel %vm3180, %v3174, %v3191
    %v3193 = vsel %vm3179, %v3190, %v3192
    %v3194 = vshll.u32 %v3154, 8
    %v3195 = vmul.u32.u64.compose %v3194, %v3193
    %v3196 = vextract.low.u32 %v3195
    %v3197 = vextract.high.u32 %v3195
    %v3198 = vmul.u32.u64.compose %v3194, %v3189
    %v3199 = vextract.low.u32 %v3198
    %v3200 = vextract.high.u32 %v3198
    %v3201 = vmul.u32 %v3194, %v3185
    %v3202 = vadd.s32 %v3197, %v3199
    %vm3203 = vc.u32 %v3197, %v3199
    %v3204 = vadd.s32 %v3200, 1
    %v3205 = vsel %vm3203, %v3204, %v3200
    %v3206 = vadd.s32 %v3201, %v3205
    %v3207 = vadd.s32 %v3206, 536870912
    %v3208 = vshrl.u32 %v3207, 30
    %v3209 = vshll.u32 %v3208, 30
    %v3210 = vsub.s32 %v3206, %v3209
    %vm3211 = vcmp.lt.s32.totalorder %v3210, 0
    %v3212 = vsub.s32 0, %v3210
    %v3213 = vsel %vm3211, %v3212, %v3210
    %v3214 = vclz %v3213
    %v3215 = vsub.s32 %v3214, 2
    %vm3216 = vcmp.gt.s32.totalorder 0, %v3215
    %v3217 = vsel %vm3216, 0, %v3215
    %v3218 = vsub.s32 32, %v3217
    %v3219 = vshll.u32 %v3210, %v3217
    %v3220 = vshrl.u32 %v3202, %v3218
    %v3221 = vor.u32 %v3219, %v3220
    %v3222 = vsub.s32 4294967266, %v3217
    %v3223 = vadd.s32 %v3222, 127
    %v3224 = vshll.u32 %v3223, 23
    %v3225 = vor.u32 4788187, %v3224
    %v3226 = vand.u32 2147483647, %v3225
    %v3228 = vcvt.s32.f32 %v3221
    %v3229 = vmul.f32 %v3228, %v3226
    %v3230 = vxor.u32 %v3229, 2147483648
    %v3231 = vsel %vm3148, %v3230, %v3229
    %v3232 = vsub.s32 4, %v3208
    %v3233 = vsel %vm3148, %v3232, %v3208
    %v3234 = vsel %vm3147, %v870, %v3231
    %v3235 = vsel %vm3147, 0, %v3233
    %v3236 = vcosq.f32.pop %v3234
    %v3237 = vsinq.f32.pop %v3234
    %vm3238 = vweird.f32 %v870
    %v3239 = vand.u32 %v3235, 3
    %vm3240 = vcmp.lt.s32.totalorder %v3239, 2
    %vm3241 = vcmp.eq.s32.totalorder %v3239, 0
    %v3242 = vxor.u32 %v3237, 2147483648
    %v3243 = vsel %vm3241, %v3236, %v3242
    %vm3244 = vcmp.eq.s32.totalorder %v3239, 2
    %v3245 = vxor.u32 %v3236, 2147483648
    %v3246 = vsel %vm3244, %v3245, %v3237
    %v3247 = vsel %vm3240, %v3243, %v3246
    %v3248 = vsel %vm3238, nan, %v3247
    %v3249 = vand.u32 2147483647, %v871
    %vm3250 = vcmp.le.f32.partialorder %v3249, 0.7853982
    %vm3251 = vcmp.lt.s32.totalorder %v871, 0
    %v3252 = vand.u32 %v871, 2139095040
    %v3253 = vshrl.u32 %v3252, 23
    %v3254 = vsub.s32 %v3253, 127
    %v3255 = vand.u32 2147483647, %v871
    %v3256 = vand.u32 %v3255, 8388607
    %v3257 = vor.u32 %v3256, 8388608
    %v3258 = vsub.s32 0, %v3257
    %v3259 = vadd.s32 %v3254, 1
    %vm3260 = vcmp.gt.s32.totalorder %v3259, 0
    %v3261 = vsel %vm3260, %v3259, 0
    %v3262 = vshrl.u32 %v3261, 5
    %v3263 = vand.u32 %v3261, 31
    %v3264 = vsub.s32 32, %v3263
    %v3265 = vshrl.u32 683565275, %v3264
    %v3266 = vshll.u32 683565275, %v3263
    %v3267 = vshrl.u32 2475754826, %v3264
    %v3268 = vor.u32 %v3266, %v3267
    %v3269 = vshll.u32 2475754826, %v3263
    %v3270 = vshrl.u32 2131351028, %v3264
    %v3271 = vor.u32 %v3269, %v3270
    %v3272 = vshll.u32 2131351028, %v3263
    %v3273 = vshrl.u32 2102212464, %v3264
    %v3274 = vor.u32 %v3272, %v3273
    %v3275 = vshll.u32 2102212464, %v3263
    %v3276 = vshrl.u32 920167782, %v3264
    %v3277 = vor.u32 %v3275, %v3276
    %v3278 = vshll.u32 920167782, %v3263
    %v3279 = vshrl.u32 1326507024, %v3264
    %v3280 = vor.u32 %v3278, %v3279
    %vm3281 = vcmp.lt.s32.totalorder %v3262, 1
    %vm3282 = vcmp.lt.s32.totalorder %v3262, 2
    %vm3283 = vcmp.lt.s32.totalorder %v3262, 3
    %vm3284 = vcmp.lt.s32.totalorder %v3262, 4
    %v3285 = vsel %vm3281, %v3265, %v3268
    %v3286 = vsel %vm3284, %v3274, 2102212464
    %v3287 = vsel %vm3283, %v3271, %v3286
    %v3288 = vsel %vm3282, %v3285, %v3287
    %v3289 = vsel %vm3281, %v3268, %v3271
    %v3290 = vsel %vm3284, %v3277, 920167782
    %v3291 = vsel %vm3283, %v3274, %v3290
    %v3292 = vsel %vm3282, %v3289, %v3291
    %v3293 = vsel %vm3281, %v3271, %v3274
    %v3294 = vsel %vm3284, %v3280, 1326507024
    %v3295 = vsel %vm3283, %v3277, %v3294
    %v3296 = vsel %vm3282, %v3293, %v3295
    %v3297 = vshll.u32 %v3257, 8
    %v3298 = vmul.u32.u64.compose %v3297, %v3296
    %v3299 = vextract.low.u32 %v3298
    %v3300 = vextract.high.u32 %v3298
    %v3301 = vmul.u32.u64.compose %v3297, %v3292
    %v3302 = vextract.low.u32 %v3301
    %v3303 = vextract.high.u32 %v3301
    %v3304 = vmul.u32 %v3297, %v3288
    %v3305 = vadd.s32 %v3300, %v3302
    %vm3306 = vc.u32 %v3300, %v3302
    %v3307 = vadd.s32 %v3303, 1
    %v3308 = vsel %vm3306, %v3307, %v3303
    %v3309 = vadd.s32 %v3304, %v3308
    %v3310 = vadd.s32 %v3309, 536870912
    %v3311 = vshrl.u32 %v3310, 30
    %v3312 = vshll.u32 %v3311, 30
    %v3313 = vsub.s32 %v3309, %v3312
    %vm3314 = vcmp.lt.s32.totalorder %v3313, 0
    %v3315 = vsub.s32 0, %v3313
    %v3316 = vsel %vm3314, %v3315, %v3313
    %v3317 = vclz %v3316
    %v3318 = vsub.s32 %v3317, 2
    %vm3319 = vcmp.gt.s32.totalorder 0, %v3318
    %v3320 = vsel %vm3319, 0, %v3318
    %v3321 = vsub.s32 32, %v3320
    %v3322 = vshll.u32 %v3313, %v3320
    %v3323 = vshrl.u32 %v3305, %v3321
    %v3324 = vor.u32 %v3322, %v3323
    %v3325 = vsub.s32 4294967266, %v3320
    %v3326 = vadd.s32 %v3325, 127
    %v3327 = vshll.u32 %v3326, 23
    %v3328 = vor.u32 4788187, %v3327
    %v3329 = vand.u32 2147483647, %v3328
    %v3331 = vcvt.s32.f32 %v3324
    %v3332 = vmul.f32 %v3331, %v3329
    %v3333 = vxor.u32 %v3332, 2147483648
    %v3334 = vsel %vm3251, %v3333, %v3332
    %v3335 = vsub.s32 4, %v3311
    %v3336 = vsel %vm3251, %v3335, %v3311
    %v3337 = vsel %vm3250, %v871, %v3334
    %v3338 = vsel %vm3250, 0, %v3336
    %v3339 = vcosq.f32.pop %v3337
    %v3340 = vsinq.f32.pop %v3337
    %vm3341 = vweird.f32 %v871
    %v3342 = vand.u32 %v3338, 3
    %vm3343 = vcmp.lt.s32.totalorder %v3342, 2
    %vm3344 = vcmp.eq.s32.totalorder %v3342, 0
    %v3345 = vxor.u32 %v3340, 2147483648
    %v3346 = vsel %vm3344, %v3339, %v3345
    %vm3347 = vcmp.eq.s32.totalorder %v3342, 2
    %v3348 = vxor.u32 %v3339, 2147483648
    %v3349 = vsel %vm3347, %v3348, %v3340
    %v3350 = vsel %vm3343, %v3346, %v3349
    %v3351 = vsel %vm3341, nan, %v3350
    %v3352 = vand.u32 2147483647, %v872
    %vm3353 = vcmp.le.f32.partialorder %v3352, 0.7853982
    %vm3354 = vcmp.lt.s32.totalorder %v872, 0
    %v3355 = vand.u32 %v872, 2139095040
    %v3356 = vshrl.u32 %v3355, 23
    %v3357 = vsub.s32 %v3356, 127
    %v3358 = vand.u32 2147483647, %v872
    %v3359 = vand.u32 %v3358, 8388607
    %v3360 = vor.u32 %v3359, 8388608
    %v3361 = vsub.s32 0, %v3360
    %v3362 = vadd.s32 %v3357, 1
    %vm3363 = vcmp.gt.s32.totalorder %v3362, 0
    %v3364 = vsel %vm3363, %v3362, 0
    %v3365 = vshrl.u32 %v3364, 5
    %v3366 = vand.u32 %v3364, 31
    %v3367 = vsub.s32 32, %v3366
    %v3368 = vshrl.u32 683565275, %v3367
    %v3369 = vshll.u32 683565275, %v3366
    %v3370 = vshrl.u32 2475754826, %v3367
    %v3371 = vor.u32 %v3369, %v3370
    %v3372 = vshll.u32 2475754826, %v3366
    %v3373 = vshrl.u32 2131351028, %v3367
    %v3374 = vor.u32 %v3372, %v3373
    %v3375 = vshll.u32 2131351028, %v3366
    %v3376 = vshrl.u32 2102212464, %v3367
    %v3377 = vor.u32 %v3375, %v3376
    %v3378 = vshll.u32 2102212464, %v3366
    %v3379 = vshrl.u32 920167782, %v3367
    %v3380 = vor.u32 %v3378, %v3379
    %v3381 = vshll.u32 920167782, %v3366
    %v3382 = vshrl.u32 1326507024, %v3367
    %v3383 = vor.u32 %v3381, %v3382
    %vm3384 = vcmp.lt.s32.totalorder %v3365, 1
    %vm3385 = vcmp.lt.s32.totalorder %v3365, 2
    %vm3386 = vcmp.lt.s32.totalorder %v3365, 3
    %vm3387 = vcmp.lt.s32.totalorder %v3365, 4
    %v3388 = vsel %vm3384, %v3368, %v3371
    %v3389 = vsel %vm3387, %v3377, 2102212464
    %v3390 = vsel %vm3386, %v3374, %v3389
    %v3391 = vsel %vm3385, %v3388, %v3390
    %v3392 = vsel %vm3384, %v3371, %v3374
    %v3393 = vsel %vm3387, %v3380, 920167782
    %v3394 = vsel %vm3386, %v3377, %v3393
    %v3395 = vsel %vm3385, %v3392, %v3394
    %v3396 = vsel %vm3384, %v3374, %v3377
    %v3397 = vsel %vm3387, %v3383, 1326507024
    %v3398 = vsel %vm3386, %v3380, %v3397
    %v3399 = vsel %vm3385, %v3396, %v3398
    %v3400 = vshll.u32 %v3360, 8
    %v3401 = vmul.u32.u64.compose %v3400, %v3399
    %v3402 = vextract.low.u32 %v3401
    %v3403 = vextract.high.u32 %v3401
    %v3404 = vmul.u32.u64.compose %v3400, %v3395
    %v3405 = vextract.low.u32 %v3404
    %v3406 = vextract.high.u32 %v3404
    %v3407 = vmul.u32 %v3400, %v3391
    %v3408 = vadd.s32 %v3403, %v3405
    %vm3409 = vc.u32 %v3403, %v3405
    %v3410 = vadd.s32 %v3406, 1
    %v3411 = vsel %vm3409, %v3410, %v3406
    %v3412 = vadd.s32 %v3407, %v3411
    %v3413 = vadd.s32 %v3412, 536870912
    %v3414 = vshrl.u32 %v3413, 30
    %v3415 = vshll.u32 %v3414, 30
    %v3416 = vsub.s32 %v3412, %v3415
    %vm3417 = vcmp.lt.s32.totalorder %v3416, 0
    %v3418 = vsub.s32 0, %v3416
    %v3419 = vsel %vm3417, %v3418, %v3416
    %v3420 = vclz %v3419
    %v3421 = vsub.s32 %v3420, 2
    %vm3422 = vcmp.gt.s32.totalorder 0, %v3421
    %v3423 = vsel %vm3422, 0, %v3421
    %v3424 = vsub.s32 32, %v3423
    %v3425 = vshll.u32 %v3416, %v3423
    %v3426 = vshrl.u32 %v3408, %v3424
    %v3427 = vor.u32 %v3425, %v3426
    %v3428 = vsub.s32 4294967266, %v3423
    %v3429 = vadd.s32 %v3428, 127
    %v3430 = vshll.u32 %v3429, 23
    %v3431 = vor.u32 4788187, %v3430
    %v3432 = vand.u32 2147483647, %v3431
    %v3434 = vcvt.s32.f32 %v3427
    %v3435 = vmul.f32 %v3434, %v3432
    %v3436 = vxor.u32 %v3435, 2147483648
    %v3437 = vsel %vm3354, %v3436, %v3435
    %v3438 = vsub.s32 4, %v3414
    %v3439 = vsel %vm3354, %v3438, %v3414
    %v3440 = vsel %vm3353, %v872, %v3437
    %v3441 = vsel %vm3353, 0, %v3439
    %v3442 = vcosq.f32.pop %v3440
    %v3443 = vsinq.f32.pop %v3440
    %vm3444 = vweird.f32 %v872
    %v3445 = vand.u32 %v3441, 3
    %vm3446 = vcmp.lt.s32.totalorder %v3445, 2
    %vm3447 = vcmp.eq.s32.totalorder %v3445, 0
    %v3448 = vxor.u32 %v3443, 2147483648
    %v3449 = vsel %vm3447, %v3442, %v3448
    %vm3450 = vcmp.eq.s32.totalorder %v3445, 2
    %v3451 = vxor.u32 %v3442, 2147483648
    %v3452 = vsel %vm3450, %v3451, %v3443
    %v3453 = vsel %vm3446, %v3449, %v3452
    %v3454 = vsel %vm3444, nan, %v3453
    %v3455 = vand.u32 2147483647, %v873
    %vm3456 = vcmp.le.f32.partialorder %v3455, 0.7853982
    %vm3457 = vcmp.lt.s32.totalorder %v873, 0
    %v3458 = vand.u32 %v873, 2139095040
    %v3459 = vshrl.u32 %v3458, 23
    %v3460 = vsub.s32 %v3459, 127
    %v3461 = vand.u32 2147483647, %v873
    %v3462 = vand.u32 %v3461, 8388607
    %v3463 = vor.u32 %v3462, 8388608
    %v3464 = vsub.s32 0, %v3463
    %v3465 = vadd.s32 %v3460, 1
    %vm3466 = vcmp.gt.s32.totalorder %v3465, 0
    %v3467 = vsel %vm3466, %v3465, 0
    %v3468 = vshrl.u32 %v3467, 5
    %v3469 = vand.u32 %v3467, 31
    %v3470 = vsub.s32 32, %v3469
    %v3471 = vshrl.u32 683565275, %v3470
    %v3472 = vshll.u32 683565275, %v3469
    %v3473 = vshrl.u32 2475754826, %v3470
    %v3474 = vor.u32 %v3472, %v3473
    %v3475 = vshll.u32 2475754826, %v3469
    %v3476 = vshrl.u32 2131351028, %v3470
    %v3477 = vor.u32 %v3475, %v3476
    %v3478 = vshll.u32 2131351028, %v3469
    %v3479 = vshrl.u32 2102212464, %v3470
    %v3480 = vor.u32 %v3478, %v3479
    %v3481 = vshll.u32 2102212464, %v3469
    %v3482 = vshrl.u32 920167782, %v3470
    %v3483 = vor.u32 %v3481, %v3482
    %v3484 = vshll.u32 920167782, %v3469
    %v3485 = vshrl.u32 1326507024, %v3470
    %v3486 = vor.u32 %v3484, %v3485
    %vm3487 = vcmp.lt.s32.totalorder %v3468, 1
    %vm3488 = vcmp.lt.s32.totalorder %v3468, 2
    %vm3489 = vcmp.lt.s32.totalorder %v3468, 3
    %vm3490 = vcmp.lt.s32.totalorder %v3468, 4
    %v3491 = vsel %vm3487, %v3471, %v3474
    %v3492 = vsel %vm3490, %v3480, 2102212464
    %v3493 = vsel %vm3489, %v3477, %v3492
    %v3494 = vsel %vm3488, %v3491, %v3493
    %v3495 = vsel %vm3487, %v3474, %v3477
    %v3496 = vsel %vm3490, %v3483, 920167782
    %v3497 = vsel %vm3489, %v3480, %v3496
    %v3498 = vsel %vm3488, %v3495, %v3497
    %v3499 = vsel %vm3487, %v3477, %v3480
    %v3500 = vsel %vm3490, %v3486, 1326507024
    %v3501 = vsel %vm3489, %v3483, %v3500
    %v3502 = vsel %vm3488, %v3499, %v3501
    %v3503 = vshll.u32 %v3463, 8
    %v3504 = vmul.u32.u64.compose %v3503, %v3502
    %v3505 = vextract.low.u32 %v3504
    %v3506 = vextract.high.u32 %v3504
    %v3507 = vmul.u32.u64.compose %v3503, %v3498
    %v3508 = vextract.low.u32 %v3507
    %v3509 = vextract.high.u32 %v3507
    %v3510 = vmul.u32 %v3503, %v3494
    %v3511 = vadd.s32 %v3506, %v3508
    %vm3512 = vc.u32 %v3506, %v3508
    %v3513 = vadd.s32 %v3509, 1
    %v3514 = vsel %vm3512, %v3513, %v3509
    %v3515 = vadd.s32 %v3510, %v3514
    %v3516 = vadd.s32 %v3515, 536870912
    %v3517 = vshrl.u32 %v3516, 30
    %v3518 = vshll.u32 %v3517, 30
    %v3519 = vsub.s32 %v3515, %v3518
    %vm3520 = vcmp.lt.s32.totalorder %v3519, 0
    %v3521 = vsub.s32 0, %v3519
    %v3522 = vsel %vm3520, %v3521, %v3519
    %v3523 = vclz %v3522
    %v3524 = vsub.s32 %v3523, 2
    %vm3525 = vcmp.gt.s32.totalorder 0, %v3524
    %v3526 = vsel %vm3525, 0, %v3524
    %v3527 = vsub.s32 32, %v3526
    %v3528 = vshll.u32 %v3519, %v3526
    %v3529 = vshrl.u32 %v3511, %v3527
    %v3530 = vor.u32 %v3528, %v3529
    %v3531 = vsub.s32 4294967266, %v3526
    %v3532 = vadd.s32 %v3531, 127
    %v3533 = vshll.u32 %v3532, 23
    %v3534 = vor.u32 4788187, %v3533
    %v3535 = vand.u32 2147483647, %v3534
    %v3537 = vcvt.s32.f32 %v3530
    %v3538 = vmul.f32 %v3537, %v3535
    %v3539 = vxor.u32 %v3538, 2147483648
    %v3540 = vsel %vm3457, %v3539, %v3538
    %v3541 = vsub.s32 4, %v3517
    %v3542 = vsel %vm3457, %v3541, %v3517
    %v3543 = vsel %vm3456, %v873, %v3540
    %v3544 = vsel %vm3456, 0, %v3542
    %v3545 = vcosq.f32.pop %v3543
    %v3546 = vsinq.f32.pop %v3543
    %vm3547 = vweird.f32 %v873
    %v3548 = vand.u32 %v3544, 3
    %vm3549 = vcmp.lt.s32.totalorder %v3548, 2
    %vm3550 = vcmp.eq.s32.totalorder %v3548, 0
    %v3551 = vxor.u32 %v3546, 2147483648
    %v3552 = vsel %vm3550, %v3545, %v3551
    %vm3553 = vcmp.eq.s32.totalorder %v3548, 2
    %v3554 = vxor.u32 %v3545, 2147483648
    %v3555 = vsel %vm3553, %v3554, %v3546
    %v3556 = vsel %vm3549, %v3552, %v3555
    %v3557 = vsel %vm3547, nan, %v3556
    %v3558 = vand.u32 2147483647, %v874
    %vm3559 = vcmp.le.f32.partialorder %v3558, 0.7853982
    %vm3560 = vcmp.lt.s32.totalorder %v874, 0
    %v3561 = vand.u32 %v874, 2139095040
    %v3562 = vshrl.u32 %v3561, 23
    %v3563 = vsub.s32 %v3562, 127
    %v3564 = vand.u32 2147483647, %v874
    %v3565 = vand.u32 %v3564, 8388607
    %v3566 = vor.u32 %v3565, 8388608
    %v3567 = vsub.s32 0, %v3566
    %v3568 = vadd.s32 %v3563, 1
    %vm3569 = vcmp.gt.s32.totalorder %v3568, 0
    %v3570 = vsel %vm3569, %v3568, 0
    %v3571 = vshrl.u32 %v3570, 5
    %v3572 = vand.u32 %v3570, 31
    %v3573 = vsub.s32 32, %v3572
    %v3574 = vshrl.u32 683565275, %v3573
    %v3575 = vshll.u32 683565275, %v3572
    %v3576 = vshrl.u32 2475754826, %v3573
    %v3577 = vor.u32 %v3575, %v3576
    %v3578 = vshll.u32 2475754826, %v3572
    %v3579 = vshrl.u32 2131351028, %v3573
    %v3580 = vor.u32 %v3578, %v3579
    %v3581 = vshll.u32 2131351028, %v3572
    %v3582 = vshrl.u32 2102212464, %v3573
    %v3583 = vor.u32 %v3581, %v3582
    %v3584 = vshll.u32 2102212464, %v3572
    %v3585 = vshrl.u32 920167782, %v3573
    %v3586 = vor.u32 %v3584, %v3585
    %v3587 = vshll.u32 920167782, %v3572
    %v3588 = vshrl.u32 1326507024, %v3573
    %v3589 = vor.u32 %v3587, %v3588
    %vm3590 = vcmp.lt.s32.totalorder %v3571, 1
    %vm3591 = vcmp.lt.s32.totalorder %v3571, 2
    %vm3592 = vcmp.lt.s32.totalorder %v3571, 3
    %vm3593 = vcmp.lt.s32.totalorder %v3571, 4
    %v3594 = vsel %vm3590, %v3574, %v3577
    %v3595 = vsel %vm3593, %v3583, 2102212464
    %v3596 = vsel %vm3592, %v3580, %v3595
    %v3597 = vsel %vm3591, %v3594, %v3596
    %v3598 = vsel %vm3590, %v3577, %v3580
    %v3599 = vsel %vm3593, %v3586, 920167782
    %v3600 = vsel %vm3592, %v3583, %v3599
    %v3601 = vsel %vm3591, %v3598, %v3600
    %v3602 = vsel %vm3590, %v3580, %v3583
    %v3603 = vsel %vm3593, %v3589, 1326507024
    %v3604 = vsel %vm3592, %v3586, %v3603
    %v3605 = vsel %vm3591, %v3602, %v3604
    %v3606 = vshll.u32 %v3566, 8
    %v3607 = vmul.u32.u64.compose %v3606, %v3605
    %v3608 = vextract.low.u32 %v3607
    %v3609 = vextract.high.u32 %v3607
    %v3610 = vmul.u32.u64.compose %v3606, %v3601
    %v3611 = vextract.low.u32 %v3610
    %v3612 = vextract.high.u32 %v3610
    %v3613 = vmul.u32 %v3606, %v3597
    %v3614 = vadd.s32 %v3609, %v3611
    %vm3615 = vc.u32 %v3609, %v3611
    %v3616 = vadd.s32 %v3612, 1
    %v3617 = vsel %vm3615, %v3616, %v3612
    %v3618 = vadd.s32 %v3613, %v3617
    %v3619 = vadd.s32 %v3618, 536870912
    %v3620 = vshrl.u32 %v3619, 30
    %v3621 = vshll.u32 %v3620, 30
    %v3622 = vsub.s32 %v3618, %v3621
    %vm3623 = vcmp.lt.s32.totalorder %v3622, 0
    %v3624 = vsub.s32 0, %v3622
    %v3625 = vsel %vm3623, %v3624, %v3622
    %v3626 = vclz %v3625
    %v3627 = vsub.s32 %v3626, 2
    %vm3628 = vcmp.gt.s32.totalorder 0, %v3627
    %v3629 = vsel %vm3628, 0, %v3627
    %v3630 = vsub.s32 32, %v3629
    %v3631 = vshll.u32 %v3622, %v3629
    %v3632 = vshrl.u32 %v3614, %v3630
    %v3633 = vor.u32 %v3631, %v3632
    %v3634 = vsub.s32 4294967266, %v3629
    %v3635 = vadd.s32 %v3634, 127
    %v3636 = vshll.u32 %v3635, 23
    %v3637 = vor.u32 4788187, %v3636
    %v3638 = vand.u32 2147483647, %v3637
    %v3640 = vcvt.s32.f32 %v3633
    %v3641 = vmul.f32 %v3640, %v3638
    %v3642 = vxor.u32 %v3641, 2147483648
    %v3643 = vsel %vm3560, %v3642, %v3641
    %v3644 = vsub.s32 4, %v3620
    %v3645 = vsel %vm3560, %v3644, %v3620
    %v3646 = vsel %vm3559, %v874, %v3643
    %v3647 = vsel %vm3559, 0, %v3645
    %v3648 = vcosq.f32.pop %v3646
    %v3649 = vsinq.f32.pop %v3646
    %vm3650 = vweird.f32 %v874
    %v3651 = vand.u32 %v3647, 3
    %vm3652 = vcmp.lt.s32.totalorder %v3651, 2
    %vm3653 = vcmp.eq.s32.totalorder %v3651, 0
    %v3654 = vxor.u32 %v3649, 2147483648
    %v3655 = vsel %vm3653, %v3648, %v3654
    %vm3656 = vcmp.eq.s32.totalorder %v3651, 2
    %v3657 = vxor.u32 %v3648, 2147483648
    %v3658 = vsel %vm3656, %v3657, %v3649
    %v3659 = vsel %vm3652, %v3655, %v3658
    %v3660 = vsel %vm3650, nan, %v3659
    %v3661 = vand.u32 2147483647, %v875
    %vm3662 = vcmp.le.f32.partialorder %v3661, 0.7853982
    %vm3663 = vcmp.lt.s32.totalorder %v875, 0
    %v3664 = vand.u32 %v875, 2139095040
    %v3665 = vshrl.u32 %v3664, 23
    %v3666 = vsub.s32 %v3665, 127
    %v3667 = vand.u32 2147483647, %v875
    %v3668 = vand.u32 %v3667, 8388607
    %v3669 = vor.u32 %v3668, 8388608
    %v3670 = vsub.s32 0, %v3669
    %v3671 = vadd.s32 %v3666, 1
    %vm3672 = vcmp.gt.s32.totalorder %v3671, 0
    %v3673 = vsel %vm3672, %v3671, 0
    %v3674 = vshrl.u32 %v3673, 5
    %v3675 = vand.u32 %v3673, 31
    %v3676 = vsub.s32 32, %v3675
    %v3677 = vshrl.u32 683565275, %v3676
    %v3678 = vshll.u32 683565275, %v3675
    %v3679 = vshrl.u32 2475754826, %v3676
    %v3680 = vor.u32 %v3678, %v3679
    %v3681 = vshll.u32 2475754826, %v3675
    %v3682 = vshrl.u32 2131351028, %v3676
    %v3683 = vor.u32 %v3681, %v3682
    %v3684 = vshll.u32 2131351028, %v3675
    %v3685 = vshrl.u32 2102212464, %v3676
    %v3686 = vor.u32 %v3684, %v3685
    %v3687 = vshll.u32 2102212464, %v3675
    %v3688 = vshrl.u32 920167782, %v3676
    %v3689 = vor.u32 %v3687, %v3688
    %v3690 = vshll.u32 920167782, %v3675
    %v3691 = vshrl.u32 1326507024, %v3676
    %v3692 = vor.u32 %v3690, %v3691
    %vm3693 = vcmp.lt.s32.totalorder %v3674, 1
    %vm3694 = vcmp.lt.s32.totalorder %v3674, 2
    %vm3695 = vcmp.lt.s32.totalorder %v3674, 3
    %vm3696 = vcmp.lt.s32.totalorder %v3674, 4
    %v3697 = vsel %vm3693, %v3677, %v3680
    %v3698 = vsel %vm3696, %v3686, 2102212464
    %v3699 = vsel %vm3695, %v3683, %v3698
    %v3700 = vsel %vm3694, %v3697, %v3699
    %v3701 = vsel %vm3693, %v3680, %v3683
    %v3702 = vsel %vm3696, %v3689, 920167782
    %v3703 = vsel %vm3695, %v3686, %v3702
    %v3704 = vsel %vm3694, %v3701, %v3703
    %v3705 = vsel %vm3693, %v3683, %v3686
    %v3706 = vsel %vm3696, %v3692, 1326507024
    %v3707 = vsel %vm3695, %v3689, %v3706
    %v3708 = vsel %vm3694, %v3705, %v3707
    %v3709 = vshll.u32 %v3669, 8
    %v3710 = vmul.u32.u64.compose %v3709, %v3708
    %v3711 = vextract.low.u32 %v3710
    %v3712 = vextract.high.u32 %v3710
    %v3713 = vmul.u32.u64.compose %v3709, %v3704
    %v3714 = vextract.low.u32 %v3713
    %v3715 = vextract.high.u32 %v3713
    %v3716 = vmul.u32 %v3709, %v3700
    %v3717 = vadd.s32 %v3712, %v3714
    %vm3718 = vc.u32 %v3712, %v3714
    %v3719 = vadd.s32 %v3715, 1
    %v3720 = vsel %vm3718, %v3719, %v3715
    %v3721 = vadd.s32 %v3716, %v3720
    %v3722 = vadd.s32 %v3721, 536870912
    %v3723 = vshrl.u32 %v3722, 30
    %v3724 = vshll.u32 %v3723, 30
    %v3725 = vsub.s32 %v3721, %v3724
    %vm3726 = vcmp.lt.s32.totalorder %v3725, 0
    %v3727 = vsub.s32 0, %v3725
    %v3728 = vsel %vm3726, %v3727, %v3725
    %v3729 = vclz %v3728
    %v3730 = vsub.s32 %v3729, 2
    %vm3731 = vcmp.gt.s32.totalorder 0, %v3730
    %v3732 = vsel %vm3731, 0, %v3730
    %v3733 = vsub.s32 32, %v3732
    %v3734 = vshll.u32 %v3725, %v3732
    %v3735 = vshrl.u32 %v3717, %v3733
    %v3736 = vor.u32 %v3734, %v3735
    %v3737 = vsub.s32 4294967266, %v3732
    %v3738 = vadd.s32 %v3737, 127
    %v3739 = vshll.u32 %v3738, 23
    %v3740 = vor.u32 4788187, %v3739
    %v3741 = vand.u32 2147483647, %v3740
    %v3743 = vcvt.s32.f32 %v3736
    %v3744 = vmul.f32 %v3743, %v3741
    %v3745 = vxor.u32 %v3744, 2147483648
    %v3746 = vsel %vm3663, %v3745, %v3744
    %v3747 = vsub.s32 4, %v3723
    %v3748 = vsel %vm3663, %v3747, %v3723
    %v3749 = vsel %vm3662, %v875, %v3746
    %v3750 = vsel %vm3662, 0, %v3748
    %v3751 = vcosq.f32.pop %v3749
    %v3752 = vsinq.f32.pop %v3749
    %vm3753 = vweird.f32 %v875
    %v3754 = vand.u32 %v3750, 3
    %vm3755 = vcmp.lt.s32.totalorder %v3754, 2
    %vm3756 = vcmp.eq.s32.totalorder %v3754, 0
    %v3757 = vxor.u32 %v3752, 2147483648
    %v3758 = vsel %vm3756, %v3751, %v3757
    %vm3759 = vcmp.eq.s32.totalorder %v3754, 2
    %v3760 = vxor.u32 %v3751, 2147483648
    %v3761 = vsel %vm3759, %v3760, %v3752
    %v3762 = vsel %vm3755, %v3758, %v3761
    %v3763 = vsel %vm3753, nan, %v3762
    %v3764 = vand.u32 2147483647, %v876
    %vm3765 = vcmp.le.f32.partialorder %v3764, 0.7853982
    %vm3766 = vcmp.lt.s32.totalorder %v876, 0
    %v3767 = vand.u32 %v876, 2139095040
    %v3768 = vshrl.u32 %v3767, 23
    %v3769 = vsub.s32 %v3768, 127
    %v3770 = vand.u32 2147483647, %v876
    %v3771 = vand.u32 %v3770, 8388607
    %v3772 = vor.u32 %v3771, 8388608
    %v3773 = vsub.s32 0, %v3772
    %v3774 = vadd.s32 %v3769, 1
    %vm3775 = vcmp.gt.s32.totalorder %v3774, 0
    %v3776 = vsel %vm3775, %v3774, 0
    %v3777 = vshrl.u32 %v3776, 5
    %v3778 = vand.u32 %v3776, 31
    %v3779 = vsub.s32 32, %v3778
    %v3780 = vshrl.u32 683565275, %v3779
    %v3781 = vshll.u32 683565275, %v3778
    %v3782 = vshrl.u32 2475754826, %v3779
    %v3783 = vor.u32 %v3781, %v3782
    %v3784 = vshll.u32 2475754826, %v3778
    %v3785 = vshrl.u32 2131351028, %v3779
    %v3786 = vor.u32 %v3784, %v3785
    %v3787 = vshll.u32 2131351028, %v3778
    %v3788 = vshrl.u32 2102212464, %v3779
    %v3789 = vor.u32 %v3787, %v3788
    %v3790 = vshll.u32 2102212464, %v3778
    %v3791 = vshrl.u32 920167782, %v3779
    %v3792 = vor.u32 %v3790, %v3791
    %v3793 = vshll.u32 920167782, %v3778
    %v3794 = vshrl.u32 1326507024, %v3779
    %v3795 = vor.u32 %v3793, %v3794
    %vm3796 = vcmp.lt.s32.totalorder %v3777, 1
    %vm3797 = vcmp.lt.s32.totalorder %v3777, 2
    %vm3798 = vcmp.lt.s32.totalorder %v3777, 3
    %vm3799 = vcmp.lt.s32.totalorder %v3777, 4
    %v3800 = vsel %vm3796, %v3780, %v3783
    %v3801 = vsel %vm3799, %v3789, 2102212464
    %v3802 = vsel %vm3798, %v3786, %v3801
    %v3803 = vsel %vm3797, %v3800, %v3802
    %v3804 = vsel %vm3796, %v3783, %v3786
    %v3805 = vsel %vm3799, %v3792, 920167782
    %v3806 = vsel %vm3798, %v3789, %v3805
    %v3807 = vsel %vm3797, %v3804, %v3806
    %v3808 = vsel %vm3796, %v3786, %v3789
    %v3809 = vsel %vm3799, %v3795, 1326507024
    %v3810 = vsel %vm3798, %v3792, %v3809
    %v3811 = vsel %vm3797, %v3808, %v3810
    %v3812 = vshll.u32 %v3772, 8
    %v3813 = vmul.u32.u64.compose %v3812, %v3811
    %v3814 = vextract.low.u32 %v3813
    %v3815 = vextract.high.u32 %v3813
    %v3816 = vmul.u32.u64.compose %v3812, %v3807
    %v3817 = vextract.low.u32 %v3816
    %v3818 = vextract.high.u32 %v3816
    %v3819 = vmul.u32 %v3812, %v3803
    %v3820 = vadd.s32 %v3815, %v3817
    %vm3821 = vc.u32 %v3815, %v3817
    %v3822 = vadd.s32 %v3818, 1
    %v3823 = vsel %vm3821, %v3822, %v3818
    %v3824 = vadd.s32 %v3819, %v3823
    %v3825 = vadd.s32 %v3824, 536870912
    %v3826 = vshrl.u32 %v3825, 30
    %v3827 = vshll.u32 %v3826, 30
    %v3828 = vsub.s32 %v3824, %v3827
    %vm3829 = vcmp.lt.s32.totalorder %v3828, 0
    %v3830 = vsub.s32 0, %v3828
    %v3831 = vsel %vm3829, %v3830, %v3828
    %v3832 = vclz %v3831
    %v3833 = vsub.s32 %v3832, 2
    %vm3834 = vcmp.gt.s32.totalorder 0, %v3833
    %v3835 = vsel %vm3834, 0, %v3833
    %v3836 = vsub.s32 32, %v3835
    %v3837 = vshll.u32 %v3828, %v3835
    %v3838 = vshrl.u32 %v3820, %v3836
    %v3839 = vor.u32 %v3837, %v3838
    %v3840 = vsub.s32 4294967266, %v3835
    %v3841 = vadd.s32 %v3840, 127
    %v3842 = vshll.u32 %v3841, 23
    %v3843 = vor.u32 4788187, %v3842
    %v3844 = vand.u32 2147483647, %v3843
    %v3846 = vcvt.s32.f32 %v3839
    %v3847 = vmul.f32 %v3846, %v3844
    %v3848 = vxor.u32 %v3847, 2147483648
    %v3849 = vsel %vm3766, %v3848, %v3847
    %v3850 = vsub.s32 4, %v3826
    %v3851 = vsel %vm3766, %v3850, %v3826
    %v3852 = vsel %vm3765, %v876, %v3849
    %v3853 = vsel %vm3765, 0, %v3851
    %v3854 = vcosq.f32.pop %v3852
    %v3855 = vsinq.f32.pop %v3852
    %vm3856 = vweird.f32 %v876
    %v3857 = vand.u32 %v3853, 3
    %vm3858 = vcmp.lt.s32.totalorder %v3857, 2
    %vm3859 = vcmp.eq.s32.totalorder %v3857, 0
    %v3860 = vxor.u32 %v3855, 2147483648
    %v3861 = vsel %vm3859, %v3854, %v3860
    %vm3862 = vcmp.eq.s32.totalorder %v3857, 2
    %v3863 = vxor.u32 %v3854, 2147483648
    %v3864 = vsel %vm3862, %v3863, %v3855
    %v3865 = vsel %vm3858, %v3861, %v3864
    %v3866 = vsel %vm3856, nan, %v3865
    %v3867 = vand.u32 2147483647, %v877
    %vm3868 = vcmp.le.f32.partialorder %v3867, 0.7853982
    %vm3869 = vcmp.lt.s32.totalorder %v877, 0
    %v3870 = vand.u32 %v877, 2139095040
    %v3871 = vshrl.u32 %v3870, 23
    %v3872 = vsub.s32 %v3871, 127
    %v3873 = vand.u32 2147483647, %v877
    %v3874 = vand.u32 %v3873, 8388607
    %v3875 = vor.u32 %v3874, 8388608
    %v3876 = vsub.s32 0, %v3875
    %v3877 = vadd.s32 %v3872, 1
    %vm3878 = vcmp.gt.s32.totalorder %v3877, 0
    %v3879 = vsel %vm3878, %v3877, 0
    %v3880 = vshrl.u32 %v3879, 5
    %v3881 = vand.u32 %v3879, 31
    %v3882 = vsub.s32 32, %v3881
    %v3883 = vshrl.u32 683565275, %v3882
    %v3884 = vshll.u32 683565275, %v3881
    %v3885 = vshrl.u32 2475754826, %v3882
    %v3886 = vor.u32 %v3884, %v3885
    %v3887 = vshll.u32 2475754826, %v3881
    %v3888 = vshrl.u32 2131351028, %v3882
    %v3889 = vor.u32 %v3887, %v3888
    %v3890 = vshll.u32 2131351028, %v3881
    %v3891 = vshrl.u32 2102212464, %v3882
    %v3892 = vor.u32 %v3890, %v3891
    %v3893 = vshll.u32 2102212464, %v3881
    %v3894 = vshrl.u32 920167782, %v3882
    %v3895 = vor.u32 %v3893, %v3894
    %v3896 = vshll.u32 920167782, %v3881
    %v3897 = vshrl.u32 1326507024, %v3882
    %v3898 = vor.u32 %v3896, %v3897
    %vm3899 = vcmp.lt.s32.totalorder %v3880, 1
    %vm3900 = vcmp.lt.s32.totalorder %v3880, 2
    %vm3901 = vcmp.lt.s32.totalorder %v3880, 3
    %vm3902 = vcmp.lt.s32.totalorder %v3880, 4
    %v3903 = vsel %vm3899, %v3883, %v3886
    %v3904 = vsel %vm3902, %v3892, 2102212464
    %v3905 = vsel %vm3901, %v3889, %v3904
    %v3906 = vsel %vm3900, %v3903, %v3905
    %v3907 = vsel %vm3899, %v3886, %v3889
    %v3908 = vsel %vm3902, %v3895, 920167782
    %v3909 = vsel %vm3901, %v3892, %v3908
    %v3910 = vsel %vm3900, %v3907, %v3909
    %v3911 = vsel %vm3899, %v3889, %v3892
    %v3912 = vsel %vm3902, %v3898, 1326507024
    %v3913 = vsel %vm3901, %v3895, %v3912
    %v3914 = vsel %vm3900, %v3911, %v3913
    %v3915 = vshll.u32 %v3875, 8
    %v3916 = vmul.u32.u64.compose %v3915, %v3914
    %v3917 = vextract.low.u32 %v3916
    %v3918 = vextract.high.u32 %v3916
    %v3919 = vmul.u32.u64.compose %v3915, %v3910
    %v3920 = vextract.low.u32 %v3919
    %v3921 = vextract.high.u32 %v3919
    %v3922 = vmul.u32 %v3915, %v3906
    %v3923 = vadd.s32 %v3918, %v3920
    %vm3924 = vc.u32 %v3918, %v3920
    %v3925 = vadd.s32 %v3921, 1
    %v3926 = vsel %vm3924, %v3925, %v3921
    %v3927 = vadd.s32 %v3922, %v3926
    %v3928 = vadd.s32 %v3927, 536870912
    %v3929 = vshrl.u32 %v3928, 30
    %v3930 = vshll.u32 %v3929, 30
    %v3931 = vsub.s32 %v3927, %v3930
    %vm3932 = vcmp.lt.s32.totalorder %v3931, 0
    %v3933 = vsub.s32 0, %v3931
    %v3934 = vsel %vm3932, %v3933, %v3931
    %v3935 = vclz %v3934
    %v3936 = vsub.s32 %v3935, 2
    %vm3937 = vcmp.gt.s32.totalorder 0, %v3936
    %v3938 = vsel %vm3937, 0, %v3936
    %v3939 = vsub.s32 32, %v3938
    %v3940 = vshll.u32 %v3931, %v3938
    %v3941 = vshrl.u32 %v3923, %v3939
    %v3942 = vor.u32 %v3940, %v3941
    %v3943 = vsub.s32 4294967266, %v3938
    %v3944 = vadd.s32 %v3943, 127
    %v3945 = vshll.u32 %v3944, 23
    %v3946 = vor.u32 4788187, %v3945
    %v3947 = vand.u32 2147483647, %v3946
    %v3949 = vcvt.s32.f32 %v3942
    %v3950 = vmul.f32 %v3949, %v3947
    %v3951 = vxor.u32 %v3950, 2147483648
    %v3952 = vsel %vm3869, %v3951, %v3950
    %v3953 = vsub.s32 4, %v3929
    %v3954 = vsel %vm3869, %v3953, %v3929
    %v3955 = vsel %vm3868, %v877, %v3952
    %v3956 = vsel %vm3868, 0, %v3954
    %v3957 = vcosq.f32.pop %v3955
    %v3958 = vsinq.f32.pop %v3955
    %vm3959 = vweird.f32 %v877
    %v3960 = vand.u32 %v3956, 3
    %vm3961 = vcmp.lt.s32.totalorder %v3960, 2
    %vm3962 = vcmp.eq.s32.totalorder %v3960, 0
    %v3963 = vxor.u32 %v3958, 2147483648
    %v3964 = vsel %vm3962, %v3957, %v3963
    %vm3965 = vcmp.eq.s32.totalorder %v3960, 2
    %v3966 = vxor.u32 %v3957, 2147483648
    %v3967 = vsel %vm3965, %v3966, %v3958
    %v3968 = vsel %vm3961, %v3964, %v3967
    %v3969 = vsel %vm3959, nan, %v3968
    %v3970 = vand.u32 2147483647, %v878
    %vm3971 = vcmp.le.f32.partialorder %v3970, 0.7853982
    %vm3972 = vcmp.lt.s32.totalorder %v878, 0
    %v3973 = vand.u32 %v878, 2139095040
    %v3974 = vshrl.u32 %v3973, 23
    %v3975 = vsub.s32 %v3974, 127
    %v3976 = vand.u32 2147483647, %v878
    %v3977 = vand.u32 %v3976, 8388607
    %v3978 = vor.u32 %v3977, 8388608
    %v3979 = vsub.s32 0, %v3978
    %v3980 = vadd.s32 %v3975, 1
    %vm3981 = vcmp.gt.s32.totalorder %v3980, 0
    %v3982 = vsel %vm3981, %v3980, 0
    %v3983 = vshrl.u32 %v3982, 5
    %v3984 = vand.u32 %v3982, 31
    %v3985 = vsub.s32 32, %v3984
    %v3986 = vshrl.u32 683565275, %v3985
    %v3987 = vshll.u32 683565275, %v3984
    %v3988 = vshrl.u32 2475754826, %v3985
    %v3989 = vor.u32 %v3987, %v3988
    %v3990 = vshll.u32 2475754826, %v3984
    %v3991 = vshrl.u32 2131351028, %v3985
    %v3992 = vor.u32 %v3990, %v3991
    %v3993 = vshll.u32 2131351028, %v3984
    %v3994 = vshrl.u32 2102212464, %v3985
    %v3995 = vor.u32 %v3993, %v3994
    %v3996 = vshll.u32 2102212464, %v3984
    %v3997 = vshrl.u32 920167782, %v3985
    %v3998 = vor.u32 %v3996, %v3997
    %v3999 = vshll.u32 920167782, %v3984
    %v4000 = vshrl.u32 1326507024, %v3985
    %v4001 = vor.u32 %v3999, %v4000
    %vm4002 = vcmp.lt.s32.totalorder %v3983, 1
    %vm4003 = vcmp.lt.s32.totalorder %v3983, 2
    %vm4004 = vcmp.lt.s32.totalorder %v3983, 3
    %vm4005 = vcmp.lt.s32.totalorder %v3983, 4
    %v4006 = vsel %vm4002, %v3986, %v3989
    %v4007 = vsel %vm4005, %v3995, 2102212464
    %v4008 = vsel %vm4004, %v3992, %v4007
    %v4009 = vsel %vm4003, %v4006, %v4008
    %v4010 = vsel %vm4002, %v3989, %v3992
    %v4011 = vsel %vm4005, %v3998, 920167782
    %v4012 = vsel %vm4004, %v3995, %v4011
    %v4013 = vsel %vm4003, %v4010, %v4012
    %v4014 = vsel %vm4002, %v3992, %v3995
    %v4015 = vsel %vm4005, %v4001, 1326507024
    %v4016 = vsel %vm4004, %v3998, %v4015
    %v4017 = vsel %vm4003, %v4014, %v4016
    %v4018 = vshll.u32 %v3978, 8
    %v4019 = vmul.u32.u64.compose %v4018, %v4017
    %v4020 = vextract.low.u32 %v4019
    %v4021 = vextract.high.u32 %v4019
    %v4022 = vmul.u32.u64.compose %v4018, %v4013
    %v4023 = vextract.low.u32 %v4022
    %v4024 = vextract.high.u32 %v4022
    %v4025 = vmul.u32 %v4018, %v4009
    %v4026 = vadd.s32 %v4021, %v4023
    %vm4027 = vc.u32 %v4021, %v4023
    %v4028 = vadd.s32 %v4024, 1
    %v4029 = vsel %vm4027, %v4028, %v4024
    %v4030 = vadd.s32 %v4025, %v4029
    %v4031 = vadd.s32 %v4030, 536870912
    %v4032 = vshrl.u32 %v4031, 30
    %v4033 = vshll.u32 %v4032, 30
    %v4034 = vsub.s32 %v4030, %v4033
    %vm4035 = vcmp.lt.s32.totalorder %v4034, 0
    %v4036 = vsub.s32 0, %v4034
    %v4037 = vsel %vm4035, %v4036, %v4034
    %v4038 = vclz %v4037
    %v4039 = vsub.s32 %v4038, 2
    %vm4040 = vcmp.gt.s32.totalorder 0, %v4039
    %v4041 = vsel %vm4040, 0, %v4039
    %v4042 = vsub.s32 32, %v4041
    %v4043 = vshll.u32 %v4034, %v4041
    %v4044 = vshrl.u32 %v4026, %v4042
    %v4045 = vor.u32 %v4043, %v4044
    %v4046 = vsub.s32 4294967266, %v4041
    %v4047 = vadd.s32 %v4046, 127
    %v4048 = vshll.u32 %v4047, 23
    %v4049 = vor.u32 4788187, %v4048
    %v4050 = vand.u32 2147483647, %v4049
    %v4052 = vcvt.s32.f32 %v4045
    %v4053 = vmul.f32 %v4052, %v4050
    %v4054 = vxor.u32 %v4053, 2147483648
    %v4055 = vsel %vm3972, %v4054, %v4053
    %v4056 = vsub.s32 4, %v4032
    %v4057 = vsel %vm3972, %v4056, %v4032
    %v4058 = vsel %vm3971, %v878, %v4055
    %v4059 = vsel %vm3971, 0, %v4057
    %v4060 = vcosq.f32.pop %v4058
    %v4061 = vsinq.f32.pop %v4058
    %vm4062 = vweird.f32 %v878
    %v4063 = vand.u32 %v4059, 3
    %vm4064 = vcmp.lt.s32.totalorder %v4063, 2
    %vm4065 = vcmp.eq.s32.totalorder %v4063, 0
    %v4066 = vxor.u32 %v4061, 2147483648
    %v4067 = vsel %vm4065, %v4060, %v4066
    %vm4068 = vcmp.eq.s32.totalorder %v4063, 2
    %v4069 = vxor.u32 %v4060, 2147483648
    %v4070 = vsel %vm4068, %v4069, %v4061
    %v4071 = vsel %vm4064, %v4067, %v4070
    %v4072 = vsel %vm4062, nan, %v4071
    %v4073 = vand.u32 2147483647, %v879
    %vm4074 = vcmp.le.f32.partialorder %v4073, 0.7853982
    %vm4075 = vcmp.lt.s32.totalorder %v879, 0
    %v4076 = vand.u32 %v879, 2139095040
    %v4077 = vshrl.u32 %v4076, 23
    %v4078 = vsub.s32 %v4077, 127
    %v4079 = vand.u32 2147483647, %v879
    %v4080 = vand.u32 %v4079, 8388607
    %v4081 = vor.u32 %v4080, 8388608
    %v4082 = vsub.s32 0, %v4081
    %v4083 = vadd.s32 %v4078, 1
    %vm4084 = vcmp.gt.s32.totalorder %v4083, 0
    %v4085 = vsel %vm4084, %v4083, 0
    %v4086 = vshrl.u32 %v4085, 5
    %v4087 = vand.u32 %v4085, 31
    %v4088 = vsub.s32 32, %v4087
    %v4089 = vshrl.u32 683565275, %v4088
    %v4090 = vshll.u32 683565275, %v4087
    %v4091 = vshrl.u32 2475754826, %v4088
    %v4092 = vor.u32 %v4090, %v4091
    %v4093 = vshll.u32 2475754826, %v4087
    %v4094 = vshrl.u32 2131351028, %v4088
    %v4095 = vor.u32 %v4093, %v4094
    %v4096 = vshll.u32 2131351028, %v4087
    %v4097 = vshrl.u32 2102212464, %v4088
    %v4098 = vor.u32 %v4096, %v4097
    %v4099 = vshll.u32 2102212464, %v4087
    %v4100 = vshrl.u32 920167782, %v4088
    %v4101 = vor.u32 %v4099, %v4100
    %v4102 = vshll.u32 920167782, %v4087
    %v4103 = vshrl.u32 1326507024, %v4088
    %v4104 = vor.u32 %v4102, %v4103
    %vm4105 = vcmp.lt.s32.totalorder %v4086, 1
    %vm4106 = vcmp.lt.s32.totalorder %v4086, 2
    %vm4107 = vcmp.lt.s32.totalorder %v4086, 3
    %vm4108 = vcmp.lt.s32.totalorder %v4086, 4
    %v4109 = vsel %vm4105, %v4089, %v4092
    %v4110 = vsel %vm4108, %v4098, 2102212464
    %v4111 = vsel %vm4107, %v4095, %v4110
    %v4112 = vsel %vm4106, %v4109, %v4111
    %v4113 = vsel %vm4105, %v4092, %v4095
    %v4114 = vsel %vm4108, %v4101, 920167782
    %v4115 = vsel %vm4107, %v4098, %v4114
    %v4116 = vsel %vm4106, %v4113, %v4115
    %v4117 = vsel %vm4105, %v4095, %v4098
    %v4118 = vsel %vm4108, %v4104, 1326507024
    %v4119 = vsel %vm4107, %v4101, %v4118
    %v4120 = vsel %vm4106, %v4117, %v4119
    %v4121 = vshll.u32 %v4081, 8
    %v4122 = vmul.u32.u64.compose %v4121, %v4120
    %v4123 = vextract.low.u32 %v4122
    %v4124 = vextract.high.u32 %v4122
    %v4125 = vmul.u32.u64.compose %v4121, %v4116
    %v4126 = vextract.low.u32 %v4125
    %v4127 = vextract.high.u32 %v4125
    %v4128 = vmul.u32 %v4121, %v4112
    %v4129 = vadd.s32 %v4124, %v4126
    %vm4130 = vc.u32 %v4124, %v4126
    %v4131 = vadd.s32 %v4127, 1
    %v4132 = vsel %vm4130, %v4131, %v4127
    %v4133 = vadd.s32 %v4128, %v4132
    %v4134 = vadd.s32 %v4133, 536870912
    %v4135 = vshrl.u32 %v4134, 30
    %v4136 = vshll.u32 %v4135, 30
    %v4137 = vsub.s32 %v4133, %v4136
    %vm4138 = vcmp.lt.s32.totalorder %v4137, 0
    %v4139 = vsub.s32 0, %v4137
    %v4140 = vsel %vm4138, %v4139, %v4137
    %v4141 = vclz %v4140
    %v4142 = vsub.s32 %v4141, 2
    %vm4143 = vcmp.gt.s32.totalorder 0, %v4142
    %v4144 = vsel %vm4143, 0, %v4142
    %v4145 = vsub.s32 32, %v4144
    %v4146 = vshll.u32 %v4137, %v4144
    %v4147 = vshrl.u32 %v4129, %v4145
    %v4148 = vor.u32 %v4146, %v4147
    %v4149 = vsub.s32 4294967266, %v4144
    %v4150 = vadd.s32 %v4149, 127
    %v4151 = vshll.u32 %v4150, 23
    %v4152 = vor.u32 4788187, %v4151
    %v4153 = vand.u32 2147483647, %v4152
    %v4155 = vcvt.s32.f32 %v4148
    %v4156 = vmul.f32 %v4155, %v4153
    %v4157 = vxor.u32 %v4156, 2147483648
    %v4158 = vsel %vm4075, %v4157, %v4156
    %v4159 = vsub.s32 4, %v4135
    %v4160 = vsel %vm4075, %v4159, %v4135
    %v4161 = vsel %vm4074, %v879, %v4158
    %v4162 = vsel %vm4074, 0, %v4160
    %v4163 = vcosq.f32.pop %v4161
    %v4164 = vsinq.f32.pop %v4161
    %vm4165 = vweird.f32 %v879
    %v4166 = vand.u32 %v4162, 3
    %vm4167 = vcmp.lt.s32.totalorder %v4166, 2
    %vm4168 = vcmp.eq.s32.totalorder %v4166, 0
    %v4169 = vxor.u32 %v4164, 2147483648
    %v4170 = vsel %vm4168, %v4163, %v4169
    %vm4171 = vcmp.eq.s32.totalorder %v4166, 2
    %v4172 = vxor.u32 %v4163, 2147483648
    %v4173 = vsel %vm4171, %v4172, %v4164
    %v4174 = vsel %vm4167, %v4170, %v4173
    %v4175 = vsel %vm4165, nan, %v4174
    %4176 = vst [vmem:[#allocation2] sm:$0xff] %v982
    %4177 = vst [vmem:[#allocation2 + $0x8] sm:$0xff] %v1085
    %4178 = vst [vmem:[#allocation2 + $0x10] sm:$0xff] %v1188
    %4179 = vst [vmem:[#allocation2 + $0x18] sm:$0xff] %v1291
    %4180 = vst [vmem:[#allocation2 + $0x20] sm:$0xff] %v1394
    %4181 = vst [vmem:[#allocation2 + $0x28] sm:$0xff] %v1497
    %4182 = vst [vmem:[#allocation2 + $0x30] sm:$0xff] %v1600
    %4183 = vst [vmem:[#allocation2 + $0x38] sm:$0xff] %v1703
    %4184 = vst [vmem:[#allocation2 + $0x40] sm:$0xff] %v1806
    %4185 = vst [vmem:[#allocation2 + $0x48] sm:$0xff] %v1909
    %4186 = vst [vmem:[#allocation2 + $0x50] sm:$0xff] %v2012
    %4187 = vst [vmem:[#allocation2 + $0x58] sm:$0xff] %v2115
    %4188 = vst [vmem:[#allocation2 + $0x60] sm:$0xff] %v2218
    %4189 = vst [vmem:[#allocation2 + $0x68] sm:$0xff] %v2321
    %4190 = vst [vmem:[#allocation2 + $0x70] sm:$0xff] %v2424
    %4191 = vst [vmem:[#allocation2 + $0x78] sm:$0xff] %v2527
    %4192 = vst [vmem:[#allocation2 + $0x80] sm:$0xff] %v2630
    %4193 = vst [vmem:[#allocation2 + $0x88] sm:$0xff] %v2733
    %4194 = vst [vmem:[#allocation2 + $0x90] sm:$0xff] %v2836
    %4195 = vst [vmem:[#allocation2 + $0x98] sm:$0xff] %v2939
    %4196 = vst [vmem:[#allocation2 + $0xa0] sm:$0xff] %v3042
    %4197 = vst [vmem:[#allocation2 + $0xa8] sm:$0xff] %v3145
    %4198 = vst [vmem:[#allocation2 + $0xb0] sm:$0xff] %v3248
    %4199 = vst [vmem:[#allocation2 + $0xb8] sm:$0xff] %v3351
    %4200 = vst [vmem:[#allocation2 + $0xc0] sm:$0xff] %v3454
    %4201 = vst [vmem:[#allocation2 + $0xc8] sm:$0xff] %v3557
    %4202 = vst [vmem:[#allocation2 + $0xd0] sm:$0xff] %v3660
    %4203 = vst [vmem:[#allocation2 + $0xd8] sm:$0xff] %v3763
    %4204 = vst [vmem:[#allocation2 + $0xe0] sm:$0xff] %v3866
    %4205 = vst [vmem:[#allocation2 + $0xe8] sm:$0xff] %v3969
    %4206 = vst [vmem:[#allocation2 + $0xf0] sm:$0xff] %v4072
    %4207 = vst [vmem:[#allocation2 + $0xf8] sm:$0xff] %v4175
    %v4208 = vand.u32 2147483647, %v848
    %vm4209 = vcmp.le.f32.partialorder %v4208, 0.7853982
    %vm4210 = vcmp.lt.s32.totalorder %v848, 0
    %v4211 = vand.u32 %v848, 2139095040
    %v4212 = vshrl.u32 %v4211, 23
    %v4213 = vsub.s32 %v4212, 127
    %v4214 = vand.u32 2147483647, %v848
    %v4215 = vand.u32 %v4214, 8388607
    %v4216 = vor.u32 %v4215, 8388608
    %v4217 = vsub.s32 0, %v4216
    %v4218 = vadd.s32 %v4213, 1
    %vm4219 = vcmp.gt.s32.totalorder %v4218, 0
    %v4220 = vsel %vm4219, %v4218, 0
    %v4221 = vshrl.u32 %v4220, 5
    %v4222 = vand.u32 %v4220, 31
    %v4223 = vsub.s32 32, %v4222
    %v4224 = vshrl.u32 683565275, %v4223
    %v4225 = vshll.u32 683565275, %v4222
    %v4226 = vshrl.u32 2475754826, %v4223
    %v4227 = vor.u32 %v4225, %v4226
    %v4228 = vshll.u32 2475754826, %v4222
    %v4229 = vshrl.u32 2131351028, %v4223
    %v4230 = vor.u32 %v4228, %v4229
    %v4231 = vshll.u32 2131351028, %v4222
    %v4232 = vshrl.u32 2102212464, %v4223
    %v4233 = vor.u32 %v4231, %v4232
    %v4234 = vshll.u32 2102212464, %v4222
    %v4235 = vshrl.u32 920167782, %v4223
    %v4236 = vor.u32 %v4234, %v4235
    %v4237 = vshll.u32 920167782, %v4222
    %v4238 = vshrl.u32 1326507024, %v4223
    %v4239 = vor.u32 %v4237, %v4238
    %vm4240 = vcmp.lt.s32.totalorder %v4221, 1
    %vm4241 = vcmp.lt.s32.totalorder %v4221, 2
    %vm4242 = vcmp.lt.s32.totalorder %v4221, 3
    %vm4243 = vcmp.lt.s32.totalorder %v4221, 4
    %v4244 = vsel %vm4240, %v4224, %v4227
    %v4245 = vsel %vm4243, %v4233, 2102212464
    %v4246 = vsel %vm4242, %v4230, %v4245
    %v4247 = vsel %vm4241, %v4244, %v4246
    %v4248 = vsel %vm4240, %v4227, %v4230
    %v4249 = vsel %vm4243, %v4236, 920167782
    %v4250 = vsel %vm4242, %v4233, %v4249
    %v4251 = vsel %vm4241, %v4248, %v4250
    %v4252 = vsel %vm4240, %v4230, %v4233
    %v4253 = vsel %vm4243, %v4239, 1326507024
    %v4254 = vsel %vm4242, %v4236, %v4253
    %v4255 = vsel %vm4241, %v4252, %v4254
    %v4256 = vshll.u32 %v4216, 8
    %v4257 = vmul.u32.u64.compose %v4256, %v4255
    %v4258 = vextract.low.u32 %v4257
    %v4259 = vextract.high.u32 %v4257
    %v4260 = vmul.u32.u64.compose %v4256, %v4251
    %v4261 = vextract.low.u32 %v4260
    %v4262 = vextract.high.u32 %v4260
    %v4263 = vmul.u32 %v4256, %v4247
    %v4264 = vadd.s32 %v4259, %v4261
    %vm4265 = vc.u32 %v4259, %v4261
    %v4266 = vadd.s32 %v4262, 1
    %v4267 = vsel %vm4265, %v4266, %v4262
    %v4268 = vadd.s32 %v4263, %v4267
    %v4269 = vadd.s32 %v4268, 536870912
    %v4270 = vshrl.u32 %v4269, 30
    %v4271 = vshll.u32 %v4270, 30
    %v4272 = vsub.s32 %v4268, %v4271
    %vm4273 = vcmp.lt.s32.totalorder %v4272, 0
    %v4274 = vsub.s32 0, %v4272
    %v4275 = vsel %vm4273, %v4274, %v4272
    %v4276 = vclz %v4275
    %v4277 = vsub.s32 %v4276, 2
    %vm4278 = vcmp.gt.s32.totalorder 0, %v4277
    %v4279 = vsel %vm4278, 0, %v4277
    %v4280 = vsub.s32 32, %v4279
    %v4281 = vshll.u32 %v4272, %v4279
    %v4282 = vshrl.u32 %v4264, %v4280
    %v4283 = vor.u32 %v4281, %v4282
    %v4284 = vsub.s32 4294967266, %v4279
    %v4285 = vadd.s32 %v4284, 127
    %v4286 = vshll.u32 %v4285, 23
    %v4287 = vor.u32 4788187, %v4286
    %v4288 = vand.u32 2147483647, %v4287
    %v4290 = vcvt.s32.f32 %v4283
    %v4291 = vmul.f32 %v4290, %v4288
    %v4292 = vxor.u32 %v4291, 2147483648
    %v4293 = vsel %vm4210, %v4292, %v4291
    %v4294 = vsub.s32 4, %v4270
    %v4295 = vsel %vm4210, %v4294, %v4270
    %v4296 = vsel %vm4209, %v848, %v4293
    %v4297 = vsel %vm4209, 0, %v4295
    %v4298 = vcosq.f32.pop %v4296
    %v4299 = vsinq.f32.pop %v4296
    %vm4300 = vweird.f32 %v848
    %v4301 = vadd.s32 %v4297, 3
    %v4302 = vand.u32 %v4301, 3
    %vm4303 = vcmp.lt.s32.totalorder %v4302, 2
    %vm4304 = vcmp.eq.s32.totalorder %v4302, 0
    %v4305 = vxor.u32 %v4299, 2147483648
    %v4306 = vsel %vm4304, %v4298, %v4305
    %vm4307 = vcmp.eq.s32.totalorder %v4302, 2
    %v4308 = vxor.u32 %v4298, 2147483648
    %v4309 = vsel %vm4307, %v4308, %v4299
    %v4310 = vsel %vm4303, %v4306, %v4309
    %v4311 = vsel %vm4300, nan, %v4310
    %v4312 = vand.u32 2147483647, %v849
    %vm4313 = vcmp.le.f32.partialorder %v4312, 0.7853982
    %vm4314 = vcmp.lt.s32.totalorder %v849, 0
    %v4315 = vand.u32 %v849, 2139095040
    %v4316 = vshrl.u32 %v4315, 23
    %v4317 = vsub.s32 %v4316, 127
    %v4318 = vand.u32 2147483647, %v849
    %v4319 = vand.u32 %v4318, 8388607
    %v4320 = vor.u32 %v4319, 8388608
    %v4321 = vsub.s32 0, %v4320
    %v4322 = vadd.s32 %v4317, 1
    %vm4323 = vcmp.gt.s32.totalorder %v4322, 0
    %v4324 = vsel %vm4323, %v4322, 0
    %v4325 = vshrl.u32 %v4324, 5
    %v4326 = vand.u32 %v4324, 31
    %v4327 = vsub.s32 32, %v4326
    %v4328 = vshrl.u32 683565275, %v4327
    %v4329 = vshll.u32 683565275, %v4326
    %v4330 = vshrl.u32 2475754826, %v4327
    %v4331 = vor.u32 %v4329, %v4330
    %v4332 = vshll.u32 2475754826, %v4326
    %v4333 = vshrl.u32 2131351028, %v4327
    %v4334 = vor.u32 %v4332, %v4333
    %v4335 = vshll.u32 2131351028, %v4326
    %v4336 = vshrl.u32 2102212464, %v4327
    %v4337 = vor.u32 %v4335, %v4336
    %v4338 = vshll.u32 2102212464, %v4326
    %v4339 = vshrl.u32 920167782, %v4327
    %v4340 = vor.u32 %v4338, %v4339
    %v4341 = vshll.u32 920167782, %v4326
    %v4342 = vshrl.u32 1326507024, %v4327
    %v4343 = vor.u32 %v4341, %v4342
    %vm4344 = vcmp.lt.s32.totalorder %v4325, 1
    %vm4345 = vcmp.lt.s32.totalorder %v4325, 2
    %vm4346 = vcmp.lt.s32.totalorder %v4325, 3
    %vm4347 = vcmp.lt.s32.totalorder %v4325, 4
    %v4348 = vsel %vm4344, %v4328, %v4331
    %v4349 = vsel %vm4347, %v4337, 2102212464
    %v4350 = vsel %vm4346, %v4334, %v4349
    %v4351 = vsel %vm4345, %v4348, %v4350
    %v4352 = vsel %vm4344, %v4331, %v4334
    %v4353 = vsel %vm4347, %v4340, 920167782
    %v4354 = vsel %vm4346, %v4337, %v4353
    %v4355 = vsel %vm4345, %v4352, %v4354
    %v4356 = vsel %vm4344, %v4334, %v4337
    %v4357 = vsel %vm4347, %v4343, 1326507024
    %v4358 = vsel %vm4346, %v4340, %v4357
    %v4359 = vsel %vm4345, %v4356, %v4358
    %v4360 = vshll.u32 %v4320, 8
    %v4361 = vmul.u32.u64.compose %v4360, %v4359
    %v4362 = vextract.low.u32 %v4361
    %v4363 = vextract.high.u32 %v4361
    %v4364 = vmul.u32.u64.compose %v4360, %v4355
    %v4365 = vextract.low.u32 %v4364
    %v4366 = vextract.high.u32 %v4364
    %v4367 = vmul.u32 %v4360, %v4351
    %v4368 = vadd.s32 %v4363, %v4365
    %vm4369 = vc.u32 %v4363, %v4365
    %v4370 = vadd.s32 %v4366, 1
    %v4371 = vsel %vm4369, %v4370, %v4366
    %v4372 = vadd.s32 %v4367, %v4371
    %v4373 = vadd.s32 %v4372, 536870912
    %v4374 = vshrl.u32 %v4373, 30
    %v4375 = vshll.u32 %v4374, 30
    %v4376 = vsub.s32 %v4372, %v4375
    %vm4377 = vcmp.lt.s32.totalorder %v4376, 0
    %v4378 = vsub.s32 0, %v4376
    %v4379 = vsel %vm4377, %v4378, %v4376
    %v4380 = vclz %v4379
    %v4381 = vsub.s32 %v4380, 2
    %vm4382 = vcmp.gt.s32.totalorder 0, %v4381
    %v4383 = vsel %vm4382, 0, %v4381
    %v4384 = vsub.s32 32, %v4383
    %v4385 = vshll.u32 %v4376, %v4383
    %v4386 = vshrl.u32 %v4368, %v4384
    %v4387 = vor.u32 %v4385, %v4386
    %v4388 = vsub.s32 4294967266, %v4383
    %v4389 = vadd.s32 %v4388, 127
    %v4390 = vshll.u32 %v4389, 23
    %v4391 = vor.u32 4788187, %v4390
    %v4392 = vand.u32 2147483647, %v4391
    %v4394 = vcvt.s32.f32 %v4387
    %v4395 = vmul.f32 %v4394, %v4392
    %v4396 = vxor.u32 %v4395, 2147483648
    %v4397 = vsel %vm4314, %v4396, %v4395
    %v4398 = vsub.s32 4, %v4374
    %v4399 = vsel %vm4314, %v4398, %v4374
    %v4400 = vsel %vm4313, %v849, %v4397
    %v4401 = vsel %vm4313, 0, %v4399
    %v4402 = vcosq.f32.pop %v4400
    %v4403 = vsinq.f32.pop %v4400
    %vm4404 = vweird.f32 %v849
    %v4405 = vadd.s32 %v4401, 3
    %v4406 = vand.u32 %v4405, 3
    %vm4407 = vcmp.lt.s32.totalorder %v4406, 2
    %vm4408 = vcmp.eq.s32.totalorder %v4406, 0
    %v4409 = vxor.u32 %v4403, 2147483648
    %v4410 = vsel %vm4408, %v4402, %v4409
    %vm4411 = vcmp.eq.s32.totalorder %v4406, 2
    %v4412 = vxor.u32 %v4402, 2147483648
    %v4413 = vsel %vm4411, %v4412, %v4403
    %v4414 = vsel %vm4407, %v4410, %v4413
    %v4415 = vsel %vm4404, nan, %v4414
    %v4416 = vand.u32 2147483647, %v850
    %vm4417 = vcmp.le.f32.partialorder %v4416, 0.7853982
    %vm4418 = vcmp.lt.s32.totalorder %v850, 0
    %v4419 = vand.u32 %v850, 2139095040
    %v4420 = vshrl.u32 %v4419, 23
    %v4421 = vsub.s32 %v4420, 127
    %v4422 = vand.u32 2147483647, %v850
    %v4423 = vand.u32 %v4422, 8388607
    %v4424 = vor.u32 %v4423, 8388608
    %v4425 = vsub.s32 0, %v4424
    %v4426 = vadd.s32 %v4421, 1
    %vm4427 = vcmp.gt.s32.totalorder %v4426, 0
    %v4428 = vsel %vm4427, %v4426, 0
    %v4429 = vshrl.u32 %v4428, 5
    %v4430 = vand.u32 %v4428, 31
    %v4431 = vsub.s32 32, %v4430
    %v4432 = vshrl.u32 683565275, %v4431
    %v4433 = vshll.u32 683565275, %v4430
    %v4434 = vshrl.u32 2475754826, %v4431
    %v4435 = vor.u32 %v4433, %v4434
    %v4436 = vshll.u32 2475754826, %v4430
    %v4437 = vshrl.u32 2131351028, %v4431
    %v4438 = vor.u32 %v4436, %v4437
    %v4439 = vshll.u32 2131351028, %v4430
    %v4440 = vshrl.u32 2102212464, %v4431
    %v4441 = vor.u32 %v4439, %v4440
    %v4442 = vshll.u32 2102212464, %v4430
    %v4443 = vshrl.u32 920167782, %v4431
    %v4444 = vor.u32 %v4442, %v4443
    %v4445 = vshll.u32 920167782, %v4430
    %v4446 = vshrl.u32 1326507024, %v4431
    %v4447 = vor.u32 %v4445, %v4446
    %vm4448 = vcmp.lt.s32.totalorder %v4429, 1
    %vm4449 = vcmp.lt.s32.totalorder %v4429, 2
    %vm4450 = vcmp.lt.s32.totalorder %v4429, 3
    %vm4451 = vcmp.lt.s32.totalorder %v4429, 4
    %v4452 = vsel %vm4448, %v4432, %v4435
    %v4453 = vsel %vm4451, %v4441, 2102212464
    %v4454 = vsel %vm4450, %v4438, %v4453
    %v4455 = vsel %vm4449, %v4452, %v4454
    %v4456 = vsel %vm4448, %v4435, %v4438
    %v4457 = vsel %vm4451, %v4444, 920167782
    %v4458 = vsel %vm4450, %v4441, %v4457
    %v4459 = vsel %vm4449, %v4456, %v4458
    %v4460 = vsel %vm4448, %v4438, %v4441
    %v4461 = vsel %vm4451, %v4447, 1326507024
    %v4462 = vsel %vm4450, %v4444, %v4461
    %v4463 = vsel %vm4449, %v4460, %v4462
    %v4464 = vshll.u32 %v4424, 8
    %v4465 = vmul.u32.u64.compose %v4464, %v4463
    %v4466 = vextract.low.u32 %v4465
    %v4467 = vextract.high.u32 %v4465
    %v4468 = vmul.u32.u64.compose %v4464, %v4459
    %v4469 = vextract.low.u32 %v4468
    %v4470 = vextract.high.u32 %v4468
    %v4471 = vmul.u32 %v4464, %v4455
    %v4472 = vadd.s32 %v4467, %v4469
    %vm4473 = vc.u32 %v4467, %v4469
    %v4474 = vadd.s32 %v4470, 1
    %v4475 = vsel %vm4473, %v4474, %v4470
    %v4476 = vadd.s32 %v4471, %v4475
    %v4477 = vadd.s32 %v4476, 536870912
    %v4478 = vshrl.u32 %v4477, 30
    %v4479 = vshll.u32 %v4478, 30
    %v4480 = vsub.s32 %v4476, %v4479
    %vm4481 = vcmp.lt.s32.totalorder %v4480, 0
    %v4482 = vsub.s32 0, %v4480
    %v4483 = vsel %vm4481, %v4482, %v4480
    %v4484 = vclz %v4483
    %v4485 = vsub.s32 %v4484, 2
    %vm4486 = vcmp.gt.s32.totalorder 0, %v4485
    %v4487 = vsel %vm4486, 0, %v4485
    %v4488 = vsub.s32 32, %v4487
    %v4489 = vshll.u32 %v4480, %v4487
    %v4490 = vshrl.u32 %v4472, %v4488
    %v4491 = vor.u32 %v4489, %v4490
    %v4492 = vsub.s32 4294967266, %v4487
    %v4493 = vadd.s32 %v4492, 127
    %v4494 = vshll.u32 %v4493, 23
    %v4495 = vor.u32 4788187, %v4494
    %v4496 = vand.u32 2147483647, %v4495
    %v4498 = vcvt.s32.f32 %v4491
    %v4499 = vmul.f32 %v4498, %v4496
    %v4500 = vxor.u32 %v4499, 2147483648
    %v4501 = vsel %vm4418, %v4500, %v4499
    %v4502 = vsub.s32 4, %v4478
    %v4503 = vsel %vm4418, %v4502, %v4478
    %v4504 = vsel %vm4417, %v850, %v4501
    %v4505 = vsel %vm4417, 0, %v4503
    %v4506 = vcosq.f32.pop %v4504
    %v4507 = vsinq.f32.pop %v4504
    %vm4508 = vweird.f32 %v850
    %v4509 = vadd.s32 %v4505, 3
    %v4510 = vand.u32 %v4509, 3
    %vm4511 = vcmp.lt.s32.totalorder %v4510, 2
    %vm4512 = vcmp.eq.s32.totalorder %v4510, 0
    %v4513 = vxor.u32 %v4507, 2147483648
    %v4514 = vsel %vm4512, %v4506, %v4513
    %vm4515 = vcmp.eq.s32.totalorder %v4510, 2
    %v4516 = vxor.u32 %v4506, 2147483648
    %v4517 = vsel %vm4515, %v4516, %v4507
    %v4518 = vsel %vm4511, %v4514, %v4517
    %v4519 = vsel %vm4508, nan, %v4518
    %v4520 = vand.u32 2147483647, %v851
    %vm4521 = vcmp.le.f32.partialorder %v4520, 0.7853982
    %vm4522 = vcmp.lt.s32.totalorder %v851, 0
    %v4523 = vand.u32 %v851, 2139095040
    %v4524 = vshrl.u32 %v4523, 23
    %v4525 = vsub.s32 %v4524, 127
    %v4526 = vand.u32 2147483647, %v851
    %v4527 = vand.u32 %v4526, 8388607
    %v4528 = vor.u32 %v4527, 8388608
    %v4529 = vsub.s32 0, %v4528
    %v4530 = vadd.s32 %v4525, 1
    %vm4531 = vcmp.gt.s32.totalorder %v4530, 0
    %v4532 = vsel %vm4531, %v4530, 0
    %v4533 = vshrl.u32 %v4532, 5
    %v4534 = vand.u32 %v4532, 31
    %v4535 = vsub.s32 32, %v4534
    %v4536 = vshrl.u32 683565275, %v4535
    %v4537 = vshll.u32 683565275, %v4534
    %v4538 = vshrl.u32 2475754826, %v4535
    %v4539 = vor.u32 %v4537, %v4538
    %v4540 = vshll.u32 2475754826, %v4534
    %v4541 = vshrl.u32 2131351028, %v4535
    %v4542 = vor.u32 %v4540, %v4541
    %v4543 = vshll.u32 2131351028, %v4534
    %v4544 = vshrl.u32 2102212464, %v4535
    %v4545 = vor.u32 %v4543, %v4544
    %v4546 = vshll.u32 2102212464, %v4534
    %v4547 = vshrl.u32 920167782, %v4535
    %v4548 = vor.u32 %v4546, %v4547
    %v4549 = vshll.u32 920167782, %v4534
    %v4550 = vshrl.u32 1326507024, %v4535
    %v4551 = vor.u32 %v4549, %v4550
    %vm4552 = vcmp.lt.s32.totalorder %v4533, 1
    %vm4553 = vcmp.lt.s32.totalorder %v4533, 2
    %vm4554 = vcmp.lt.s32.totalorder %v4533, 3
    %vm4555 = vcmp.lt.s32.totalorder %v4533, 4
    %v4556 = vsel %vm4552, %v4536, %v4539
    %v4557 = vsel %vm4555, %v4545, 2102212464
    %v4558 = vsel %vm4554, %v4542, %v4557
    %v4559 = vsel %vm4553, %v4556, %v4558
    %v4560 = vsel %vm4552, %v4539, %v4542
    %v4561 = vsel %vm4555, %v4548, 920167782
    %v4562 = vsel %vm4554, %v4545, %v4561
    %v4563 = vsel %vm4553, %v4560, %v4562
    %v4564 = vsel %vm4552, %v4542, %v4545
    %v4565 = vsel %vm4555, %v4551, 1326507024
    %v4566 = vsel %vm4554, %v4548, %v4565
    %v4567 = vsel %vm4553, %v4564, %v4566
    %v4568 = vshll.u32 %v4528, 8
    %v4569 = vmul.u32.u64.compose %v4568, %v4567
    %v4570 = vextract.low.u32 %v4569
    %v4571 = vextract.high.u32 %v4569
    %v4572 = vmul.u32.u64.compose %v4568, %v4563
    %v4573 = vextract.low.u32 %v4572
    %v4574 = vextract.high.u32 %v4572
    %v4575 = vmul.u32 %v4568, %v4559
    %v4576 = vadd.s32 %v4571, %v4573
    %vm4577 = vc.u32 %v4571, %v4573
    %v4578 = vadd.s32 %v4574, 1
    %v4579 = vsel %vm4577, %v4578, %v4574
    %v4580 = vadd.s32 %v4575, %v4579
    %v4581 = vadd.s32 %v4580, 536870912
    %v4582 = vshrl.u32 %v4581, 30
    %v4583 = vshll.u32 %v4582, 30
    %v4584 = vsub.s32 %v4580, %v4583
    %vm4585 = vcmp.lt.s32.totalorder %v4584, 0
    %v4586 = vsub.s32 0, %v4584
    %v4587 = vsel %vm4585, %v4586, %v4584
    %v4588 = vclz %v4587
    %v4589 = vsub.s32 %v4588, 2
    %vm4590 = vcmp.gt.s32.totalorder 0, %v4589
    %v4591 = vsel %vm4590, 0, %v4589
    %v4592 = vsub.s32 32, %v4591
    %v4593 = vshll.u32 %v4584, %v4591
    %v4594 = vshrl.u32 %v4576, %v4592
    %v4595 = vor.u32 %v4593, %v4594
    %v4596 = vsub.s32 4294967266, %v4591
    %v4597 = vadd.s32 %v4596, 127
    %v4598 = vshll.u32 %v4597, 23
    %v4599 = vor.u32 4788187, %v4598
    %v4600 = vand.u32 2147483647, %v4599
    %v4602 = vcvt.s32.f32 %v4595
    %v4603 = vmul.f32 %v4602, %v4600
    %v4604 = vxor.u32 %v4603, 2147483648
    %v4605 = vsel %vm4522, %v4604, %v4603
    %v4606 = vsub.s32 4, %v4582
    %v4607 = vsel %vm4522, %v4606, %v4582
    %v4608 = vsel %vm4521, %v851, %v4605
    %v4609 = vsel %vm4521, 0, %v4607
    %v4610 = vcosq.f32.pop %v4608
    %v4611 = vsinq.f32.pop %v4608
    %vm4612 = vweird.f32 %v851
    %v4613 = vadd.s32 %v4609, 3
    %v4614 = vand.u32 %v4613, 3
    %vm4615 = vcmp.lt.s32.totalorder %v4614, 2
    %vm4616 = vcmp.eq.s32.totalorder %v4614, 0
    %v4617 = vxor.u32 %v4611, 2147483648
    %v4618 = vsel %vm4616, %v4610, %v4617
    %vm4619 = vcmp.eq.s32.totalorder %v4614, 2
    %v4620 = vxor.u32 %v4610, 2147483648
    %v4621 = vsel %vm4619, %v4620, %v4611
    %v4622 = vsel %vm4615, %v4618, %v4621
    %v4623 = vsel %vm4612, nan, %v4622
    %v4624 = vand.u32 2147483647, %v852
    %vm4625 = vcmp.le.f32.partialorder %v4624, 0.7853982
    %vm4626 = vcmp.lt.s32.totalorder %v852, 0
    %v4627 = vand.u32 %v852, 2139095040
    %v4628 = vshrl.u32 %v4627, 23
    %v4629 = vsub.s32 %v4628, 127
    %v4630 = vand.u32 2147483647, %v852
    %v4631 = vand.u32 %v4630, 8388607
    %v4632 = vor.u32 %v4631, 8388608
    %v4633 = vsub.s32 0, %v4632
    %v4634 = vadd.s32 %v4629, 1
    %vm4635 = vcmp.gt.s32.totalorder %v4634, 0
    %v4636 = vsel %vm4635, %v4634, 0
    %v4637 = vshrl.u32 %v4636, 5
    %v4638 = vand.u32 %v4636, 31
    %v4639 = vsub.s32 32, %v4638
    %v4640 = vshrl.u32 683565275, %v4639
    %v4641 = vshll.u32 683565275, %v4638
    %v4642 = vshrl.u32 2475754826, %v4639
    %v4643 = vor.u32 %v4641, %v4642
    %v4644 = vshll.u32 2475754826, %v4638
    %v4645 = vshrl.u32 2131351028, %v4639
    %v4646 = vor.u32 %v4644, %v4645
    %v4647 = vshll.u32 2131351028, %v4638
    %v4648 = vshrl.u32 2102212464, %v4639
    %v4649 = vor.u32 %v4647, %v4648
    %v4650 = vshll.u32 2102212464, %v4638
    %v4651 = vshrl.u32 920167782, %v4639
    %v4652 = vor.u32 %v4650, %v4651
    %v4653 = vshll.u32 920167782, %v4638
    %v4654 = vshrl.u32 1326507024, %v4639
    %v4655 = vor.u32 %v4653, %v4654
    %vm4656 = vcmp.lt.s32.totalorder %v4637, 1
    %vm4657 = vcmp.lt.s32.totalorder %v4637, 2
    %vm4658 = vcmp.lt.s32.totalorder %v4637, 3
    %vm4659 = vcmp.lt.s32.totalorder %v4637, 4
    %v4660 = vsel %vm4656, %v4640, %v4643
    %v4661 = vsel %vm4659, %v4649, 2102212464
    %v4662 = vsel %vm4658, %v4646, %v4661
    %v4663 = vsel %vm4657, %v4660, %v4662
    %v4664 = vsel %vm4656, %v4643, %v4646
    %v4665 = vsel %vm4659, %v4652, 920167782
    %v4666 = vsel %vm4658, %v4649, %v4665
    %v4667 = vsel %vm4657, %v4664, %v4666
    %v4668 = vsel %vm4656, %v4646, %v4649
    %v4669 = vsel %vm4659, %v4655, 1326507024
    %v4670 = vsel %vm4658, %v4652, %v4669
    %v4671 = vsel %vm4657, %v4668, %v4670
    %v4672 = vshll.u32 %v4632, 8
    %v4673 = vmul.u32.u64.compose %v4672, %v4671
    %v4674 = vextract.low.u32 %v4673
    %v4675 = vextract.high.u32 %v4673
    %v4676 = vmul.u32.u64.compose %v4672, %v4667
    %v4677 = vextract.low.u32 %v4676
    %v4678 = vextract.high.u32 %v4676
    %v4679 = vmul.u32 %v4672, %v4663
    %v4680 = vadd.s32 %v4675, %v4677
    %vm4681 = vc.u32 %v4675, %v4677
    %v4682 = vadd.s32 %v4678, 1
    %v4683 = vsel %vm4681, %v4682, %v4678
    %v4684 = vadd.s32 %v4679, %v4683
    %v4685 = vadd.s32 %v4684, 536870912
    %v4686 = vshrl.u32 %v4685, 30
    %v4687 = vshll.u32 %v4686, 30
    %v4688 = vsub.s32 %v4684, %v4687
    %vm4689 = vcmp.lt.s32.totalorder %v4688, 0
    %v4690 = vsub.s32 0, %v4688
    %v4691 = vsel %vm4689, %v4690, %v4688
    %v4692 = vclz %v4691
    %v4693 = vsub.s32 %v4692, 2
    %vm4694 = vcmp.gt.s32.totalorder 0, %v4693
    %v4695 = vsel %vm4694, 0, %v4693
    %v4696 = vsub.s32 32, %v4695
    %v4697 = vshll.u32 %v4688, %v4695
    %v4698 = vshrl.u32 %v4680, %v4696
    %v4699 = vor.u32 %v4697, %v4698
    %v4700 = vsub.s32 4294967266, %v4695
    %v4701 = vadd.s32 %v4700, 127
    %v4702 = vshll.u32 %v4701, 23
    %v4703 = vor.u32 4788187, %v4702
    %v4704 = vand.u32 2147483647, %v4703
    %v4706 = vcvt.s32.f32 %v4699
    %v4707 = vmul.f32 %v4706, %v4704
    %v4708 = vxor.u32 %v4707, 2147483648
    %v4709 = vsel %vm4626, %v4708, %v4707
    %v4710 = vsub.s32 4, %v4686
    %v4711 = vsel %vm4626, %v4710, %v4686
    %v4712 = vsel %vm4625, %v852, %v4709
    %v4713 = vsel %vm4625, 0, %v4711
    %v4714 = vcosq.f32.pop %v4712
    %v4715 = vsinq.f32.pop %v4712
    %vm4716 = vweird.f32 %v852
    %v4717 = vadd.s32 %v4713, 3
    %v4718 = vand.u32 %v4717, 3
    %vm4719 = vcmp.lt.s32.totalorder %v4718, 2
    %vm4720 = vcmp.eq.s32.totalorder %v4718, 0
    %v4721 = vxor.u32 %v4715, 2147483648
    %v4722 = vsel %vm4720, %v4714, %v4721
    %vm4723 = vcmp.eq.s32.totalorder %v4718, 2
    %v4724 = vxor.u32 %v4714, 2147483648
    %v4725 = vsel %vm4723, %v4724, %v4715
    %v4726 = vsel %vm4719, %v4722, %v4725
    %v4727 = vsel %vm4716, nan, %v4726
    %v4728 = vand.u32 2147483647, %v853
    %vm4729 = vcmp.le.f32.partialorder %v4728, 0.7853982
    %vm4730 = vcmp.lt.s32.totalorder %v853, 0
    %v4731 = vand.u32 %v853, 2139095040
    %v4732 = vshrl.u32 %v4731, 23
    %v4733 = vsub.s32 %v4732, 127
    %v4734 = vand.u32 2147483647, %v853
    %v4735 = vand.u32 %v4734, 8388607
    %v4736 = vor.u32 %v4735, 8388608
    %v4737 = vsub.s32 0, %v4736
    %v4738 = vadd.s32 %v4733, 1
    %vm4739 = vcmp.gt.s32.totalorder %v4738, 0
    %v4740 = vsel %vm4739, %v4738, 0
    %v4741 = vshrl.u32 %v4740, 5
    %v4742 = vand.u32 %v4740, 31
    %v4743 = vsub.s32 32, %v4742
    %v4744 = vshrl.u32 683565275, %v4743
    %v4745 = vshll.u32 683565275, %v4742
    %v4746 = vshrl.u32 2475754826, %v4743
    %v4747 = vor.u32 %v4745, %v4746
    %v4748 = vshll.u32 2475754826, %v4742
    %v4749 = vshrl.u32 2131351028, %v4743
    %v4750 = vor.u32 %v4748, %v4749
    %v4751 = vshll.u32 2131351028, %v4742
    %v4752 = vshrl.u32 2102212464, %v4743
    %v4753 = vor.u32 %v4751, %v4752
    %v4754 = vshll.u32 2102212464, %v4742
    %v4755 = vshrl.u32 920167782, %v4743
    %v4756 = vor.u32 %v4754, %v4755
    %v4757 = vshll.u32 920167782, %v4742
    %v4758 = vshrl.u32 1326507024, %v4743
    %v4759 = vor.u32 %v4757, %v4758
    %vm4760 = vcmp.lt.s32.totalorder %v4741, 1
    %vm4761 = vcmp.lt.s32.totalorder %v4741, 2
    %vm4762 = vcmp.lt.s32.totalorder %v4741, 3
    %vm4763 = vcmp.lt.s32.totalorder %v4741, 4
    %v4764 = vsel %vm4760, %v4744, %v4747
    %v4765 = vsel %vm4763, %v4753, 2102212464
    %v4766 = vsel %vm4762, %v4750, %v4765
    %v4767 = vsel %vm4761, %v4764, %v4766
    %v4768 = vsel %vm4760, %v4747, %v4750
    %v4769 = vsel %vm4763, %v4756, 920167782
    %v4770 = vsel %vm4762, %v4753, %v4769
    %v4771 = vsel %vm4761, %v4768, %v4770
    %v4772 = vsel %vm4760, %v4750, %v4753
    %v4773 = vsel %vm4763, %v4759, 1326507024
    %v4774 = vsel %vm4762, %v4756, %v4773
    %v4775 = vsel %vm4761, %v4772, %v4774
    %v4776 = vshll.u32 %v4736, 8
    %v4777 = vmul.u32.u64.compose %v4776, %v4775
    %v4778 = vextract.low.u32 %v4777
    %v4779 = vextract.high.u32 %v4777
    %v4780 = vmul.u32.u64.compose %v4776, %v4771
    %v4781 = vextract.low.u32 %v4780
    %v4782 = vextract.high.u32 %v4780
    %v4783 = vmul.u32 %v4776, %v4767
    %v4784 = vadd.s32 %v4779, %v4781
    %vm4785 = vc.u32 %v4779, %v4781
    %v4786 = vadd.s32 %v4782, 1
    %v4787 = vsel %vm4785, %v4786, %v4782
    %v4788 = vadd.s32 %v4783, %v4787
    %v4789 = vadd.s32 %v4788, 536870912
    %v4790 = vshrl.u32 %v4789, 30
    %v4791 = vshll.u32 %v4790, 30
    %v4792 = vsub.s32 %v4788, %v4791
    %vm4793 = vcmp.lt.s32.totalorder %v4792, 0
    %v4794 = vsub.s32 0, %v4792
    %v4795 = vsel %vm4793, %v4794, %v4792
    %v4796 = vclz %v4795
    %v4797 = vsub.s32 %v4796, 2
    %vm4798 = vcmp.gt.s32.totalorder 0, %v4797
    %v4799 = vsel %vm4798, 0, %v4797
    %v4800 = vsub.s32 32, %v4799
    %v4801 = vshll.u32 %v4792, %v4799
    %v4802 = vshrl.u32 %v4784, %v4800
    %v4803 = vor.u32 %v4801, %v4802
    %v4804 = vsub.s32 4294967266, %v4799
    %v4805 = vadd.s32 %v4804, 127
    %v4806 = vshll.u32 %v4805, 23
    %v4807 = vor.u32 4788187, %v4806
    %v4808 = vand.u32 2147483647, %v4807
    %v4810 = vcvt.s32.f32 %v4803
    %v4811 = vmul.f32 %v4810, %v4808
    %v4812 = vxor.u32 %v4811, 2147483648
    %v4813 = vsel %vm4730, %v4812, %v4811
    %v4814 = vsub.s32 4, %v4790
    %v4815 = vsel %vm4730, %v4814, %v4790
    %v4816 = vsel %vm4729, %v853, %v4813
    %v4817 = vsel %vm4729, 0, %v4815
    %v4818 = vcosq.f32.pop %v4816
    %v4819 = vsinq.f32.pop %v4816
    %vm4820 = vweird.f32 %v853
    %v4821 = vadd.s32 %v4817, 3
    %v4822 = vand.u32 %v4821, 3
    %vm4823 = vcmp.lt.s32.totalorder %v4822, 2
    %vm4824 = vcmp.eq.s32.totalorder %v4822, 0
    %v4825 = vxor.u32 %v4819, 2147483648
    %v4826 = vsel %vm4824, %v4818, %v4825
    %vm4827 = vcmp.eq.s32.totalorder %v4822, 2
    %v4828 = vxor.u32 %v4818, 2147483648
    %v4829 = vsel %vm4827, %v4828, %v4819
    %v4830 = vsel %vm4823, %v4826, %v4829
    %v4831 = vsel %vm4820, nan, %v4830
    %v4832 = vand.u32 2147483647, %v854
    %vm4833 = vcmp.le.f32.partialorder %v4832, 0.7853982
    %vm4834 = vcmp.lt.s32.totalorder %v854, 0
    %v4835 = vand.u32 %v854, 2139095040
    %v4836 = vshrl.u32 %v4835, 23
    %v4837 = vsub.s32 %v4836, 127
    %v4838 = vand.u32 2147483647, %v854
    %v4839 = vand.u32 %v4838, 8388607
    %v4840 = vor.u32 %v4839, 8388608
    %v4841 = vsub.s32 0, %v4840
    %v4842 = vadd.s32 %v4837, 1
    %vm4843 = vcmp.gt.s32.totalorder %v4842, 0
    %v4844 = vsel %vm4843, %v4842, 0
    %v4845 = vshrl.u32 %v4844, 5
    %v4846 = vand.u32 %v4844, 31
    %v4847 = vsub.s32 32, %v4846
    %v4848 = vshrl.u32 683565275, %v4847
    %v4849 = vshll.u32 683565275, %v4846
    %v4850 = vshrl.u32 2475754826, %v4847
    %v4851 = vor.u32 %v4849, %v4850
    %v4852 = vshll.u32 2475754826, %v4846
    %v4853 = vshrl.u32 2131351028, %v4847
    %v4854 = vor.u32 %v4852, %v4853
    %v4855 = vshll.u32 2131351028, %v4846
    %v4856 = vshrl.u32 2102212464, %v4847
    %v4857 = vor.u32 %v4855, %v4856
    %v4858 = vshll.u32 2102212464, %v4846
    %v4859 = vshrl.u32 920167782, %v4847
    %v4860 = vor.u32 %v4858, %v4859
    %v4861 = vshll.u32 920167782, %v4846
    %v4862 = vshrl.u32 1326507024, %v4847
    %v4863 = vor.u32 %v4861, %v4862
    %vm4864 = vcmp.lt.s32.totalorder %v4845, 1
    %vm4865 = vcmp.lt.s32.totalorder %v4845, 2
    %vm4866 = vcmp.lt.s32.totalorder %v4845, 3
    %vm4867 = vcmp.lt.s32.totalorder %v4845, 4
    %v4868 = vsel %vm4864, %v4848, %v4851
    %v4869 = vsel %vm4867, %v4857, 2102212464
    %v4870 = vsel %vm4866, %v4854, %v4869
    %v4871 = vsel %vm4865, %v4868, %v4870
    %v4872 = vsel %vm4864, %v4851, %v4854
    %v4873 = vsel %vm4867, %v4860, 920167782
    %v4874 = vsel %vm4866, %v4857, %v4873
    %v4875 = vsel %vm4865, %v4872, %v4874
    %v4876 = vsel %vm4864, %v4854, %v4857
    %v4877 = vsel %vm4867, %v4863, 1326507024
    %v4878 = vsel %vm4866, %v4860, %v4877
    %v4879 = vsel %vm4865, %v4876, %v4878
    %v4880 = vshll.u32 %v4840, 8
    %v4881 = vmul.u32.u64.compose %v4880, %v4879
    %v4882 = vextract.low.u32 %v4881
    %v4883 = vextract.high.u32 %v4881
    %v4884 = vmul.u32.u64.compose %v4880, %v4875
    %v4885 = vextract.low.u32 %v4884
    %v4886 = vextract.high.u32 %v4884
    %v4887 = vmul.u32 %v4880, %v4871
    %v4888 = vadd.s32 %v4883, %v4885
    %vm4889 = vc.u32 %v4883, %v4885
    %v4890 = vadd.s32 %v4886, 1
    %v4891 = vsel %vm4889, %v4890, %v4886
    %v4892 = vadd.s32 %v4887, %v4891
    %v4893 = vadd.s32 %v4892, 536870912
    %v4894 = vshrl.u32 %v4893, 30
    %v4895 = vshll.u32 %v4894, 30
    %v4896 = vsub.s32 %v4892, %v4895
    %vm4897 = vcmp.lt.s32.totalorder %v4896, 0
    %v4898 = vsub.s32 0, %v4896
    %v4899 = vsel %vm4897, %v4898, %v4896
    %v4900 = vclz %v4899
    %v4901 = vsub.s32 %v4900, 2
    %vm4902 = vcmp.gt.s32.totalorder 0, %v4901
    %v4903 = vsel %vm4902, 0, %v4901
    %v4904 = vsub.s32 32, %v4903
    %v4905 = vshll.u32 %v4896, %v4903
    %v4906 = vshrl.u32 %v4888, %v4904
    %v4907 = vor.u32 %v4905, %v4906
    %v4908 = vsub.s32 4294967266, %v4903
    %v4909 = vadd.s32 %v4908, 127
    %v4910 = vshll.u32 %v4909, 23
    %v4911 = vor.u32 4788187, %v4910
    %v4912 = vand.u32 2147483647, %v4911
    %v4914 = vcvt.s32.f32 %v4907
    %v4915 = vmul.f32 %v4914, %v4912
    %v4916 = vxor.u32 %v4915, 2147483648
    %v4917 = vsel %vm4834, %v4916, %v4915
    %v4918 = vsub.s32 4, %v4894
    %v4919 = vsel %vm4834, %v4918, %v4894
    %v4920 = vsel %vm4833, %v854, %v4917
    %v4921 = vsel %vm4833, 0, %v4919
    %v4922 = vcosq.f32.pop %v4920
    %v4923 = vsinq.f32.pop %v4920
    %vm4924 = vweird.f32 %v854
    %v4925 = vadd.s32 %v4921, 3
    %v4926 = vand.u32 %v4925, 3
    %vm4927 = vcmp.lt.s32.totalorder %v4926, 2
    %vm4928 = vcmp.eq.s32.totalorder %v4926, 0
    %v4929 = vxor.u32 %v4923, 2147483648
    %v4930 = vsel %vm4928, %v4922, %v4929
    %vm4931 = vcmp.eq.s32.totalorder %v4926, 2
    %v4932 = vxor.u32 %v4922, 2147483648
    %v4933 = vsel %vm4931, %v4932, %v4923
    %v4934 = vsel %vm4927, %v4930, %v4933
    %v4935 = vsel %vm4924, nan, %v4934
    %v4936 = vand.u32 2147483647, %v855
    %vm4937 = vcmp.le.f32.partialorder %v4936, 0.7853982
    %vm4938 = vcmp.lt.s32.totalorder %v855, 0
    %v4939 = vand.u32 %v855, 2139095040
    %v4940 = vshrl.u32 %v4939, 23
    %v4941 = vsub.s32 %v4940, 127
    %v4942 = vand.u32 2147483647, %v855
    %v4943 = vand.u32 %v4942, 8388607
    %v4944 = vor.u32 %v4943, 8388608
    %v4945 = vsub.s32 0, %v4944
    %v4946 = vadd.s32 %v4941, 1
    %vm4947 = vcmp.gt.s32.totalorder %v4946, 0
    %v4948 = vsel %vm4947, %v4946, 0
    %v4949 = vshrl.u32 %v4948, 5
    %v4950 = vand.u32 %v4948, 31
    %v4951 = vsub.s32 32, %v4950
    %v4952 = vshrl.u32 683565275, %v4951
    %v4953 = vshll.u32 683565275, %v4950
    %v4954 = vshrl.u32 2475754826, %v4951
    %v4955 = vor.u32 %v4953, %v4954
    %v4956 = vshll.u32 2475754826, %v4950
    %v4957 = vshrl.u32 2131351028, %v4951
    %v4958 = vor.u32 %v4956, %v4957
    %v4959 = vshll.u32 2131351028, %v4950
    %v4960 = vshrl.u32 2102212464, %v4951
    %v4961 = vor.u32 %v4959, %v4960
    %v4962 = vshll.u32 2102212464, %v4950
    %v4963 = vshrl.u32 920167782, %v4951
    %v4964 = vor.u32 %v4962, %v4963
    %v4965 = vshll.u32 920167782, %v4950
    %v4966 = vshrl.u32 1326507024, %v4951
    %v4967 = vor.u32 %v4965, %v4966
    %vm4968 = vcmp.lt.s32.totalorder %v4949, 1
    %vm4969 = vcmp.lt.s32.totalorder %v4949, 2
    %vm4970 = vcmp.lt.s32.totalorder %v4949, 3
    %vm4971 = vcmp.lt.s32.totalorder %v4949, 4
    %v4972 = vsel %vm4968, %v4952, %v4955
    %v4973 = vsel %vm4971, %v4961, 2102212464
    %v4974 = vsel %vm4970, %v4958, %v4973
    %v4975 = vsel %vm4969, %v4972, %v4974
    %v4976 = vsel %vm4968, %v4955, %v4958
    %v4977 = vsel %vm4971, %v4964, 920167782
    %v4978 = vsel %vm4970, %v4961, %v4977
    %v4979 = vsel %vm4969, %v4976, %v4978
    %v4980 = vsel %vm4968, %v4958, %v4961
    %v4981 = vsel %vm4971, %v4967, 1326507024
    %v4982 = vsel %vm4970, %v4964, %v4981
    %v4983 = vsel %vm4969, %v4980, %v4982
    %v4984 = vshll.u32 %v4944, 8
    %v4985 = vmul.u32.u64.compose %v4984, %v4983
    %v4986 = vextract.low.u32 %v4985
    %v4987 = vextract.high.u32 %v4985
    %v4988 = vmul.u32.u64.compose %v4984, %v4979
    %v4989 = vextract.low.u32 %v4988
    %v4990 = vextract.high.u32 %v4988
    %v4991 = vmul.u32 %v4984, %v4975
    %v4992 = vadd.s32 %v4987, %v4989
    %vm4993 = vc.u32 %v4987, %v4989
    %v4994 = vadd.s32 %v4990, 1
    %v4995 = vsel %vm4993, %v4994, %v4990
    %v4996 = vadd.s32 %v4991, %v4995
    %v4997 = vadd.s32 %v4996, 536870912
    %v4998 = vshrl.u32 %v4997, 30
    %v4999 = vshll.u32 %v4998, 30
    %v5000 = vsub.s32 %v4996, %v4999
    %vm5001 = vcmp.lt.s32.totalorder %v5000, 0
    %v5002 = vsub.s32 0, %v5000
    %v5003 = vsel %vm5001, %v5002, %v5000
    %v5004 = vclz %v5003
    %v5005 = vsub.s32 %v5004, 2
    %vm5006 = vcmp.gt.s32.totalorder 0, %v5005
    %v5007 = vsel %vm5006, 0, %v5005
    %v5008 = vsub.s32 32, %v5007
    %v5009 = vshll.u32 %v5000, %v5007
    %v5010 = vshrl.u32 %v4992, %v5008
    %v5011 = vor.u32 %v5009, %v5010
    %v5012 = vsub.s32 4294967266, %v5007
    %v5013 = vadd.s32 %v5012, 127
    %v5014 = vshll.u32 %v5013, 23
    %v5015 = vor.u32 4788187, %v5014
    %v5016 = vand.u32 2147483647, %v5015
    %v5018 = vcvt.s32.f32 %v5011
    %v5019 = vmul.f32 %v5018, %v5016
    %v5020 = vxor.u32 %v5019, 2147483648
    %v5021 = vsel %vm4938, %v5020, %v5019
    %v5022 = vsub.s32 4, %v4998
    %v5023 = vsel %vm4938, %v5022, %v4998
    %v5024 = vsel %vm4937, %v855, %v5021
    %v5025 = vsel %vm4937, 0, %v5023
    %v5026 = vcosq.f32.pop %v5024
    %v5027 = vsinq.f32.pop %v5024
    %vm5028 = vweird.f32 %v855
    %v5029 = vadd.s32 %v5025, 3
    %v5030 = vand.u32 %v5029, 3
    %vm5031 = vcmp.lt.s32.totalorder %v5030, 2
    %vm5032 = vcmp.eq.s32.totalorder %v5030, 0
    %v5033 = vxor.u32 %v5027, 2147483648
    %v5034 = vsel %vm5032, %v5026, %v5033
    %vm5035 = vcmp.eq.s32.totalorder %v5030, 2
    %v5036 = vxor.u32 %v5026, 2147483648
    %v5037 = vsel %vm5035, %v5036, %v5027
    %v5038 = vsel %vm5031, %v5034, %v5037
    %v5039 = vsel %vm5028, nan, %v5038
    %v5040 = vand.u32 2147483647, %v856
    %vm5041 = vcmp.le.f32.partialorder %v5040, 0.7853982
    %vm5042 = vcmp.lt.s32.totalorder %v856, 0
    %v5043 = vand.u32 %v856, 2139095040
    %v5044 = vshrl.u32 %v5043, 23
    %v5045 = vsub.s32 %v5044, 127
    %v5046 = vand.u32 2147483647, %v856
    %v5047 = vand.u32 %v5046, 8388607
    %v5048 = vor.u32 %v5047, 8388608
    %v5049 = vsub.s32 0, %v5048
    %v5050 = vadd.s32 %v5045, 1
    %vm5051 = vcmp.gt.s32.totalorder %v5050, 0
    %v5052 = vsel %vm5051, %v5050, 0
    %v5053 = vshrl.u32 %v5052, 5
    %v5054 = vand.u32 %v5052, 31
    %v5055 = vsub.s32 32, %v5054
    %v5056 = vshrl.u32 683565275, %v5055
    %v5057 = vshll.u32 683565275, %v5054
    %v5058 = vshrl.u32 2475754826, %v5055
    %v5059 = vor.u32 %v5057, %v5058
    %v5060 = vshll.u32 2475754826, %v5054
    %v5061 = vshrl.u32 2131351028, %v5055
    %v5062 = vor.u32 %v5060, %v5061
    %v5063 = vshll.u32 2131351028, %v5054
    %v5064 = vshrl.u32 2102212464, %v5055
    %v5065 = vor.u32 %v5063, %v5064
    %v5066 = vshll.u32 2102212464, %v5054
    %v5067 = vshrl.u32 920167782, %v5055
    %v5068 = vor.u32 %v5066, %v5067
    %v5069 = vshll.u32 920167782, %v5054
    %v5070 = vshrl.u32 1326507024, %v5055
    %v5071 = vor.u32 %v5069, %v5070
    %vm5072 = vcmp.lt.s32.totalorder %v5053, 1
    %vm5073 = vcmp.lt.s32.totalorder %v5053, 2
    %vm5074 = vcmp.lt.s32.totalorder %v5053, 3
    %vm5075 = vcmp.lt.s32.totalorder %v5053, 4
    %v5076 = vsel %vm5072, %v5056, %v5059
    %v5077 = vsel %vm5075, %v5065, 2102212464
    %v5078 = vsel %vm5074, %v5062, %v5077
    %v5079 = vsel %vm5073, %v5076, %v5078
    %v5080 = vsel %vm5072, %v5059, %v5062
    %v5081 = vsel %vm5075, %v5068, 920167782
    %v5082 = vsel %vm5074, %v5065, %v5081
    %v5083 = vsel %vm5073, %v5080, %v5082
    %v5084 = vsel %vm5072, %v5062, %v5065
    %v5085 = vsel %vm5075, %v5071, 1326507024
    %v5086 = vsel %vm5074, %v5068, %v5085
    %v5087 = vsel %vm5073, %v5084, %v5086
    %v5088 = vshll.u32 %v5048, 8
    %v5089 = vmul.u32.u64.compose %v5088, %v5087
    %v5090 = vextract.low.u32 %v5089
    %v5091 = vextract.high.u32 %v5089
    %v5092 = vmul.u32.u64.compose %v5088, %v5083
    %v5093 = vextract.low.u32 %v5092
    %v5094 = vextract.high.u32 %v5092
    %v5095 = vmul.u32 %v5088, %v5079
    %v5096 = vadd.s32 %v5091, %v5093
    %vm5097 = vc.u32 %v5091, %v5093
    %v5098 = vadd.s32 %v5094, 1
    %v5099 = vsel %vm5097, %v5098, %v5094
    %v5100 = vadd.s32 %v5095, %v5099
    %v5101 = vadd.s32 %v5100, 536870912
    %v5102 = vshrl.u32 %v5101, 30
    %v5103 = vshll.u32 %v5102, 30
    %v5104 = vsub.s32 %v5100, %v5103
    %vm5105 = vcmp.lt.s32.totalorder %v5104, 0
    %v5106 = vsub.s32 0, %v5104
    %v5107 = vsel %vm5105, %v5106, %v5104
    %v5108 = vclz %v5107
    %v5109 = vsub.s32 %v5108, 2
    %vm5110 = vcmp.gt.s32.totalorder 0, %v5109
    %v5111 = vsel %vm5110, 0, %v5109
    %v5112 = vsub.s32 32, %v5111
    %v5113 = vshll.u32 %v5104, %v5111
    %v5114 = vshrl.u32 %v5096, %v5112
    %v5115 = vor.u32 %v5113, %v5114
    %v5116 = vsub.s32 4294967266, %v5111
    %v5117 = vadd.s32 %v5116, 127
    %v5118 = vshll.u32 %v5117, 23
    %v5119 = vor.u32 4788187, %v5118
    %v5120 = vand.u32 2147483647, %v5119
    %v5122 = vcvt.s32.f32 %v5115
    %v5123 = vmul.f32 %v5122, %v5120
    %v5124 = vxor.u32 %v5123, 2147483648
    %v5125 = vsel %vm5042, %v5124, %v5123
    %v5126 = vsub.s32 4, %v5102
    %v5127 = vsel %vm5042, %v5126, %v5102
    %v5128 = vsel %vm5041, %v856, %v5125
    %v5129 = vsel %vm5041, 0, %v5127
    %v5130 = vcosq.f32.pop %v5128
    %v5131 = vsinq.f32.pop %v5128
    %vm5132 = vweird.f32 %v856
    %v5133 = vadd.s32 %v5129, 3
    %v5134 = vand.u32 %v5133, 3
    %vm5135 = vcmp.lt.s32.totalorder %v5134, 2
    %vm5136 = vcmp.eq.s32.totalorder %v5134, 0
    %v5137 = vxor.u32 %v5131, 2147483648
    %v5138 = vsel %vm5136, %v5130, %v5137
    %vm5139 = vcmp.eq.s32.totalorder %v5134, 2
    %v5140 = vxor.u32 %v5130, 2147483648
    %v5141 = vsel %vm5139, %v5140, %v5131
    %v5142 = vsel %vm5135, %v5138, %v5141
    %v5143 = vsel %vm5132, nan, %v5142
    %v5144 = vand.u32 2147483647, %v857
    %vm5145 = vcmp.le.f32.partialorder %v5144, 0.7853982
    %vm5146 = vcmp.lt.s32.totalorder %v857, 0
    %v5147 = vand.u32 %v857, 2139095040
    %v5148 = vshrl.u32 %v5147, 23
    %v5149 = vsub.s32 %v5148, 127
    %v5150 = vand.u32 2147483647, %v857
    %v5151 = vand.u32 %v5150, 8388607
    %v5152 = vor.u32 %v5151, 8388608
    %v5153 = vsub.s32 0, %v5152
    %v5154 = vadd.s32 %v5149, 1
    %vm5155 = vcmp.gt.s32.totalorder %v5154, 0
    %v5156 = vsel %vm5155, %v5154, 0
    %v5157 = vshrl.u32 %v5156, 5
    %v5158 = vand.u32 %v5156, 31
    %v5159 = vsub.s32 32, %v5158
    %v5160 = vshrl.u32 683565275, %v5159
    %v5161 = vshll.u32 683565275, %v5158
    %v5162 = vshrl.u32 2475754826, %v5159
    %v5163 = vor.u32 %v5161, %v5162
    %v5164 = vshll.u32 2475754826, %v5158
    %v5165 = vshrl.u32 2131351028, %v5159
    %v5166 = vor.u32 %v5164, %v5165
    %v5167 = vshll.u32 2131351028, %v5158
    %v5168 = vshrl.u32 2102212464, %v5159
    %v5169 = vor.u32 %v5167, %v5168
    %v5170 = vshll.u32 2102212464, %v5158
    %v5171 = vshrl.u32 920167782, %v5159
    %v5172 = vor.u32 %v5170, %v5171
    %v5173 = vshll.u32 920167782, %v5158
    %v5174 = vshrl.u32 1326507024, %v5159
    %v5175 = vor.u32 %v5173, %v5174
    %vm5176 = vcmp.lt.s32.totalorder %v5157, 1
    %vm5177 = vcmp.lt.s32.totalorder %v5157, 2
    %vm5178 = vcmp.lt.s32.totalorder %v5157, 3
    %vm5179 = vcmp.lt.s32.totalorder %v5157, 4
    %v5180 = vsel %vm5176, %v5160, %v5163
    %v5181 = vsel %vm5179, %v5169, 2102212464
    %v5182 = vsel %vm5178, %v5166, %v5181
    %v5183 = vsel %vm5177, %v5180, %v5182
    %v5184 = vsel %vm5176, %v5163, %v5166
    %v5185 = vsel %vm5179, %v5172, 920167782
    %v5186 = vsel %vm5178, %v5169, %v5185
    %v5187 = vsel %vm5177, %v5184, %v5186
    %v5188 = vsel %vm5176, %v5166, %v5169
    %v5189 = vsel %vm5179, %v5175, 1326507024
    %v5190 = vsel %vm5178, %v5172, %v5189
    %v5191 = vsel %vm5177, %v5188, %v5190
    %v5192 = vshll.u32 %v5152, 8
    %v5193 = vmul.u32.u64.compose %v5192, %v5191
    %v5194 = vextract.low.u32 %v5193
    %v5195 = vextract.high.u32 %v5193
    %v5196 = vmul.u32.u64.compose %v5192, %v5187
    %v5197 = vextract.low.u32 %v5196
    %v5198 = vextract.high.u32 %v5196
    %v5199 = vmul.u32 %v5192, %v5183
    %v5200 = vadd.s32 %v5195, %v5197
    %vm5201 = vc.u32 %v5195, %v5197
    %v5202 = vadd.s32 %v5198, 1
    %v5203 = vsel %vm5201, %v5202, %v5198
    %v5204 = vadd.s32 %v5199, %v5203
    %v5205 = vadd.s32 %v5204, 536870912
    %v5206 = vshrl.u32 %v5205, 30
    %v5207 = vshll.u32 %v5206, 30
    %v5208 = vsub.s32 %v5204, %v5207
    %vm5209 = vcmp.lt.s32.totalorder %v5208, 0
    %v5210 = vsub.s32 0, %v5208
    %v5211 = vsel %vm5209, %v5210, %v5208
    %v5212 = vclz %v5211
    %v5213 = vsub.s32 %v5212, 2
    %vm5214 = vcmp.gt.s32.totalorder 0, %v5213
    %v5215 = vsel %vm5214, 0, %v5213
    %v5216 = vsub.s32 32, %v5215
    %v5217 = vshll.u32 %v5208, %v5215
    %v5218 = vshrl.u32 %v5200, %v5216
    %v5219 = vor.u32 %v5217, %v5218
    %v5220 = vsub.s32 4294967266, %v5215
    %v5221 = vadd.s32 %v5220, 127
    %v5222 = vshll.u32 %v5221, 23
    %v5223 = vor.u32 4788187, %v5222
    %v5224 = vand.u32 2147483647, %v5223
    %v5226 = vcvt.s32.f32 %v5219
    %v5227 = vmul.f32 %v5226, %v5224
    %v5228 = vxor.u32 %v5227, 2147483648
    %v5229 = vsel %vm5146, %v5228, %v5227
    %v5230 = vsub.s32 4, %v5206
    %v5231 = vsel %vm5146, %v5230, %v5206
    %v5232 = vsel %vm5145, %v857, %v5229
    %v5233 = vsel %vm5145, 0, %v5231
    %v5234 = vcosq.f32.pop %v5232
    %v5235 = vsinq.f32.pop %v5232
    %vm5236 = vweird.f32 %v857
    %v5237 = vadd.s32 %v5233, 3
    %v5238 = vand.u32 %v5237, 3
    %vm5239 = vcmp.lt.s32.totalorder %v5238, 2
    %vm5240 = vcmp.eq.s32.totalorder %v5238, 0
    %v5241 = vxor.u32 %v5235, 2147483648
    %v5242 = vsel %vm5240, %v5234, %v5241
    %vm5243 = vcmp.eq.s32.totalorder %v5238, 2
    %v5244 = vxor.u32 %v5234, 2147483648
    %v5245 = vsel %vm5243, %v5244, %v5235
    %v5246 = vsel %vm5239, %v5242, %v5245
    %v5247 = vsel %vm5236, nan, %v5246
    %v5248 = vand.u32 2147483647, %v858
    %vm5249 = vcmp.le.f32.partialorder %v5248, 0.7853982
    %vm5250 = vcmp.lt.s32.totalorder %v858, 0
    %v5251 = vand.u32 %v858, 2139095040
    %v5252 = vshrl.u32 %v5251, 23
    %v5253 = vsub.s32 %v5252, 127
    %v5254 = vand.u32 2147483647, %v858
    %v5255 = vand.u32 %v5254, 8388607
    %v5256 = vor.u32 %v5255, 8388608
    %v5257 = vsub.s32 0, %v5256
    %v5258 = vadd.s32 %v5253, 1
    %vm5259 = vcmp.gt.s32.totalorder %v5258, 0
    %v5260 = vsel %vm5259, %v5258, 0
    %v5261 = vshrl.u32 %v5260, 5
    %v5262 = vand.u32 %v5260, 31
    %v5263 = vsub.s32 32, %v5262
    %v5264 = vshrl.u32 683565275, %v5263
    %v5265 = vshll.u32 683565275, %v5262
    %v5266 = vshrl.u32 2475754826, %v5263
    %v5267 = vor.u32 %v5265, %v5266
    %v5268 = vshll.u32 2475754826, %v5262
    %v5269 = vshrl.u32 2131351028, %v5263
    %v5270 = vor.u32 %v5268, %v5269
    %v5271 = vshll.u32 2131351028, %v5262
    %v5272 = vshrl.u32 2102212464, %v5263
    %v5273 = vor.u32 %v5271, %v5272
    %v5274 = vshll.u32 2102212464, %v5262
    %v5275 = vshrl.u32 920167782, %v5263
    %v5276 = vor.u32 %v5274, %v5275
    %v5277 = vshll.u32 920167782, %v5262
    %v5278 = vshrl.u32 1326507024, %v5263
    %v5279 = vor.u32 %v5277, %v5278
    %vm5280 = vcmp.lt.s32.totalorder %v5261, 1
    %vm5281 = vcmp.lt.s32.totalorder %v5261, 2
    %vm5282 = vcmp.lt.s32.totalorder %v5261, 3
    %vm5283 = vcmp.lt.s32.totalorder %v5261, 4
    %v5284 = vsel %vm5280, %v5264, %v5267
    %v5285 = vsel %vm5283, %v5273, 2102212464
    %v5286 = vsel %vm5282, %v5270, %v5285
    %v5287 = vsel %vm5281, %v5284, %v5286
    %v5288 = vsel %vm5280, %v5267, %v5270
    %v5289 = vsel %vm5283, %v5276, 920167782
    %v5290 = vsel %vm5282, %v5273, %v5289
    %v5291 = vsel %vm5281, %v5288, %v5290
    %v5292 = vsel %vm5280, %v5270, %v5273
    %v5293 = vsel %vm5283, %v5279, 1326507024
    %v5294 = vsel %vm5282, %v5276, %v5293
    %v5295 = vsel %vm5281, %v5292, %v5294
    %v5296 = vshll.u32 %v5256, 8
    %v5297 = vmul.u32.u64.compose %v5296, %v5295
    %v5298 = vextract.low.u32 %v5297
    %v5299 = vextract.high.u32 %v5297
    %v5300 = vmul.u32.u64.compose %v5296, %v5291
    %v5301 = vextract.low.u32 %v5300
    %v5302 = vextract.high.u32 %v5300
    %v5303 = vmul.u32 %v5296, %v5287
    %v5304 = vadd.s32 %v5299, %v5301
    %vm5305 = vc.u32 %v5299, %v5301
    %v5306 = vadd.s32 %v5302, 1
    %v5307 = vsel %vm5305, %v5306, %v5302
    %v5308 = vadd.s32 %v5303, %v5307
    %v5309 = vadd.s32 %v5308, 536870912
    %v5310 = vshrl.u32 %v5309, 30
    %v5311 = vshll.u32 %v5310, 30
    %v5312 = vsub.s32 %v5308, %v5311
    %vm5313 = vcmp.lt.s32.totalorder %v5312, 0
    %v5314 = vsub.s32 0, %v5312
    %v5315 = vsel %vm5313, %v5314, %v5312
    %v5316 = vclz %v5315
    %v5317 = vsub.s32 %v5316, 2
    %vm5318 = vcmp.gt.s32.totalorder 0, %v5317
    %v5319 = vsel %vm5318, 0, %v5317
    %v5320 = vsub.s32 32, %v5319
    %v5321 = vshll.u32 %v5312, %v5319
    %v5322 = vshrl.u32 %v5304, %v5320
    %v5323 = vor.u32 %v5321, %v5322
    %v5324 = vsub.s32 4294967266, %v5319
    %v5325 = vadd.s32 %v5324, 127
    %v5326 = vshll.u32 %v5325, 23
    %v5327 = vor.u32 4788187, %v5326
    %v5328 = vand.u32 2147483647, %v5327
    %v5330 = vcvt.s32.f32 %v5323
    %v5331 = vmul.f32 %v5330, %v5328
    %v5332 = vxor.u32 %v5331, 2147483648
    %v5333 = vsel %vm5250, %v5332, %v5331
    %v5334 = vsub.s32 4, %v5310
    %v5335 = vsel %vm5250, %v5334, %v5310
    %v5336 = vsel %vm5249, %v858, %v5333
    %v5337 = vsel %vm5249, 0, %v5335
    %v5338 = vcosq.f32.pop %v5336
    %v5339 = vsinq.f32.pop %v5336
    %vm5340 = vweird.f32 %v858
    %v5341 = vadd.s32 %v5337, 3
    %v5342 = vand.u32 %v5341, 3
    %vm5343 = vcmp.lt.s32.totalorder %v5342, 2
    %vm5344 = vcmp.eq.s32.totalorder %v5342, 0
    %v5345 = vxor.u32 %v5339, 2147483648
    %v5346 = vsel %vm5344, %v5338, %v5345
    %vm5347 = vcmp.eq.s32.totalorder %v5342, 2
    %v5348 = vxor.u32 %v5338, 2147483648
    %v5349 = vsel %vm5347, %v5348, %v5339
    %v5350 = vsel %vm5343, %v5346, %v5349
    %v5351 = vsel %vm5340, nan, %v5350
    %v5352 = vand.u32 2147483647, %v859
    %vm5353 = vcmp.le.f32.partialorder %v5352, 0.7853982
    %vm5354 = vcmp.lt.s32.totalorder %v859, 0
    %v5355 = vand.u32 %v859, 2139095040
    %v5356 = vshrl.u32 %v5355, 23
    %v5357 = vsub.s32 %v5356, 127
    %v5358 = vand.u32 2147483647, %v859
    %v5359 = vand.u32 %v5358, 8388607
    %v5360 = vor.u32 %v5359, 8388608
    %v5361 = vsub.s32 0, %v5360
    %v5362 = vadd.s32 %v5357, 1
    %vm5363 = vcmp.gt.s32.totalorder %v5362, 0
    %v5364 = vsel %vm5363, %v5362, 0
    %v5365 = vshrl.u32 %v5364, 5
    %v5366 = vand.u32 %v5364, 31
    %v5367 = vsub.s32 32, %v5366
    %v5368 = vshrl.u32 683565275, %v5367
    %v5369 = vshll.u32 683565275, %v5366
    %v5370 = vshrl.u32 2475754826, %v5367
    %v5371 = vor.u32 %v5369, %v5370
    %v5372 = vshll.u32 2475754826, %v5366
    %v5373 = vshrl.u32 2131351028, %v5367
    %v5374 = vor.u32 %v5372, %v5373
    %v5375 = vshll.u32 2131351028, %v5366
    %v5376 = vshrl.u32 2102212464, %v5367
    %v5377 = vor.u32 %v5375, %v5376
    %v5378 = vshll.u32 2102212464, %v5366
    %v5379 = vshrl.u32 920167782, %v5367
    %v5380 = vor.u32 %v5378, %v5379
    %v5381 = vshll.u32 920167782, %v5366
    %v5382 = vshrl.u32 1326507024, %v5367
    %v5383 = vor.u32 %v5381, %v5382
    %vm5384 = vcmp.lt.s32.totalorder %v5365, 1
    %vm5385 = vcmp.lt.s32.totalorder %v5365, 2
    %vm5386 = vcmp.lt.s32.totalorder %v5365, 3
    %vm5387 = vcmp.lt.s32.totalorder %v5365, 4
    %v5388 = vsel %vm5384, %v5368, %v5371
    %v5389 = vsel %vm5387, %v5377, 2102212464
    %v5390 = vsel %vm5386, %v5374, %v5389
    %v5391 = vsel %vm5385, %v5388, %v5390
    %v5392 = vsel %vm5384, %v5371, %v5374
    %v5393 = vsel %vm5387, %v5380, 920167782
    %v5394 = vsel %vm5386, %v5377, %v5393
    %v5395 = vsel %vm5385, %v5392, %v5394
    %v5396 = vsel %vm5384, %v5374, %v5377
    %v5397 = vsel %vm5387, %v5383, 1326507024
    %v5398 = vsel %vm5386, %v5380, %v5397
    %v5399 = vsel %vm5385, %v5396, %v5398
    %v5400 = vshll.u32 %v5360, 8
    %v5401 = vmul.u32.u64.compose %v5400, %v5399
    %v5402 = vextract.low.u32 %v5401
    %v5403 = vextract.high.u32 %v5401
    %v5404 = vmul.u32.u64.compose %v5400, %v5395
    %v5405 = vextract.low.u32 %v5404
    %v5406 = vextract.high.u32 %v5404
    %v5407 = vmul.u32 %v5400, %v5391
    %v5408 = vadd.s32 %v5403, %v5405
    %vm5409 = vc.u32 %v5403, %v5405
    %v5410 = vadd.s32 %v5406, 1
    %v5411 = vsel %vm5409, %v5410, %v5406
    %v5412 = vadd.s32 %v5407, %v5411
    %v5413 = vadd.s32 %v5412, 536870912
    %v5414 = vshrl.u32 %v5413, 30
    %v5415 = vshll.u32 %v5414, 30
    %v5416 = vsub.s32 %v5412, %v5415
    %vm5417 = vcmp.lt.s32.totalorder %v5416, 0
    %v5418 = vsub.s32 0, %v5416
    %v5419 = vsel %vm5417, %v5418, %v5416
    %v5420 = vclz %v5419
    %v5421 = vsub.s32 %v5420, 2
    %vm5422 = vcmp.gt.s32.totalorder 0, %v5421
    %v5423 = vsel %vm5422, 0, %v5421
    %v5424 = vsub.s32 32, %v5423
    %v5425 = vshll.u32 %v5416, %v5423
    %v5426 = vshrl.u32 %v5408, %v5424
    %v5427 = vor.u32 %v5425, %v5426
    %v5428 = vsub.s32 4294967266, %v5423
    %v5429 = vadd.s32 %v5428, 127
    %v5430 = vshll.u32 %v5429, 23
    %v5431 = vor.u32 4788187, %v5430
    %v5432 = vand.u32 2147483647, %v5431
    %v5434 = vcvt.s32.f32 %v5427
    %v5435 = vmul.f32 %v5434, %v5432
    %v5436 = vxor.u32 %v5435, 2147483648
    %v5437 = vsel %vm5354, %v5436, %v5435
    %v5438 = vsub.s32 4, %v5414
    %v5439 = vsel %vm5354, %v5438, %v5414
    %v5440 = vsel %vm5353, %v859, %v5437
    %v5441 = vsel %vm5353, 0, %v5439
    %v5442 = vcosq.f32.pop %v5440
    %v5443 = vsinq.f32.pop %v5440
    %vm5444 = vweird.f32 %v859
    %v5445 = vadd.s32 %v5441, 3
    %v5446 = vand.u32 %v5445, 3
    %vm5447 = vcmp.lt.s32.totalorder %v5446, 2
    %vm5448 = vcmp.eq.s32.totalorder %v5446, 0
    %v5449 = vxor.u32 %v5443, 2147483648
    %v5450 = vsel %vm5448, %v5442, %v5449
    %vm5451 = vcmp.eq.s32.totalorder %v5446, 2
    %v5452 = vxor.u32 %v5442, 2147483648
    %v5453 = vsel %vm5451, %v5452, %v5443
    %v5454 = vsel %vm5447, %v5450, %v5453
    %v5455 = vsel %vm5444, nan, %v5454
    %v5456 = vand.u32 2147483647, %v860
    %vm5457 = vcmp.le.f32.partialorder %v5456, 0.7853982
    %vm5458 = vcmp.lt.s32.totalorder %v860, 0
    %v5459 = vand.u32 %v860, 2139095040
    %v5460 = vshrl.u32 %v5459, 23
    %v5461 = vsub.s32 %v5460, 127
    %v5462 = vand.u32 2147483647, %v860
    %v5463 = vand.u32 %v5462, 8388607
    %v5464 = vor.u32 %v5463, 8388608
    %v5465 = vsub.s32 0, %v5464
    %v5466 = vadd.s32 %v5461, 1
    %vm5467 = vcmp.gt.s32.totalorder %v5466, 0
    %v5468 = vsel %vm5467, %v5466, 0
    %v5469 = vshrl.u32 %v5468, 5
    %v5470 = vand.u32 %v5468, 31
    %v5471 = vsub.s32 32, %v5470
    %v5472 = vshrl.u32 683565275, %v5471
    %v5473 = vshll.u32 683565275, %v5470
    %v5474 = vshrl.u32 2475754826, %v5471
    %v5475 = vor.u32 %v5473, %v5474
    %v5476 = vshll.u32 2475754826, %v5470
    %v5477 = vshrl.u32 2131351028, %v5471
    %v5478 = vor.u32 %v5476, %v5477
    %v5479 = vshll.u32 2131351028, %v5470
    %v5480 = vshrl.u32 2102212464, %v5471
    %v5481 = vor.u32 %v5479, %v5480
    %v5482 = vshll.u32 2102212464, %v5470
    %v5483 = vshrl.u32 920167782, %v5471
    %v5484 = vor.u32 %v5482, %v5483
    %v5485 = vshll.u32 920167782, %v5470
    %v5486 = vshrl.u32 1326507024, %v5471
    %v5487 = vor.u32 %v5485, %v5486
    %vm5488 = vcmp.lt.s32.totalorder %v5469, 1
    %vm5489 = vcmp.lt.s32.totalorder %v5469, 2
    %vm5490 = vcmp.lt.s32.totalorder %v5469, 3
    %vm5491 = vcmp.lt.s32.totalorder %v5469, 4
    %v5492 = vsel %vm5488, %v5472, %v5475
    %v5493 = vsel %vm5491, %v5481, 2102212464
    %v5494 = vsel %vm5490, %v5478, %v5493
    %v5495 = vsel %vm5489, %v5492, %v5494
    %v5496 = vsel %vm5488, %v5475, %v5478
    %v5497 = vsel %vm5491, %v5484, 920167782
    %v5498 = vsel %vm5490, %v5481, %v5497
    %v5499 = vsel %vm5489, %v5496, %v5498
    %v5500 = vsel %vm5488, %v5478, %v5481
    %v5501 = vsel %vm5491, %v5487, 1326507024
    %v5502 = vsel %vm5490, %v5484, %v5501
    %v5503 = vsel %vm5489, %v5500, %v5502
    %v5504 = vshll.u32 %v5464, 8
    %v5505 = vmul.u32.u64.compose %v5504, %v5503
    %v5506 = vextract.low.u32 %v5505
    %v5507 = vextract.high.u32 %v5505
    %v5508 = vmul.u32.u64.compose %v5504, %v5499
    %v5509 = vextract.low.u32 %v5508
    %v5510 = vextract.high.u32 %v5508
    %v5511 = vmul.u32 %v5504, %v5495
    %v5512 = vadd.s32 %v5507, %v5509
    %vm5513 = vc.u32 %v5507, %v5509
    %v5514 = vadd.s32 %v5510, 1
    %v5515 = vsel %vm5513, %v5514, %v5510
    %v5516 = vadd.s32 %v5511, %v5515
    %v5517 = vadd.s32 %v5516, 536870912
    %v5518 = vshrl.u32 %v5517, 30
    %v5519 = vshll.u32 %v5518, 30
    %v5520 = vsub.s32 %v5516, %v5519
    %vm5521 = vcmp.lt.s32.totalorder %v5520, 0
    %v5522 = vsub.s32 0, %v5520
    %v5523 = vsel %vm5521, %v5522, %v5520
    %v5524 = vclz %v5523
    %v5525 = vsub.s32 %v5524, 2
    %vm5526 = vcmp.gt.s32.totalorder 0, %v5525
    %v5527 = vsel %vm5526, 0, %v5525
    %v5528 = vsub.s32 32, %v5527
    %v5529 = vshll.u32 %v5520, %v5527
    %v5530 = vshrl.u32 %v5512, %v5528
    %v5531 = vor.u32 %v5529, %v5530
    %v5532 = vsub.s32 4294967266, %v5527
    %v5533 = vadd.s32 %v5532, 127
    %v5534 = vshll.u32 %v5533, 23
    %v5535 = vor.u32 4788187, %v5534
    %v5536 = vand.u32 2147483647, %v5535
    %v5538 = vcvt.s32.f32 %v5531
    %v5539 = vmul.f32 %v5538, %v5536
    %v5540 = vxor.u32 %v5539, 2147483648
    %v5541 = vsel %vm5458, %v5540, %v5539
    %v5542 = vsub.s32 4, %v5518
    %v5543 = vsel %vm5458, %v5542, %v5518
    %v5544 = vsel %vm5457, %v860, %v5541
    %v5545 = vsel %vm5457, 0, %v5543
    %v5546 = vcosq.f32.pop %v5544
    %v5547 = vsinq.f32.pop %v5544
    %vm5548 = vweird.f32 %v860
    %v5549 = vadd.s32 %v5545, 3
    %v5550 = vand.u32 %v5549, 3
    %vm5551 = vcmp.lt.s32.totalorder %v5550, 2
    %vm5552 = vcmp.eq.s32.totalorder %v5550, 0
    %v5553 = vxor.u32 %v5547, 2147483648
    %v5554 = vsel %vm5552, %v5546, %v5553
    %vm5555 = vcmp.eq.s32.totalorder %v5550, 2
    %v5556 = vxor.u32 %v5546, 2147483648
    %v5557 = vsel %vm5555, %v5556, %v5547
    %v5558 = vsel %vm5551, %v5554, %v5557
    %v5559 = vsel %vm5548, nan, %v5558
    %v5560 = vand.u32 2147483647, %v861
    %vm5561 = vcmp.le.f32.partialorder %v5560, 0.7853982
    %vm5562 = vcmp.lt.s32.totalorder %v861, 0
    %v5563 = vand.u32 %v861, 2139095040
    %v5564 = vshrl.u32 %v5563, 23
    %v5565 = vsub.s32 %v5564, 127
    %v5566 = vand.u32 2147483647, %v861
    %v5567 = vand.u32 %v5566, 8388607
    %v5568 = vor.u32 %v5567, 8388608
    %v5569 = vsub.s32 0, %v5568
    %v5570 = vadd.s32 %v5565, 1
    %vm5571 = vcmp.gt.s32.totalorder %v5570, 0
    %v5572 = vsel %vm5571, %v5570, 0
    %v5573 = vshrl.u32 %v5572, 5
    %v5574 = vand.u32 %v5572, 31
    %v5575 = vsub.s32 32, %v5574
    %v5576 = vshrl.u32 683565275, %v5575
    %v5577 = vshll.u32 683565275, %v5574
    %v5578 = vshrl.u32 2475754826, %v5575
    %v5579 = vor.u32 %v5577, %v5578
    %v5580 = vshll.u32 2475754826, %v5574
    %v5581 = vshrl.u32 2131351028, %v5575
    %v5582 = vor.u32 %v5580, %v5581
    %v5583 = vshll.u32 2131351028, %v5574
    %v5584 = vshrl.u32 2102212464, %v5575
    %v5585 = vor.u32 %v5583, %v5584
    %v5586 = vshll.u32 2102212464, %v5574
    %v5587 = vshrl.u32 920167782, %v5575
    %v5588 = vor.u32 %v5586, %v5587
    %v5589 = vshll.u32 920167782, %v5574
    %v5590 = vshrl.u32 1326507024, %v5575
    %v5591 = vor.u32 %v5589, %v5590
    %vm5592 = vcmp.lt.s32.totalorder %v5573, 1
    %vm5593 = vcmp.lt.s32.totalorder %v5573, 2
    %vm5594 = vcmp.lt.s32.totalorder %v5573, 3
    %vm5595 = vcmp.lt.s32.totalorder %v5573, 4
    %v5596 = vsel %vm5592, %v5576, %v5579
    %v5597 = vsel %vm5595, %v5585, 2102212464
    %v5598 = vsel %vm5594, %v5582, %v5597
    %v5599 = vsel %vm5593, %v5596, %v5598
    %v5600 = vsel %vm5592, %v5579, %v5582
    %v5601 = vsel %vm5595, %v5588, 920167782
    %v5602 = vsel %vm5594, %v5585, %v5601
    %v5603 = vsel %vm5593, %v5600, %v5602
    %v5604 = vsel %vm5592, %v5582, %v5585
    %v5605 = vsel %vm5595, %v5591, 1326507024
    %v5606 = vsel %vm5594, %v5588, %v5605
    %v5607 = vsel %vm5593, %v5604, %v5606
    %v5608 = vshll.u32 %v5568, 8
    %v5609 = vmul.u32.u64.compose %v5608, %v5607
    %v5610 = vextract.low.u32 %v5609
    %v5611 = vextract.high.u32 %v5609
    %v5612 = vmul.u32.u64.compose %v5608, %v5603
    %v5613 = vextract.low.u32 %v5612
    %v5614 = vextract.high.u32 %v5612
    %v5615 = vmul.u32 %v5608, %v5599
    %v5616 = vadd.s32 %v5611, %v5613
    %vm5617 = vc.u32 %v5611, %v5613
    %v5618 = vadd.s32 %v5614, 1
    %v5619 = vsel %vm5617, %v5618, %v5614
    %v5620 = vadd.s32 %v5615, %v5619
    %v5621 = vadd.s32 %v5620, 536870912
    %v5622 = vshrl.u32 %v5621, 30
    %v5623 = vshll.u32 %v5622, 30
    %v5624 = vsub.s32 %v5620, %v5623
    %vm5625 = vcmp.lt.s32.totalorder %v5624, 0
    %v5626 = vsub.s32 0, %v5624
    %v5627 = vsel %vm5625, %v5626, %v5624
    %v5628 = vclz %v5627
    %v5629 = vsub.s32 %v5628, 2
    %vm5630 = vcmp.gt.s32.totalorder 0, %v5629
    %v5631 = vsel %vm5630, 0, %v5629
    %v5632 = vsub.s32 32, %v5631
    %v5633 = vshll.u32 %v5624, %v5631
    %v5634 = vshrl.u32 %v5616, %v5632
    %v5635 = vor.u32 %v5633, %v5634
    %v5636 = vsub.s32 4294967266, %v5631
    %v5637 = vadd.s32 %v5636, 127
    %v5638 = vshll.u32 %v5637, 23
    %v5639 = vor.u32 4788187, %v5638
    %v5640 = vand.u32 2147483647, %v5639
    %v5642 = vcvt.s32.f32 %v5635
    %v5643 = vmul.f32 %v5642, %v5640
    %v5644 = vxor.u32 %v5643, 2147483648
    %v5645 = vsel %vm5562, %v5644, %v5643
    %v5646 = vsub.s32 4, %v5622
    %v5647 = vsel %vm5562, %v5646, %v5622
    %v5648 = vsel %vm5561, %v861, %v5645
    %v5649 = vsel %vm5561, 0, %v5647
    %v5650 = vcosq.f32.pop %v5648
    %v5651 = vsinq.f32.pop %v5648
    %vm5652 = vweird.f32 %v861
    %v5653 = vadd.s32 %v5649, 3
    %v5654 = vand.u32 %v5653, 3
    %vm5655 = vcmp.lt.s32.totalorder %v5654, 2
    %vm5656 = vcmp.eq.s32.totalorder %v5654, 0
    %v5657 = vxor.u32 %v5651, 2147483648
    %v5658 = vsel %vm5656, %v5650, %v5657
    %vm5659 = vcmp.eq.s32.totalorder %v5654, 2
    %v5660 = vxor.u32 %v5650, 2147483648
    %v5661 = vsel %vm5659, %v5660, %v5651
    %v5662 = vsel %vm5655, %v5658, %v5661
    %v5663 = vsel %vm5652, nan, %v5662
    %v5664 = vand.u32 2147483647, %v862
    %vm5665 = vcmp.le.f32.partialorder %v5664, 0.7853982
    %vm5666 = vcmp.lt.s32.totalorder %v862, 0
    %v5667 = vand.u32 %v862, 2139095040
    %v5668 = vshrl.u32 %v5667, 23
    %v5669 = vsub.s32 %v5668, 127
    %v5670 = vand.u32 2147483647, %v862
    %v5671 = vand.u32 %v5670, 8388607
    %v5672 = vor.u32 %v5671, 8388608
    %v5673 = vsub.s32 0, %v5672
    %v5674 = vadd.s32 %v5669, 1
    %vm5675 = vcmp.gt.s32.totalorder %v5674, 0
    %v5676 = vsel %vm5675, %v5674, 0
    %v5677 = vshrl.u32 %v5676, 5
    %v5678 = vand.u32 %v5676, 31
    %v5679 = vsub.s32 32, %v5678
    %v5680 = vshrl.u32 683565275, %v5679
    %v5681 = vshll.u32 683565275, %v5678
    %v5682 = vshrl.u32 2475754826, %v5679
    %v5683 = vor.u32 %v5681, %v5682
    %v5684 = vshll.u32 2475754826, %v5678
    %v5685 = vshrl.u32 2131351028, %v5679
    %v5686 = vor.u32 %v5684, %v5685
    %v5687 = vshll.u32 2131351028, %v5678
    %v5688 = vshrl.u32 2102212464, %v5679
    %v5689 = vor.u32 %v5687, %v5688
    %v5690 = vshll.u32 2102212464, %v5678
    %v5691 = vshrl.u32 920167782, %v5679
    %v5692 = vor.u32 %v5690, %v5691
    %v5693 = vshll.u32 920167782, %v5678
    %v5694 = vshrl.u32 1326507024, %v5679
    %v5695 = vor.u32 %v5693, %v5694
    %vm5696 = vcmp.lt.s32.totalorder %v5677, 1
    %vm5697 = vcmp.lt.s32.totalorder %v5677, 2
    %vm5698 = vcmp.lt.s32.totalorder %v5677, 3
    %vm5699 = vcmp.lt.s32.totalorder %v5677, 4
    %v5700 = vsel %vm5696, %v5680, %v5683
    %v5701 = vsel %vm5699, %v5689, 2102212464
    %v5702 = vsel %vm5698, %v5686, %v5701
    %v5703 = vsel %vm5697, %v5700, %v5702
    %v5704 = vsel %vm5696, %v5683, %v5686
    %v5705 = vsel %vm5699, %v5692, 920167782
    %v5706 = vsel %vm5698, %v5689, %v5705
    %v5707 = vsel %vm5697, %v5704, %v5706
    %v5708 = vsel %vm5696, %v5686, %v5689
    %v5709 = vsel %vm5699, %v5695, 1326507024
    %v5710 = vsel %vm5698, %v5692, %v5709
    %v5711 = vsel %vm5697, %v5708, %v5710
    %v5712 = vshll.u32 %v5672, 8
    %v5713 = vmul.u32.u64.compose %v5712, %v5711
    %v5714 = vextract.low.u32 %v5713
    %v5715 = vextract.high.u32 %v5713
    %v5716 = vmul.u32.u64.compose %v5712, %v5707
    %v5717 = vextract.low.u32 %v5716
    %v5718 = vextract.high.u32 %v5716
    %v5719 = vmul.u32 %v5712, %v5703
    %v5720 = vadd.s32 %v5715, %v5717
    %vm5721 = vc.u32 %v5715, %v5717
    %v5722 = vadd.s32 %v5718, 1
    %v5723 = vsel %vm5721, %v5722, %v5718
    %v5724 = vadd.s32 %v5719, %v5723
    %v5725 = vadd.s32 %v5724, 536870912
    %v5726 = vshrl.u32 %v5725, 30
    %v5727 = vshll.u32 %v5726, 30
    %v5728 = vsub.s32 %v5724, %v5727
    %vm5729 = vcmp.lt.s32.totalorder %v5728, 0
    %v5730 = vsub.s32 0, %v5728
    %v5731 = vsel %vm5729, %v5730, %v5728
    %v5732 = vclz %v5731
    %v5733 = vsub.s32 %v5732, 2
    %vm5734 = vcmp.gt.s32.totalorder 0, %v5733
    %v5735 = vsel %vm5734, 0, %v5733
    %v5736 = vsub.s32 32, %v5735
    %v5737 = vshll.u32 %v5728, %v5735
    %v5738 = vshrl.u32 %v5720, %v5736
    %v5739 = vor.u32 %v5737, %v5738
    %v5740 = vsub.s32 4294967266, %v5735
    %v5741 = vadd.s32 %v5740, 127
    %v5742 = vshll.u32 %v5741, 23
    %v5743 = vor.u32 4788187, %v5742
    %v5744 = vand.u32 2147483647, %v5743
    %v5746 = vcvt.s32.f32 %v5739
    %v5747 = vmul.f32 %v5746, %v5744
    %v5748 = vxor.u32 %v5747, 2147483648
    %v5749 = vsel %vm5666, %v5748, %v5747
    %v5750 = vsub.s32 4, %v5726
    %v5751 = vsel %vm5666, %v5750, %v5726
    %v5752 = vsel %vm5665, %v862, %v5749
    %v5753 = vsel %vm5665, 0, %v5751
    %v5754 = vcosq.f32.pop %v5752
    %v5755 = vsinq.f32.pop %v5752
    %vm5756 = vweird.f32 %v862
    %v5757 = vadd.s32 %v5753, 3
    %v5758 = vand.u32 %v5757, 3
    %vm5759 = vcmp.lt.s32.totalorder %v5758, 2
    %vm5760 = vcmp.eq.s32.totalorder %v5758, 0
    %v5761 = vxor.u32 %v5755, 2147483648
    %v5762 = vsel %vm5760, %v5754, %v5761
    %vm5763 = vcmp.eq.s32.totalorder %v5758, 2
    %v5764 = vxor.u32 %v5754, 2147483648
    %v5765 = vsel %vm5763, %v5764, %v5755
    %v5766 = vsel %vm5759, %v5762, %v5765
    %v5767 = vsel %vm5756, nan, %v5766
    %v5768 = vand.u32 2147483647, %v863
    %vm5769 = vcmp.le.f32.partialorder %v5768, 0.7853982
    %vm5770 = vcmp.lt.s32.totalorder %v863, 0
    %v5771 = vand.u32 %v863, 2139095040
    %v5772 = vshrl.u32 %v5771, 23
    %v5773 = vsub.s32 %v5772, 127
    %v5774 = vand.u32 2147483647, %v863
    %v5775 = vand.u32 %v5774, 8388607
    %v5776 = vor.u32 %v5775, 8388608
    %v5777 = vsub.s32 0, %v5776
    %v5778 = vadd.s32 %v5773, 1
    %vm5779 = vcmp.gt.s32.totalorder %v5778, 0
    %v5780 = vsel %vm5779, %v5778, 0
    %v5781 = vshrl.u32 %v5780, 5
    %v5782 = vand.u32 %v5780, 31
    %v5783 = vsub.s32 32, %v5782
    %v5784 = vshrl.u32 683565275, %v5783
    %v5785 = vshll.u32 683565275, %v5782
    %v5786 = vshrl.u32 2475754826, %v5783
    %v5787 = vor.u32 %v5785, %v5786
    %v5788 = vshll.u32 2475754826, %v5782
    %v5789 = vshrl.u32 2131351028, %v5783
    %v5790 = vor.u32 %v5788, %v5789
    %v5791 = vshll.u32 2131351028, %v5782
    %v5792 = vshrl.u32 2102212464, %v5783
    %v5793 = vor.u32 %v5791, %v5792
    %v5794 = vshll.u32 2102212464, %v5782
    %v5795 = vshrl.u32 920167782, %v5783
    %v5796 = vor.u32 %v5794, %v5795
    %v5797 = vshll.u32 920167782, %v5782
    %v5798 = vshrl.u32 1326507024, %v5783
    %v5799 = vor.u32 %v5797, %v5798
    %vm5800 = vcmp.lt.s32.totalorder %v5781, 1
    %vm5801 = vcmp.lt.s32.totalorder %v5781, 2
    %vm5802 = vcmp.lt.s32.totalorder %v5781, 3
    %vm5803 = vcmp.lt.s32.totalorder %v5781, 4
    %v5804 = vsel %vm5800, %v5784, %v5787
    %v5805 = vsel %vm5803, %v5793, 2102212464
    %v5806 = vsel %vm5802, %v5790, %v5805
    %v5807 = vsel %vm5801, %v5804, %v5806
    %v5808 = vsel %vm5800, %v5787, %v5790
    %v5809 = vsel %vm5803, %v5796, 920167782
    %v5810 = vsel %vm5802, %v5793, %v5809
    %v5811 = vsel %vm5801, %v5808, %v5810
    %v5812 = vsel %vm5800, %v5790, %v5793
    %v5813 = vsel %vm5803, %v5799, 1326507024
    %v5814 = vsel %vm5802, %v5796, %v5813
    %v5815 = vsel %vm5801, %v5812, %v5814
    %v5816 = vshll.u32 %v5776, 8
    %v5817 = vmul.u32.u64.compose %v5816, %v5815
    %v5818 = vextract.low.u32 %v5817
    %v5819 = vextract.high.u32 %v5817
    %v5820 = vmul.u32.u64.compose %v5816, %v5811
    %v5821 = vextract.low.u32 %v5820
    %v5822 = vextract.high.u32 %v5820
    %v5823 = vmul.u32 %v5816, %v5807
    %v5824 = vadd.s32 %v5819, %v5821
    %vm5825 = vc.u32 %v5819, %v5821
    %v5826 = vadd.s32 %v5822, 1
    %v5827 = vsel %vm5825, %v5826, %v5822
    %v5828 = vadd.s32 %v5823, %v5827
    %v5829 = vadd.s32 %v5828, 536870912
    %v5830 = vshrl.u32 %v5829, 30
    %v5831 = vshll.u32 %v5830, 30
    %v5832 = vsub.s32 %v5828, %v5831
    %vm5833 = vcmp.lt.s32.totalorder %v5832, 0
    %v5834 = vsub.s32 0, %v5832
    %v5835 = vsel %vm5833, %v5834, %v5832
    %v5836 = vclz %v5835
    %v5837 = vsub.s32 %v5836, 2
    %vm5838 = vcmp.gt.s32.totalorder 0, %v5837
    %v5839 = vsel %vm5838, 0, %v5837
    %v5840 = vsub.s32 32, %v5839
    %v5841 = vshll.u32 %v5832, %v5839
    %v5842 = vshrl.u32 %v5824, %v5840
    %v5843 = vor.u32 %v5841, %v5842
    %v5844 = vsub.s32 4294967266, %v5839
    %v5845 = vadd.s32 %v5844, 127
    %v5846 = vshll.u32 %v5845, 23
    %v5847 = vor.u32 4788187, %v5846
    %v5848 = vand.u32 2147483647, %v5847
    %v5850 = vcvt.s32.f32 %v5843
    %v5851 = vmul.f32 %v5850, %v5848
    %v5852 = vxor.u32 %v5851, 2147483648
    %v5853 = vsel %vm5770, %v5852, %v5851
    %v5854 = vsub.s32 4, %v5830
    %v5855 = vsel %vm5770, %v5854, %v5830
    %v5856 = vsel %vm5769, %v863, %v5853
    %v5857 = vsel %vm5769, 0, %v5855
    %v5858 = vcosq.f32.pop %v5856
    %v5859 = vsinq.f32.pop %v5856
    %vm5860 = vweird.f32 %v863
    %v5861 = vadd.s32 %v5857, 3
    %v5862 = vand.u32 %v5861, 3
    %vm5863 = vcmp.lt.s32.totalorder %v5862, 2
    %vm5864 = vcmp.eq.s32.totalorder %v5862, 0
    %v5865 = vxor.u32 %v5859, 2147483648
    %v5866 = vsel %vm5864, %v5858, %v5865
    %vm5867 = vcmp.eq.s32.totalorder %v5862, 2
    %v5868 = vxor.u32 %v5858, 2147483648
    %v5869 = vsel %vm5867, %v5868, %v5859
    %v5870 = vsel %vm5863, %v5866, %v5869
    %v5871 = vsel %vm5860, nan, %v5870
    %v5872 = vand.u32 2147483647, %v864
    %vm5873 = vcmp.le.f32.partialorder %v5872, 0.7853982
    %vm5874 = vcmp.lt.s32.totalorder %v864, 0
    %v5875 = vand.u32 %v864, 2139095040
    %v5876 = vshrl.u32 %v5875, 23
    %v5877 = vsub.s32 %v5876, 127
    %v5878 = vand.u32 2147483647, %v864
    %v5879 = vand.u32 %v5878, 8388607
    %v5880 = vor.u32 %v5879, 8388608
    %v5881 = vsub.s32 0, %v5880
    %v5882 = vadd.s32 %v5877, 1
    %vm5883 = vcmp.gt.s32.totalorder %v5882, 0
    %v5884 = vsel %vm5883, %v5882, 0
    %v5885 = vshrl.u32 %v5884, 5
    %v5886 = vand.u32 %v5884, 31
    %v5887 = vsub.s32 32, %v5886
    %v5888 = vshrl.u32 683565275, %v5887
    %v5889 = vshll.u32 683565275, %v5886
    %v5890 = vshrl.u32 2475754826, %v5887
    %v5891 = vor.u32 %v5889, %v5890
    %v5892 = vshll.u32 2475754826, %v5886
    %v5893 = vshrl.u32 2131351028, %v5887
    %v5894 = vor.u32 %v5892, %v5893
    %v5895 = vshll.u32 2131351028, %v5886
    %v5896 = vshrl.u32 2102212464, %v5887
    %v5897 = vor.u32 %v5895, %v5896
    %v5898 = vshll.u32 2102212464, %v5886
    %v5899 = vshrl.u32 920167782, %v5887
    %v5900 = vor.u32 %v5898, %v5899
    %v5901 = vshll.u32 920167782, %v5886
    %v5902 = vshrl.u32 1326507024, %v5887
    %v5903 = vor.u32 %v5901, %v5902
    %vm5904 = vcmp.lt.s32.totalorder %v5885, 1
    %vm5905 = vcmp.lt.s32.totalorder %v5885, 2
    %vm5906 = vcmp.lt.s32.totalorder %v5885, 3
    %vm5907 = vcmp.lt.s32.totalorder %v5885, 4
    %v5908 = vsel %vm5904, %v5888, %v5891
    %v5909 = vsel %vm5907, %v5897, 2102212464
    %v5910 = vsel %vm5906, %v5894, %v5909
    %v5911 = vsel %vm5905, %v5908, %v5910
    %v5912 = vsel %vm5904, %v5891, %v5894
    %v5913 = vsel %vm5907, %v5900, 920167782
    %v5914 = vsel %vm5906, %v5897, %v5913
    %v5915 = vsel %vm5905, %v5912, %v5914
    %v5916 = vsel %vm5904, %v5894, %v5897
    %v5917 = vsel %vm5907, %v5903, 1326507024
    %v5918 = vsel %vm5906, %v5900, %v5917
    %v5919 = vsel %vm5905, %v5916, %v5918
    %v5920 = vshll.u32 %v5880, 8
    %v5921 = vmul.u32.u64.compose %v5920, %v5919
    %v5922 = vextract.low.u32 %v5921
    %v5923 = vextract.high.u32 %v5921
    %v5924 = vmul.u32.u64.compose %v5920, %v5915
    %v5925 = vextract.low.u32 %v5924
    %v5926 = vextract.high.u32 %v5924
    %v5927 = vmul.u32 %v5920, %v5911
    %v5928 = vadd.s32 %v5923, %v5925
    %vm5929 = vc.u32 %v5923, %v5925
    %v5930 = vadd.s32 %v5926, 1
    %v5931 = vsel %vm5929, %v5930, %v5926
    %v5932 = vadd.s32 %v5927, %v5931
    %v5933 = vadd.s32 %v5932, 536870912
    %v5934 = vshrl.u32 %v5933, 30
    %v5935 = vshll.u32 %v5934, 30
    %v5936 = vsub.s32 %v5932, %v5935
    %vm5937 = vcmp.lt.s32.totalorder %v5936, 0
    %v5938 = vsub.s32 0, %v5936
    %v5939 = vsel %vm5937, %v5938, %v5936
    %v5940 = vclz %v5939
    %v5941 = vsub.s32 %v5940, 2
    %vm5942 = vcmp.gt.s32.totalorder 0, %v5941
    %v5943 = vsel %vm5942, 0, %v5941
    %v5944 = vsub.s32 32, %v5943
    %v5945 = vshll.u32 %v5936, %v5943
    %v5946 = vshrl.u32 %v5928, %v5944
    %v5947 = vor.u32 %v5945, %v5946
    %v5948 = vsub.s32 4294967266, %v5943
    %v5949 = vadd.s32 %v5948, 127
    %v5950 = vshll.u32 %v5949, 23
    %v5951 = vor.u32 4788187, %v5950
    %v5952 = vand.u32 2147483647, %v5951
    %v5954 = vcvt.s32.f32 %v5947
    %v5955 = vmul.f32 %v5954, %v5952
    %v5956 = vxor.u32 %v5955, 2147483648
    %v5957 = vsel %vm5874, %v5956, %v5955
    %v5958 = vsub.s32 4, %v5934
    %v5959 = vsel %vm5874, %v5958, %v5934
    %v5960 = vsel %vm5873, %v864, %v5957
    %v5961 = vsel %vm5873, 0, %v5959
    %v5962 = vcosq.f32.pop %v5960
    %v5963 = vsinq.f32.pop %v5960
    %vm5964 = vweird.f32 %v864
    %v5965 = vadd.s32 %v5961, 3
    %v5966 = vand.u32 %v5965, 3
    %vm5967 = vcmp.lt.s32.totalorder %v5966, 2
    %vm5968 = vcmp.eq.s32.totalorder %v5966, 0
    %v5969 = vxor.u32 %v5963, 2147483648
    %v5970 = vsel %vm5968, %v5962, %v5969
    %vm5971 = vcmp.eq.s32.totalorder %v5966, 2
    %v5972 = vxor.u32 %v5962, 2147483648
    %v5973 = vsel %vm5971, %v5972, %v5963
    %v5974 = vsel %vm5967, %v5970, %v5973
    %v5975 = vsel %vm5964, nan, %v5974
    %v5976 = vand.u32 2147483647, %v865
    %vm5977 = vcmp.le.f32.partialorder %v5976, 0.7853982
    %vm5978 = vcmp.lt.s32.totalorder %v865, 0
    %v5979 = vand.u32 %v865, 2139095040
    %v5980 = vshrl.u32 %v5979, 23
    %v5981 = vsub.s32 %v5980, 127
    %v5982 = vand.u32 2147483647, %v865
    %v5983 = vand.u32 %v5982, 8388607
    %v5984 = vor.u32 %v5983, 8388608
    %v5985 = vsub.s32 0, %v5984
    %v5986 = vadd.s32 %v5981, 1
    %vm5987 = vcmp.gt.s32.totalorder %v5986, 0
    %v5988 = vsel %vm5987, %v5986, 0
    %v5989 = vshrl.u32 %v5988, 5
    %v5990 = vand.u32 %v5988, 31
    %v5991 = vsub.s32 32, %v5990
    %v5992 = vshrl.u32 683565275, %v5991
    %v5993 = vshll.u32 683565275, %v5990
    %v5994 = vshrl.u32 2475754826, %v5991
    %v5995 = vor.u32 %v5993, %v5994
    %v5996 = vshll.u32 2475754826, %v5990
    %v5997 = vshrl.u32 2131351028, %v5991
    %v5998 = vor.u32 %v5996, %v5997
    %v5999 = vshll.u32 2131351028, %v5990
    %v6000 = vshrl.u32 2102212464, %v5991
    %v6001 = vor.u32 %v5999, %v6000
    %v6002 = vshll.u32 2102212464, %v5990
    %v6003 = vshrl.u32 920167782, %v5991
    %v6004 = vor.u32 %v6002, %v6003
    %v6005 = vshll.u32 920167782, %v5990
    %v6006 = vshrl.u32 1326507024, %v5991
    %v6007 = vor.u32 %v6005, %v6006
    %vm6008 = vcmp.lt.s32.totalorder %v5989, 1
    %vm6009 = vcmp.lt.s32.totalorder %v5989, 2
    %vm6010 = vcmp.lt.s32.totalorder %v5989, 3
    %vm6011 = vcmp.lt.s32.totalorder %v5989, 4
    %v6012 = vsel %vm6008, %v5992, %v5995
    %v6013 = vsel %vm6011, %v6001, 2102212464
    %v6014 = vsel %vm6010, %v5998, %v6013
    %v6015 = vsel %vm6009, %v6012, %v6014
    %v6016 = vsel %vm6008, %v5995, %v5998
    %v6017 = vsel %vm6011, %v6004, 920167782
    %v6018 = vsel %vm6010, %v6001, %v6017
    %v6019 = vsel %vm6009, %v6016, %v6018
    %v6020 = vsel %vm6008, %v5998, %v6001
    %v6021 = vsel %vm6011, %v6007, 1326507024
    %v6022 = vsel %vm6010, %v6004, %v6021
    %v6023 = vsel %vm6009, %v6020, %v6022
    %v6024 = vshll.u32 %v5984, 8
    %v6025 = vmul.u32.u64.compose %v6024, %v6023
    %v6026 = vextract.low.u32 %v6025
    %v6027 = vextract.high.u32 %v6025
    %v6028 = vmul.u32.u64.compose %v6024, %v6019
    %v6029 = vextract.low.u32 %v6028
    %v6030 = vextract.high.u32 %v6028
    %v6031 = vmul.u32 %v6024, %v6015
    %v6032 = vadd.s32 %v6027, %v6029
    %vm6033 = vc.u32 %v6027, %v6029
    %v6034 = vadd.s32 %v6030, 1
    %v6035 = vsel %vm6033, %v6034, %v6030
    %v6036 = vadd.s32 %v6031, %v6035
    %v6037 = vadd.s32 %v6036, 536870912
    %v6038 = vshrl.u32 %v6037, 30
    %v6039 = vshll.u32 %v6038, 30
    %v6040 = vsub.s32 %v6036, %v6039
    %vm6041 = vcmp.lt.s32.totalorder %v6040, 0
    %v6042 = vsub.s32 0, %v6040
    %v6043 = vsel %vm6041, %v6042, %v6040
    %v6044 = vclz %v6043
    %v6045 = vsub.s32 %v6044, 2
    %vm6046 = vcmp.gt.s32.totalorder 0, %v6045
    %v6047 = vsel %vm6046, 0, %v6045
    %v6048 = vsub.s32 32, %v6047
    %v6049 = vshll.u32 %v6040, %v6047
    %v6050 = vshrl.u32 %v6032, %v6048
    %v6051 = vor.u32 %v6049, %v6050
    %v6052 = vsub.s32 4294967266, %v6047
    %v6053 = vadd.s32 %v6052, 127
    %v6054 = vshll.u32 %v6053, 23
    %v6055 = vor.u32 4788187, %v6054
    %v6056 = vand.u32 2147483647, %v6055
    %v6058 = vcvt.s32.f32 %v6051
    %v6059 = vmul.f32 %v6058, %v6056
    %v6060 = vxor.u32 %v6059, 2147483648
    %v6061 = vsel %vm5978, %v6060, %v6059
    %v6062 = vsub.s32 4, %v6038
    %v6063 = vsel %vm5978, %v6062, %v6038
    %v6064 = vsel %vm5977, %v865, %v6061
    %v6065 = vsel %vm5977, 0, %v6063
    %v6066 = vcosq.f32.pop %v6064
    %v6067 = vsinq.f32.pop %v6064
    %vm6068 = vweird.f32 %v865
    %v6069 = vadd.s32 %v6065, 3
    %v6070 = vand.u32 %v6069, 3
    %vm6071 = vcmp.lt.s32.totalorder %v6070, 2
    %vm6072 = vcmp.eq.s32.totalorder %v6070, 0
    %v6073 = vxor.u32 %v6067, 2147483648
    %v6074 = vsel %vm6072, %v6066, %v6073
    %vm6075 = vcmp.eq.s32.totalorder %v6070, 2
    %v6076 = vxor.u32 %v6066, 2147483648
    %v6077 = vsel %vm6075, %v6076, %v6067
    %v6078 = vsel %vm6071, %v6074, %v6077
    %v6079 = vsel %vm6068, nan, %v6078
    %v6080 = vand.u32 2147483647, %v866
    %vm6081 = vcmp.le.f32.partialorder %v6080, 0.7853982
    %vm6082 = vcmp.lt.s32.totalorder %v866, 0
    %v6083 = vand.u32 %v866, 2139095040
    %v6084 = vshrl.u32 %v6083, 23
    %v6085 = vsub.s32 %v6084, 127
    %v6086 = vand.u32 2147483647, %v866
    %v6087 = vand.u32 %v6086, 8388607
    %v6088 = vor.u32 %v6087, 8388608
    %v6089 = vsub.s32 0, %v6088
    %v6090 = vadd.s32 %v6085, 1
    %vm6091 = vcmp.gt.s32.totalorder %v6090, 0
    %v6092 = vsel %vm6091, %v6090, 0
    %v6093 = vshrl.u32 %v6092, 5
    %v6094 = vand.u32 %v6092, 31
    %v6095 = vsub.s32 32, %v6094
    %v6096 = vshrl.u32 683565275, %v6095
    %v6097 = vshll.u32 683565275, %v6094
    %v6098 = vshrl.u32 2475754826, %v6095
    %v6099 = vor.u32 %v6097, %v6098
    %v6100 = vshll.u32 2475754826, %v6094
    %v6101 = vshrl.u32 2131351028, %v6095
    %v6102 = vor.u32 %v6100, %v6101
    %v6103 = vshll.u32 2131351028, %v6094
    %v6104 = vshrl.u32 2102212464, %v6095
    %v6105 = vor.u32 %v6103, %v6104
    %v6106 = vshll.u32 2102212464, %v6094
    %v6107 = vshrl.u32 920167782, %v6095
    %v6108 = vor.u32 %v6106, %v6107
    %v6109 = vshll.u32 920167782, %v6094
    %v6110 = vshrl.u32 1326507024, %v6095
    %v6111 = vor.u32 %v6109, %v6110
    %vm6112 = vcmp.lt.s32.totalorder %v6093, 1
    %vm6113 = vcmp.lt.s32.totalorder %v6093, 2
    %vm6114 = vcmp.lt.s32.totalorder %v6093, 3
    %vm6115 = vcmp.lt.s32.totalorder %v6093, 4
    %v6116 = vsel %vm6112, %v6096, %v6099
    %v6117 = vsel %vm6115, %v6105, 2102212464
    %v6118 = vsel %vm6114, %v6102, %v6117
    %v6119 = vsel %vm6113, %v6116, %v6118
    %v6120 = vsel %vm6112, %v6099, %v6102
    %v6121 = vsel %vm6115, %v6108, 920167782
    %v6122 = vsel %vm6114, %v6105, %v6121
    %v6123 = vsel %vm6113, %v6120, %v6122
    %v6124 = vsel %vm6112, %v6102, %v6105
    %v6125 = vsel %vm6115, %v6111, 1326507024
    %v6126 = vsel %vm6114, %v6108, %v6125
    %v6127 = vsel %vm6113, %v6124, %v6126
    %v6128 = vshll.u32 %v6088, 8
    %v6129 = vmul.u32.u64.compose %v6128, %v6127
    %v6130 = vextract.low.u32 %v6129
    %v6131 = vextract.high.u32 %v6129
    %v6132 = vmul.u32.u64.compose %v6128, %v6123
    %v6133 = vextract.low.u32 %v6132
    %v6134 = vextract.high.u32 %v6132
    %v6135 = vmul.u32 %v6128, %v6119
    %v6136 = vadd.s32 %v6131, %v6133
    %vm6137 = vc.u32 %v6131, %v6133
    %v6138 = vadd.s32 %v6134, 1
    %v6139 = vsel %vm6137, %v6138, %v6134
    %v6140 = vadd.s32 %v6135, %v6139
    %v6141 = vadd.s32 %v6140, 536870912
    %v6142 = vshrl.u32 %v6141, 30
    %v6143 = vshll.u32 %v6142, 30
    %v6144 = vsub.s32 %v6140, %v6143
    %vm6145 = vcmp.lt.s32.totalorder %v6144, 0
    %v6146 = vsub.s32 0, %v6144
    %v6147 = vsel %vm6145, %v6146, %v6144
    %v6148 = vclz %v6147
    %v6149 = vsub.s32 %v6148, 2
    %vm6150 = vcmp.gt.s32.totalorder 0, %v6149
    %v6151 = vsel %vm6150, 0, %v6149
    %v6152 = vsub.s32 32, %v6151
    %v6153 = vshll.u32 %v6144, %v6151
    %v6154 = vshrl.u32 %v6136, %v6152
    %v6155 = vor.u32 %v6153, %v6154
    %v6156 = vsub.s32 4294967266, %v6151
    %v6157 = vadd.s32 %v6156, 127
    %v6158 = vshll.u32 %v6157, 23
    %v6159 = vor.u32 4788187, %v6158
    %v6160 = vand.u32 2147483647, %v6159
    %v6162 = vcvt.s32.f32 %v6155
    %v6163 = vmul.f32 %v6162, %v6160
    %v6164 = vxor.u32 %v6163, 2147483648
    %v6165 = vsel %vm6082, %v6164, %v6163
    %v6166 = vsub.s32 4, %v6142
    %v6167 = vsel %vm6082, %v6166, %v6142
    %v6168 = vsel %vm6081, %v866, %v6165
    %v6169 = vsel %vm6081, 0, %v6167
    %v6170 = vcosq.f32.pop %v6168
    %v6171 = vsinq.f32.pop %v6168
    %vm6172 = vweird.f32 %v866
    %v6173 = vadd.s32 %v6169, 3
    %v6174 = vand.u32 %v6173, 3
    %vm6175 = vcmp.lt.s32.totalorder %v6174, 2
    %vm6176 = vcmp.eq.s32.totalorder %v6174, 0
    %v6177 = vxor.u32 %v6171, 2147483648
    %v6178 = vsel %vm6176, %v6170, %v6177
    %vm6179 = vcmp.eq.s32.totalorder %v6174, 2
    %v6180 = vxor.u32 %v6170, 2147483648
    %v6181 = vsel %vm6179, %v6180, %v6171
    %v6182 = vsel %vm6175, %v6178, %v6181
    %v6183 = vsel %vm6172, nan, %v6182
    %v6184 = vand.u32 2147483647, %v867
    %vm6185 = vcmp.le.f32.partialorder %v6184, 0.7853982
    %vm6186 = vcmp.lt.s32.totalorder %v867, 0
    %v6187 = vand.u32 %v867, 2139095040
    %v6188 = vshrl.u32 %v6187, 23
    %v6189 = vsub.s32 %v6188, 127
    %v6190 = vand.u32 2147483647, %v867
    %v6191 = vand.u32 %v6190, 8388607
    %v6192 = vor.u32 %v6191, 8388608
    %v6193 = vsub.s32 0, %v6192
    %v6194 = vadd.s32 %v6189, 1
    %vm6195 = vcmp.gt.s32.totalorder %v6194, 0
    %v6196 = vsel %vm6195, %v6194, 0
    %v6197 = vshrl.u32 %v6196, 5
    %v6198 = vand.u32 %v6196, 31
    %v6199 = vsub.s32 32, %v6198
    %v6200 = vshrl.u32 683565275, %v6199
    %v6201 = vshll.u32 683565275, %v6198
    %v6202 = vshrl.u32 2475754826, %v6199
    %v6203 = vor.u32 %v6201, %v6202
    %v6204 = vshll.u32 2475754826, %v6198
    %v6205 = vshrl.u32 2131351028, %v6199
    %v6206 = vor.u32 %v6204, %v6205
    %v6207 = vshll.u32 2131351028, %v6198
    %v6208 = vshrl.u32 2102212464, %v6199
    %v6209 = vor.u32 %v6207, %v6208
    %v6210 = vshll.u32 2102212464, %v6198
    %v6211 = vshrl.u32 920167782, %v6199
    %v6212 = vor.u32 %v6210, %v6211
    %v6213 = vshll.u32 920167782, %v6198
    %v6214 = vshrl.u32 1326507024, %v6199
    %v6215 = vor.u32 %v6213, %v6214
    %vm6216 = vcmp.lt.s32.totalorder %v6197, 1
    %vm6217 = vcmp.lt.s32.totalorder %v6197, 2
    %vm6218 = vcmp.lt.s32.totalorder %v6197, 3
    %vm6219 = vcmp.lt.s32.totalorder %v6197, 4
    %v6220 = vsel %vm6216, %v6200, %v6203
    %v6221 = vsel %vm6219, %v6209, 2102212464
    %v6222 = vsel %vm6218, %v6206, %v6221
    %v6223 = vsel %vm6217, %v6220, %v6222
    %v6224 = vsel %vm6216, %v6203, %v6206
    %v6225 = vsel %vm6219, %v6212, 920167782
    %v6226 = vsel %vm6218, %v6209, %v6225
    %v6227 = vsel %vm6217, %v6224, %v6226
    %v6228 = vsel %vm6216, %v6206, %v6209
    %v6229 = vsel %vm6219, %v6215, 1326507024
    %v6230 = vsel %vm6218, %v6212, %v6229
    %v6231 = vsel %vm6217, %v6228, %v6230
    %v6232 = vshll.u32 %v6192, 8
    %v6233 = vmul.u32.u64.compose %v6232, %v6231
    %v6234 = vextract.low.u32 %v6233
    %v6235 = vextract.high.u32 %v6233
    %v6236 = vmul.u32.u64.compose %v6232, %v6227
    %v6237 = vextract.low.u32 %v6236
    %v6238 = vextract.high.u32 %v6236
    %v6239 = vmul.u32 %v6232, %v6223
    %v6240 = vadd.s32 %v6235, %v6237
    %vm6241 = vc.u32 %v6235, %v6237
    %v6242 = vadd.s32 %v6238, 1
    %v6243 = vsel %vm6241, %v6242, %v6238
    %v6244 = vadd.s32 %v6239, %v6243
    %v6245 = vadd.s32 %v6244, 536870912
    %v6246 = vshrl.u32 %v6245, 30
    %v6247 = vshll.u32 %v6246, 30
    %v6248 = vsub.s32 %v6244, %v6247
    %vm6249 = vcmp.lt.s32.totalorder %v6248, 0
    %v6250 = vsub.s32 0, %v6248
    %v6251 = vsel %vm6249, %v6250, %v6248
    %v6252 = vclz %v6251
    %v6253 = vsub.s32 %v6252, 2
    %vm6254 = vcmp.gt.s32.totalorder 0, %v6253
    %v6255 = vsel %vm6254, 0, %v6253
    %v6256 = vsub.s32 32, %v6255
    %v6257 = vshll.u32 %v6248, %v6255
    %v6258 = vshrl.u32 %v6240, %v6256
    %v6259 = vor.u32 %v6257, %v6258
    %v6260 = vsub.s32 4294967266, %v6255
    %v6261 = vadd.s32 %v6260, 127
    %v6262 = vshll.u32 %v6261, 23
    %v6263 = vor.u32 4788187, %v6262
    %v6264 = vand.u32 2147483647, %v6263
    %v6266 = vcvt.s32.f32 %v6259
    %v6267 = vmul.f32 %v6266, %v6264
    %v6268 = vxor.u32 %v6267, 2147483648
    %v6269 = vsel %vm6186, %v6268, %v6267
    %v6270 = vsub.s32 4, %v6246
    %v6271 = vsel %vm6186, %v6270, %v6246
    %v6272 = vsel %vm6185, %v867, %v6269
    %v6273 = vsel %vm6185, 0, %v6271
    %v6274 = vcosq.f32.pop %v6272
    %v6275 = vsinq.f32.pop %v6272
    %vm6276 = vweird.f32 %v867
    %v6277 = vadd.s32 %v6273, 3
    %v6278 = vand.u32 %v6277, 3
    %vm6279 = vcmp.lt.s32.totalorder %v6278, 2
    %vm6280 = vcmp.eq.s32.totalorder %v6278, 0
    %v6281 = vxor.u32 %v6275, 2147483648
    %v6282 = vsel %vm6280, %v6274, %v6281
    %vm6283 = vcmp.eq.s32.totalorder %v6278, 2
    %v6284 = vxor.u32 %v6274, 2147483648
    %v6285 = vsel %vm6283, %v6284, %v6275
    %v6286 = vsel %vm6279, %v6282, %v6285
    %v6287 = vsel %vm6276, nan, %v6286
    %v6288 = vand.u32 2147483647, %v868
    %vm6289 = vcmp.le.f32.partialorder %v6288, 0.7853982
    %vm6290 = vcmp.lt.s32.totalorder %v868, 0
    %v6291 = vand.u32 %v868, 2139095040
    %v6292 = vshrl.u32 %v6291, 23
    %v6293 = vsub.s32 %v6292, 127
    %v6294 = vand.u32 2147483647, %v868
    %v6295 = vand.u32 %v6294, 8388607
    %v6296 = vor.u32 %v6295, 8388608
    %v6297 = vsub.s32 0, %v6296
    %v6298 = vadd.s32 %v6293, 1
    %vm6299 = vcmp.gt.s32.totalorder %v6298, 0
    %v6300 = vsel %vm6299, %v6298, 0
    %v6301 = vshrl.u32 %v6300, 5
    %v6302 = vand.u32 %v6300, 31
    %v6303 = vsub.s32 32, %v6302
    %v6304 = vshrl.u32 683565275, %v6303
    %v6305 = vshll.u32 683565275, %v6302
    %v6306 = vshrl.u32 2475754826, %v6303
    %v6307 = vor.u32 %v6305, %v6306
    %v6308 = vshll.u32 2475754826, %v6302
    %v6309 = vshrl.u32 2131351028, %v6303
    %v6310 = vor.u32 %v6308, %v6309
    %v6311 = vshll.u32 2131351028, %v6302
    %v6312 = vshrl.u32 2102212464, %v6303
    %v6313 = vor.u32 %v6311, %v6312
    %v6314 = vshll.u32 2102212464, %v6302
    %v6315 = vshrl.u32 920167782, %v6303
    %v6316 = vor.u32 %v6314, %v6315
    %v6317 = vshll.u32 920167782, %v6302
    %v6318 = vshrl.u32 1326507024, %v6303
    %v6319 = vor.u32 %v6317, %v6318
    %vm6320 = vcmp.lt.s32.totalorder %v6301, 1
    %vm6321 = vcmp.lt.s32.totalorder %v6301, 2
    %vm6322 = vcmp.lt.s32.totalorder %v6301, 3
    %vm6323 = vcmp.lt.s32.totalorder %v6301, 4
    %v6324 = vsel %vm6320, %v6304, %v6307
    %v6325 = vsel %vm6323, %v6313, 2102212464
    %v6326 = vsel %vm6322, %v6310, %v6325
    %v6327 = vsel %vm6321, %v6324, %v6326
    %v6328 = vsel %vm6320, %v6307, %v6310
    %v6329 = vsel %vm6323, %v6316, 920167782
    %v6330 = vsel %vm6322, %v6313, %v6329
    %v6331 = vsel %vm6321, %v6328, %v6330
    %v6332 = vsel %vm6320, %v6310, %v6313
    %v6333 = vsel %vm6323, %v6319, 1326507024
    %v6334 = vsel %vm6322, %v6316, %v6333
    %v6335 = vsel %vm6321, %v6332, %v6334
    %v6336 = vshll.u32 %v6296, 8
    %v6337 = vmul.u32.u64.compose %v6336, %v6335
    %v6338 = vextract.low.u32 %v6337
    %v6339 = vextract.high.u32 %v6337
    %v6340 = vmul.u32.u64.compose %v6336, %v6331
    %v6341 = vextract.low.u32 %v6340
    %v6342 = vextract.high.u32 %v6340
    %v6343 = vmul.u32 %v6336, %v6327
    %v6344 = vadd.s32 %v6339, %v6341
    %vm6345 = vc.u32 %v6339, %v6341
    %v6346 = vadd.s32 %v6342, 1
    %v6347 = vsel %vm6345, %v6346, %v6342
    %v6348 = vadd.s32 %v6343, %v6347
    %v6349 = vadd.s32 %v6348, 536870912
    %v6350 = vshrl.u32 %v6349, 30
    %v6351 = vshll.u32 %v6350, 30
    %v6352 = vsub.s32 %v6348, %v6351
    %vm6353 = vcmp.lt.s32.totalorder %v6352, 0
    %v6354 = vsub.s32 0, %v6352
    %v6355 = vsel %vm6353, %v6354, %v6352
    %v6356 = vclz %v6355
    %v6357 = vsub.s32 %v6356, 2
    %vm6358 = vcmp.gt.s32.totalorder 0, %v6357
    %v6359 = vsel %vm6358, 0, %v6357
    %v6360 = vsub.s32 32, %v6359
    %v6361 = vshll.u32 %v6352, %v6359
    %v6362 = vshrl.u32 %v6344, %v6360
    %v6363 = vor.u32 %v6361, %v6362
    %v6364 = vsub.s32 4294967266, %v6359
    %v6365 = vadd.s32 %v6364, 127
    %v6366 = vshll.u32 %v6365, 23
    %v6367 = vor.u32 4788187, %v6366
    %v6368 = vand.u32 2147483647, %v6367
    %v6370 = vcvt.s32.f32 %v6363
    %v6371 = vmul.f32 %v6370, %v6368
    %v6372 = vxor.u32 %v6371, 2147483648
    %v6373 = vsel %vm6290, %v6372, %v6371
    %v6374 = vsub.s32 4, %v6350
    %v6375 = vsel %vm6290, %v6374, %v6350
    %v6376 = vsel %vm6289, %v868, %v6373
    %v6377 = vsel %vm6289, 0, %v6375
    %v6378 = vcosq.f32.pop %v6376
    %v6379 = vsinq.f32.pop %v6376
    %vm6380 = vweird.f32 %v868
    %v6381 = vadd.s32 %v6377, 3
    %v6382 = vand.u32 %v6381, 3
    %vm6383 = vcmp.lt.s32.totalorder %v6382, 2
    %vm6384 = vcmp.eq.s32.totalorder %v6382, 0
    %v6385 = vxor.u32 %v6379, 2147483648
    %v6386 = vsel %vm6384, %v6378, %v6385
    %vm6387 = vcmp.eq.s32.totalorder %v6382, 2
    %v6388 = vxor.u32 %v6378, 2147483648
    %v6389 = vsel %vm6387, %v6388, %v6379
    %v6390 = vsel %vm6383, %v6386, %v6389
    %v6391 = vsel %vm6380, nan, %v6390
    %v6392 = vand.u32 2147483647, %v869
    %vm6393 = vcmp.le.f32.partialorder %v6392, 0.7853982
    %vm6394 = vcmp.lt.s32.totalorder %v869, 0
    %v6395 = vand.u32 %v869, 2139095040
    %v6396 = vshrl.u32 %v6395, 23
    %v6397 = vsub.s32 %v6396, 127
    %v6398 = vand.u32 2147483647, %v869
    %v6399 = vand.u32 %v6398, 8388607
    %v6400 = vor.u32 %v6399, 8388608
    %v6401 = vsub.s32 0, %v6400
    %v6402 = vadd.s32 %v6397, 1
    %vm6403 = vcmp.gt.s32.totalorder %v6402, 0
    %v6404 = vsel %vm6403, %v6402, 0
    %v6405 = vshrl.u32 %v6404, 5
    %v6406 = vand.u32 %v6404, 31
    %v6407 = vsub.s32 32, %v6406
    %v6408 = vshrl.u32 683565275, %v6407
    %v6409 = vshll.u32 683565275, %v6406
    %v6410 = vshrl.u32 2475754826, %v6407
    %v6411 = vor.u32 %v6409, %v6410
    %v6412 = vshll.u32 2475754826, %v6406
    %v6413 = vshrl.u32 2131351028, %v6407
    %v6414 = vor.u32 %v6412, %v6413
    %v6415 = vshll.u32 2131351028, %v6406
    %v6416 = vshrl.u32 2102212464, %v6407
    %v6417 = vor.u32 %v6415, %v6416
    %v6418 = vshll.u32 2102212464, %v6406
    %v6419 = vshrl.u32 920167782, %v6407
    %v6420 = vor.u32 %v6418, %v6419
    %v6421 = vshll.u32 920167782, %v6406
    %v6422 = vshrl.u32 1326507024, %v6407
    %v6423 = vor.u32 %v6421, %v6422
    %vm6424 = vcmp.lt.s32.totalorder %v6405, 1
    %vm6425 = vcmp.lt.s32.totalorder %v6405, 2
    %vm6426 = vcmp.lt.s32.totalorder %v6405, 3
    %vm6427 = vcmp.lt.s32.totalorder %v6405, 4
    %v6428 = vsel %vm6424, %v6408, %v6411
    %v6429 = vsel %vm6427, %v6417, 2102212464
    %v6430 = vsel %vm6426, %v6414, %v6429
    %v6431 = vsel %vm6425, %v6428, %v6430
    %v6432 = vsel %vm6424, %v6411, %v6414
    %v6433 = vsel %vm6427, %v6420, 920167782
    %v6434 = vsel %vm6426, %v6417, %v6433
    %v6435 = vsel %vm6425, %v6432, %v6434
    %v6436 = vsel %vm6424, %v6414, %v6417
    %v6437 = vsel %vm6427, %v6423, 1326507024
    %v6438 = vsel %vm6426, %v6420, %v6437
    %v6439 = vsel %vm6425, %v6436, %v6438
    %v6440 = vshll.u32 %v6400, 8
    %v6441 = vmul.u32.u64.compose %v6440, %v6439
    %v6442 = vextract.low.u32 %v6441
    %v6443 = vextract.high.u32 %v6441
    %v6444 = vmul.u32.u64.compose %v6440, %v6435
    %v6445 = vextract.low.u32 %v6444
    %v6446 = vextract.high.u32 %v6444
    %v6447 = vmul.u32 %v6440, %v6431
    %v6448 = vadd.s32 %v6443, %v6445
    %vm6449 = vc.u32 %v6443, %v6445
    %v6450 = vadd.s32 %v6446, 1
    %v6451 = vsel %vm6449, %v6450, %v6446
    %v6452 = vadd.s32 %v6447, %v6451
    %v6453 = vadd.s32 %v6452, 536870912
    %v6454 = vshrl.u32 %v6453, 30
    %v6455 = vshll.u32 %v6454, 30
    %v6456 = vsub.s32 %v6452, %v6455
    %vm6457 = vcmp.lt.s32.totalorder %v6456, 0
    %v6458 = vsub.s32 0, %v6456
    %v6459 = vsel %vm6457, %v6458, %v6456
    %v6460 = vclz %v6459
    %v6461 = vsub.s32 %v6460, 2
    %vm6462 = vcmp.gt.s32.totalorder 0, %v6461
    %v6463 = vsel %vm6462, 0, %v6461
    %v6464 = vsub.s32 32, %v6463
    %v6465 = vshll.u32 %v6456, %v6463
    %v6466 = vshrl.u32 %v6448, %v6464
    %v6467 = vor.u32 %v6465, %v6466
    %v6468 = vsub.s32 4294967266, %v6463
    %v6469 = vadd.s32 %v6468, 127
    %v6470 = vshll.u32 %v6469, 23
    %v6471 = vor.u32 4788187, %v6470
    %v6472 = vand.u32 2147483647, %v6471
    %v6474 = vcvt.s32.f32 %v6467
    %v6475 = vmul.f32 %v6474, %v6472
    %v6476 = vxor.u32 %v6475, 2147483648
    %v6477 = vsel %vm6394, %v6476, %v6475
    %v6478 = vsub.s32 4, %v6454
    %v6479 = vsel %vm6394, %v6478, %v6454
    %v6480 = vsel %vm6393, %v869, %v6477
    %v6481 = vsel %vm6393, 0, %v6479
    %v6482 = vcosq.f32.pop %v6480
    %v6483 = vsinq.f32.pop %v6480
    %vm6484 = vweird.f32 %v869
    %v6485 = vadd.s32 %v6481, 3
    %v6486 = vand.u32 %v6485, 3
    %vm6487 = vcmp.lt.s32.totalorder %v6486, 2
    %vm6488 = vcmp.eq.s32.totalorder %v6486, 0
    %v6489 = vxor.u32 %v6483, 2147483648
    %v6490 = vsel %vm6488, %v6482, %v6489
    %vm6491 = vcmp.eq.s32.totalorder %v6486, 2
    %v6492 = vxor.u32 %v6482, 2147483648
    %v6493 = vsel %vm6491, %v6492, %v6483
    %v6494 = vsel %vm6487, %v6490, %v6493
    %v6495 = vsel %vm6484, nan, %v6494
    %v6496 = vand.u32 2147483647, %v870
    %vm6497 = vcmp.le.f32.partialorder %v6496, 0.7853982
    %vm6498 = vcmp.lt.s32.totalorder %v870, 0
    %v6499 = vand.u32 %v870, 2139095040
    %v6500 = vshrl.u32 %v6499, 23
    %v6501 = vsub.s32 %v6500, 127
    %v6502 = vand.u32 2147483647, %v870
    %v6503 = vand.u32 %v6502, 8388607
    %v6504 = vor.u32 %v6503, 8388608
    %v6505 = vsub.s32 0, %v6504
    %v6506 = vadd.s32 %v6501, 1
    %vm6507 = vcmp.gt.s32.totalorder %v6506, 0
    %v6508 = vsel %vm6507, %v6506, 0
    %v6509 = vshrl.u32 %v6508, 5
    %v6510 = vand.u32 %v6508, 31
    %v6511 = vsub.s32 32, %v6510
    %v6512 = vshrl.u32 683565275, %v6511
    %v6513 = vshll.u32 683565275, %v6510
    %v6514 = vshrl.u32 2475754826, %v6511
    %v6515 = vor.u32 %v6513, %v6514
    %v6516 = vshll.u32 2475754826, %v6510
    %v6517 = vshrl.u32 2131351028, %v6511
    %v6518 = vor.u32 %v6516, %v6517
    %v6519 = vshll.u32 2131351028, %v6510
    %v6520 = vshrl.u32 2102212464, %v6511
    %v6521 = vor.u32 %v6519, %v6520
    %v6522 = vshll.u32 2102212464, %v6510
    %v6523 = vshrl.u32 920167782, %v6511
    %v6524 = vor.u32 %v6522, %v6523
    %v6525 = vshll.u32 920167782, %v6510
    %v6526 = vshrl.u32 1326507024, %v6511
    %v6527 = vor.u32 %v6525, %v6526
    %vm6528 = vcmp.lt.s32.totalorder %v6509, 1
    %vm6529 = vcmp.lt.s32.totalorder %v6509, 2
    %vm6530 = vcmp.lt.s32.totalorder %v6509, 3
    %vm6531 = vcmp.lt.s32.totalorder %v6509, 4
    %v6532 = vsel %vm6528, %v6512, %v6515
    %v6533 = vsel %vm6531, %v6521, 2102212464
    %v6534 = vsel %vm6530, %v6518, %v6533
    %v6535 = vsel %vm6529, %v6532, %v6534
    %v6536 = vsel %vm6528, %v6515, %v6518
    %v6537 = vsel %vm6531, %v6524, 920167782
    %v6538 = vsel %vm6530, %v6521, %v6537
    %v6539 = vsel %vm6529, %v6536, %v6538
    %v6540 = vsel %vm6528, %v6518, %v6521
    %v6541 = vsel %vm6531, %v6527, 1326507024
    %v6542 = vsel %vm6530, %v6524, %v6541
    %v6543 = vsel %vm6529, %v6540, %v6542
    %v6544 = vshll.u32 %v6504, 8
    %v6545 = vmul.u32.u64.compose %v6544, %v6543
    %v6546 = vextract.low.u32 %v6545
    %v6547 = vextract.high.u32 %v6545
    %v6548 = vmul.u32.u64.compose %v6544, %v6539
    %v6549 = vextract.low.u32 %v6548
    %v6550 = vextract.high.u32 %v6548
    %v6551 = vmul.u32 %v6544, %v6535
    %v6552 = vadd.s32 %v6547, %v6549
    %vm6553 = vc.u32 %v6547, %v6549
    %v6554 = vadd.s32 %v6550, 1
    %v6555 = vsel %vm6553, %v6554, %v6550
    %v6556 = vadd.s32 %v6551, %v6555
    %v6557 = vadd.s32 %v6556, 536870912
    %v6558 = vshrl.u32 %v6557, 30
    %v6559 = vshll.u32 %v6558, 30
    %v6560 = vsub.s32 %v6556, %v6559
    %vm6561 = vcmp.lt.s32.totalorder %v6560, 0
    %v6562 = vsub.s32 0, %v6560
    %v6563 = vsel %vm6561, %v6562, %v6560
    %v6564 = vclz %v6563
    %v6565 = vsub.s32 %v6564, 2
    %vm6566 = vcmp.gt.s32.totalorder 0, %v6565
    %v6567 = vsel %vm6566, 0, %v6565
    %v6568 = vsub.s32 32, %v6567
    %v6569 = vshll.u32 %v6560, %v6567
    %v6570 = vshrl.u32 %v6552, %v6568
    %v6571 = vor.u32 %v6569, %v6570
    %v6572 = vsub.s32 4294967266, %v6567
    %v6573 = vadd.s32 %v6572, 127
    %v6574 = vshll.u32 %v6573, 23
    %v6575 = vor.u32 4788187, %v6574
    %v6576 = vand.u32 2147483647, %v6575
    %v6578 = vcvt.s32.f32 %v6571
    %v6579 = vmul.f32 %v6578, %v6576
    %v6580 = vxor.u32 %v6579, 2147483648
    %v6581 = vsel %vm6498, %v6580, %v6579
    %v6582 = vsub.s32 4, %v6558
    %v6583 = vsel %vm6498, %v6582, %v6558
    %v6584 = vsel %vm6497, %v870, %v6581
    %v6585 = vsel %vm6497, 0, %v6583
    %v6586 = vcosq.f32.pop %v6584
    %v6587 = vsinq.f32.pop %v6584
    %vm6588 = vweird.f32 %v870
    %v6589 = vadd.s32 %v6585, 3
    %v6590 = vand.u32 %v6589, 3
    %vm6591 = vcmp.lt.s32.totalorder %v6590, 2
    %vm6592 = vcmp.eq.s32.totalorder %v6590, 0
    %v6593 = vxor.u32 %v6587, 2147483648
    %v6594 = vsel %vm6592, %v6586, %v6593
    %vm6595 = vcmp.eq.s32.totalorder %v6590, 2
    %v6596 = vxor.u32 %v6586, 2147483648
    %v6597 = vsel %vm6595, %v6596, %v6587
    %v6598 = vsel %vm6591, %v6594, %v6597
    %v6599 = vsel %vm6588, nan, %v6598
    %v6600 = vand.u32 2147483647, %v871
    %vm6601 = vcmp.le.f32.partialorder %v6600, 0.7853982
    %vm6602 = vcmp.lt.s32.totalorder %v871, 0
    %v6603 = vand.u32 %v871, 2139095040
    %v6604 = vshrl.u32 %v6603, 23
    %v6605 = vsub.s32 %v6604, 127
    %v6606 = vand.u32 2147483647, %v871
    %v6607 = vand.u32 %v6606, 8388607
    %v6608 = vor.u32 %v6607, 8388608
    %v6609 = vsub.s32 0, %v6608
    %v6610 = vadd.s32 %v6605, 1
    %vm6611 = vcmp.gt.s32.totalorder %v6610, 0
    %v6612 = vsel %vm6611, %v6610, 0
    %v6613 = vshrl.u32 %v6612, 5
    %v6614 = vand.u32 %v6612, 31
    %v6615 = vsub.s32 32, %v6614
    %v6616 = vshrl.u32 683565275, %v6615
    %v6617 = vshll.u32 683565275, %v6614
    %v6618 = vshrl.u32 2475754826, %v6615
    %v6619 = vor.u32 %v6617, %v6618
    %v6620 = vshll.u32 2475754826, %v6614
    %v6621 = vshrl.u32 2131351028, %v6615
    %v6622 = vor.u32 %v6620, %v6621
    %v6623 = vshll.u32 2131351028, %v6614
    %v6624 = vshrl.u32 2102212464, %v6615
    %v6625 = vor.u32 %v6623, %v6624
    %v6626 = vshll.u32 2102212464, %v6614
    %v6627 = vshrl.u32 920167782, %v6615
    %v6628 = vor.u32 %v6626, %v6627
    %v6629 = vshll.u32 920167782, %v6614
    %v6630 = vshrl.u32 1326507024, %v6615
    %v6631 = vor.u32 %v6629, %v6630
    %vm6632 = vcmp.lt.s32.totalorder %v6613, 1
    %vm6633 = vcmp.lt.s32.totalorder %v6613, 2
    %vm6634 = vcmp.lt.s32.totalorder %v6613, 3
    %vm6635 = vcmp.lt.s32.totalorder %v6613, 4
    %v6636 = vsel %vm6632, %v6616, %v6619
    %v6637 = vsel %vm6635, %v6625, 2102212464
    %v6638 = vsel %vm6634, %v6622, %v6637
    %v6639 = vsel %vm6633, %v6636, %v6638
    %v6640 = vsel %vm6632, %v6619, %v6622
    %v6641 = vsel %vm6635, %v6628, 920167782
    %v6642 = vsel %vm6634, %v6625, %v6641
    %v6643 = vsel %vm6633, %v6640, %v6642
    %v6644 = vsel %vm6632, %v6622, %v6625
    %v6645 = vsel %vm6635, %v6631, 1326507024
    %v6646 = vsel %vm6634, %v6628, %v6645
    %v6647 = vsel %vm6633, %v6644, %v6646
    %v6648 = vshll.u32 %v6608, 8
    %v6649 = vmul.u32.u64.compose %v6648, %v6647
    %v6650 = vextract.low.u32 %v6649
    %v6651 = vextract.high.u32 %v6649
    %v6652 = vmul.u32.u64.compose %v6648, %v6643
    %v6653 = vextract.low.u32 %v6652
    %v6654 = vextract.high.u32 %v6652
    %v6655 = vmul.u32 %v6648, %v6639
    %v6656 = vadd.s32 %v6651, %v6653
    %vm6657 = vc.u32 %v6651, %v6653
    %v6658 = vadd.s32 %v6654, 1
    %v6659 = vsel %vm6657, %v6658, %v6654
    %v6660 = vadd.s32 %v6655, %v6659
    %v6661 = vadd.s32 %v6660, 536870912
    %v6662 = vshrl.u32 %v6661, 30
    %v6663 = vshll.u32 %v6662, 30
    %v6664 = vsub.s32 %v6660, %v6663
    %vm6665 = vcmp.lt.s32.totalorder %v6664, 0
    %v6666 = vsub.s32 0, %v6664
    %v6667 = vsel %vm6665, %v6666, %v6664
    %v6668 = vclz %v6667
    %v6669 = vsub.s32 %v6668, 2
    %vm6670 = vcmp.gt.s32.totalorder 0, %v6669
    %v6671 = vsel %vm6670, 0, %v6669
    %v6672 = vsub.s32 32, %v6671
    %v6673 = vshll.u32 %v6664, %v6671
    %v6674 = vshrl.u32 %v6656, %v6672
    %v6675 = vor.u32 %v6673, %v6674
    %v6676 = vsub.s32 4294967266, %v6671
    %v6677 = vadd.s32 %v6676, 127
    %v6678 = vshll.u32 %v6677, 23
    %v6679 = vor.u32 4788187, %v6678
    %v6680 = vand.u32 2147483647, %v6679
    %v6682 = vcvt.s32.f32 %v6675
    %v6683 = vmul.f32 %v6682, %v6680
    %v6684 = vxor.u32 %v6683, 2147483648
    %v6685 = vsel %vm6602, %v6684, %v6683
    %v6686 = vsub.s32 4, %v6662
    %v6687 = vsel %vm6602, %v6686, %v6662
    %v6688 = vsel %vm6601, %v871, %v6685
    %v6689 = vsel %vm6601, 0, %v6687
    %v6690 = vcosq.f32.pop %v6688
    %v6691 = vsinq.f32.pop %v6688
    %vm6692 = vweird.f32 %v871
    %v6693 = vadd.s32 %v6689, 3
    %v6694 = vand.u32 %v6693, 3
    %vm6695 = vcmp.lt.s32.totalorder %v6694, 2
    %vm6696 = vcmp.eq.s32.totalorder %v6694, 0
    %v6697 = vxor.u32 %v6691, 2147483648
    %v6698 = vsel %vm6696, %v6690, %v6697
    %vm6699 = vcmp.eq.s32.totalorder %v6694, 2
    %v6700 = vxor.u32 %v6690, 2147483648
    %v6701 = vsel %vm6699, %v6700, %v6691
    %v6702 = vsel %vm6695, %v6698, %v6701
    %v6703 = vsel %vm6692, nan, %v6702
    %v6704 = vand.u32 2147483647, %v872
    %vm6705 = vcmp.le.f32.partialorder %v6704, 0.7853982
    %vm6706 = vcmp.lt.s32.totalorder %v872, 0
    %v6707 = vand.u32 %v872, 2139095040
    %v6708 = vshrl.u32 %v6707, 23
    %v6709 = vsub.s32 %v6708, 127
    %v6710 = vand.u32 2147483647, %v872
    %v6711 = vand.u32 %v6710, 8388607
    %v6712 = vor.u32 %v6711, 8388608
    %v6713 = vsub.s32 0, %v6712
    %v6714 = vadd.s32 %v6709, 1
    %vm6715 = vcmp.gt.s32.totalorder %v6714, 0
    %v6716 = vsel %vm6715, %v6714, 0
    %v6717 = vshrl.u32 %v6716, 5
    %v6718 = vand.u32 %v6716, 31
    %v6719 = vsub.s32 32, %v6718
    %v6720 = vshrl.u32 683565275, %v6719
    %v6721 = vshll.u32 683565275, %v6718
    %v6722 = vshrl.u32 2475754826, %v6719
    %v6723 = vor.u32 %v6721, %v6722
    %v6724 = vshll.u32 2475754826, %v6718
    %v6725 = vshrl.u32 2131351028, %v6719
    %v6726 = vor.u32 %v6724, %v6725
    %v6727 = vshll.u32 2131351028, %v6718
    %v6728 = vshrl.u32 2102212464, %v6719
    %v6729 = vor.u32 %v6727, %v6728
    %v6730 = vshll.u32 2102212464, %v6718
    %v6731 = vshrl.u32 920167782, %v6719
    %v6732 = vor.u32 %v6730, %v6731
    %v6733 = vshll.u32 920167782, %v6718
    %v6734 = vshrl.u32 1326507024, %v6719
    %v6735 = vor.u32 %v6733, %v6734
    %vm6736 = vcmp.lt.s32.totalorder %v6717, 1
    %vm6737 = vcmp.lt.s32.totalorder %v6717, 2
    %vm6738 = vcmp.lt.s32.totalorder %v6717, 3
    %vm6739 = vcmp.lt.s32.totalorder %v6717, 4
    %v6740 = vsel %vm6736, %v6720, %v6723
    %v6741 = vsel %vm6739, %v6729, 2102212464
    %v6742 = vsel %vm6738, %v6726, %v6741
    %v6743 = vsel %vm6737, %v6740, %v6742
    %v6744 = vsel %vm6736, %v6723, %v6726
    %v6745 = vsel %vm6739, %v6732, 920167782
    %v6746 = vsel %vm6738, %v6729, %v6745
    %v6747 = vsel %vm6737, %v6744, %v6746
    %v6748 = vsel %vm6736, %v6726, %v6729
    %v6749 = vsel %vm6739, %v6735, 1326507024
    %v6750 = vsel %vm6738, %v6732, %v6749
    %v6751 = vsel %vm6737, %v6748, %v6750
    %v6752 = vshll.u32 %v6712, 8
    %v6753 = vmul.u32.u64.compose %v6752, %v6751
    %v6754 = vextract.low.u32 %v6753
    %v6755 = vextract.high.u32 %v6753
    %v6756 = vmul.u32.u64.compose %v6752, %v6747
    %v6757 = vextract.low.u32 %v6756
    %v6758 = vextract.high.u32 %v6756
    %v6759 = vmul.u32 %v6752, %v6743
    %v6760 = vadd.s32 %v6755, %v6757
    %vm6761 = vc.u32 %v6755, %v6757
    %v6762 = vadd.s32 %v6758, 1
    %v6763 = vsel %vm6761, %v6762, %v6758
    %v6764 = vadd.s32 %v6759, %v6763
    %v6765 = vadd.s32 %v6764, 536870912
    %v6766 = vshrl.u32 %v6765, 30
    %v6767 = vshll.u32 %v6766, 30
    %v6768 = vsub.s32 %v6764, %v6767
    %vm6769 = vcmp.lt.s32.totalorder %v6768, 0
    %v6770 = vsub.s32 0, %v6768
    %v6771 = vsel %vm6769, %v6770, %v6768
    %v6772 = vclz %v6771
    %v6773 = vsub.s32 %v6772, 2
    %vm6774 = vcmp.gt.s32.totalorder 0, %v6773
    %v6775 = vsel %vm6774, 0, %v6773
    %v6776 = vsub.s32 32, %v6775
    %v6777 = vshll.u32 %v6768, %v6775
    %v6778 = vshrl.u32 %v6760, %v6776
    %v6779 = vor.u32 %v6777, %v6778
    %v6780 = vsub.s32 4294967266, %v6775
    %v6781 = vadd.s32 %v6780, 127
    %v6782 = vshll.u32 %v6781, 23
    %v6783 = vor.u32 4788187, %v6782
    %v6784 = vand.u32 2147483647, %v6783
    %v6786 = vcvt.s32.f32 %v6779
    %v6787 = vmul.f32 %v6786, %v6784
    %v6788 = vxor.u32 %v6787, 2147483648
    %v6789 = vsel %vm6706, %v6788, %v6787
    %v6790 = vsub.s32 4, %v6766
    %v6791 = vsel %vm6706, %v6790, %v6766
    %v6792 = vsel %vm6705, %v872, %v6789
    %v6793 = vsel %vm6705, 0, %v6791
    %v6794 = vcosq.f32.pop %v6792
    %v6795 = vsinq.f32.pop %v6792
    %vm6796 = vweird.f32 %v872
    %v6797 = vadd.s32 %v6793, 3
    %v6798 = vand.u32 %v6797, 3
    %vm6799 = vcmp.lt.s32.totalorder %v6798, 2
    %vm6800 = vcmp.eq.s32.totalorder %v6798, 0
    %v6801 = vxor.u32 %v6795, 2147483648
    %v6802 = vsel %vm6800, %v6794, %v6801
    %vm6803 = vcmp.eq.s32.totalorder %v6798, 2
    %v6804 = vxor.u32 %v6794, 2147483648
    %v6805 = vsel %vm6803, %v6804, %v6795
    %v6806 = vsel %vm6799, %v6802, %v6805
    %v6807 = vsel %vm6796, nan, %v6806
    %v6808 = vand.u32 2147483647, %v873
    %vm6809 = vcmp.le.f32.partialorder %v6808, 0.7853982
    %vm6810 = vcmp.lt.s32.totalorder %v873, 0
    %v6811 = vand.u32 %v873, 2139095040
    %v6812 = vshrl.u32 %v6811, 23
    %v6813 = vsub.s32 %v6812, 127
    %v6814 = vand.u32 2147483647, %v873
    %v6815 = vand.u32 %v6814, 8388607
    %v6816 = vor.u32 %v6815, 8388608
    %v6817 = vsub.s32 0, %v6816
    %v6818 = vadd.s32 %v6813, 1
    %vm6819 = vcmp.gt.s32.totalorder %v6818, 0
    %v6820 = vsel %vm6819, %v6818, 0
    %v6821 = vshrl.u32 %v6820, 5
    %v6822 = vand.u32 %v6820, 31
    %v6823 = vsub.s32 32, %v6822
    %v6824 = vshrl.u32 683565275, %v6823
    %v6825 = vshll.u32 683565275, %v6822
    %v6826 = vshrl.u32 2475754826, %v6823
    %v6827 = vor.u32 %v6825, %v6826
    %v6828 = vshll.u32 2475754826, %v6822
    %v6829 = vshrl.u32 2131351028, %v6823
    %v6830 = vor.u32 %v6828, %v6829
    %v6831 = vshll.u32 2131351028, %v6822
    %v6832 = vshrl.u32 2102212464, %v6823
    %v6833 = vor.u32 %v6831, %v6832
    %v6834 = vshll.u32 2102212464, %v6822
    %v6835 = vshrl.u32 920167782, %v6823
    %v6836 = vor.u32 %v6834, %v6835
    %v6837 = vshll.u32 920167782, %v6822
    %v6838 = vshrl.u32 1326507024, %v6823
    %v6839 = vor.u32 %v6837, %v6838
    %vm6840 = vcmp.lt.s32.totalorder %v6821, 1
    %vm6841 = vcmp.lt.s32.totalorder %v6821, 2
    %vm6842 = vcmp.lt.s32.totalorder %v6821, 3
    %vm6843 = vcmp.lt.s32.totalorder %v6821, 4
    %v6844 = vsel %vm6840, %v6824, %v6827
    %v6845 = vsel %vm6843, %v6833, 2102212464
    %v6846 = vsel %vm6842, %v6830, %v6845
    %v6847 = vsel %vm6841, %v6844, %v6846
    %v6848 = vsel %vm6840, %v6827, %v6830
    %v6849 = vsel %vm6843, %v6836, 920167782
    %v6850 = vsel %vm6842, %v6833, %v6849
    %v6851 = vsel %vm6841, %v6848, %v6850
    %v6852 = vsel %vm6840, %v6830, %v6833
    %v6853 = vsel %vm6843, %v6839, 1326507024
    %v6854 = vsel %vm6842, %v6836, %v6853
    %v6855 = vsel %vm6841, %v6852, %v6854
    %v6856 = vshll.u32 %v6816, 8
    %v6857 = vmul.u32.u64.compose %v6856, %v6855
    %v6858 = vextract.low.u32 %v6857
    %v6859 = vextract.high.u32 %v6857
    %v6860 = vmul.u32.u64.compose %v6856, %v6851
    %v6861 = vextract.low.u32 %v6860
    %v6862 = vextract.high.u32 %v6860
    %v6863 = vmul.u32 %v6856, %v6847
    %v6864 = vadd.s32 %v6859, %v6861
    %vm6865 = vc.u32 %v6859, %v6861
    %v6866 = vadd.s32 %v6862, 1
    %v6867 = vsel %vm6865, %v6866, %v6862
    %v6868 = vadd.s32 %v6863, %v6867
    %v6869 = vadd.s32 %v6868, 536870912
    %v6870 = vshrl.u32 %v6869, 30
    %v6871 = vshll.u32 %v6870, 30
    %v6872 = vsub.s32 %v6868, %v6871
    %vm6873 = vcmp.lt.s32.totalorder %v6872, 0
    %v6874 = vsub.s32 0, %v6872
    %v6875 = vsel %vm6873, %v6874, %v6872
    %v6876 = vclz %v6875
    %v6877 = vsub.s32 %v6876, 2
    %vm6878 = vcmp.gt.s32.totalorder 0, %v6877
    %v6879 = vsel %vm6878, 0, %v6877
    %v6880 = vsub.s32 32, %v6879
    %v6881 = vshll.u32 %v6872, %v6879
    %v6882 = vshrl.u32 %v6864, %v6880
    %v6883 = vor.u32 %v6881, %v6882
    %v6884 = vsub.s32 4294967266, %v6879
    %v6885 = vadd.s32 %v6884, 127
    %v6886 = vshll.u32 %v6885, 23
    %v6887 = vor.u32 4788187, %v6886
    %v6888 = vand.u32 2147483647, %v6887
    %v6890 = vcvt.s32.f32 %v6883
    %v6891 = vmul.f32 %v6890, %v6888
    %v6892 = vxor.u32 %v6891, 2147483648
    %v6893 = vsel %vm6810, %v6892, %v6891
    %v6894 = vsub.s32 4, %v6870
    %v6895 = vsel %vm6810, %v6894, %v6870
    %v6896 = vsel %vm6809, %v873, %v6893
    %v6897 = vsel %vm6809, 0, %v6895
    %v6898 = vcosq.f32.pop %v6896
    %v6899 = vsinq.f32.pop %v6896
    %vm6900 = vweird.f32 %v873
    %v6901 = vadd.s32 %v6897, 3
    %v6902 = vand.u32 %v6901, 3
    %vm6903 = vcmp.lt.s32.totalorder %v6902, 2
    %vm6904 = vcmp.eq.s32.totalorder %v6902, 0
    %v6905 = vxor.u32 %v6899, 2147483648
    %v6906 = vsel %vm6904, %v6898, %v6905
    %vm6907 = vcmp.eq.s32.totalorder %v6902, 2
    %v6908 = vxor.u32 %v6898, 2147483648
    %v6909 = vsel %vm6907, %v6908, %v6899
    %v6910 = vsel %vm6903, %v6906, %v6909
    %v6911 = vsel %vm6900, nan, %v6910
    %v6912 = vand.u32 2147483647, %v874
    %vm6913 = vcmp.le.f32.partialorder %v6912, 0.7853982
    %vm6914 = vcmp.lt.s32.totalorder %v874, 0
    %v6915 = vand.u32 %v874, 2139095040
    %v6916 = vshrl.u32 %v6915, 23
    %v6917 = vsub.s32 %v6916, 127
    %v6918 = vand.u32 2147483647, %v874
    %v6919 = vand.u32 %v6918, 8388607
    %v6920 = vor.u32 %v6919, 8388608
    %v6921 = vsub.s32 0, %v6920
    %v6922 = vadd.s32 %v6917, 1
    %vm6923 = vcmp.gt.s32.totalorder %v6922, 0
    %v6924 = vsel %vm6923, %v6922, 0
    %v6925 = vshrl.u32 %v6924, 5
    %v6926 = vand.u32 %v6924, 31
    %v6927 = vsub.s32 32, %v6926
    %v6928 = vshrl.u32 683565275, %v6927
    %v6929 = vshll.u32 683565275, %v6926
    %v6930 = vshrl.u32 2475754826, %v6927
    %v6931 = vor.u32 %v6929, %v6930
    %v6932 = vshll.u32 2475754826, %v6926
    %v6933 = vshrl.u32 2131351028, %v6927
    %v6934 = vor.u32 %v6932, %v6933
    %v6935 = vshll.u32 2131351028, %v6926
    %v6936 = vshrl.u32 2102212464, %v6927
    %v6937 = vor.u32 %v6935, %v6936
    %v6938 = vshll.u32 2102212464, %v6926
    %v6939 = vshrl.u32 920167782, %v6927
    %v6940 = vor.u32 %v6938, %v6939
    %v6941 = vshll.u32 920167782, %v6926
    %v6942 = vshrl.u32 1326507024, %v6927
    %v6943 = vor.u32 %v6941, %v6942
    %vm6944 = vcmp.lt.s32.totalorder %v6925, 1
    %vm6945 = vcmp.lt.s32.totalorder %v6925, 2
    %vm6946 = vcmp.lt.s32.totalorder %v6925, 3
    %vm6947 = vcmp.lt.s32.totalorder %v6925, 4
    %v6948 = vsel %vm6944, %v6928, %v6931
    %v6949 = vsel %vm6947, %v6937, 2102212464
    %v6950 = vsel %vm6946, %v6934, %v6949
    %v6951 = vsel %vm6945, %v6948, %v6950
    %v6952 = vsel %vm6944, %v6931, %v6934
    %v6953 = vsel %vm6947, %v6940, 920167782
    %v6954 = vsel %vm6946, %v6937, %v6953
    %v6955 = vsel %vm6945, %v6952, %v6954
    %v6956 = vsel %vm6944, %v6934, %v6937
    %v6957 = vsel %vm6947, %v6943, 1326507024
    %v6958 = vsel %vm6946, %v6940, %v6957
    %v6959 = vsel %vm6945, %v6956, %v6958
    %v6960 = vshll.u32 %v6920, 8
    %v6961 = vmul.u32.u64.compose %v6960, %v6959
    %v6962 = vextract.low.u32 %v6961
    %v6963 = vextract.high.u32 %v6961
    %v6964 = vmul.u32.u64.compose %v6960, %v6955
    %v6965 = vextract.low.u32 %v6964
    %v6966 = vextract.high.u32 %v6964
    %v6967 = vmul.u32 %v6960, %v6951
    %v6968 = vadd.s32 %v6963, %v6965
    %vm6969 = vc.u32 %v6963, %v6965
    %v6970 = vadd.s32 %v6966, 1
    %v6971 = vsel %vm6969, %v6970, %v6966
    %v6972 = vadd.s32 %v6967, %v6971
    %v6973 = vadd.s32 %v6972, 536870912
    %v6974 = vshrl.u32 %v6973, 30
    %v6975 = vshll.u32 %v6974, 30
    %v6976 = vsub.s32 %v6972, %v6975
    %vm6977 = vcmp.lt.s32.totalorder %v6976, 0
    %v6978 = vsub.s32 0, %v6976
    %v6979 = vsel %vm6977, %v6978, %v6976
    %v6980 = vclz %v6979
    %v6981 = vsub.s32 %v6980, 2
    %vm6982 = vcmp.gt.s32.totalorder 0, %v6981
    %v6983 = vsel %vm6982, 0, %v6981
    %v6984 = vsub.s32 32, %v6983
    %v6985 = vshll.u32 %v6976, %v6983
    %v6986 = vshrl.u32 %v6968, %v6984
    %v6987 = vor.u32 %v6985, %v6986
    %v6988 = vsub.s32 4294967266, %v6983
    %v6989 = vadd.s32 %v6988, 127
    %v6990 = vshll.u32 %v6989, 23
    %v6991 = vor.u32 4788187, %v6990
    %v6992 = vand.u32 2147483647, %v6991
    %v6994 = vcvt.s32.f32 %v6987
    %v6995 = vmul.f32 %v6994, %v6992
    %v6996 = vxor.u32 %v6995, 2147483648
    %v6997 = vsel %vm6914, %v6996, %v6995
    %v6998 = vsub.s32 4, %v6974
    %v6999 = vsel %vm6914, %v6998, %v6974
    %v7000 = vsel %vm6913, %v874, %v6997
    %v7001 = vsel %vm6913, 0, %v6999
    %v7002 = vcosq.f32.pop %v7000
    %v7003 = vsinq.f32.pop %v7000
    %vm7004 = vweird.f32 %v874
    %v7005 = vadd.s32 %v7001, 3
    %v7006 = vand.u32 %v7005, 3
    %vm7007 = vcmp.lt.s32.totalorder %v7006, 2
    %vm7008 = vcmp.eq.s32.totalorder %v7006, 0
    %v7009 = vxor.u32 %v7003, 2147483648
    %v7010 = vsel %vm7008, %v7002, %v7009
    %vm7011 = vcmp.eq.s32.totalorder %v7006, 2
    %v7012 = vxor.u32 %v7002, 2147483648
    %v7013 = vsel %vm7011, %v7012, %v7003
    %v7014 = vsel %vm7007, %v7010, %v7013
    %v7015 = vsel %vm7004, nan, %v7014
    %v7016 = vand.u32 2147483647, %v875
    %vm7017 = vcmp.le.f32.partialorder %v7016, 0.7853982
    %vm7018 = vcmp.lt.s32.totalorder %v875, 0
    %v7019 = vand.u32 %v875, 2139095040
    %v7020 = vshrl.u32 %v7019, 23
    %v7021 = vsub.s32 %v7020, 127
    %v7022 = vand.u32 2147483647, %v875
    %v7023 = vand.u32 %v7022, 8388607
    %v7024 = vor.u32 %v7023, 8388608
    %v7025 = vsub.s32 0, %v7024
    %v7026 = vadd.s32 %v7021, 1
    %vm7027 = vcmp.gt.s32.totalorder %v7026, 0
    %v7028 = vsel %vm7027, %v7026, 0
    %v7029 = vshrl.u32 %v7028, 5
    %v7030 = vand.u32 %v7028, 31
    %v7031 = vsub.s32 32, %v7030
    %v7032 = vshrl.u32 683565275, %v7031
    %v7033 = vshll.u32 683565275, %v7030
    %v7034 = vshrl.u32 2475754826, %v7031
    %v7035 = vor.u32 %v7033, %v7034
    %v7036 = vshll.u32 2475754826, %v7030
    %v7037 = vshrl.u32 2131351028, %v7031
    %v7038 = vor.u32 %v7036, %v7037
    %v7039 = vshll.u32 2131351028, %v7030
    %v7040 = vshrl.u32 2102212464, %v7031
    %v7041 = vor.u32 %v7039, %v7040
    %v7042 = vshll.u32 2102212464, %v7030
    %v7043 = vshrl.u32 920167782, %v7031
    %v7044 = vor.u32 %v7042, %v7043
    %v7045 = vshll.u32 920167782, %v7030
    %v7046 = vshrl.u32 1326507024, %v7031
    %v7047 = vor.u32 %v7045, %v7046
    %vm7048 = vcmp.lt.s32.totalorder %v7029, 1
    %vm7049 = vcmp.lt.s32.totalorder %v7029, 2
    %vm7050 = vcmp.lt.s32.totalorder %v7029, 3
    %vm7051 = vcmp.lt.s32.totalorder %v7029, 4
    %v7052 = vsel %vm7048, %v7032, %v7035
    %v7053 = vsel %vm7051, %v7041, 2102212464
    %v7054 = vsel %vm7050, %v7038, %v7053
    %v7055 = vsel %vm7049, %v7052, %v7054
    %v7056 = vsel %vm7048, %v7035, %v7038
    %v7057 = vsel %vm7051, %v7044, 920167782
    %v7058 = vsel %vm7050, %v7041, %v7057
    %v7059 = vsel %vm7049, %v7056, %v7058
    %v7060 = vsel %vm7048, %v7038, %v7041
    %v7061 = vsel %vm7051, %v7047, 1326507024
    %v7062 = vsel %vm7050, %v7044, %v7061
    %v7063 = vsel %vm7049, %v7060, %v7062
    %v7064 = vshll.u32 %v7024, 8
    %v7065 = vmul.u32.u64.compose %v7064, %v7063
    %v7066 = vextract.low.u32 %v7065
    %v7067 = vextract.high.u32 %v7065
    %v7068 = vmul.u32.u64.compose %v7064, %v7059
    %v7069 = vextract.low.u32 %v7068
    %v7070 = vextract.high.u32 %v7068
    %v7071 = vmul.u32 %v7064, %v7055
    %v7072 = vadd.s32 %v7067, %v7069
    %vm7073 = vc.u32 %v7067, %v7069
    %v7074 = vadd.s32 %v7070, 1
    %v7075 = vsel %vm7073, %v7074, %v7070
    %v7076 = vadd.s32 %v7071, %v7075
    %v7077 = vadd.s32 %v7076, 536870912
    %v7078 = vshrl.u32 %v7077, 30
    %v7079 = vshll.u32 %v7078, 30
    %v7080 = vsub.s32 %v7076, %v7079
    %vm7081 = vcmp.lt.s32.totalorder %v7080, 0
    %v7082 = vsub.s32 0, %v7080
    %v7083 = vsel %vm7081, %v7082, %v7080
    %v7084 = vclz %v7083
    %v7085 = vsub.s32 %v7084, 2
    %vm7086 = vcmp.gt.s32.totalorder 0, %v7085
    %v7087 = vsel %vm7086, 0, %v7085
    %v7088 = vsub.s32 32, %v7087
    %v7089 = vshll.u32 %v7080, %v7087
    %v7090 = vshrl.u32 %v7072, %v7088
    %v7091 = vor.u32 %v7089, %v7090
    %v7092 = vsub.s32 4294967266, %v7087
    %v7093 = vadd.s32 %v7092, 127
    %v7094 = vshll.u32 %v7093, 23
    %v7095 = vor.u32 4788187, %v7094
    %v7096 = vand.u32 2147483647, %v7095
    %v7098 = vcvt.s32.f32 %v7091
    %v7099 = vmul.f32 %v7098, %v7096
    %v7100 = vxor.u32 %v7099, 2147483648
    %v7101 = vsel %vm7018, %v7100, %v7099
    %v7102 = vsub.s32 4, %v7078
    %v7103 = vsel %vm7018, %v7102, %v7078
    %v7104 = vsel %vm7017, %v875, %v7101
    %v7105 = vsel %vm7017, 0, %v7103
    %v7106 = vcosq.f32.pop %v7104
    %v7107 = vsinq.f32.pop %v7104
    %vm7108 = vweird.f32 %v875
    %v7109 = vadd.s32 %v7105, 3
    %v7110 = vand.u32 %v7109, 3
    %vm7111 = vcmp.lt.s32.totalorder %v7110, 2
    %vm7112 = vcmp.eq.s32.totalorder %v7110, 0
    %v7113 = vxor.u32 %v7107, 2147483648
    %v7114 = vsel %vm7112, %v7106, %v7113
    %vm7115 = vcmp.eq.s32.totalorder %v7110, 2
    %v7116 = vxor.u32 %v7106, 2147483648
    %v7117 = vsel %vm7115, %v7116, %v7107
    %v7118 = vsel %vm7111, %v7114, %v7117
    %v7119 = vsel %vm7108, nan, %v7118
    %v7120 = vand.u32 2147483647, %v876
    %vm7121 = vcmp.le.f32.partialorder %v7120, 0.7853982
    %vm7122 = vcmp.lt.s32.totalorder %v876, 0
    %v7123 = vand.u32 %v876, 2139095040
    %v7124 = vshrl.u32 %v7123, 23
    %v7125 = vsub.s32 %v7124, 127
    %v7126 = vand.u32 2147483647, %v876
    %v7127 = vand.u32 %v7126, 8388607
    %v7128 = vor.u32 %v7127, 8388608
    %v7129 = vsub.s32 0, %v7128
    %v7130 = vadd.s32 %v7125, 1
    %vm7131 = vcmp.gt.s32.totalorder %v7130, 0
    %v7132 = vsel %vm7131, %v7130, 0
    %v7133 = vshrl.u32 %v7132, 5
    %v7134 = vand.u32 %v7132, 31
    %v7135 = vsub.s32 32, %v7134
    %v7136 = vshrl.u32 683565275, %v7135
    %v7137 = vshll.u32 683565275, %v7134
    %v7138 = vshrl.u32 2475754826, %v7135
    %v7139 = vor.u32 %v7137, %v7138
    %v7140 = vshll.u32 2475754826, %v7134
    %v7141 = vshrl.u32 2131351028, %v7135
    %v7142 = vor.u32 %v7140, %v7141
    %v7143 = vshll.u32 2131351028, %v7134
    %v7144 = vshrl.u32 2102212464, %v7135
    %v7145 = vor.u32 %v7143, %v7144
    %v7146 = vshll.u32 2102212464, %v7134
    %v7147 = vshrl.u32 920167782, %v7135
    %v7148 = vor.u32 %v7146, %v7147
    %v7149 = vshll.u32 920167782, %v7134
    %v7150 = vshrl.u32 1326507024, %v7135
    %v7151 = vor.u32 %v7149, %v7150
    %vm7152 = vcmp.lt.s32.totalorder %v7133, 1
    %vm7153 = vcmp.lt.s32.totalorder %v7133, 2
    %vm7154 = vcmp.lt.s32.totalorder %v7133, 3
    %vm7155 = vcmp.lt.s32.totalorder %v7133, 4
    %v7156 = vsel %vm7152, %v7136, %v7139
    %v7157 = vsel %vm7155, %v7145, 2102212464
    %v7158 = vsel %vm7154, %v7142, %v7157
    %v7159 = vsel %vm7153, %v7156, %v7158
    %v7160 = vsel %vm7152, %v7139, %v7142
    %v7161 = vsel %vm7155, %v7148, 920167782
    %v7162 = vsel %vm7154, %v7145, %v7161
    %v7163 = vsel %vm7153, %v7160, %v7162
    %v7164 = vsel %vm7152, %v7142, %v7145
    %v7165 = vsel %vm7155, %v7151, 1326507024
    %v7166 = vsel %vm7154, %v7148, %v7165
    %v7167 = vsel %vm7153, %v7164, %v7166
    %v7168 = vshll.u32 %v7128, 8
    %v7169 = vmul.u32.u64.compose %v7168, %v7167
    %v7170 = vextract.low.u32 %v7169
    %v7171 = vextract.high.u32 %v7169
    %v7172 = vmul.u32.u64.compose %v7168, %v7163
    %v7173 = vextract.low.u32 %v7172
    %v7174 = vextract.high.u32 %v7172
    %v7175 = vmul.u32 %v7168, %v7159
    %v7176 = vadd.s32 %v7171, %v7173
    %vm7177 = vc.u32 %v7171, %v7173
    %v7178 = vadd.s32 %v7174, 1
    %v7179 = vsel %vm7177, %v7178, %v7174
    %v7180 = vadd.s32 %v7175, %v7179
    %v7181 = vadd.s32 %v7180, 536870912
    %v7182 = vshrl.u32 %v7181, 30
    %v7183 = vshll.u32 %v7182, 30
    %v7184 = vsub.s32 %v7180, %v7183
    %vm7185 = vcmp.lt.s32.totalorder %v7184, 0
    %v7186 = vsub.s32 0, %v7184
    %v7187 = vsel %vm7185, %v7186, %v7184
    %v7188 = vclz %v7187
    %v7189 = vsub.s32 %v7188, 2
    %vm7190 = vcmp.gt.s32.totalorder 0, %v7189
    %v7191 = vsel %vm7190, 0, %v7189
    %v7192 = vsub.s32 32, %v7191
    %v7193 = vshll.u32 %v7184, %v7191
    %v7194 = vshrl.u32 %v7176, %v7192
    %v7195 = vor.u32 %v7193, %v7194
    %v7196 = vsub.s32 4294967266, %v7191
    %v7197 = vadd.s32 %v7196, 127
    %v7198 = vshll.u32 %v7197, 23
    %v7199 = vor.u32 4788187, %v7198
    %v7200 = vand.u32 2147483647, %v7199
    %v7202 = vcvt.s32.f32 %v7195
    %v7203 = vmul.f32 %v7202, %v7200
    %v7204 = vxor.u32 %v7203, 2147483648
    %v7205 = vsel %vm7122, %v7204, %v7203
    %v7206 = vsub.s32 4, %v7182
    %v7207 = vsel %vm7122, %v7206, %v7182
    %v7208 = vsel %vm7121, %v876, %v7205
    %v7209 = vsel %vm7121, 0, %v7207
    %v7210 = vcosq.f32.pop %v7208
    %v7211 = vsinq.f32.pop %v7208
    %vm7212 = vweird.f32 %v876
    %v7213 = vadd.s32 %v7209, 3
    %v7214 = vand.u32 %v7213, 3
    %vm7215 = vcmp.lt.s32.totalorder %v7214, 2
    %vm7216 = vcmp.eq.s32.totalorder %v7214, 0
    %v7217 = vxor.u32 %v7211, 2147483648
    %v7218 = vsel %vm7216, %v7210, %v7217
    %vm7219 = vcmp.eq.s32.totalorder %v7214, 2
    %v7220 = vxor.u32 %v7210, 2147483648
    %v7221 = vsel %vm7219, %v7220, %v7211
    %v7222 = vsel %vm7215, %v7218, %v7221
    %v7223 = vsel %vm7212, nan, %v7222
    %v7224 = vand.u32 2147483647, %v877
    %vm7225 = vcmp.le.f32.partialorder %v7224, 0.7853982
    %vm7226 = vcmp.lt.s32.totalorder %v877, 0
    %v7227 = vand.u32 %v877, 2139095040
    %v7228 = vshrl.u32 %v7227, 23
    %v7229 = vsub.s32 %v7228, 127
    %v7230 = vand.u32 2147483647, %v877
    %v7231 = vand.u32 %v7230, 8388607
    %v7232 = vor.u32 %v7231, 8388608
    %v7233 = vsub.s32 0, %v7232
    %v7234 = vadd.s32 %v7229, 1
    %vm7235 = vcmp.gt.s32.totalorder %v7234, 0
    %v7236 = vsel %vm7235, %v7234, 0
    %v7237 = vshrl.u32 %v7236, 5
    %v7238 = vand.u32 %v7236, 31
    %v7239 = vsub.s32 32, %v7238
    %v7240 = vshrl.u32 683565275, %v7239
    %v7241 = vshll.u32 683565275, %v7238
    %v7242 = vshrl.u32 2475754826, %v7239
    %v7243 = vor.u32 %v7241, %v7242
    %v7244 = vshll.u32 2475754826, %v7238
    %v7245 = vshrl.u32 2131351028, %v7239
    %v7246 = vor.u32 %v7244, %v7245
    %v7247 = vshll.u32 2131351028, %v7238
    %v7248 = vshrl.u32 2102212464, %v7239
    %v7249 = vor.u32 %v7247, %v7248
    %v7250 = vshll.u32 2102212464, %v7238
    %v7251 = vshrl.u32 920167782, %v7239
    %v7252 = vor.u32 %v7250, %v7251
    %v7253 = vshll.u32 920167782, %v7238
    %v7254 = vshrl.u32 1326507024, %v7239
    %v7255 = vor.u32 %v7253, %v7254
    %vm7256 = vcmp.lt.s32.totalorder %v7237, 1
    %vm7257 = vcmp.lt.s32.totalorder %v7237, 2
    %vm7258 = vcmp.lt.s32.totalorder %v7237, 3
    %vm7259 = vcmp.lt.s32.totalorder %v7237, 4
    %v7260 = vsel %vm7256, %v7240, %v7243
    %v7261 = vsel %vm7259, %v7249, 2102212464
    %v7262 = vsel %vm7258, %v7246, %v7261
    %v7263 = vsel %vm7257, %v7260, %v7262
    %v7264 = vsel %vm7256, %v7243, %v7246
    %v7265 = vsel %vm7259, %v7252, 920167782
    %v7266 = vsel %vm7258, %v7249, %v7265
    %v7267 = vsel %vm7257, %v7264, %v7266
    %v7268 = vsel %vm7256, %v7246, %v7249
    %v7269 = vsel %vm7259, %v7255, 1326507024
    %v7270 = vsel %vm7258, %v7252, %v7269
    %v7271 = vsel %vm7257, %v7268, %v7270
    %v7272 = vshll.u32 %v7232, 8
    %v7273 = vmul.u32.u64.compose %v7272, %v7271
    %v7274 = vextract.low.u32 %v7273
    %v7275 = vextract.high.u32 %v7273
    %v7276 = vmul.u32.u64.compose %v7272, %v7267
    %v7277 = vextract.low.u32 %v7276
    %v7278 = vextract.high.u32 %v7276
    %v7279 = vmul.u32 %v7272, %v7263
    %v7280 = vadd.s32 %v7275, %v7277
    %vm7281 = vc.u32 %v7275, %v7277
    %v7282 = vadd.s32 %v7278, 1
    %v7283 = vsel %vm7281, %v7282, %v7278
    %v7284 = vadd.s32 %v7279, %v7283
    %v7285 = vadd.s32 %v7284, 536870912
    %v7286 = vshrl.u32 %v7285, 30
    %v7287 = vshll.u32 %v7286, 30
    %v7288 = vsub.s32 %v7284, %v7287
    %vm7289 = vcmp.lt.s32.totalorder %v7288, 0
    %v7290 = vsub.s32 0, %v7288
    %v7291 = vsel %vm7289, %v7290, %v7288
    %v7292 = vclz %v7291
    %v7293 = vsub.s32 %v7292, 2
    %vm7294 = vcmp.gt.s32.totalorder 0, %v7293
    %v7295 = vsel %vm7294, 0, %v7293
    %v7296 = vsub.s32 32, %v7295
    %v7297 = vshll.u32 %v7288, %v7295
    %v7298 = vshrl.u32 %v7280, %v7296
    %v7299 = vor.u32 %v7297, %v7298
    %v7300 = vsub.s32 4294967266, %v7295
    %v7301 = vadd.s32 %v7300, 127
    %v7302 = vshll.u32 %v7301, 23
    %v7303 = vor.u32 4788187, %v7302
    %v7304 = vand.u32 2147483647, %v7303
    %v7306 = vcvt.s32.f32 %v7299
    %v7307 = vmul.f32 %v7306, %v7304
    %v7308 = vxor.u32 %v7307, 2147483648
    %v7309 = vsel %vm7226, %v7308, %v7307
    %v7310 = vsub.s32 4, %v7286
    %v7311 = vsel %vm7226, %v7310, %v7286
    %v7312 = vsel %vm7225, %v877, %v7309
    %v7313 = vsel %vm7225, 0, %v7311
    %v7314 = vcosq.f32.pop %v7312
    %v7315 = vsinq.f32.pop %v7312
    %vm7316 = vweird.f32 %v877
    %v7317 = vadd.s32 %v7313, 3
    %v7318 = vand.u32 %v7317, 3
    %vm7319 = vcmp.lt.s32.totalorder %v7318, 2
    %vm7320 = vcmp.eq.s32.totalorder %v7318, 0
    %v7321 = vxor.u32 %v7315, 2147483648
    %v7322 = vsel %vm7320, %v7314, %v7321
    %vm7323 = vcmp.eq.s32.totalorder %v7318, 2
    %v7324 = vxor.u32 %v7314, 2147483648
    %v7325 = vsel %vm7323, %v7324, %v7315
    %v7326 = vsel %vm7319, %v7322, %v7325
    %v7327 = vsel %vm7316, nan, %v7326
    %v7328 = vand.u32 2147483647, %v878
    %vm7329 = vcmp.le.f32.partialorder %v7328, 0.7853982
    %vm7330 = vcmp.lt.s32.totalorder %v878, 0
    %v7331 = vand.u32 %v878, 2139095040
    %v7332 = vshrl.u32 %v7331, 23
    %v7333 = vsub.s32 %v7332, 127
    %v7334 = vand.u32 2147483647, %v878
    %v7335 = vand.u32 %v7334, 8388607
    %v7336 = vor.u32 %v7335, 8388608
    %v7337 = vsub.s32 0, %v7336
    %v7338 = vadd.s32 %v7333, 1
    %vm7339 = vcmp.gt.s32.totalorder %v7338, 0
    %v7340 = vsel %vm7339, %v7338, 0
    %v7341 = vshrl.u32 %v7340, 5
    %v7342 = vand.u32 %v7340, 31
    %v7343 = vsub.s32 32, %v7342
    %v7344 = vshrl.u32 683565275, %v7343
    %v7345 = vshll.u32 683565275, %v7342
    %v7346 = vshrl.u32 2475754826, %v7343
    %v7347 = vor.u32 %v7345, %v7346
    %v7348 = vshll.u32 2475754826, %v7342
    %v7349 = vshrl.u32 2131351028, %v7343
    %v7350 = vor.u32 %v7348, %v7349
    %v7351 = vshll.u32 2131351028, %v7342
    %v7352 = vshrl.u32 2102212464, %v7343
    %v7353 = vor.u32 %v7351, %v7352
    %v7354 = vshll.u32 2102212464, %v7342
    %v7355 = vshrl.u32 920167782, %v7343
    %v7356 = vor.u32 %v7354, %v7355
    %v7357 = vshll.u32 920167782, %v7342
    %v7358 = vshrl.u32 1326507024, %v7343
    %v7359 = vor.u32 %v7357, %v7358
    %vm7360 = vcmp.lt.s32.totalorder %v7341, 1
    %vm7361 = vcmp.lt.s32.totalorder %v7341, 2
    %vm7362 = vcmp.lt.s32.totalorder %v7341, 3
    %vm7363 = vcmp.lt.s32.totalorder %v7341, 4
    %v7364 = vsel %vm7360, %v7344, %v7347
    %v7365 = vsel %vm7363, %v7353, 2102212464
    %v7366 = vsel %vm7362, %v7350, %v7365
    %v7367 = vsel %vm7361, %v7364, %v7366
    %v7368 = vsel %vm7360, %v7347, %v7350
    %v7369 = vsel %vm7363, %v7356, 920167782
    %v7370 = vsel %vm7362, %v7353, %v7369
    %v7371 = vsel %vm7361, %v7368, %v7370
    %v7372 = vsel %vm7360, %v7350, %v7353
    %v7373 = vsel %vm7363, %v7359, 1326507024
    %v7374 = vsel %vm7362, %v7356, %v7373
    %v7375 = vsel %vm7361, %v7372, %v7374
    %v7376 = vshll.u32 %v7336, 8
    %v7377 = vmul.u32.u64.compose %v7376, %v7375
    %v7378 = vextract.low.u32 %v7377
    %v7379 = vextract.high.u32 %v7377
    %v7380 = vmul.u32.u64.compose %v7376, %v7371
    %v7381 = vextract.low.u32 %v7380
    %v7382 = vextract.high.u32 %v7380
    %v7383 = vmul.u32 %v7376, %v7367
    %v7384 = vadd.s32 %v7379, %v7381
    %vm7385 = vc.u32 %v7379, %v7381
    %v7386 = vadd.s32 %v7382, 1
    %v7387 = vsel %vm7385, %v7386, %v7382
    %v7388 = vadd.s32 %v7383, %v7387
    %v7389 = vadd.s32 %v7388, 536870912
    %v7390 = vshrl.u32 %v7389, 30
    %v7391 = vshll.u32 %v7390, 30
    %v7392 = vsub.s32 %v7388, %v7391
    %vm7393 = vcmp.lt.s32.totalorder %v7392, 0
    %v7394 = vsub.s32 0, %v7392
    %v7395 = vsel %vm7393, %v7394, %v7392
    %v7396 = vclz %v7395
    %v7397 = vsub.s32 %v7396, 2
    %vm7398 = vcmp.gt.s32.totalorder 0, %v7397
    %v7399 = vsel %vm7398, 0, %v7397
    %v7400 = vsub.s32 32, %v7399
    %v7401 = vshll.u32 %v7392, %v7399
    %v7402 = vshrl.u32 %v7384, %v7400
    %v7403 = vor.u32 %v7401, %v7402
    %v7404 = vsub.s32 4294967266, %v7399
    %v7405 = vadd.s32 %v7404, 127
    %v7406 = vshll.u32 %v7405, 23
    %v7407 = vor.u32 4788187, %v7406
    %v7408 = vand.u32 2147483647, %v7407
    %v7410 = vcvt.s32.f32 %v7403
    %v7411 = vmul.f32 %v7410, %v7408
    %v7412 = vxor.u32 %v7411, 2147483648
    %v7413 = vsel %vm7330, %v7412, %v7411
    %v7414 = vsub.s32 4, %v7390
    %v7415 = vsel %vm7330, %v7414, %v7390
    %v7416 = vsel %vm7329, %v878, %v7413
    %v7417 = vsel %vm7329, 0, %v7415
    %v7418 = vcosq.f32.pop %v7416
    %v7419 = vsinq.f32.pop %v7416
    %vm7420 = vweird.f32 %v878
    %v7421 = vadd.s32 %v7417, 3
    %v7422 = vand.u32 %v7421, 3
    %vm7423 = vcmp.lt.s32.totalorder %v7422, 2
    %vm7424 = vcmp.eq.s32.totalorder %v7422, 0
    %v7425 = vxor.u32 %v7419, 2147483648
    %v7426 = vsel %vm7424, %v7418, %v7425
    %vm7427 = vcmp.eq.s32.totalorder %v7422, 2
    %v7428 = vxor.u32 %v7418, 2147483648
    %v7429 = vsel %vm7427, %v7428, %v7419
    %v7430 = vsel %vm7423, %v7426, %v7429
    %v7431 = vsel %vm7420, nan, %v7430
    %v7432 = vand.u32 2147483647, %v879
    %vm7433 = vcmp.le.f32.partialorder %v7432, 0.7853982
    %vm7434 = vcmp.lt.s32.totalorder %v879, 0
    %v7435 = vand.u32 %v879, 2139095040
    %v7436 = vshrl.u32 %v7435, 23
    %v7437 = vsub.s32 %v7436, 127
    %v7438 = vand.u32 2147483647, %v879
    %v7439 = vand.u32 %v7438, 8388607
    %v7440 = vor.u32 %v7439, 8388608
    %v7441 = vsub.s32 0, %v7440
    %v7442 = vadd.s32 %v7437, 1
    %vm7443 = vcmp.gt.s32.totalorder %v7442, 0
    %v7444 = vsel %vm7443, %v7442, 0
    %v7445 = vshrl.u32 %v7444, 5
    %v7446 = vand.u32 %v7444, 31
    %v7447 = vsub.s32 32, %v7446
    %v7448 = vshrl.u32 683565275, %v7447
    %v7449 = vshll.u32 683565275, %v7446
    %v7450 = vshrl.u32 2475754826, %v7447
    %v7451 = vor.u32 %v7449, %v7450
    %v7452 = vshll.u32 2475754826, %v7446
    %v7453 = vshrl.u32 2131351028, %v7447
    %v7454 = vor.u32 %v7452, %v7453
    %v7455 = vshll.u32 2131351028, %v7446
    %v7456 = vshrl.u32 2102212464, %v7447
    %v7457 = vor.u32 %v7455, %v7456
    %v7458 = vshll.u32 2102212464, %v7446
    %v7459 = vshrl.u32 920167782, %v7447
    %v7460 = vor.u32 %v7458, %v7459
    %v7461 = vshll.u32 920167782, %v7446
    %v7462 = vshrl.u32 1326507024, %v7447
    %v7463 = vor.u32 %v7461, %v7462
    %vm7464 = vcmp.lt.s32.totalorder %v7445, 1
    %vm7465 = vcmp.lt.s32.totalorder %v7445, 2
    %vm7466 = vcmp.lt.s32.totalorder %v7445, 3
    %vm7467 = vcmp.lt.s32.totalorder %v7445, 4
    %v7468 = vsel %vm7464, %v7448, %v7451
    %v7469 = vsel %vm7467, %v7457, 2102212464
    %v7470 = vsel %vm7466, %v7454, %v7469
    %v7471 = vsel %vm7465, %v7468, %v7470
    %v7472 = vsel %vm7464, %v7451, %v7454
    %v7473 = vsel %vm7467, %v7460, 920167782
    %v7474 = vsel %vm7466, %v7457, %v7473
    %v7475 = vsel %vm7465, %v7472, %v7474
    %v7476 = vsel %vm7464, %v7454, %v7457
    %v7477 = vsel %vm7467, %v7463, 1326507024
    %v7478 = vsel %vm7466, %v7460, %v7477
    %v7479 = vsel %vm7465, %v7476, %v7478
    %v7480 = vshll.u32 %v7440, 8
    %v7481 = vmul.u32.u64.compose %v7480, %v7479
    %v7482 = vextract.low.u32 %v7481
    %v7483 = vextract.high.u32 %v7481
    %v7484 = vmul.u32.u64.compose %v7480, %v7475
    %v7485 = vextract.low.u32 %v7484
    %v7486 = vextract.high.u32 %v7484
    %v7487 = vmul.u32 %v7480, %v7471
    %v7488 = vadd.s32 %v7483, %v7485
    %vm7489 = vc.u32 %v7483, %v7485
    %v7490 = vadd.s32 %v7486, 1
    %v7491 = vsel %vm7489, %v7490, %v7486
    %v7492 = vadd.s32 %v7487, %v7491
    %v7493 = vadd.s32 %v7492, 536870912
    %v7494 = vshrl.u32 %v7493, 30
    %v7495 = vshll.u32 %v7494, 30
    %v7496 = vsub.s32 %v7492, %v7495
    %vm7497 = vcmp.lt.s32.totalorder %v7496, 0
    %v7498 = vsub.s32 0, %v7496
    %v7499 = vsel %vm7497, %v7498, %v7496
    %v7500 = vclz %v7499
    %v7501 = vsub.s32 %v7500, 2
    %vm7502 = vcmp.gt.s32.totalorder 0, %v7501
    %v7503 = vsel %vm7502, 0, %v7501
    %v7504 = vsub.s32 32, %v7503
    %v7505 = vshll.u32 %v7496, %v7503
    %v7506 = vshrl.u32 %v7488, %v7504
    %v7507 = vor.u32 %v7505, %v7506
    %v7508 = vsub.s32 4294967266, %v7503
    %v7509 = vadd.s32 %v7508, 127
    %v7510 = vshll.u32 %v7509, 23
    %v7511 = vor.u32 4788187, %v7510
    %v7512 = vand.u32 2147483647, %v7511
    %v7514 = vcvt.s32.f32 %v7507
    %v7515 = vmul.f32 %v7514, %v7512
    %v7516 = vxor.u32 %v7515, 2147483648
    %v7517 = vsel %vm7434, %v7516, %v7515
    %v7518 = vsub.s32 4, %v7494
    %v7519 = vsel %vm7434, %v7518, %v7494
    %v7520 = vsel %vm7433, %v879, %v7517
    %v7521 = vsel %vm7433, 0, %v7519
    %v7522 = vcosq.f32.pop %v7520
    %v7523 = vsinq.f32.pop %v7520
    %vm7524 = vweird.f32 %v879
    %v7525 = vadd.s32 %v7521, 3
    %v7526 = vand.u32 %v7525, 3
    %vm7527 = vcmp.lt.s32.totalorder %v7526, 2
    %vm7528 = vcmp.eq.s32.totalorder %v7526, 0
    %v7529 = vxor.u32 %v7523, 2147483648
    %v7530 = vsel %vm7528, %v7522, %v7529
    %vm7531 = vcmp.eq.s32.totalorder %v7526, 2
    %v7532 = vxor.u32 %v7522, 2147483648
    %v7533 = vsel %vm7531, %v7532, %v7523
    %v7534 = vsel %vm7527, %v7530, %v7533
    %v7535 = vsel %vm7524, nan, %v7534
    %7536 = vst [vmem:[#allocation4] sm:$0xff] %v4311
    %7537 = vst [vmem:[#allocation4 + $0x8] sm:$0xff] %v4415
    %7538 = vst [vmem:[#allocation4 + $0x10] sm:$0xff] %v4519
    %7539 = vst [vmem:[#allocation4 + $0x18] sm:$0xff] %v4623
    %7540 = vst [vmem:[#allocation4 + $0x20] sm:$0xff] %v4727
    %7541 = vst [vmem:[#allocation4 + $0x28] sm:$0xff] %v4831
    %7542 = vst [vmem:[#allocation4 + $0x30] sm:$0xff] %v4935
    %7543 = vst [vmem:[#allocation4 + $0x38] sm:$0xff] %v5039
    %7544 = vst [vmem:[#allocation4 + $0x40] sm:$0xff] %v5143
    %7545 = vst [vmem:[#allocation4 + $0x48] sm:$0xff] %v5247
    %7546 = vst [vmem:[#allocation4 + $0x50] sm:$0xff] %v5351
    %7547 = vst [vmem:[#allocation4 + $0x58] sm:$0xff] %v5455
    %7548 = vst [vmem:[#allocation4 + $0x60] sm:$0xff] %v5559
    %7549 = vst [vmem:[#allocation4 + $0x68] sm:$0xff] %v5663
    %7550 = vst [vmem:[#allocation4 + $0x70] sm:$0xff] %v5767
    %7551 = vst [vmem:[#allocation4 + $0x78] sm:$0xff] %v5871
    %7552 = vst [vmem:[#allocation4 + $0x80] sm:$0xff] %v5975
    %7553 = vst [vmem:[#allocation4 + $0x88] sm:$0xff] %v6079
    %7554 = vst [vmem:[#allocation4 + $0x90] sm:$0xff] %v6183
    %7555 = vst [vmem:[#allocation4 + $0x98] sm:$0xff] %v6287
    %7556 = vst [vmem:[#allocation4 + $0xa0] sm:$0xff] %v6391
    %7557 = vst [vmem:[#allocation4 + $0xa8] sm:$0xff] %v6495
    %7558 = vst [vmem:[#allocation4 + $0xb0] sm:$0xff] %v6599
    %7559 = vst [vmem:[#allocation4 + $0xb8] sm:$0xff] %v6703
    %7560 = vst [vmem:[#allocation4 + $0xc0] sm:$0xff] %v6807
    %7561 = vst [vmem:[#allocation4 + $0xc8] sm:$0xff] %v6911
    %7562 = vst [vmem:[#allocation4 + $0xd0] sm:$0xff] %v7015
    %7563 = vst [vmem:[#allocation4 + $0xd8] sm:$0xff] %v7119
    %7564 = vst [vmem:[#allocation4 + $0xe0] sm:$0xff] %v7223
    %7565 = vst [vmem:[#allocation4 + $0xe8] sm:$0xff] %v7327
    %7566 = vst [vmem:[#allocation4 + $0xf0] sm:$0xff] %v7431
    %7567 = vst [vmem:[#allocation4 + $0xf8] sm:$0xff] %v7535
    // Predicated region
    $region14: #{tpu_custom_call.1} parent=1 // pred_check
      _
    $region15: #{tpu_custom_call.1} parent=1 // pred_check_branch
      %7569 = sbr.rel (0) target = $region17
    $region16: #{tpu_custom_call.1} parent=1 // pred_region
      %s7571 = ssub.s32 4096, 4096
      %7572 = vsyncadd [#allocation3], %s7571
      %s7573 = sshll.u32 [#allocation2], 4
      %s7574 = int_to_ptr.vmem [resolvable:$true] %s7573
      %7579 = dma.vmem_to_hbm [thread:$0]  %s7574, 4096, %s3, [#allocation3], 128, 128, 8
    $region17: #{tpu_custom_call.1} parent=1 // pred_fallthru
      _
    // Predicated region
    $region18: #{tpu_custom_call.1} parent=1 // pred_check
      _
    $region19: #{tpu_custom_call.1} parent=1 // pred_check_branch
      %7581 = sbr.rel (0) target = $region21
    $region20: #{tpu_custom_call.1} parent=1 // pred_region
      %s7583 = ssub.s32 4096, 4096
      %7584 = vsyncadd [#allocation5], %s7583
      %s7585 = sshll.u32 [#allocation4], 4
      %s7586 = int_to_ptr.vmem [resolvable:$true] %s7585
      %7591 = dma.vmem_to_hbm [thread:$0]  %s7586, 4096, %s4, [#allocation5], 128, 128, 8
    $region21: #{tpu_custom_call.1} parent=1 // pred_fallthru
      _
    // Predicated region
    $region22: #{tpu_custom_call.1} parent=1 // pred_check
      _
    $region23: #{tpu_custom_call.1} parent=1 // pred_check_branch
      %7593 = sbr.rel (0) target = $region25
    $region24: #{tpu_custom_call.1} parent=1 // pred_region
      %7594 = dma.done [#allocation3], 4096
    $region25: #{tpu_custom_call.1} parent=1 // pred_fallthru
      _
    // Predicated region
    $region26: #{tpu_custom_call.1} parent=1 // pred_check
      _
    $region27: #{tpu_custom_call.1} parent=1 // pred_check_branch
      %7596 = sbr.rel (0) target = $region29
    $region28: #{tpu_custom_call.1} parent=1 // pred_region
      %7597 = dma.done [#allocation5], 4096
    $region29: #{tpu_custom_call.1} parent=1 // pred_fallthru
      _
    %7598 = vsyncpa [#allocation3], 1
    %7599 = vsyncpa [#allocation5], 1

</llo_original>
